<compile_context>
chip_gen: v5e
topology: v5e:2x2
jax: 0.10.0
libtpu: 0.0.40
codegen_flags: <defaults>
</compile_context>

<pallas_src>
import math

import jax
import jax.numpy as jnp
import numpy as np
from jax.experimental import pallas as pl
from jax.experimental.pallas import tpu as pltpu


OUT_PAD = 128  # lane-dense padded output width (column 0 holds the result)

KERNEL_PARAM_NAMES = [
    "pe",
    "price_w", "price_b", "esg_w", "esg_b",
    "enc_w_qkv", "enc_b_qkv", "enc_w_o", "enc_b_o",
    "enc_w_ff1", "enc_b_ff1", "enc_w_ff2", "enc_b_ff2",
    "enc_ln1_g", "enc_ln1_b", "enc_ln2_g", "enc_ln2_b",
    "ca_w_q", "ca_b_q", "ca_w_kv", "ca_b_kv", "ca_w_o", "ca_b_o",
    "grn_w_fc1", "grn_b_fc1", "grn_w_fc2", "grn_b_fc2",
    "grn_w_gate", "grn_b_gate",
    "fn_g", "fn_b",
    "dec_w_pad", "dec_b_pad",
]


# ----------------------------------------------------------------------------
# In-kernel helpers
# ----------------------------------------------------------------------------

def _mm(a, b):
    return jnp.dot(a, b, preferred_element_type=jnp.float32)


def _layer_norm(h, g, b, eps=1e-5):
    mu = jnp.mean(h, axis=-1, keepdims=True)
    var = jnp.mean(jnp.square(h - mu), axis=-1, keepdims=True)
    return (h - mu) * jax.lax.rsqrt(var + eps) * g + b


def _split_heads(x2, B, T, H, hd):
    """(B*T, H*hd) -> (B*H, T, hd) with PyTorch head ordering (feature = h*hd+d)."""
    return jnp.swapaxes(x2.reshape(B, T, H, hd), 1, 2).reshape(B * H, T, hd)


def _merge_heads(x3, B, T, H, hd):
    """(B*H, T, hd) -> (B*T, H*hd), inverse of _split_heads."""
    return jnp.swapaxes(x3.reshape(B, H, T, hd), 1, 2).reshape(B * T, H * hd)


def _attention(q2, k2, v2, w_o, b_o, B, Tq, Tk, H, D):
    """Multi-head scaled-dot-product attention on already-projected q/k/v.

    q2: (B*Tq, D), k2/v2: (B*Tk, D).  Heads are folded into the batch dim so
    scores/context are two batched einsums; the output projection is a single
    matmul against the unsplit W_o.  Returns (B*Tq, D).
    """
    hd = D // H
    scale = 1.0 / math.sqrt(hd)

    q = _split_heads(q2, B, Tq, H, hd)          # (B*H, Tq, hd)
    k = _split_heads(k2, B, Tk, H, hd)          # (B*H, Tk, hd)
    v = _split_heads(v2, B, Tk, H, hd)          # (B*H, Tk, hd)

    s = jnp.einsum('bqd,bkd->bqk', q, k,
                   preferred_element_type=jnp.float32) * scale     # (B*H, Tq, Tk)
    s = s - jnp.max(s, axis=-1, keepdims=True)
    e = jnp.exp(s)
    p = e * pl.reciprocal(jnp.sum(e, axis=-1, keepdims=True), approx=True)
    o = jnp.einsum('bqk,bkd->bqd', p, v,
                   preferred_element_type=jnp.float32)             # (B*H, Tq, hd)
    o = _merge_heads(o, B, Tq, H, hd)                              # (B*Tq, D)
    return _mm(o, w_o) + b_o


def _encoder_layer(h, refs, l, B, S, H, D):
    """Post-norm TransformerEncoderLayer (relu activation), static layer index l.

    h: (B*S, D).  Weights are loaded from Refs at point of use (per-layer slice).
    """
    qkv = _mm(h, refs["enc_w_qkv"][l]) + refs["enc_b_qkv"][l]      # (B*S, 3D)
    attn = _attention(qkv[:, :D], qkv[:, D:2 * D], qkv[:, 2 * D:],
                      refs["enc_w_o"][l], refs["enc_b_o"][l],
                      B, S, S, H, D)
    h = _layer_norm(h + attn, refs["enc_ln1_g"][l], refs["enc_ln1_b"][l])
    ff = jnp.maximum(_mm(h, refs["enc_w_ff1"][l]) + refs["enc_b_ff1"][l], 0.0)
    ff = _mm(ff, refs["enc_w_ff2"][l]) + refs["enc_b_ff2"][l]
    h = _layer_norm(h + ff, refs["enc_ln2_g"][l], refs["enc_ln2_b"][l])
    return h


def _forward_from_refs(price, esg, refs, cfg):
    """Full CrossModalTransformer forward for the whole batch (inside kernel).

    price: (B, S, price_size), esg: (B, S, esg_size); refs: dict of param Refs.
    Returns lane-padded output (B, OUT_PAD) whose column 0 is the prediction.
    """
    B, S, P = price.shape
    E = esg.shape[-1]
    D = cfg["d_model"]
    H = cfg["nhead"]
    L = cfg["num_layers"]

    pe = refs["pe"][...]                                           # (S, D)

    # modality projections + sinusoidal positional encoding (dropout == identity)
    hp = _mm(price.reshape(B * S, P), refs["price_w"][...]) + refs["price_b"][...]
    hp = (hp.reshape(B, S, D) + pe).reshape(B * S, D)
    he = _mm(esg.reshape(B * S, E), refs["esg_w"][...]) + refs["esg_b"][...]
    he = (he.reshape(B, S, D) + pe).reshape(B * S, D)

    # price encoder uses layers [0, L), esg encoder uses layers [L, 2L)
    for l in range(L):
        hp = _encoder_layer(hp, refs, l, B, S, H, D)
    for l in range(L, 2 * L):
        he = _encoder_layer(he, refs, l, B, S, H, D)

    price_last = hp.reshape(B, S, D)[:, S - 1, :]                  # (B, D)

    # cross attention: query = last price step, keys/values = ESG sequence
    q2 = _mm(price_last, refs["ca_w_q"][...]) + refs["ca_b_q"][...]          # (B, D)
    kv = _mm(he, refs["ca_w_kv"][...]) + refs["ca_b_kv"][...]                # (B*S, 2D)
    att = _attention(q2, kv[:, :D], kv[:, D:],
                     refs["ca_w_o"][...], refs["ca_b_o"][...],
                     B, 1, S, H, D)                                          # (B, D)

    # Gated residual network
    a1 = _mm(att, refs["grn_w_fc1"][...]) + refs["grn_b_fc1"][...]
    a1 = jnp.where(a1 > 0, a1, jnp.exp(jnp.minimum(a1, 0.0)) - 1.0)   # ELU(alpha=1)
    x2 = _mm(a1, refs["grn_w_fc2"][...]) + refs["grn_b_fc2"][...]
    z = _mm(att, refs["grn_w_gate"][...]) + refs["grn_b_gate"][...]
    g = pl.reciprocal(1.0 + jnp.exp(-z), approx=True)                 # sigmoid
    fused = g * x2 + (1.0 - g) * price_last

    normed = _layer_norm(fused, refs["fn_g"][...], refs["fn_b"][...])
    return _mm(normed, refs["dec_w_pad"][...]) + refs["dec_b_pad"][...]   # (B, OUT_PAD)


# ----------------------------------------------------------------------------
# Wrapper
# ----------------------------------------------------------------------------

def _pad_decoder(params):
    """Zero-pad the (D,1) decoder to 128 output lanes for a lane-dense store."""
    D = params["dec_w"].shape[0]
    dec_w_pad = jnp.zeros((D, OUT_PAD), jnp.float32).at[:, :1].set(params["dec_w"])
    dec_b_pad = jnp.zeros((1, OUT_PAD), jnp.float32).at[:, :1].set(params["dec_b"])
    return dec_w_pad, dec_b_pad


def cross_modal_forward(x, params, cfg):
    """Pallas wrapper: x [B, S, input_size] -> [B, 1]."""
    B, S, _ = x.shape
    P = cfg["price_size"]

    # split modalities on the host side (keeps narrow lane slices out of the kernel)
    price = x[:, :, :P]
    esg = x[:, :, P:]

    kp = dict(params)
    kp["dec_w_pad"], kp["dec_b_pad"] = _pad_decoder(params)
    param_list = [kp[n] for n in KERNEL_PARAM_NAMES]

    def kernel(price_ref, esg_ref, *rest):
        out_ref = rest[-1]
        refs = dict(zip(KERNEL_PARAM_NAMES, rest[:-1]))
        out_ref[...] = _forward_from_refs(price_ref[...], esg_ref[...], refs, cfg)

    def _full(a):
        nd = a.ndim
        return pl.BlockSpec(a.shape, lambda i, _nd=nd: (0,) * _nd)

    out_pad = pl.pallas_call(
        kernel,
        grid=(1,),                       # single invocation: whole batch at once
        in_specs=[_full(price), _full(esg)] + [_full(a) for a in param_list],
        out_specs=pl.BlockSpec((B, OUT_PAD), lambda i: (0, 0)),
        out_shape=jax.ShapeDtypeStruct((B, OUT_PAD), jnp.float32),
        compiler_params=pltpu.CompilerParams(
            dimension_semantics=("arbitrary",),
            # vmem_limit_bytes: raise here first when D/DFF grow (v5e/v6e).
        ),
    )(price, esg, *param_list)

    return out_pad[:, :1]


# ----------------------------------------------------------------------------
# Independent pure-JAX reference (mirrors the PyTorch module's semantics)
# ----------------------------------------------------------------------------

def reference_forward(x, params, cfg):
    P = cfg["price_size"]
    D = cfg["d_model"]
    H = cfg["nhead"]
    L = cfg["num_layers"]
    hd = D // H

    price = x[..., :P]
    esg = x[..., P:]

    def linear(h, w, b):
        return h @ w + b

    def layer_norm(h, g, b, eps=1e-5):
        mu = h.mean(-1, keepdims=True)
        var = ((h - mu) ** 2).mean(-1, keepdims=True)
        return (h - mu) / jnp.sqrt(var + eps) * g + b

    def mha(q_in, kv_in, w_q, b_q, w_k, b_k, w_v, b_v, w_o, b_o):
        Bq, Tq, _ = q_in.shape
        Tk = kv_in.shape[1]
        q = linear(q_in, w_q, b_q).reshape(Bq, Tq, H, hd).transpose(0, 2, 1, 3)
        k = linear(kv_in, w_k, b_k).reshape(Bq, Tk, H, hd).transpose(0, 2, 1, 3)
        v = linear(kv_in, w_v, b_v).reshape(Bq, Tk, H, hd).transpose(0, 2, 1, 3)
        s = jnp.einsum('bhqd,bhkd->bhqk', q, k) / math.sqrt(hd)
        a = jax.nn.softmax(s, axis=-1)
        o = jnp.einsum('bhqk,bhkd->bhqd', a, v)
        o = o.transpose(0, 2, 1, 3).reshape(Bq, Tq, D)
        return linear(o, w_o, b_o)

    hp = linear(price, params["price_w"], params["price_b"]) + params["pe"]
    he = linear(esg, params["esg_w"], params["esg_b"]) + params["pe"]

    def enc_layer(h, l):
        w_qkv = params["enc_w_qkv"][l]
        b_qkv = params["enc_b_qkv"][l]
        wq, wk, wv = w_qkv[:, :D], w_qkv[:, D:2 * D], w_qkv[:, 2 * D:]
        bq, bk, bv = b_qkv[:, :D], b_qkv[:, D:2 * D], b_qkv[:, 2 * D:]
        attn = mha(h, h, wq, bq, wk, bk, wv, bv,
                   params["enc_w_o"][l], params["enc_b_o"][l])
        h = layer_norm(h + attn, params["enc_ln1_g"][l], params["enc_ln1_b"][l])
        ff = jax.nn.relu(linear(h, params["enc_w_ff1"][l], params["enc_b_ff1"][l]))
        ff = linear(ff, params["enc_w_ff2"][l], params["enc_b_ff2"][l])
        h = layer_norm(h + ff, params["enc_ln2_g"][l], params["enc_ln2_b"][l])
        return h

    for l in range(L):
        hp = enc_layer(hp, l)
    for l in range(L, 2 * L):
        he = enc_layer(he, l)

    query = hp[:, -1:, :]
    price_last = hp[:, -1, :]

    w_kv = params["ca_w_kv"]
    b_kv = params["ca_b_kv"]
    att = mha(query, he,
              params["ca_w_q"], params["ca_b_q"],
              w_kv[:, :D], b_kv[:, :D], w_kv[:, D:], b_kv[:, D:],
              params["ca_w_o"], params["ca_b_o"])[:, 0, :]

    z1 = att @ params["grn_w_fc1"] + params["grn_b_fc1"]
    x1 = jnp.where(z1 > 0, z1, jnp.expm1(jnp.minimum(z1, 0.0)))
    x2 = x1 @ params["grn_w_fc2"] + params["grn_b_fc2"]
    g = jax.nn.sigmoid(att @ params["grn_w_gate"] + params["grn_b_gate"])
    fused = g * x2 + (1.0 - g) * price_last

    normed = layer_norm(fused, params["fn_g"], params["fn_b"])
    return normed @ params["dec_w"] + params["dec_b"]


# ----------------------------------------------------------------------------
# Parameter construction
# ----------------------------------------------------------------------------

def make_positional_encoding(seq_len, d_model):
    pos = jnp.arange(seq_len, dtype=jnp.float32)[:, None]
    div = jnp.exp(jnp.arange(0, d_model, 2, dtype=jnp.float32)
                  * (-math.log(10000.0) / d_model))
    pe = jnp.zeros((seq_len, d_model), jnp.float32)
    pe = pe.at[:, 0::2].set(jnp.sin(pos * div))
    pe = pe.at[:, 1::2].set(jnp.cos(pos * div))
    return pe


def init_params(key, cfg, seq_len):
    D = cfg["d_model"]
    P = cfg["price_size"]
    E = cfg["esg_size"]
    DFF = cfg["dim_feedforward"]
    L2 = 2 * cfg["num_layers"]     # price encoder layers + esg encoder layers

    keys = iter(jax.random.split(key, 48))

    def w(shape, scale=0.1):
        return jax.random.normal(next(keys), shape, jnp.float32) * scale

    params = {
        "pe": make_positional_encoding(seq_len, D),
        "price_w": w((P, D)), "price_b": w((1, D)),
        "esg_w": w((E, D)), "esg_b": w((1, D)),
        # fused Q/K/V in-projection per layer (PyTorch in_proj layout: [q|k|v])
        "enc_w_qkv": w((L2, D, 3 * D)), "enc_b_qkv": w((L2, 1, 3 * D)),
        "enc_w_o": w((L2, D, D)), "enc_b_o": w((L2, 1, D)),
        "enc_w_ff1": w((L2, D, DFF)), "enc_b_ff1": w((L2, 1, DFF)),
        "enc_w_ff2": w((L2, DFF, D)), "enc_b_ff2": w((L2, 1, D)),
        "enc_ln1_g": jnp.ones((L2, 1, D), jnp.float32),
        "enc_ln1_b": jnp.zeros((L2, 1, D), jnp.float32),
        "enc_ln2_g": jnp.ones((L2, 1, D), jnp.float32),
        "enc_ln2_b": jnp.zeros((L2, 1, D), jnp.float32),
        "ca_w_q": w((D, D)), "ca_b_q": w((1, D)),
        "ca_w_kv": w((D, 2 * D)), "ca_b_kv": w((1, 2 * D)),
        "ca_w_o": w((D, D)), "ca_b_o": w((1, D)),
        "grn_w_fc1": w((D, D)), "grn_b_fc1": w((1, D)),
        "grn_w_fc2": w((D, D)), "grn_b_fc2": w((1, D)),
        "grn_w_gate": w((D, D)), "grn_b_gate": w((1, D)),
        "fn_g": jnp.ones((1, D), jnp.float32),
        "fn_b": jnp.zeros((1, D), jnp.float32),
        "dec_w": w((D, 1)), "dec_b": w((1, 1)),
    }
    return params


if __name__ == "__main__":
    B, S = 2, 8
    input_size, price_size = 6, 4
    cfg = dict(
        price_size=price_size,
        esg_size=input_size - price_size,
        d_model=32,
        nhead=4,
        num_layers=2,
        dim_feedforward=64,
    )

    key = jax.random.PRNGKey(0)
    kx, kparams = jax.random.split(key)
    x = jax.random.normal(kx, (B, S, input_size), dtype=jnp.float32)
    params = init_params(kparams, cfg, S)

    y = cross_modal_forward(x, params, cfg)
    y = jax.block_until_ready(y)
    assert y.shape == (B, 1)

    y_ref = reference_forward(x, params, cfg)
    # Tolerance covers pl.reciprocal(approx=True) in softmax / sigmoid.
    np.testing.assert_allclose(np.asarray(y), np.asarray(y_ref), rtol=5e-3, atol=5e-3)

    print("KERNEL_OK")
</pallas_src>

<mosaic_0001>
module attributes {stable_mosaic.version = 11 : i64} {
  func.func @kernel(%arg0: i32, %arg1: memref<2x8x4xf32, #tpu.memory_space<vmem>>, %arg2: memref<2x8x2xf32, #tpu.memory_space<vmem>>, %arg3: memref<8x32xf32, #tpu.memory_space<vmem>>, %arg4: memref<4x32xf32, #tpu.memory_space<vmem>>, %arg5: memref<1x32xf32, #tpu.memory_space<vmem>>, %arg6: memref<2x32xf32, #tpu.memory_space<vmem>>, %arg7: memref<1x32xf32, #tpu.memory_space<vmem>>, %arg8: memref<4x32x96xf32, #tpu.memory_space<vmem>>, %arg9: memref<4x1x96xf32, #tpu.memory_space<vmem>>, %arg10: memref<4x32x32xf32, #tpu.memory_space<vmem>>, %arg11: memref<4x1x32xf32, #tpu.memory_space<vmem>>, %arg12: memref<4x32x64xf32, #tpu.memory_space<vmem>>, %arg13: memref<4x1x64xf32, #tpu.memory_space<vmem>>, %arg14: memref<4x64x32xf32, #tpu.memory_space<vmem>>, %arg15: memref<4x1x32xf32, #tpu.memory_space<vmem>>, %arg16: memref<4x1x32xf32, #tpu.memory_space<vmem>>, %arg17: memref<4x1x32xf32, #tpu.memory_space<vmem>>, %arg18: memref<4x1x32xf32, #tpu.memory_space<vmem>>, %arg19: memref<4x1x32xf32, #tpu.memory_space<vmem>>, %arg20: memref<32x32xf32, #tpu.memory_space<vmem>>, %arg21: memref<1x32xf32, #tpu.memory_space<vmem>>, %arg22: memref<32x64xf32, #tpu.memory_space<vmem>>, %arg23: memref<1x64xf32, #tpu.memory_space<vmem>>, %arg24: memref<32x32xf32, #tpu.memory_space<vmem>>, %arg25: memref<1x32xf32, #tpu.memory_space<vmem>>, %arg26: memref<32x32xf32, #tpu.memory_space<vmem>>, %arg27: memref<1x32xf32, #tpu.memory_space<vmem>>, %arg28: memref<32x32xf32, #tpu.memory_space<vmem>>, %arg29: memref<1x32xf32, #tpu.memory_space<vmem>>, %arg30: memref<32x32xf32, #tpu.memory_space<vmem>>, %arg31: memref<1x32xf32, #tpu.memory_space<vmem>>, %arg32: memref<1x32xf32, #tpu.memory_space<vmem>>, %arg33: memref<1x32xf32, #tpu.memory_space<vmem>>, %arg34: memref<32x128xf32, #tpu.memory_space<vmem>>, %arg35: memref<1x128xf32, #tpu.memory_space<vmem>>, %arg36: memref<2x128xf32, #tpu.memory_space<vmem>>) attributes {dimension_semantics = [#tpu.dimension_semantics<arbitrary>], iteration_bounds = array<i64: 1>, scalar_prefetch = 0 : i64, scratch_operands = 0 : i64, tpu.core_type = #tpu.core_type<tc>, window_params = [{pipeline_mode = #tpu.pipeline_mode<synchronous>, transform_indices = @transform_0, window_bounds = array<i64: 2, 8, 4>}, {pipeline_mode = #tpu.pipeline_mode<synchronous>, transform_indices = @transform_1, window_bounds = array<i64: 2, 8, 2>}, {pipeline_mode = #tpu.pipeline_mode<synchronous>, transform_indices = @transform_2, window_bounds = array<i64: 8, 32>}, {pipeline_mode = #tpu.pipeline_mode<synchronous>, transform_indices = @transform_3, window_bounds = array<i64: 4, 32>}, {pipeline_mode = #tpu.pipeline_mode<synchronous>, transform_indices = @transform_4, window_bounds = array<i64: 1, 32>}, {pipeline_mode = #tpu.pipeline_mode<synchronous>, transform_indices = @transform_5, window_bounds = array<i64: 2, 32>}, {pipeline_mode = #tpu.pipeline_mode<synchronous>, transform_indices = @transform_6, window_bounds = array<i64: 1, 32>}, {pipeline_mode = #tpu.pipeline_mode<synchronous>, transform_indices = @transform_7, window_bounds = array<i64: 4, 32, 96>}, {pipeline_mode = #tpu.pipeline_mode<synchronous>, transform_indices = @transform_8, window_bounds = array<i64: 4, 1, 96>}, {pipeline_mode = #tpu.pipeline_mode<synchronous>, transform_indices = @transform_9, window_bounds = array<i64: 4, 32, 32>}, {pipeline_mode = #tpu.pipeline_mode<synchronous>, transform_indices = @transform_10, window_bounds = array<i64: 4, 1, 32>}, {pipeline_mode = #tpu.pipeline_mode<synchronous>, transform_indices = @transform_11, window_bounds = array<i64: 4, 32, 64>}, {pipeline_mode = #tpu.pipeline_mode<synchronous>, transform_indices = @transform_12, window_bounds = array<i64: 4, 1, 64>}, {pipeline_mode = #tpu.pipeline_mode<synchronous>, transform_indices = @transform_13, window_bounds = array<i64: 4, 64, 32>}, {pipeline_mode = #tpu.pipeline_mode<synchronous>, transform_indices = @transform_14, window_bounds = array<i64: 4, 1, 32>}, {pipeline_mode = #tpu.pipeline_mode<synchronous>, transform_indices = @transform_15, window_bounds = array<i64: 4, 1, 32>}, {pipeline_mode = #tpu.pipeline_mode<synchronous>, transform_indices = @transform_16, window_bounds = array<i64: 4, 1, 32>}, {pipeline_mode = #tpu.pipeline_mode<synchronous>, transform_indices = @transform_17, window_bounds = array<i64: 4, 1, 32>}, {pipeline_mode = #tpu.pipeline_mode<synchronous>, transform_indices = @transform_18, window_bounds = array<i64: 4, 1, 32>}, {pipeline_mode = #tpu.pipeline_mode<synchronous>, transform_indices = @transform_19, window_bounds = array<i64: 32, 32>}, {pipeline_mode = #tpu.pipeline_mode<synchronous>, transform_indices = @transform_20, window_bounds = array<i64: 1, 32>}, {pipeline_mode = #tpu.pipeline_mode<synchronous>, transform_indices = @transform_21, window_bounds = array<i64: 32, 64>}, {pipeline_mode = #tpu.pipeline_mode<synchronous>, transform_indices = @transform_22, window_bounds = array<i64: 1, 64>}, {pipeline_mode = #tpu.pipeline_mode<synchronous>, transform_indices = @transform_23, window_bounds = array<i64: 32, 32>}, {pipeline_mode = #tpu.pipeline_mode<synchronous>, transform_indices = @transform_24, window_bounds = array<i64: 1, 32>}, {pipeline_mode = #tpu.pipeline_mode<synchronous>, transform_indices = @transform_25, window_bounds = array<i64: 32, 32>}, {pipeline_mode = #tpu.pipeline_mode<synchronous>, transform_indices = @transform_26, window_bounds = array<i64: 1, 32>}, {pipeline_mode = #tpu.pipeline_mode<synchronous>, transform_indices = @transform_27, window_bounds = array<i64: 32, 32>}, {pipeline_mode = #tpu.pipeline_mode<synchronous>, transform_indices = @transform_28, window_bounds = array<i64: 1, 32>}, {pipeline_mode = #tpu.pipeline_mode<synchronous>, transform_indices = @transform_29, window_bounds = array<i64: 32, 32>}, {pipeline_mode = #tpu.pipeline_mode<synchronous>, transform_indices = @transform_30, window_bounds = array<i64: 1, 32>}, {pipeline_mode = #tpu.pipeline_mode<synchronous>, transform_indices = @transform_31, window_bounds = array<i64: 1, 32>}, {pipeline_mode = #tpu.pipeline_mode<synchronous>, transform_indices = @transform_32, window_bounds = array<i64: 1, 32>}, {pipeline_mode = #tpu.pipeline_mode<synchronous>, transform_indices = @transform_33, window_bounds = array<i64: 32, 128>}, {pipeline_mode = #tpu.pipeline_mode<synchronous>, transform_indices = @transform_34, window_bounds = array<i64: 1, 128>}, {pipeline_mode = #tpu.pipeline_mode<synchronous>, transform_indices = @transform_35, window_bounds = array<i64: 2, 128>}]} {
    %c0 = arith.constant 0 : index
    %c0_0 = arith.constant 0 : index
    %c0_1 = arith.constant 0 : index
    %0 = vector.load %arg1[%c0, %c0_0, %c0_1] : memref<2x8x4xf32, #tpu.memory_space<vmem>>, vector<2x8x4xf32>
    %c0_2 = arith.constant 0 : index
    %c0_3 = arith.constant 0 : index
    %c0_4 = arith.constant 0 : index
    %1 = vector.load %arg2[%c0_2, %c0_3, %c0_4] : memref<2x8x2xf32, #tpu.memory_space<vmem>>, vector<2x8x2xf32>
    %c0_5 = arith.constant 0 : index
    %c0_6 = arith.constant 0 : index
    %2 = vector.load %arg3[%c0_5, %c0_6] : memref<8x32xf32, #tpu.memory_space<vmem>>, vector<8x32xf32>
    %3 = vector.shape_cast %0 : vector<2x8x4xf32> to vector<16x4xf32>
    %c0_7 = arith.constant 0 : index
    %c0_8 = arith.constant 0 : index
    %4 = vector.load %arg4[%c0_7, %c0_8] : memref<4x32xf32, #tpu.memory_space<vmem>>, vector<4x32xf32>
    %cst = arith.constant dense<0.000000e+00> : vector<16x32xf32>
    %5 = tpu.matmul %3, %4, %cst {dimension_numbers = #tpu.dot_dimension_numbers<[1], [0], [0], [1], [0, 0, 1, 1], [], []>} : vector<16x4xf32>, vector<4x32xf32>, vector<16x32xf32> -> vector<16x32xf32>
    %c0_9 = arith.constant 0 : index
    %c0_10 = arith.constant 0 : index
    %6 = vector.load %arg5[%c0_9, %c0_10] : memref<1x32xf32, #tpu.memory_space<vmem>>, vector<1x32xf32>
    %7 = vector.broadcast %6 : vector<1x32xf32> to vector<16x32xf32>
    %8 = arith.addf %5, %7 : vector<16x32xf32>
    %9 = vector.shape_cast %8 : vector<16x32xf32> to vector<2x8x32xf32>
    %10 = vector.shape_cast %2 : vector<8x32xf32> to vector<1x8x32xf32>
    %11 = vector.broadcast %10 : vector<1x8x32xf32> to vector<2x8x32xf32>
    %12 = arith.addf %9, %11 : vector<2x8x32xf32>
    %13 = vector.shape_cast %12 : vector<2x8x32xf32> to vector<16x32xf32>
    %14 = vector.shape_cast %1 : vector<2x8x2xf32> to vector<16x2xf32>
    %c0_11 = arith.constant 0 : index
    %c0_12 = arith.constant 0 : index
    %15 = vector.load %arg6[%c0_11, %c0_12] : memref<2x32xf32, #tpu.memory_space<vmem>>, vector<2x32xf32>
    %cst_13 = arith.constant dense<0.000000e+00> : vector<16x32xf32>
    %16 = tpu.matmul %14, %15, %cst_13 {dimension_numbers = #tpu.dot_dimension_numbers<[1], [0], [0], [1], [0, 0, 1, 1], [], []>} : vector<16x2xf32>, vector<2x32xf32>, vector<16x32xf32> -> vector<16x32xf32>
    %c0_14 = arith.constant 0 : index
    %c0_15 = arith.constant 0 : index
    %17 = vector.load %arg7[%c0_14, %c0_15] : memref<1x32xf32, #tpu.memory_space<vmem>>, vector<1x32xf32>
    %18 = vector.broadcast %17 : vector<1x32xf32> to vector<16x32xf32>
    %19 = arith.addf %16, %18 : vector<16x32xf32>
    %20 = vector.shape_cast %19 : vector<16x32xf32> to vector<2x8x32xf32>
    %21 = vector.shape_cast %2 : vector<8x32xf32> to vector<1x8x32xf32>
    %22 = vector.broadcast %21 : vector<1x8x32xf32> to vector<2x8x32xf32>
    %23 = arith.addf %20, %22 : vector<2x8x32xf32>
    %24 = vector.shape_cast %23 : vector<2x8x32xf32> to vector<16x32xf32>
    %c0_16 = arith.constant 0 : index
    %c0_17 = arith.constant 0 : index
    %c0_18 = arith.constant 0 : index
    %25 = vector.load %arg8[%c0_16, %c0_17, %c0_18] : memref<4x32x96xf32, #tpu.memory_space<vmem>>, vector<1x32x96xf32>
    %26 = vector.shape_cast %25 : vector<1x32x96xf32> to vector<32x96xf32>
    %cst_19 = arith.constant dense<0.000000e+00> : vector<16x96xf32>
    %27 = tpu.matmul %13, %26, %cst_19 {dimension_numbers = #tpu.dot_dimension_numbers<[1], [0], [0], [1], [0, 0, 1, 1], [], []>} : vector<16x32xf32>, vector<32x96xf32>, vector<16x96xf32> -> vector<16x96xf32>
    %c0_20 = arith.constant 0 : index
    %c0_21 = arith.constant 0 : index
    %c0_22 = arith.constant 0 : index
    %28 = vector.load %arg9[%c0_20, %c0_21, %c0_22] : memref<4x1x96xf32, #tpu.memory_space<vmem>>, vector<1x1x96xf32>
    %29 = vector.shape_cast %28 : vector<1x1x96xf32> to vector<1x96xf32>
    %30 = vector.broadcast %29 : vector<1x96xf32> to vector<16x96xf32>
    %31 = arith.addf %27, %30 : vector<16x96xf32>
    %32 = vector.extract_strided_slice %31 {offsets = [0, 0], sizes = [16, 32], strides = [1, 1]} : vector<16x96xf32> to vector<16x32xf32>
    %33 = vector.extract_strided_slice %31 {offsets = [0, 32], sizes = [16, 32], strides = [1, 1]} : vector<16x96xf32> to vector<16x32xf32>
    %34 = vector.extract_strided_slice %31 {offsets = [0, 64], sizes = [16, 32], strides = [1, 1]} : vector<16x96xf32> to vector<16x32xf32>
    %c0_23 = arith.constant 0 : index
    %c0_24 = arith.constant 0 : index
    %c0_25 = arith.constant 0 : index
    %35 = vector.load %arg10[%c0_23, %c0_24, %c0_25] : memref<4x32x32xf32, #tpu.memory_space<vmem>>, vector<1x32x32xf32>
    %36 = vector.shape_cast %35 : vector<1x32x32xf32> to vector<32x32xf32>
    %c0_26 = arith.constant 0 : index
    %c0_27 = arith.constant 0 : index
    %c0_28 = arith.constant 0 : index
    %37 = vector.load %arg11[%c0_26, %c0_27, %c0_28] : memref<4x1x32xf32, #tpu.memory_space<vmem>>, vector<1x1x32xf32>
    %38 = vector.shape_cast %37 : vector<1x1x32xf32> to vector<1x32xf32>
    %39 = vector.shape_cast %32 : vector<16x32xf32> to vector<2x8x4x8xf32>
    %40 = tpu.transpose %39, [0, 2, 1, 3] : vector<2x8x4x8xf32> -> vector<2x4x8x8xf32>
    %41 = vector.shape_cast %40 : vector<2x4x8x8xf32> to vector<8x8x8xf32>
    %42 = vector.shape_cast %33 : vector<16x32xf32> to vector<2x8x4x8xf32>
    %43 = tpu.transpose %42, [0, 2, 1, 3] : vector<2x8x4x8xf32> -> vector<2x4x8x8xf32>
    %44 = vector.shape_cast %43 : vector<2x4x8x8xf32> to vector<8x8x8xf32>
    %45 = vector.shape_cast %34 : vector<16x32xf32> to vector<2x8x4x8xf32>
    %46 = tpu.transpose %45, [0, 2, 1, 3] : vector<2x8x4x8xf32> -> vector<2x4x8x8xf32>
    %47 = vector.shape_cast %46 : vector<2x4x8x8xf32> to vector<8x8x8xf32>
    "tpu.trace_start"() <{level = 10 : i32, message = "bqd,bkd->bqk"}> : () -> ()
    %cst_29 = arith.constant dense<0.000000e+00> : vector<8x8x8xf32>
    %48 = tpu.matmul %41, %44, %cst_29 {dimension_numbers = #tpu.dot_dimension_numbers<[2], [2], [1], [1], [0, 0, 0, 1, 1, 1], [0], [0]>} : vector<8x8x8xf32>, vector<8x8x8xf32>, vector<8x8x8xf32> -> vector<8x8x8xf32>
    "tpu.trace_stop"() : () -> ()
    %cst_30 = arith.constant 0.353553385 : f32
    %49 = vector.broadcast %cst_30 : f32 to vector<8x8x8xf32>
    %50 = arith.mulf %48, %49 : vector<8x8x8xf32>
    %cst_31 = arith.constant dense<0xFF800000> : vector<8x8xf32>
    %51 = vector.multi_reduction <maximumf>, %50, %cst_31 [2] : vector<8x8x8xf32> to vector<8x8xf32>
    %52 = vector.shape_cast %51 : vector<8x8xf32> to vector<8x8x1xf32>
    %53 = vector.broadcast %52 : vector<8x8x1xf32> to vector<8x8x8xf32>
    %54 = arith.subf %50, %53 : vector<8x8x8xf32>
    %55 = math.exp %54 : vector<8x8x8xf32>
    %cst_32 = arith.constant dense<0.000000e+00> : vector<8x8xf32>
    %56 = vector.multi_reduction <add>, %55, %cst_32 [2] : vector<8x8x8xf32> to vector<8x8xf32>
    %57 = vector.shape_cast %56 : vector<8x8xf32> to vector<8x8x1xf32>
    %58 = tpu.reciprocal %57 {approx = true} : vector<8x8x1xf32> -> vector<8x8x1xf32>
    %59 = vector.broadcast %58 : vector<8x8x1xf32> to vector<8x8x8xf32>
    %60 = arith.mulf %55, %59 : vector<8x8x8xf32>
    "tpu.trace_start"() <{level = 10 : i32, message = "bqk,bkd->bqd"}> : () -> ()
    %cst_33 = arith.constant dense<0.000000e+00> : vector<8x8x8xf32>
    %61 = tpu.matmul %60, %47, %cst_33 {dimension_numbers = #tpu.dot_dimension_numbers<[2], [1], [1], [2], [0, 0, 0, 1, 1, 2], [0], [0]>} : vector<8x8x8xf32>, vector<8x8x8xf32>, vector<8x8x8xf32> -> vector<8x8x8xf32>
    "tpu.trace_stop"() : () -> ()
    %62 = vector.shape_cast %61 : vector<8x8x8xf32> to vector<2x4x8x8xf32>
    %63 = tpu.transpose %62, [0, 2, 1, 3] : vector<2x4x8x8xf32> -> vector<2x8x4x8xf32>
    %64 = vector.shape_cast %63 : vector<2x8x4x8xf32> to vector<16x32xf32>
    %cst_34 = arith.constant dense<0.000000e+00> : vector<16x32xf32>
    %65 = tpu.matmul %64, %36, %cst_34 {dimension_numbers = #tpu.dot_dimension_numbers<[1], [0], [0], [1], [0, 0, 1, 1], [], []>} : vector<16x32xf32>, vector<32x32xf32>, vector<16x32xf32> -> vector<16x32xf32>
    %66 = vector.broadcast %38 : vector<1x32xf32> to vector<16x32xf32>
    %67 = arith.addf %65, %66 : vector<16x32xf32>
    %68 = arith.addf %13, %67 : vector<16x32xf32>
    %c0_35 = arith.constant 0 : index
    %c0_36 = arith.constant 0 : index
    %c0_37 = arith.constant 0 : index
    %69 = vector.load %arg16[%c0_35, %c0_36, %c0_37] : memref<4x1x32xf32, #tpu.memory_space<vmem>>, vector<1x1x32xf32>
    %70 = vector.shape_cast %69 : vector<1x1x32xf32> to vector<1x32xf32>
    %c0_38 = arith.constant 0 : index
    %c0_39 = arith.constant 0 : index
    %c0_40 = arith.constant 0 : index
    %71 = vector.load %arg17[%c0_38, %c0_39, %c0_40] : memref<4x1x32xf32, #tpu.memory_space<vmem>>, vector<1x1x32xf32>
    %72 = vector.shape_cast %71 : vector<1x1x32xf32> to vector<1x32xf32>
    %cst_41 = arith.constant dense<0.000000e+00> : vector<16xf32>
    %73 = vector.multi_reduction <add>, %68, %cst_41 [1] : vector<16x32xf32> to vector<16xf32>
    %74 = vector.shape_cast %73 : vector<16xf32> to vector<16x1xf32>
    %cst_42 = arith.constant 3.200000e+01 : f32
    %75 = vector.broadcast %cst_42 : f32 to vector<16x1xf32>
    %76 = arith.divf %74, %75 : vector<16x1xf32>
    %77 = vector.broadcast %76 : vector<16x1xf32> to vector<16x32xf32>
    %78 = arith.subf %68, %77 : vector<16x32xf32>
    %79 = arith.mulf %78, %78 : vector<16x32xf32>
    %cst_43 = arith.constant dense<0.000000e+00> : vector<16xf32>
    %80 = vector.multi_reduction <add>, %79, %cst_43 [1] : vector<16x32xf32> to vector<16xf32>
    %81 = vector.shape_cast %80 : vector<16xf32> to vector<16x1xf32>
    %cst_44 = arith.constant 3.200000e+01 : f32
    %82 = vector.broadcast %cst_44 : f32 to vector<16x1xf32>
    %83 = arith.divf %81, %82 : vector<16x1xf32>
    %84 = vector.broadcast %76 : vector<16x1xf32> to vector<16x32xf32>
    %85 = arith.subf %68, %84 : vector<16x32xf32>
    %cst_45 = arith.constant 9.99999974E-6 : f32
    %86 = vector.broadcast %cst_45 : f32 to vector<16x1xf32>
    %87 = arith.addf %83, %86 : vector<16x1xf32>
    %88 = math.rsqrt %87 : vector<16x1xf32>
    %89 = vector.broadcast %88 : vector<16x1xf32> to vector<16x32xf32>
    %90 = arith.mulf %85, %89 : vector<16x32xf32>
    %91 = vector.broadcast %70 : vector<1x32xf32> to vector<16x32xf32>
    %92 = arith.mulf %90, %91 : vector<16x32xf32>
    %93 = vector.broadcast %72 : vector<1x32xf32> to vector<16x32xf32>
    %94 = arith.addf %92, %93 : vector<16x32xf32>
    %c0_46 = arith.constant 0 : index
    %c0_47 = arith.constant 0 : index
    %c0_48 = arith.constant 0 : index
    %95 = vector.load %arg12[%c0_46, %c0_47, %c0_48] : memref<4x32x64xf32, #tpu.memory_space<vmem>>, vector<1x32x64xf32>
    %96 = vector.shape_cast %95 : vector<1x32x64xf32> to vector<32x64xf32>
    %cst_49 = arith.constant dense<0.000000e+00> : vector<16x64xf32>
    %97 = tpu.matmul %94, %96, %cst_49 {dimension_numbers = #tpu.dot_dimension_numbers<[1], [0], [0], [1], [0, 0, 1, 1], [], []>} : vector<16x32xf32>, vector<32x64xf32>, vector<16x64xf32> -> vector<16x64xf32>
    %c0_50 = arith.constant 0 : index
    %c0_51 = arith.constant 0 : index
    %c0_52 = arith.constant 0 : index
    %98 = vector.load %arg13[%c0_50, %c0_51, %c0_52] : memref<4x1x64xf32, #tpu.memory_space<vmem>>, vector<1x1x64xf32>
    %99 = vector.shape_cast %98 : vector<1x1x64xf32> to vector<1x64xf32>
    %100 = vector.broadcast %99 : vector<1x64xf32> to vector<16x64xf32>
    %101 = arith.addf %97, %100 : vector<16x64xf32>
    %cst_53 = arith.constant 0.000000e+00 : f32
    %102 = vector.broadcast %cst_53 : f32 to vector<16x64xf32>
    %103 = arith.maximumf %101, %102 : vector<16x64xf32>
    %c0_54 = arith.constant 0 : index
    %c0_55 = arith.constant 0 : index
    %c0_56 = arith.constant 0 : index
    %104 = vector.load %arg14[%c0_54, %c0_55, %c0_56] : memref<4x64x32xf32, #tpu.memory_space<vmem>>, vector<1x64x32xf32>
    %105 = vector.shape_cast %104 : vector<1x64x32xf32> to vector<64x32xf32>
    %cst_57 = arith.constant dense<0.000000e+00> : vector<16x32xf32>
    %106 = tpu.matmul %103, %105, %cst_57 {dimension_numbers = #tpu.dot_dimension_numbers<[1], [0], [0], [1], [0, 0, 1, 1], [], []>} : vector<16x64xf32>, vector<64x32xf32>, vector<16x32xf32> -> vector<16x32xf32>
    %c0_58 = arith.constant 0 : index
    %c0_59 = arith.constant 0 : index
    %c0_60 = arith.constant 0 : index
    %107 = vector.load %arg15[%c0_58, %c0_59, %c0_60] : memref<4x1x32xf32, #tpu.memory_space<vmem>>, vector<1x1x32xf32>
    %108 = vector.shape_cast %107 : vector<1x1x32xf32> to vector<1x32xf32>
    %109 = vector.broadcast %108 : vector<1x32xf32> to vector<16x32xf32>
    %110 = arith.addf %106, %109 : vector<16x32xf32>
    %111 = arith.addf %94, %110 : vector<16x32xf32>
    %c0_61 = arith.constant 0 : index
    %c0_62 = arith.constant 0 : index
    %c0_63 = arith.constant 0 : index
    %112 = vector.load %arg18[%c0_61, %c0_62, %c0_63] : memref<4x1x32xf32, #tpu.memory_space<vmem>>, vector<1x1x32xf32>
    %113 = vector.shape_cast %112 : vector<1x1x32xf32> to vector<1x32xf32>
    %c0_64 = arith.constant 0 : index
    %c0_65 = arith.constant 0 : index
    %c0_66 = arith.constant 0 : index
    %114 = vector.load %arg19[%c0_64, %c0_65, %c0_66] : memref<4x1x32xf32, #tpu.memory_space<vmem>>, vector<1x1x32xf32>
    %115 = vector.shape_cast %114 : vector<1x1x32xf32> to vector<1x32xf32>
    %cst_67 = arith.constant dense<0.000000e+00> : vector<16xf32>
    %116 = vector.multi_reduction <add>, %111, %cst_67 [1] : vector<16x32xf32> to vector<16xf32>
    %117 = vector.shape_cast %116 : vector<16xf32> to vector<16x1xf32>
    %cst_68 = arith.constant 3.200000e+01 : f32
    %118 = vector.broadcast %cst_68 : f32 to vector<16x1xf32>
    %119 = arith.divf %117, %118 : vector<16x1xf32>
    %120 = vector.broadcast %119 : vector<16x1xf32> to vector<16x32xf32>
    %121 = arith.subf %111, %120 : vector<16x32xf32>
    %122 = arith.mulf %121, %121 : vector<16x32xf32>
    %cst_69 = arith.constant dense<0.000000e+00> : vector<16xf32>
    %123 = vector.multi_reduction <add>, %122, %cst_69 [1] : vector<16x32xf32> to vector<16xf32>
    %124 = vector.shape_cast %123 : vector<16xf32> to vector<16x1xf32>
    %cst_70 = arith.constant 3.200000e+01 : f32
    %125 = vector.broadcast %cst_70 : f32 to vector<16x1xf32>
    %126 = arith.divf %124, %125 : vector<16x1xf32>
    %127 = vector.broadcast %119 : vector<16x1xf32> to vector<16x32xf32>
    %128 = arith.subf %111, %127 : vector<16x32xf32>
    %cst_71 = arith.constant 9.99999974E-6 : f32
    %129 = vector.broadcast %cst_71 : f32 to vector<16x1xf32>
    %130 = arith.addf %126, %129 : vector<16x1xf32>
    %131 = math.rsqrt %130 : vector<16x1xf32>
    %132 = vector.broadcast %131 : vector<16x1xf32> to vector<16x32xf32>
    %133 = arith.mulf %128, %132 : vector<16x32xf32>
    %134 = vector.broadcast %113 : vector<1x32xf32> to vector<16x32xf32>
    %135 = arith.mulf %133, %134 : vector<16x32xf32>
    %136 = vector.broadcast %115 : vector<1x32xf32> to vector<16x32xf32>
    %137 = arith.addf %135, %136 : vector<16x32xf32>
    %c1 = arith.constant 1 : index
    %c0_72 = arith.constant 0 : index
    %c0_73 = arith.constant 0 : index
    %138 = vector.load %arg8[%c1, %c0_72, %c0_73] : memref<4x32x96xf32, #tpu.memory_space<vmem>>, vector<1x32x96xf32>
    %139 = vector.shape_cast %138 : vector<1x32x96xf32> to vector<32x96xf32>
    %cst_74 = arith.constant dense<0.000000e+00> : vector<16x96xf32>
    %140 = tpu.matmul %137, %139, %cst_74 {dimension_numbers = #tpu.dot_dimension_numbers<[1], [0], [0], [1], [0, 0, 1, 1], [], []>} : vector<16x32xf32>, vector<32x96xf32>, vector<16x96xf32> -> vector<16x96xf32>
    %c1_75 = arith.constant 1 : index
    %c0_76 = arith.constant 0 : index
    %c0_77 = arith.constant 0 : index
    %141 = vector.load %arg9[%c1_75, %c0_76, %c0_77] : memref<4x1x96xf32, #tpu.memory_space<vmem>>, vector<1x1x96xf32>
    %142 = vector.shape_cast %141 : vector<1x1x96xf32> to vector<1x96xf32>
    %143 = vector.broadcast %142 : vector<1x96xf32> to vector<16x96xf32>
    %144 = arith.addf %140, %143 : vector<16x96xf32>
    %145 = vector.extract_strided_slice %144 {offsets = [0, 0], sizes = [16, 32], strides = [1, 1]} : vector<16x96xf32> to vector<16x32xf32>
    %146 = vector.extract_strided_slice %144 {offsets = [0, 32], sizes = [16, 32], strides = [1, 1]} : vector<16x96xf32> to vector<16x32xf32>
    %147 = vector.extract_strided_slice %144 {offsets = [0, 64], sizes = [16, 32], strides = [1, 1]} : vector<16x96xf32> to vector<16x32xf32>
    %c1_78 = arith.constant 1 : index
    %c0_79 = arith.constant 0 : index
    %c0_80 = arith.constant 0 : index
    %148 = vector.load %arg10[%c1_78, %c0_79, %c0_80] : memref<4x32x32xf32, #tpu.memory_space<vmem>>, vector<1x32x32xf32>
    %149 = vector.shape_cast %148 : vector<1x32x32xf32> to vector<32x32xf32>
    %c1_81 = arith.constant 1 : index
    %c0_82 = arith.constant 0 : index
    %c0_83 = arith.constant 0 : index
    %150 = vector.load %arg11[%c1_81, %c0_82, %c0_83] : memref<4x1x32xf32, #tpu.memory_space<vmem>>, vector<1x1x32xf32>
    %151 = vector.shape_cast %150 : vector<1x1x32xf32> to vector<1x32xf32>
    %152 = vector.shape_cast %145 : vector<16x32xf32> to vector<2x8x4x8xf32>
    %153 = tpu.transpose %152, [0, 2, 1, 3] : vector<2x8x4x8xf32> -> vector<2x4x8x8xf32>
    %154 = vector.shape_cast %153 : vector<2x4x8x8xf32> to vector<8x8x8xf32>
    %155 = vector.shape_cast %146 : vector<16x32xf32> to vector<2x8x4x8xf32>
    %156 = tpu.transpose %155, [0, 2, 1, 3] : vector<2x8x4x8xf32> -> vector<2x4x8x8xf32>
    %157 = vector.shape_cast %156 : vector<2x4x8x8xf32> to vector<8x8x8xf32>
    %158 = vector.shape_cast %147 : vector<16x32xf32> to vector<2x8x4x8xf32>
    %159 = tpu.transpose %158, [0, 2, 1, 3] : vector<2x8x4x8xf32> -> vector<2x4x8x8xf32>
    %160 = vector.shape_cast %159 : vector<2x4x8x8xf32> to vector<8x8x8xf32>
    "tpu.trace_start"() <{level = 10 : i32, message = "bqd,bkd->bqk"}> : () -> ()
    %cst_84 = arith.constant dense<0.000000e+00> : vector<8x8x8xf32>
    %161 = tpu.matmul %154, %157, %cst_84 {dimension_numbers = #tpu.dot_dimension_numbers<[2], [2], [1], [1], [0, 0, 0, 1, 1, 1], [0], [0]>} : vector<8x8x8xf32>, vector<8x8x8xf32>, vector<8x8x8xf32> -> vector<8x8x8xf32>
    "tpu.trace_stop"() : () -> ()
    %cst_85 = arith.constant 0.353553385 : f32
    %162 = vector.broadcast %cst_85 : f32 to vector<8x8x8xf32>
    %163 = arith.mulf %161, %162 : vector<8x8x8xf32>
    %cst_86 = arith.constant dense<0xFF800000> : vector<8x8xf32>
    %164 = vector.multi_reduction <maximumf>, %163, %cst_86 [2] : vector<8x8x8xf32> to vector<8x8xf32>
    %165 = vector.shape_cast %164 : vector<8x8xf32> to vector<8x8x1xf32>
    %166 = vector.broadcast %165 : vector<8x8x1xf32> to vector<8x8x8xf32>
    %167 = arith.subf %163, %166 : vector<8x8x8xf32>
    %168 = math.exp %167 : vector<8x8x8xf32>
    %cst_87 = arith.constant dense<0.000000e+00> : vector<8x8xf32>
    %169 = vector.multi_reduction <add>, %168, %cst_87 [2] : vector<8x8x8xf32> to vector<8x8xf32>
    %170 = vector.shape_cast %169 : vector<8x8xf32> to vector<8x8x1xf32>
    %171 = tpu.reciprocal %170 {approx = true} : vector<8x8x1xf32> -> vector<8x8x1xf32>
    %172 = vector.broadcast %171 : vector<8x8x1xf32> to vector<8x8x8xf32>
    %173 = arith.mulf %168, %172 : vector<8x8x8xf32>
    "tpu.trace_start"() <{level = 10 : i32, message = "bqk,bkd->bqd"}> : () -> ()
    %cst_88 = arith.constant dense<0.000000e+00> : vector<8x8x8xf32>
    %174 = tpu.matmul %173, %160, %cst_88 {dimension_numbers = #tpu.dot_dimension_numbers<[2], [1], [1], [2], [0, 0, 0, 1, 1, 2], [0], [0]>} : vector<8x8x8xf32>, vector<8x8x8xf32>, vector<8x8x8xf32> -> vector<8x8x8xf32>
    "tpu.trace_stop"() : () -> ()
    %175 = vector.shape_cast %174 : vector<8x8x8xf32> to vector<2x4x8x8xf32>
    %176 = tpu.transpose %175, [0, 2, 1, 3] : vector<2x4x8x8xf32> -> vector<2x8x4x8xf32>
    %177 = vector.shape_cast %176 : vector<2x8x4x8xf32> to vector<16x32xf32>
    %cst_89 = arith.constant dense<0.000000e+00> : vector<16x32xf32>
    %178 = tpu.matmul %177, %149, %cst_89 {dimension_numbers = #tpu.dot_dimension_numbers<[1], [0], [0], [1], [0, 0, 1, 1], [], []>} : vector<16x32xf32>, vector<32x32xf32>, vector<16x32xf32> -> vector<16x32xf32>
    %179 = vector.broadcast %151 : vector<1x32xf32> to vector<16x32xf32>
    %180 = arith.addf %178, %179 : vector<16x32xf32>
    %181 = arith.addf %137, %180 : vector<16x32xf32>
    %c1_90 = arith.constant 1 : index
    %c0_91 = arith.constant 0 : index
    %c0_92 = arith.constant 0 : index
    %182 = vector.load %arg16[%c1_90, %c0_91, %c0_92] : memref<4x1x32xf32, #tpu.memory_space<vmem>>, vector<1x1x32xf32>
    %183 = vector.shape_cast %182 : vector<1x1x32xf32> to vector<1x32xf32>
    %c1_93 = arith.constant 1 : index
    %c0_94 = arith.constant 0 : index
    %c0_95 = arith.constant 0 : index
    %184 = vector.load %arg17[%c1_93, %c0_94, %c0_95] : memref<4x1x32xf32, #tpu.memory_space<vmem>>, vector<1x1x32xf32>
    %185 = vector.shape_cast %184 : vector<1x1x32xf32> to vector<1x32xf32>
    %cst_96 = arith.constant dense<0.000000e+00> : vector<16xf32>
    %186 = vector.multi_reduction <add>, %181, %cst_96 [1] : vector<16x32xf32> to vector<16xf32>
    %187 = vector.shape_cast %186 : vector<16xf32> to vector<16x1xf32>
    %cst_97 = arith.constant 3.200000e+01 : f32
    %188 = vector.broadcast %cst_97 : f32 to vector<16x1xf32>
    %189 = arith.divf %187, %188 : vector<16x1xf32>
    %190 = vector.broadcast %189 : vector<16x1xf32> to vector<16x32xf32>
    %191 = arith.subf %181, %190 : vector<16x32xf32>
    %192 = arith.mulf %191, %191 : vector<16x32xf32>
    %cst_98 = arith.constant dense<0.000000e+00> : vector<16xf32>
    %193 = vector.multi_reduction <add>, %192, %cst_98 [1] : vector<16x32xf32> to vector<16xf32>
    %194 = vector.shape_cast %193 : vector<16xf32> to vector<16x1xf32>
    %cst_99 = arith.constant 3.200000e+01 : f32
    %195 = vector.broadcast %cst_99 : f32 to vector<16x1xf32>
    %196 = arith.divf %194, %195 : vector<16x1xf32>
    %197 = vector.broadcast %189 : vector<16x1xf32> to vector<16x32xf32>
    %198 = arith.subf %181, %197 : vector<16x32xf32>
    %cst_100 = arith.constant 9.99999974E-6 : f32
    %199 = vector.broadcast %cst_100 : f32 to vector<16x1xf32>
    %200 = arith.addf %196, %199 : vector<16x1xf32>
    %201 = math.rsqrt %200 : vector<16x1xf32>
    %202 = vector.broadcast %201 : vector<16x1xf32> to vector<16x32xf32>
    %203 = arith.mulf %198, %202 : vector<16x32xf32>
    %204 = vector.broadcast %183 : vector<1x32xf32> to vector<16x32xf32>
    %205 = arith.mulf %203, %204 : vector<16x32xf32>
    %206 = vector.broadcast %185 : vector<1x32xf32> to vector<16x32xf32>
    %207 = arith.addf %205, %206 : vector<16x32xf32>
    %c1_101 = arith.constant 1 : index
    %c0_102 = arith.constant 0 : index
    %c0_103 = arith.constant 0 : index
    %208 = vector.load %arg12[%c1_101, %c0_102, %c0_103] : memref<4x32x64xf32, #tpu.memory_space<vmem>>, vector<1x32x64xf32>
    %209 = vector.shape_cast %208 : vector<1x32x64xf32> to vector<32x64xf32>
    %cst_104 = arith.constant dense<0.000000e+00> : vector<16x64xf32>
    %210 = tpu.matmul %207, %209, %cst_104 {dimension_numbers = #tpu.dot_dimension_numbers<[1], [0], [0], [1], [0, 0, 1, 1], [], []>} : vector<16x32xf32>, vector<32x64xf32>, vector<16x64xf32> -> vector<16x64xf32>
    %c1_105 = arith.constant 1 : index
    %c0_106 = arith.constant 0 : index
    %c0_107 = arith.constant 0 : index
    %211 = vector.load %arg13[%c1_105, %c0_106, %c0_107] : memref<4x1x64xf32, #tpu.memory_space<vmem>>, vector<1x1x64xf32>
    %212 = vector.shape_cast %211 : vector<1x1x64xf32> to vector<1x64xf32>
    %213 = vector.broadcast %212 : vector<1x64xf32> to vector<16x64xf32>
    %214 = arith.addf %210, %213 : vector<16x64xf32>
    %cst_108 = arith.constant 0.000000e+00 : f32
    %215 = vector.broadcast %cst_108 : f32 to vector<16x64xf32>
    %216 = arith.maximumf %214, %215 : vector<16x64xf32>
    %c1_109 = arith.constant 1 : index
    %c0_110 = arith.constant 0 : index
    %c0_111 = arith.constant 0 : index
    %217 = vector.load %arg14[%c1_109, %c0_110, %c0_111] : memref<4x64x32xf32, #tpu.memory_space<vmem>>, vector<1x64x32xf32>
    %218 = vector.shape_cast %217 : vector<1x64x32xf32> to vector<64x32xf32>
    %cst_112 = arith.constant dense<0.000000e+00> : vector<16x32xf32>
    %219 = tpu.matmul %216, %218, %cst_112 {dimension_numbers = #tpu.dot_dimension_numbers<[1], [0], [0], [1], [0, 0, 1, 1], [], []>} : vector<16x64xf32>, vector<64x32xf32>, vector<16x32xf32> -> vector<16x32xf32>
    %c1_113 = arith.constant 1 : index
    %c0_114 = arith.constant 0 : index
    %c0_115 = arith.constant 0 : index
    %220 = vector.load %arg15[%c1_113, %c0_114, %c0_115] : memref<4x1x32xf32, #tpu.memory_space<vmem>>, vector<1x1x32xf32>
    %221 = vector.shape_cast %220 : vector<1x1x32xf32> to vector<1x32xf32>
    %222 = vector.broadcast %221 : vector<1x32xf32> to vector<16x32xf32>
    %223 = arith.addf %219, %222 : vector<16x32xf32>
    %224 = arith.addf %207, %223 : vector<16x32xf32>
    %c1_116 = arith.constant 1 : index
    %c0_117 = arith.constant 0 : index
    %c0_118 = arith.constant 0 : index
    %225 = vector.load %arg18[%c1_116, %c0_117, %c0_118] : memref<4x1x32xf32, #tpu.memory_space<vmem>>, vector<1x1x32xf32>
    %226 = vector.shape_cast %225 : vector<1x1x32xf32> to vector<1x32xf32>
    %c1_119 = arith.constant 1 : index
    %c0_120 = arith.constant 0 : index
    %c0_121 = arith.constant 0 : index
    %227 = vector.load %arg19[%c1_119, %c0_120, %c0_121] : memref<4x1x32xf32, #tpu.memory_space<vmem>>, vector<1x1x32xf32>
    %228 = vector.shape_cast %227 : vector<1x1x32xf32> to vector<1x32xf32>
    %cst_122 = arith.constant dense<0.000000e+00> : vector<16xf32>
    %229 = vector.multi_reduction <add>, %224, %cst_122 [1] : vector<16x32xf32> to vector<16xf32>
    %230 = vector.shape_cast %229 : vector<16xf32> to vector<16x1xf32>
    %cst_123 = arith.constant 3.200000e+01 : f32
    %231 = vector.broadcast %cst_123 : f32 to vector<16x1xf32>
    %232 = arith.divf %230, %231 : vector<16x1xf32>
    %233 = vector.broadcast %232 : vector<16x1xf32> to vector<16x32xf32>
    %234 = arith.subf %224, %233 : vector<16x32xf32>
    %235 = arith.mulf %234, %234 : vector<16x32xf32>
    %cst_124 = arith.constant dense<0.000000e+00> : vector<16xf32>
    %236 = vector.multi_reduction <add>, %235, %cst_124 [1] : vector<16x32xf32> to vector<16xf32>
    %237 = vector.shape_cast %236 : vector<16xf32> to vector<16x1xf32>
    %cst_125 = arith.constant 3.200000e+01 : f32
    %238 = vector.broadcast %cst_125 : f32 to vector<16x1xf32>
    %239 = arith.divf %237, %238 : vector<16x1xf32>
    %240 = vector.broadcast %232 : vector<16x1xf32> to vector<16x32xf32>
    %241 = arith.subf %224, %240 : vector<16x32xf32>
    %cst_126 = arith.constant 9.99999974E-6 : f32
    %242 = vector.broadcast %cst_126 : f32 to vector<16x1xf32>
    %243 = arith.addf %239, %242 : vector<16x1xf32>
    %244 = math.rsqrt %243 : vector<16x1xf32>
    %245 = vector.broadcast %244 : vector<16x1xf32> to vector<16x32xf32>
    %246 = arith.mulf %241, %245 : vector<16x32xf32>
    %247 = vector.broadcast %226 : vector<1x32xf32> to vector<16x32xf32>
    %248 = arith.mulf %246, %247 : vector<16x32xf32>
    %249 = vector.broadcast %228 : vector<1x32xf32> to vector<16x32xf32>
    %250 = arith.addf %248, %249 : vector<16x32xf32>
    %c2 = arith.constant 2 : index
    %c0_127 = arith.constant 0 : index
    %c0_128 = arith.constant 0 : index
    %251 = vector.load %arg8[%c2, %c0_127, %c0_128] : memref<4x32x96xf32, #tpu.memory_space<vmem>>, vector<1x32x96xf32>
    %252 = vector.shape_cast %251 : vector<1x32x96xf32> to vector<32x96xf32>
    %cst_129 = arith.constant dense<0.000000e+00> : vector<16x96xf32>
    %253 = tpu.matmul %24, %252, %cst_129 {dimension_numbers = #tpu.dot_dimension_numbers<[1], [0], [0], [1], [0, 0, 1, 1], [], []>} : vector<16x32xf32>, vector<32x96xf32>, vector<16x96xf32> -> vector<16x96xf32>
    %c2_130 = arith.constant 2 : index
    %c0_131 = arith.constant 0 : index
    %c0_132 = arith.constant 0 : index
    %254 = vector.load %arg9[%c2_130, %c0_131, %c0_132] : memref<4x1x96xf32, #tpu.memory_space<vmem>>, vector<1x1x96xf32>
    %255 = vector.shape_cast %254 : vector<1x1x96xf32> to vector<1x96xf32>
    %256 = vector.broadcast %255 : vector<1x96xf32> to vector<16x96xf32>
    %257 = arith.addf %253, %256 : vector<16x96xf32>
    %258 = vector.extract_strided_slice %257 {offsets = [0, 0], sizes = [16, 32], strides = [1, 1]} : vector<16x96xf32> to vector<16x32xf32>
    %259 = vector.extract_strided_slice %257 {offsets = [0, 32], sizes = [16, 32], strides = [1, 1]} : vector<16x96xf32> to vector<16x32xf32>
    %260 = vector.extract_strided_slice %257 {offsets = [0, 64], sizes = [16, 32], strides = [1, 1]} : vector<16x96xf32> to vector<16x32xf32>
    %c2_133 = arith.constant 2 : index
    %c0_134 = arith.constant 0 : index
    %c0_135 = arith.constant 0 : index
    %261 = vector.load %arg10[%c2_133, %c0_134, %c0_135] : memref<4x32x32xf32, #tpu.memory_space<vmem>>, vector<1x32x32xf32>
    %262 = vector.shape_cast %261 : vector<1x32x32xf32> to vector<32x32xf32>
    %c2_136 = arith.constant 2 : index
    %c0_137 = arith.constant 0 : index
    %c0_138 = arith.constant 0 : index
    %263 = vector.load %arg11[%c2_136, %c0_137, %c0_138] : memref<4x1x32xf32, #tpu.memory_space<vmem>>, vector<1x1x32xf32>
    %264 = vector.shape_cast %263 : vector<1x1x32xf32> to vector<1x32xf32>
    %265 = vector.shape_cast %258 : vector<16x32xf32> to vector<2x8x4x8xf32>
    %266 = tpu.transpose %265, [0, 2, 1, 3] : vector<2x8x4x8xf32> -> vector<2x4x8x8xf32>
    %267 = vector.shape_cast %266 : vector<2x4x8x8xf32> to vector<8x8x8xf32>
    %268 = vector.shape_cast %259 : vector<16x32xf32> to vector<2x8x4x8xf32>
    %269 = tpu.transpose %268, [0, 2, 1, 3] : vector<2x8x4x8xf32> -> vector<2x4x8x8xf32>
    %270 = vector.shape_cast %269 : vector<2x4x8x8xf32> to vector<8x8x8xf32>
    %271 = vector.shape_cast %260 : vector<16x32xf32> to vector<2x8x4x8xf32>
    %272 = tpu.transpose %271, [0, 2, 1, 3] : vector<2x8x4x8xf32> -> vector<2x4x8x8xf32>
    %273 = vector.shape_cast %272 : vector<2x4x8x8xf32> to vector<8x8x8xf32>
    "tpu.trace_start"() <{level = 10 : i32, message = "bqd,bkd->bqk"}> : () -> ()
    %cst_139 = arith.constant dense<0.000000e+00> : vector<8x8x8xf32>
    %274 = tpu.matmul %267, %270, %cst_139 {dimension_numbers = #tpu.dot_dimension_numbers<[2], [2], [1], [1], [0, 0, 0, 1, 1, 1], [0], [0]>} : vector<8x8x8xf32>, vector<8x8x8xf32>, vector<8x8x8xf32> -> vector<8x8x8xf32>
    "tpu.trace_stop"() : () -> ()
    %cst_140 = arith.constant 0.353553385 : f32
    %275 = vector.broadcast %cst_140 : f32 to vector<8x8x8xf32>
    %276 = arith.mulf %274, %275 : vector<8x8x8xf32>
    %cst_141 = arith.constant dense<0xFF800000> : vector<8x8xf32>
    %277 = vector.multi_reduction <maximumf>, %276, %cst_141 [2] : vector<8x8x8xf32> to vector<8x8xf32>
    %278 = vector.shape_cast %277 : vector<8x8xf32> to vector<8x8x1xf32>
    %279 = vector.broadcast %278 : vector<8x8x1xf32> to vector<8x8x8xf32>
    %280 = arith.subf %276, %279 : vector<8x8x8xf32>
    %281 = math.exp %280 : vector<8x8x8xf32>
    %cst_142 = arith.constant dense<0.000000e+00> : vector<8x8xf32>
    %282 = vector.multi_reduction <add>, %281, %cst_142 [2] : vector<8x8x8xf32> to vector<8x8xf32>
    %283 = vector.shape_cast %282 : vector<8x8xf32> to vector<8x8x1xf32>
    %284 = tpu.reciprocal %283 {approx = true} : vector<8x8x1xf32> -> vector<8x8x1xf32>
    %285 = vector.broadcast %284 : vector<8x8x1xf32> to vector<8x8x8xf32>
    %286 = arith.mulf %281, %285 : vector<8x8x8xf32>
    "tpu.trace_start"() <{level = 10 : i32, message = "bqk,bkd->bqd"}> : () -> ()
    %cst_143 = arith.constant dense<0.000000e+00> : vector<8x8x8xf32>
    %287 = tpu.matmul %286, %273, %cst_143 {dimension_numbers = #tpu.dot_dimension_numbers<[2], [1], [1], [2], [0, 0, 0, 1, 1, 2], [0], [0]>} : vector<8x8x8xf32>, vector<8x8x8xf32>, vector<8x8x8xf32> -> vector<8x8x8xf32>
    "tpu.trace_stop"() : () -> ()
    %288 = vector.shape_cast %287 : vector<8x8x8xf32> to vector<2x4x8x8xf32>
    %289 = tpu.transpose %288, [0, 2, 1, 3] : vector<2x4x8x8xf32> -> vector<2x8x4x8xf32>
    %290 = vector.shape_cast %289 : vector<2x8x4x8xf32> to vector<16x32xf32>
    %cst_144 = arith.constant dense<0.000000e+00> : vector<16x32xf32>
    %291 = tpu.matmul %290, %262, %cst_144 {dimension_numbers = #tpu.dot_dimension_numbers<[1], [0], [0], [1], [0, 0, 1, 1], [], []>} : vector<16x32xf32>, vector<32x32xf32>, vector<16x32xf32> -> vector<16x32xf32>
    %292 = vector.broadcast %264 : vector<1x32xf32> to vector<16x32xf32>
    %293 = arith.addf %291, %292 : vector<16x32xf32>
    %294 = arith.addf %24, %293 : vector<16x32xf32>
    %c2_145 = arith.constant 2 : index
    %c0_146 = arith.constant 0 : index
    %c0_147 = arith.constant 0 : index
    %295 = vector.load %arg16[%c2_145, %c0_146, %c0_147] : memref<4x1x32xf32, #tpu.memory_space<vmem>>, vector<1x1x32xf32>
    %296 = vector.shape_cast %295 : vector<1x1x32xf32> to vector<1x32xf32>
    %c2_148 = arith.constant 2 : index
    %c0_149 = arith.constant 0 : index
    %c0_150 = arith.constant 0 : index
    %297 = vector.load %arg17[%c2_148, %c0_149, %c0_150] : memref<4x1x32xf32, #tpu.memory_space<vmem>>, vector<1x1x32xf32>
    %298 = vector.shape_cast %297 : vector<1x1x32xf32> to vector<1x32xf32>
    %cst_151 = arith.constant dense<0.000000e+00> : vector<16xf32>
    %299 = vector.multi_reduction <add>, %294, %cst_151 [1] : vector<16x32xf32> to vector<16xf32>
    %300 = vector.shape_cast %299 : vector<16xf32> to vector<16x1xf32>
    %cst_152 = arith.constant 3.200000e+01 : f32
    %301 = vector.broadcast %cst_152 : f32 to vector<16x1xf32>
    %302 = arith.divf %300, %301 : vector<16x1xf32>
    %303 = vector.broadcast %302 : vector<16x1xf32> to vector<16x32xf32>
    %304 = arith.subf %294, %303 : vector<16x32xf32>
    %305 = arith.mulf %304, %304 : vector<16x32xf32>
    %cst_153 = arith.constant dense<0.000000e+00> : vector<16xf32>
    %306 = vector.multi_reduction <add>, %305, %cst_153 [1] : vector<16x32xf32> to vector<16xf32>
    %307 = vector.shape_cast %306 : vector<16xf32> to vector<16x1xf32>
    %cst_154 = arith.constant 3.200000e+01 : f32
    %308 = vector.broadcast %cst_154 : f32 to vector<16x1xf32>
    %309 = arith.divf %307, %308 : vector<16x1xf32>
    %310 = vector.broadcast %302 : vector<16x1xf32> to vector<16x32xf32>
    %311 = arith.subf %294, %310 : vector<16x32xf32>
    %cst_155 = arith.constant 9.99999974E-6 : f32
    %312 = vector.broadcast %cst_155 : f32 to vector<16x1xf32>
    %313 = arith.addf %309, %312 : vector<16x1xf32>
    %314 = math.rsqrt %313 : vector<16x1xf32>
    %315 = vector.broadcast %314 : vector<16x1xf32> to vector<16x32xf32>
    %316 = arith.mulf %311, %315 : vector<16x32xf32>
    %317 = vector.broadcast %296 : vector<1x32xf32> to vector<16x32xf32>
    %318 = arith.mulf %316, %317 : vector<16x32xf32>
    %319 = vector.broadcast %298 : vector<1x32xf32> to vector<16x32xf32>
    %320 = arith.addf %318, %319 : vector<16x32xf32>
    %c2_156 = arith.constant 2 : index
    %c0_157 = arith.constant 0 : index
    %c0_158 = arith.constant 0 : index
    %321 = vector.load %arg12[%c2_156, %c0_157, %c0_158] : memref<4x32x64xf32, #tpu.memory_space<vmem>>, vector<1x32x64xf32>
    %322 = vector.shape_cast %321 : vector<1x32x64xf32> to vector<32x64xf32>
    %cst_159 = arith.constant dense<0.000000e+00> : vector<16x64xf32>
    %323 = tpu.matmul %320, %322, %cst_159 {dimension_numbers = #tpu.dot_dimension_numbers<[1], [0], [0], [1], [0, 0, 1, 1], [], []>} : vector<16x32xf32>, vector<32x64xf32>, vector<16x64xf32> -> vector<16x64xf32>
    %c2_160 = arith.constant 2 : index
    %c0_161 = arith.constant 0 : index
    %c0_162 = arith.constant 0 : index
    %324 = vector.load %arg13[%c2_160, %c0_161, %c0_162] : memref<4x1x64xf32, #tpu.memory_space<vmem>>, vector<1x1x64xf32>
    %325 = vector.shape_cast %324 : vector<1x1x64xf32> to vector<1x64xf32>
    %326 = vector.broadcast %325 : vector<1x64xf32> to vector<16x64xf32>
    %327 = arith.addf %323, %326 : vector<16x64xf32>
    %cst_163 = arith.constant 0.000000e+00 : f32
    %328 = vector.broadcast %cst_163 : f32 to vector<16x64xf32>
    %329 = arith.maximumf %327, %328 : vector<16x64xf32>
    %c2_164 = arith.constant 2 : index
    %c0_165 = arith.constant 0 : index
    %c0_166 = arith.constant 0 : index
    %330 = vector.load %arg14[%c2_164, %c0_165, %c0_166] : memref<4x64x32xf32, #tpu.memory_space<vmem>>, vector<1x64x32xf32>
    %331 = vector.shape_cast %330 : vector<1x64x32xf32> to vector<64x32xf32>
    %cst_167 = arith.constant dense<0.000000e+00> : vector<16x32xf32>
    %332 = tpu.matmul %329, %331, %cst_167 {dimension_numbers = #tpu.dot_dimension_numbers<[1], [0], [0], [1], [0, 0, 1, 1], [], []>} : vector<16x64xf32>, vector<64x32xf32>, vector<16x32xf32> -> vector<16x32xf32>
    %c2_168 = arith.constant 2 : index
    %c0_169 = arith.constant 0 : index
    %c0_170 = arith.constant 0 : index
    %333 = vector.load %arg15[%c2_168, %c0_169, %c0_170] : memref<4x1x32xf32, #tpu.memory_space<vmem>>, vector<1x1x32xf32>
    %334 = vector.shape_cast %333 : vector<1x1x32xf32> to vector<1x32xf32>
    %335 = vector.broadcast %334 : vector<1x32xf32> to vector<16x32xf32>
    %336 = arith.addf %332, %335 : vector<16x32xf32>
    %337 = arith.addf %320, %336 : vector<16x32xf32>
    %c2_171 = arith.constant 2 : index
    %c0_172 = arith.constant 0 : index
    %c0_173 = arith.constant 0 : index
    %338 = vector.load %arg18[%c2_171, %c0_172, %c0_173] : memref<4x1x32xf32, #tpu.memory_space<vmem>>, vector<1x1x32xf32>
    %339 = vector.shape_cast %338 : vector<1x1x32xf32> to vector<1x32xf32>
    %c2_174 = arith.constant 2 : index
    %c0_175 = arith.constant 0 : index
    %c0_176 = arith.constant 0 : index
    %340 = vector.load %arg19[%c2_174, %c0_175, %c0_176] : memref<4x1x32xf32, #tpu.memory_space<vmem>>, vector<1x1x32xf32>
    %341 = vector.shape_cast %340 : vector<1x1x32xf32> to vector<1x32xf32>
    %cst_177 = arith.constant dense<0.000000e+00> : vector<16xf32>
    %342 = vector.multi_reduction <add>, %337, %cst_177 [1] : vector<16x32xf32> to vector<16xf32>
    %343 = vector.shape_cast %342 : vector<16xf32> to vector<16x1xf32>
    %cst_178 = arith.constant 3.200000e+01 : f32
    %344 = vector.broadcast %cst_178 : f32 to vector<16x1xf32>
    %345 = arith.divf %343, %344 : vector<16x1xf32>
    %346 = vector.broadcast %345 : vector<16x1xf32> to vector<16x32xf32>
    %347 = arith.subf %337, %346 : vector<16x32xf32>
    %348 = arith.mulf %347, %347 : vector<16x32xf32>
    %cst_179 = arith.constant dense<0.000000e+00> : vector<16xf32>
    %349 = vector.multi_reduction <add>, %348, %cst_179 [1] : vector<16x32xf32> to vector<16xf32>
    %350 = vector.shape_cast %349 : vector<16xf32> to vector<16x1xf32>
    %cst_180 = arith.constant 3.200000e+01 : f32
    %351 = vector.broadcast %cst_180 : f32 to vector<16x1xf32>
    %352 = arith.divf %350, %351 : vector<16x1xf32>
    %353 = vector.broadcast %345 : vector<16x1xf32> to vector<16x32xf32>
    %354 = arith.subf %337, %353 : vector<16x32xf32>
    %cst_181 = arith.constant 9.99999974E-6 : f32
    %355 = vector.broadcast %cst_181 : f32 to vector<16x1xf32>
    %356 = arith.addf %352, %355 : vector<16x1xf32>
    %357 = math.rsqrt %356 : vector<16x1xf32>
    %358 = vector.broadcast %357 : vector<16x1xf32> to vector<16x32xf32>
    %359 = arith.mulf %354, %358 : vector<16x32xf32>
    %360 = vector.broadcast %339 : vector<1x32xf32> to vector<16x32xf32>
    %361 = arith.mulf %359, %360 : vector<16x32xf32>
    %362 = vector.broadcast %341 : vector<1x32xf32> to vector<16x32xf32>
    %363 = arith.addf %361, %362 : vector<16x32xf32>
    %c3 = arith.constant 3 : index
    %c0_182 = arith.constant 0 : index
    %c0_183 = arith.constant 0 : index
    %364 = vector.load %arg8[%c3, %c0_182, %c0_183] : memref<4x32x96xf32, #tpu.memory_space<vmem>>, vector<1x32x96xf32>
    %365 = vector.shape_cast %364 : vector<1x32x96xf32> to vector<32x96xf32>
    %cst_184 = arith.constant dense<0.000000e+00> : vector<16x96xf32>
    %366 = tpu.matmul %363, %365, %cst_184 {dimension_numbers = #tpu.dot_dimension_numbers<[1], [0], [0], [1], [0, 0, 1, 1], [], []>} : vector<16x32xf32>, vector<32x96xf32>, vector<16x96xf32> -> vector<16x96xf32>
    %c3_185 = arith.constant 3 : index
    %c0_186 = arith.constant 0 : index
    %c0_187 = arith.constant 0 : index
    %367 = vector.load %arg9[%c3_185, %c0_186, %c0_187] : memref<4x1x96xf32, #tpu.memory_space<vmem>>, vector<1x1x96xf32>
    %368 = vector.shape_cast %367 : vector<1x1x96xf32> to vector<1x96xf32>
    %369 = vector.broadcast %368 : vector<1x96xf32> to vector<16x96xf32>
    %370 = arith.addf %366, %369 : vector<16x96xf32>
    %371 = vector.extract_strided_slice %370 {offsets = [0, 0], sizes = [16, 32], strides = [1, 1]} : vector<16x96xf32> to vector<16x32xf32>
    %372 = vector.extract_strided_slice %370 {offsets = [0, 32], sizes = [16, 32], strides = [1, 1]} : vector<16x96xf32> to vector<16x32xf32>
    %373 = vector.extract_strided_slice %370 {offsets = [0, 64], sizes = [16, 32], strides = [1, 1]} : vector<16x96xf32> to vector<16x32xf32>
    %c3_188 = arith.constant 3 : index
    %c0_189 = arith.constant 0 : index
    %c0_190 = arith.constant 0 : index
    %374 = vector.load %arg10[%c3_188, %c0_189, %c0_190] : memref<4x32x32xf32, #tpu.memory_space<vmem>>, vector<1x32x32xf32>
    %375 = vector.shape_cast %374 : vector<1x32x32xf32> to vector<32x32xf32>
    %c3_191 = arith.constant 3 : index
    %c0_192 = arith.constant 0 : index
    %c0_193 = arith.constant 0 : index
    %376 = vector.load %arg11[%c3_191, %c0_192, %c0_193] : memref<4x1x32xf32, #tpu.memory_space<vmem>>, vector<1x1x32xf32>
    %377 = vector.shape_cast %376 : vector<1x1x32xf32> to vector<1x32xf32>
    %378 = vector.shape_cast %371 : vector<16x32xf32> to vector<2x8x4x8xf32>
    %379 = tpu.transpose %378, [0, 2, 1, 3] : vector<2x8x4x8xf32> -> vector<2x4x8x8xf32>
    %380 = vector.shape_cast %379 : vector<2x4x8x8xf32> to vector<8x8x8xf32>
    %381 = vector.shape_cast %372 : vector<16x32xf32> to vector<2x8x4x8xf32>
    %382 = tpu.transpose %381, [0, 2, 1, 3] : vector<2x8x4x8xf32> -> vector<2x4x8x8xf32>
    %383 = vector.shape_cast %382 : vector<2x4x8x8xf32> to vector<8x8x8xf32>
    %384 = vector.shape_cast %373 : vector<16x32xf32> to vector<2x8x4x8xf32>
    %385 = tpu.transpose %384, [0, 2, 1, 3] : vector<2x8x4x8xf32> -> vector<2x4x8x8xf32>
    %386 = vector.shape_cast %385 : vector<2x4x8x8xf32> to vector<8x8x8xf32>
    "tpu.trace_start"() <{level = 10 : i32, message = "bqd,bkd->bqk"}> : () -> ()
    %cst_194 = arith.constant dense<0.000000e+00> : vector<8x8x8xf32>
    %387 = tpu.matmul %380, %383, %cst_194 {dimension_numbers = #tpu.dot_dimension_numbers<[2], [2], [1], [1], [0, 0, 0, 1, 1, 1], [0], [0]>} : vector<8x8x8xf32>, vector<8x8x8xf32>, vector<8x8x8xf32> -> vector<8x8x8xf32>
    "tpu.trace_stop"() : () -> ()
    %cst_195 = arith.constant 0.353553385 : f32
    %388 = vector.broadcast %cst_195 : f32 to vector<8x8x8xf32>
    %389 = arith.mulf %387, %388 : vector<8x8x8xf32>
    %cst_196 = arith.constant dense<0xFF800000> : vector<8x8xf32>
    %390 = vector.multi_reduction <maximumf>, %389, %cst_196 [2] : vector<8x8x8xf32> to vector<8x8xf32>
    %391 = vector.shape_cast %390 : vector<8x8xf32> to vector<8x8x1xf32>
    %392 = vector.broadcast %391 : vector<8x8x1xf32> to vector<8x8x8xf32>
    %393 = arith.subf %389, %392 : vector<8x8x8xf32>
    %394 = math.exp %393 : vector<8x8x8xf32>
    %cst_197 = arith.constant dense<0.000000e+00> : vector<8x8xf32>
    %395 = vector.multi_reduction <add>, %394, %cst_197 [2] : vector<8x8x8xf32> to vector<8x8xf32>
    %396 = vector.shape_cast %395 : vector<8x8xf32> to vector<8x8x1xf32>
    %397 = tpu.reciprocal %396 {approx = true} : vector<8x8x1xf32> -> vector<8x8x1xf32>
    %398 = vector.broadcast %397 : vector<8x8x1xf32> to vector<8x8x8xf32>
    %399 = arith.mulf %394, %398 : vector<8x8x8xf32>
    "tpu.trace_start"() <{level = 10 : i32, message = "bqk,bkd->bqd"}> : () -> ()
    %cst_198 = arith.constant dense<0.000000e+00> : vector<8x8x8xf32>
    %400 = tpu.matmul %399, %386, %cst_198 {dimension_numbers = #tpu.dot_dimension_numbers<[2], [1], [1], [2], [0, 0, 0, 1, 1, 2], [0], [0]>} : vector<8x8x8xf32>, vector<8x8x8xf32>, vector<8x8x8xf32> -> vector<8x8x8xf32>
    "tpu.trace_stop"() : () -> ()
    %401 = vector.shape_cast %400 : vector<8x8x8xf32> to vector<2x4x8x8xf32>
    %402 = tpu.transpose %401, [0, 2, 1, 3] : vector<2x4x8x8xf32> -> vector<2x8x4x8xf32>
    %403 = vector.shape_cast %402 : vector<2x8x4x8xf32> to vector<16x32xf32>
    %cst_199 = arith.constant dense<0.000000e+00> : vector<16x32xf32>
    %404 = tpu.matmul %403, %375, %cst_199 {dimension_numbers = #tpu.dot_dimension_numbers<[1], [0], [0], [1], [0, 0, 1, 1], [], []>} : vector<16x32xf32>, vector<32x32xf32>, vector<16x32xf32> -> vector<16x32xf32>
    %405 = vector.broadcast %377 : vector<1x32xf32> to vector<16x32xf32>
    %406 = arith.addf %404, %405 : vector<16x32xf32>
    %407 = arith.addf %363, %406 : vector<16x32xf32>
    %c3_200 = arith.constant 3 : index
    %c0_201 = arith.constant 0 : index
    %c0_202 = arith.constant 0 : index
    %408 = vector.load %arg16[%c3_200, %c0_201, %c0_202] : memref<4x1x32xf32, #tpu.memory_space<vmem>>, vector<1x1x32xf32>
    %409 = vector.shape_cast %408 : vector<1x1x32xf32> to vector<1x32xf32>
    %c3_203 = arith.constant 3 : index
    %c0_204 = arith.constant 0 : index
    %c0_205 = arith.constant 0 : index
    %410 = vector.load %arg17[%c3_203, %c0_204, %c0_205] : memref<4x1x32xf32, #tpu.memory_space<vmem>>, vector<1x1x32xf32>
    %411 = vector.shape_cast %410 : vector<1x1x32xf32> to vector<1x32xf32>
    %cst_206 = arith.constant dense<0.000000e+00> : vector<16xf32>
    %412 = vector.multi_reduction <add>, %407, %cst_206 [1] : vector<16x32xf32> to vector<16xf32>
    %413 = vector.shape_cast %412 : vector<16xf32> to vector<16x1xf32>
    %cst_207 = arith.constant 3.200000e+01 : f32
    %414 = vector.broadcast %cst_207 : f32 to vector<16x1xf32>
    %415 = arith.divf %413, %414 : vector<16x1xf32>
    %416 = vector.broadcast %415 : vector<16x1xf32> to vector<16x32xf32>
    %417 = arith.subf %407, %416 : vector<16x32xf32>
    %418 = arith.mulf %417, %417 : vector<16x32xf32>
    %cst_208 = arith.constant dense<0.000000e+00> : vector<16xf32>
    %419 = vector.multi_reduction <add>, %418, %cst_208 [1] : vector<16x32xf32> to vector<16xf32>
    %420 = vector.shape_cast %419 : vector<16xf32> to vector<16x1xf32>
    %cst_209 = arith.constant 3.200000e+01 : f32
    %421 = vector.broadcast %cst_209 : f32 to vector<16x1xf32>
    %422 = arith.divf %420, %421 : vector<16x1xf32>
    %423 = vector.broadcast %415 : vector<16x1xf32> to vector<16x32xf32>
    %424 = arith.subf %407, %423 : vector<16x32xf32>
    %cst_210 = arith.constant 9.99999974E-6 : f32
    %425 = vector.broadcast %cst_210 : f32 to vector<16x1xf32>
    %426 = arith.addf %422, %425 : vector<16x1xf32>
    %427 = math.rsqrt %426 : vector<16x1xf32>
    %428 = vector.broadcast %427 : vector<16x1xf32> to vector<16x32xf32>
    %429 = arith.mulf %424, %428 : vector<16x32xf32>
    %430 = vector.broadcast %409 : vector<1x32xf32> to vector<16x32xf32>
    %431 = arith.mulf %429, %430 : vector<16x32xf32>
    %432 = vector.broadcast %411 : vector<1x32xf32> to vector<16x32xf32>
    %433 = arith.addf %431, %432 : vector<16x32xf32>
    %c3_211 = arith.constant 3 : index
    %c0_212 = arith.constant 0 : index
    %c0_213 = arith.constant 0 : index
    %434 = vector.load %arg12[%c3_211, %c0_212, %c0_213] : memref<4x32x64xf32, #tpu.memory_space<vmem>>, vector<1x32x64xf32>
    %435 = vector.shape_cast %434 : vector<1x32x64xf32> to vector<32x64xf32>
    %cst_214 = arith.constant dense<0.000000e+00> : vector<16x64xf32>
    %436 = tpu.matmul %433, %435, %cst_214 {dimension_numbers = #tpu.dot_dimension_numbers<[1], [0], [0], [1], [0, 0, 1, 1], [], []>} : vector<16x32xf32>, vector<32x64xf32>, vector<16x64xf32> -> vector<16x64xf32>
    %c3_215 = arith.constant 3 : index
    %c0_216 = arith.constant 0 : index
    %c0_217 = arith.constant 0 : index
    %437 = vector.load %arg13[%c3_215, %c0_216, %c0_217] : memref<4x1x64xf32, #tpu.memory_space<vmem>>, vector<1x1x64xf32>
    %438 = vector.shape_cast %437 : vector<1x1x64xf32> to vector<1x64xf32>
    %439 = vector.broadcast %438 : vector<1x64xf32> to vector<16x64xf32>
    %440 = arith.addf %436, %439 : vector<16x64xf32>
    %cst_218 = arith.constant 0.000000e+00 : f32
    %441 = vector.broadcast %cst_218 : f32 to vector<16x64xf32>
    %442 = arith.maximumf %440, %441 : vector<16x64xf32>
    %c3_219 = arith.constant 3 : index
    %c0_220 = arith.constant 0 : index
    %c0_221 = arith.constant 0 : index
    %443 = vector.load %arg14[%c3_219, %c0_220, %c0_221] : memref<4x64x32xf32, #tpu.memory_space<vmem>>, vector<1x64x32xf32>
    %444 = vector.shape_cast %443 : vector<1x64x32xf32> to vector<64x32xf32>
    %cst_222 = arith.constant dense<0.000000e+00> : vector<16x32xf32>
    %445 = tpu.matmul %442, %444, %cst_222 {dimension_numbers = #tpu.dot_dimension_numbers<[1], [0], [0], [1], [0, 0, 1, 1], [], []>} : vector<16x64xf32>, vector<64x32xf32>, vector<16x32xf32> -> vector<16x32xf32>
    %c3_223 = arith.constant 3 : index
    %c0_224 = arith.constant 0 : index
    %c0_225 = arith.constant 0 : index
    %446 = vector.load %arg15[%c3_223, %c0_224, %c0_225] : memref<4x1x32xf32, #tpu.memory_space<vmem>>, vector<1x1x32xf32>
    %447 = vector.shape_cast %446 : vector<1x1x32xf32> to vector<1x32xf32>
    %448 = vector.broadcast %447 : vector<1x32xf32> to vector<16x32xf32>
    %449 = arith.addf %445, %448 : vector<16x32xf32>
    %450 = arith.addf %433, %449 : vector<16x32xf32>
    %c3_226 = arith.constant 3 : index
    %c0_227 = arith.constant 0 : index
    %c0_228 = arith.constant 0 : index
    %451 = vector.load %arg18[%c3_226, %c0_227, %c0_228] : memref<4x1x32xf32, #tpu.memory_space<vmem>>, vector<1x1x32xf32>
    %452 = vector.shape_cast %451 : vector<1x1x32xf32> to vector<1x32xf32>
    %c3_229 = arith.constant 3 : index
    %c0_230 = arith.constant 0 : index
    %c0_231 = arith.constant 0 : index
    %453 = vector.load %arg19[%c3_229, %c0_230, %c0_231] : memref<4x1x32xf32, #tpu.memory_space<vmem>>, vector<1x1x32xf32>
    %454 = vector.shape_cast %453 : vector<1x1x32xf32> to vector<1x32xf32>
    %cst_232 = arith.constant dense<0.000000e+00> : vector<16xf32>
    %455 = vector.multi_reduction <add>, %450, %cst_232 [1] : vector<16x32xf32> to vector<16xf32>
    %456 = vector.shape_cast %455 : vector<16xf32> to vector<16x1xf32>
    %cst_233 = arith.constant 3.200000e+01 : f32
    %457 = vector.broadcast %cst_233 : f32 to vector<16x1xf32>
    %458 = arith.divf %456, %457 : vector<16x1xf32>
    %459 = vector.broadcast %458 : vector<16x1xf32> to vector<16x32xf32>
    %460 = arith.subf %450, %459 : vector<16x32xf32>
    %461 = arith.mulf %460, %460 : vector<16x32xf32>
    %cst_234 = arith.constant dense<0.000000e+00> : vector<16xf32>
    %462 = vector.multi_reduction <add>, %461, %cst_234 [1] : vector<16x32xf32> to vector<16xf32>
    %463 = vector.shape_cast %462 : vector<16xf32> to vector<16x1xf32>
    %cst_235 = arith.constant 3.200000e+01 : f32
    %464 = vector.broadcast %cst_235 : f32 to vector<16x1xf32>
    %465 = arith.divf %463, %464 : vector<16x1xf32>
    %466 = vector.broadcast %458 : vector<16x1xf32> to vector<16x32xf32>
    %467 = arith.subf %450, %466 : vector<16x32xf32>
    %cst_236 = arith.constant 9.99999974E-6 : f32
    %468 = vector.broadcast %cst_236 : f32 to vector<16x1xf32>
    %469 = arith.addf %465, %468 : vector<16x1xf32>
    %470 = math.rsqrt %469 : vector<16x1xf32>
    %471 = vector.broadcast %470 : vector<16x1xf32> to vector<16x32xf32>
    %472 = arith.mulf %467, %471 : vector<16x32xf32>
    %473 = vector.broadcast %452 : vector<1x32xf32> to vector<16x32xf32>
    %474 = arith.mulf %472, %473 : vector<16x32xf32>
    %475 = vector.broadcast %454 : vector<1x32xf32> to vector<16x32xf32>
    %476 = arith.addf %474, %475 : vector<16x32xf32>
    %477 = vector.shape_cast %250 : vector<16x32xf32> to vector<2x8x32xf32>
    %478 = vector.extract_strided_slice %477 {offsets = [0, 7, 0], sizes = [2, 1, 32], strides = [1, 1, 1]} : vector<2x8x32xf32> to vector<2x1x32xf32>
    %479 = vector.shape_cast %478 : vector<2x1x32xf32> to vector<2x32xf32>
    %c0_237 = arith.constant 0 : index
    %c0_238 = arith.constant 0 : index
    %480 = vector.load %arg20[%c0_237, %c0_238] : memref<32x32xf32, #tpu.memory_space<vmem>>, vector<32x32xf32>
    %cst_239 = arith.constant dense<0.000000e+00> : vector<2x32xf32>
    %481 = tpu.matmul %479, %480, %cst_239 {dimension_numbers = #tpu.dot_dimension_numbers<[1], [0], [0], [1], [0, 0, 1, 1], [], []>} : vector<2x32xf32>, vector<32x32xf32>, vector<2x32xf32> -> vector<2x32xf32>
    %c0_240 = arith.constant 0 : index
    %c0_241 = arith.constant 0 : index
    %482 = vector.load %arg21[%c0_240, %c0_241] : memref<1x32xf32, #tpu.memory_space<vmem>>, vector<1x32xf32>
    %483 = vector.broadcast %482 : vector<1x32xf32> to vector<2x32xf32>
    %484 = arith.addf %481, %483 : vector<2x32xf32>
    %c0_242 = arith.constant 0 : index
    %c0_243 = arith.constant 0 : index
    %485 = vector.load %arg22[%c0_242, %c0_243] : memref<32x64xf32, #tpu.memory_space<vmem>>, vector<32x64xf32>
    %cst_244 = arith.constant dense<0.000000e+00> : vector<16x64xf32>
    %486 = tpu.matmul %476, %485, %cst_244 {dimension_numbers = #tpu.dot_dimension_numbers<[1], [0], [0], [1], [0, 0, 1, 1], [], []>} : vector<16x32xf32>, vector<32x64xf32>, vector<16x64xf32> -> vector<16x64xf32>
    %c0_245 = arith.constant 0 : index
    %c0_246 = arith.constant 0 : index
    %487 = vector.load %arg23[%c0_245, %c0_246] : memref<1x64xf32, #tpu.memory_space<vmem>>, vector<1x64xf32>
    %488 = vector.broadcast %487 : vector<1x64xf32> to vector<16x64xf32>
    %489 = arith.addf %486, %488 : vector<16x64xf32>
    %490 = vector.extract_strided_slice %489 {offsets = [0, 0], sizes = [16, 32], strides = [1, 1]} : vector<16x64xf32> to vector<16x32xf32>
    %491 = vector.extract_strided_slice %489 {offsets = [0, 32], sizes = [16, 32], strides = [1, 1]} : vector<16x64xf32> to vector<16x32xf32>
    %c0_247 = arith.constant 0 : index
    %c0_248 = arith.constant 0 : index
    %492 = vector.load %arg24[%c0_247, %c0_248] : memref<32x32xf32, #tpu.memory_space<vmem>>, vector<32x32xf32>
    %c0_249 = arith.constant 0 : index
    %c0_250 = arith.constant 0 : index
    %493 = vector.load %arg25[%c0_249, %c0_250] : memref<1x32xf32, #tpu.memory_space<vmem>>, vector<1x32xf32>
    %494 = vector.shape_cast %484 : vector<2x32xf32> to vector<2x1x4x8xf32>
    %495 = tpu.transpose %494, [0, 2, 1, 3] : vector<2x1x4x8xf32> -> vector<2x4x1x8xf32>
    %496 = vector.shape_cast %495 : vector<2x4x1x8xf32> to vector<8x1x8xf32>
    %497 = vector.shape_cast %490 : vector<16x32xf32> to vector<2x8x4x8xf32>
    %498 = tpu.transpose %497, [0, 2, 1, 3] : vector<2x8x4x8xf32> -> vector<2x4x8x8xf32>
    %499 = vector.shape_cast %498 : vector<2x4x8x8xf32> to vector<8x8x8xf32>
    %500 = vector.shape_cast %491 : vector<16x32xf32> to vector<2x8x4x8xf32>
    %501 = tpu.transpose %500, [0, 2, 1, 3] : vector<2x8x4x8xf32> -> vector<2x4x8x8xf32>
    %502 = vector.shape_cast %501 : vector<2x4x8x8xf32> to vector<8x8x8xf32>
    "tpu.trace_start"() <{level = 10 : i32, message = "bqd,bkd->bqk"}> : () -> ()
    %cst_251 = arith.constant dense<0.000000e+00> : vector<8x1x8xf32>
    %503 = tpu.matmul %496, %499, %cst_251 {dimension_numbers = #tpu.dot_dimension_numbers<[2], [2], [1], [1], [0, 0, 0, 1, 1, 1], [0], [0]>} : vector<8x1x8xf32>, vector<8x8x8xf32>, vector<8x1x8xf32> -> vector<8x1x8xf32>
    "tpu.trace_stop"() : () -> ()
    %cst_252 = arith.constant 0.353553385 : f32
    %504 = vector.broadcast %cst_252 : f32 to vector<8x1x8xf32>
    %505 = arith.mulf %503, %504 : vector<8x1x8xf32>
    %cst_253 = arith.constant dense<0xFF800000> : vector<8x1xf32>
    %506 = vector.multi_reduction <maximumf>, %505, %cst_253 [2] : vector<8x1x8xf32> to vector<8x1xf32>
    %507 = vector.shape_cast %506 : vector<8x1xf32> to vector<8x1x1xf32>
    %508 = vector.broadcast %507 : vector<8x1x1xf32> to vector<8x1x8xf32>
    %509 = arith.subf %505, %508 : vector<8x1x8xf32>
    %510 = math.exp %509 : vector<8x1x8xf32>
    %cst_254 = arith.constant dense<0.000000e+00> : vector<8x1xf32>
    %511 = vector.multi_reduction <add>, %510, %cst_254 [2] : vector<8x1x8xf32> to vector<8x1xf32>
    %512 = vector.shape_cast %511 : vector<8x1xf32> to vector<8x1x1xf32>
    %513 = tpu.reciprocal %512 {approx = true} : vector<8x1x1xf32> -> vector<8x1x1xf32>
    %514 = vector.broadcast %513 : vector<8x1x1xf32> to vector<8x1x8xf32>
    %515 = arith.mulf %510, %514 : vector<8x1x8xf32>
    "tpu.trace_start"() <{level = 10 : i32, message = "bqk,bkd->bqd"}> : () -> ()
    %cst_255 = arith.constant dense<0.000000e+00> : vector<8x1x8xf32>
    %516 = tpu.matmul %515, %502, %cst_255 {dimension_numbers = #tpu.dot_dimension_numbers<[2], [1], [1], [2], [0, 0, 0, 1, 1, 2], [0], [0]>} : vector<8x1x8xf32>, vector<8x8x8xf32>, vector<8x1x8xf32> -> vector<8x1x8xf32>
    "tpu.trace_stop"() : () -> ()
    %517 = vector.shape_cast %516 : vector<8x1x8xf32> to vector<2x4x1x8xf32>
    %518 = tpu.transpose %517, [0, 2, 1, 3] : vector<2x4x1x8xf32> -> vector<2x1x4x8xf32>
    %519 = vector.shape_cast %518 : vector<2x1x4x8xf32> to vector<2x32xf32>
    %cst_256 = arith.constant dense<0.000000e+00> : vector<2x32xf32>
    %520 = tpu.matmul %519, %492, %cst_256 {dimension_numbers = #tpu.dot_dimension_numbers<[1], [0], [0], [1], [0, 0, 1, 1], [], []>} : vector<2x32xf32>, vector<32x32xf32>, vector<2x32xf32> -> vector<2x32xf32>
    %521 = vector.broadcast %493 : vector<1x32xf32> to vector<2x32xf32>
    %522 = arith.addf %520, %521 : vector<2x32xf32>
    %c0_257 = arith.constant 0 : index
    %c0_258 = arith.constant 0 : index
    %523 = vector.load %arg26[%c0_257, %c0_258] : memref<32x32xf32, #tpu.memory_space<vmem>>, vector<32x32xf32>
    %cst_259 = arith.constant dense<0.000000e+00> : vector<2x32xf32>
    %524 = tpu.matmul %522, %523, %cst_259 {dimension_numbers = #tpu.dot_dimension_numbers<[1], [0], [0], [1], [0, 0, 1, 1], [], []>} : vector<2x32xf32>, vector<32x32xf32>, vector<2x32xf32> -> vector<2x32xf32>
    %c0_260 = arith.constant 0 : index
    %c0_261 = arith.constant 0 : index
    %525 = vector.load %arg27[%c0_260, %c0_261] : memref<1x32xf32, #tpu.memory_space<vmem>>, vector<1x32xf32>
    %526 = vector.broadcast %525 : vector<1x32xf32> to vector<2x32xf32>
    %527 = arith.addf %524, %526 : vector<2x32xf32>
    %cst_262 = arith.constant 0.000000e+00 : f32
    %528 = vector.broadcast %cst_262 : f32 to vector<2x32xf32>
    %529 = arith.cmpf ogt, %527, %528 : vector<2x32xf32>
    %cst_263 = arith.constant 0.000000e+00 : f32
    %530 = vector.broadcast %cst_263 : f32 to vector<2x32xf32>
    %531 = arith.minimumf %527, %530 : vector<2x32xf32>
    %532 = math.exp %531 : vector<2x32xf32>
    %cst_264 = arith.constant 1.000000e+00 : f32
    %533 = vector.broadcast %cst_264 : f32 to vector<2x32xf32>
    %534 = arith.subf %532, %533 : vector<2x32xf32>
    %535 = arith.select %529, %527, %534 : vector<2x32xi1>, vector<2x32xf32>
    %c0_265 = arith.constant 0 : index
    %c0_266 = arith.constant 0 : index
    %536 = vector.load %arg28[%c0_265, %c0_266] : memref<32x32xf32, #tpu.memory_space<vmem>>, vector<32x32xf32>
    %cst_267 = arith.constant dense<0.000000e+00> : vector<2x32xf32>
    %537 = tpu.matmul %535, %536, %cst_267 {dimension_numbers = #tpu.dot_dimension_numbers<[1], [0], [0], [1], [0, 0, 1, 1], [], []>} : vector<2x32xf32>, vector<32x32xf32>, vector<2x32xf32> -> vector<2x32xf32>
    %c0_268 = arith.constant 0 : index
    %c0_269 = arith.constant 0 : index
    %538 = vector.load %arg29[%c0_268, %c0_269] : memref<1x32xf32, #tpu.memory_space<vmem>>, vector<1x32xf32>
    %539 = vector.broadcast %538 : vector<1x32xf32> to vector<2x32xf32>
    %540 = arith.addf %537, %539 : vector<2x32xf32>
    %c0_270 = arith.constant 0 : index
    %c0_271 = arith.constant 0 : index
    %541 = vector.load %arg30[%c0_270, %c0_271] : memref<32x32xf32, #tpu.memory_space<vmem>>, vector<32x32xf32>
    %cst_272 = arith.constant dense<0.000000e+00> : vector<2x32xf32>
    %542 = tpu.matmul %522, %541, %cst_272 {dimension_numbers = #tpu.dot_dimension_numbers<[1], [0], [0], [1], [0, 0, 1, 1], [], []>} : vector<2x32xf32>, vector<32x32xf32>, vector<2x32xf32> -> vector<2x32xf32>
    %c0_273 = arith.constant 0 : index
    %c0_274 = arith.constant 0 : index
    %543 = vector.load %arg31[%c0_273, %c0_274] : memref<1x32xf32, #tpu.memory_space<vmem>>, vector<1x32xf32>
    %544 = vector.broadcast %543 : vector<1x32xf32> to vector<2x32xf32>
    %545 = arith.addf %542, %544 : vector<2x32xf32>
    %cst_275 = arith.constant 0.000000e+00 : f32
    %546 = vector.broadcast %cst_275 : f32 to vector<2x32xf32>
    %547 = arith.subf %546, %545 : vector<2x32xf32>
    %548 = math.exp %547 : vector<2x32xf32>
    %cst_276 = arith.constant 1.000000e+00 : f32
    %549 = vector.broadcast %cst_276 : f32 to vector<2x32xf32>
    %550 = arith.addf %549, %548 : vector<2x32xf32>
    %551 = tpu.reciprocal %550 {approx = true} : vector<2x32xf32> -> vector<2x32xf32>
    %552 = arith.mulf %551, %540 : vector<2x32xf32>
    %cst_277 = arith.constant 1.000000e+00 : f32
    %553 = vector.broadcast %cst_277 : f32 to vector<2x32xf32>
    %554 = arith.subf %553, %551 : vector<2x32xf32>
    %555 = arith.mulf %554, %479 : vector<2x32xf32>
    %556 = arith.addf %552, %555 : vector<2x32xf32>
    %c0_278 = arith.constant 0 : index
    %c0_279 = arith.constant 0 : index
    %557 = vector.load %arg32[%c0_278, %c0_279] : memref<1x32xf32, #tpu.memory_space<vmem>>, vector<1x32xf32>
    %c0_280 = arith.constant 0 : index
    %c0_281 = arith.constant 0 : index
    %558 = vector.load %arg33[%c0_280, %c0_281] : memref<1x32xf32, #tpu.memory_space<vmem>>, vector<1x32xf32>
    %cst_282 = arith.constant dense<0.000000e+00> : vector<2xf32>
    %559 = vector.multi_reduction <add>, %556, %cst_282 [1] : vector<2x32xf32> to vector<2xf32>
    %560 = vector.shape_cast %559 : vector<2xf32> to vector<2x1xf32>
    %cst_283 = arith.constant 3.200000e+01 : f32
    %561 = vector.broadcast %cst_283 : f32 to vector<2x1xf32>
    %562 = arith.divf %560, %561 : vector<2x1xf32>
    %563 = vector.broadcast %562 : vector<2x1xf32> to vector<2x32xf32>
    %564 = arith.subf %556, %563 : vector<2x32xf32>
    %565 = arith.mulf %564, %564 : vector<2x32xf32>
    %cst_284 = arith.constant dense<0.000000e+00> : vector<2xf32>
    %566 = vector.multi_reduction <add>, %565, %cst_284 [1] : vector<2x32xf32> to vector<2xf32>
    %567 = vector.shape_cast %566 : vector<2xf32> to vector<2x1xf32>
    %cst_285 = arith.constant 3.200000e+01 : f32
    %568 = vector.broadcast %cst_285 : f32 to vector<2x1xf32>
    %569 = arith.divf %567, %568 : vector<2x1xf32>
    %570 = vector.broadcast %562 : vector<2x1xf32> to vector<2x32xf32>
    %571 = arith.subf %556, %570 : vector<2x32xf32>
    %cst_286 = arith.constant 9.99999974E-6 : f32
    %572 = vector.broadcast %cst_286 : f32 to vector<2x1xf32>
    %573 = arith.addf %569, %572 : vector<2x1xf32>
    %574 = math.rsqrt %573 : vector<2x1xf32>
    %575 = vector.broadcast %574 : vector<2x1xf32> to vector<2x32xf32>
    %576 = arith.mulf %571, %575 : vector<2x32xf32>
    %577 = vector.broadcast %557 : vector<1x32xf32> to vector<2x32xf32>
    %578 = arith.mulf %576, %577 : vector<2x32xf32>
    %579 = vector.broadcast %558 : vector<1x32xf32> to vector<2x32xf32>
    %580 = arith.addf %578, %579 : vector<2x32xf32>
    %c0_287 = arith.constant 0 : index
    %c0_288 = arith.constant 0 : index
    %581 = vector.load %arg34[%c0_287, %c0_288] : memref<32x128xf32, #tpu.memory_space<vmem>>, vector<32x128xf32>
    %cst_289 = arith.constant dense<0.000000e+00> : vector<2x128xf32>
    %582 = tpu.matmul %580, %581, %cst_289 {dimension_numbers = #tpu.dot_dimension_numbers<[1], [0], [0], [1], [0, 0, 1, 1], [], []>} : vector<2x32xf32>, vector<32x128xf32>, vector<2x128xf32> -> vector<2x128xf32>
    %c0_290 = arith.constant 0 : index
    %c0_291 = arith.constant 0 : index
    %583 = vector.load %arg35[%c0_290, %c0_291] : memref<1x128xf32, #tpu.memory_space<vmem>>, vector<1x128xf32>
    %584 = vector.broadcast %583 : vector<1x128xf32> to vector<2x128xf32>
    %585 = arith.addf %582, %584 : vector<2x128xf32>
    %c0_292 = arith.constant 0 : index
    %c0_293 = arith.constant 0 : index
    %586 = vector.load %arg36[%c0_292, %c0_293] : memref<2x128xf32, #tpu.memory_space<vmem>>, vector<2x128xf32>
    tpu.vector_store %arg36[%c0_292, %c0_293], %585 {strides = array<i32>} : memref<2x128xf32, #tpu.memory_space<vmem>>, vector<2x128xf32>,
    return
  }
  func.func @transform_0(%arg0: i32) -> (i32, i32, i32) {
    %c0_i32 = arith.constant 0 : i32
    %c0_i32_0 = arith.constant 0 : i32
    %c0_i32_1 = arith.constant 0 : i32
    %c0_i32_2 = arith.constant 0 : i32
    return %c0_i32, %c0_i32_0, %c0_i32_1 : i32, i32, i32
  }
  func.func @transform_1(%arg0: i32) -> (i32, i32, i32) {
    %c0_i32 = arith.constant 0 : i32
    %c0_i32_0 = arith.constant 0 : i32
    %c0_i32_1 = arith.constant 0 : i32
    %c0_i32_2 = arith.constant 0 : i32
    return %c0_i32, %c0_i32_0, %c0_i32_1 : i32, i32, i32
  }
  func.func @transform_2(%arg0: i32) -> (i32, i32) {
    %c0_i32 = arith.constant 0 : i32
    %c0_i32_0 = arith.constant 0 : i32
    %c0_i32_1 = arith.constant 0 : i32
    return %c0_i32, %c0_i32_0 : i32, i32
  }
  func.func @transform_3(%arg0: i32) -> (i32, i32) {
    %c0_i32 = arith.constant 0 : i32
    %c0_i32_0 = arith.constant 0 : i32
    %c0_i32_1 = arith.constant 0 : i32
    return %c0_i32, %c0_i32_0 : i32, i32
  }
  func.func @transform_4(%arg0: i32) -> (i32, i32) {
    %c0_i32 = arith.constant 0 : i32
    %c0_i32_0 = arith.constant 0 : i32
    %c0_i32_1 = arith.constant 0 : i32
    return %c0_i32, %c0_i32_0 : i32, i32
  }
  func.func @transform_5(%arg0: i32) -> (i32, i32) {
    %c0_i32 = arith.constant 0 : i32
    %c0_i32_0 = arith.constant 0 : i32
    %c0_i32_1 = arith.constant 0 : i32
    return %c0_i32, %c0_i32_0 : i32, i32
  }
  func.func @transform_6(%arg0: i32) -> (i32, i32) {
    %c0_i32 = arith.constant 0 : i32
    %c0_i32_0 = arith.constant 0 : i32
    %c0_i32_1 = arith.constant 0 : i32
    return %c0_i32, %c0_i32_0 : i32, i32
  }
  func.func @transform_7(%arg0: i32) -> (i32, i32, i32) {
    %c0_i32 = arith.constant 0 : i32
    %c0_i32_0 = arith.constant 0 : i32
    %c0_i32_1 = arith.constant 0 : i32
    %c0_i32_2 = arith.constant 0 : i32
    return %c0_i32, %c0_i32_0, %c0_i32_1 : i32, i32, i32
  }
  func.func @transform_8(%arg0: i32) -> (i32, i32, i32) {
    %c0_i32 = arith.constant 0 : i32
    %c0_i32_0 = arith.constant 0 : i32
    %c0_i32_1 = arith.constant 0 : i32
    %c0_i32_2 = arith.constant 0 : i32
    return %c0_i32, %c0_i32_0, %c0_i32_1 : i32, i32, i32
  }
  func.func @transform_9(%arg0: i32) -> (i32, i32, i32) {
    %c0_i32 = arith.constant 0 : i32
    %c0_i32_0 = arith.constant 0 : i32
    %c0_i32_1 = arith.constant 0 : i32
    %c0_i32_2 = arith.constant 0 : i32
    return %c0_i32, %c0_i32_0, %c0_i32_1 : i32, i32, i32
  }
  func.func @transform_10(%arg0: i32) -> (i32, i32, i32) {
    %c0_i32 = arith.constant 0 : i32
    %c0_i32_0 = arith.constant 0 : i32
    %c0_i32_1 = arith.constant 0 : i32
    %c0_i32_2 = arith.constant 0 : i32
    return %c0_i32, %c0_i32_0, %c0_i32_1 : i32, i32, i32
  }
  func.func @transform_11(%arg0: i32) -> (i32, i32, i32) {
    %c0_i32 = arith.constant 0 : i32
    %c0_i32_0 = arith.constant 0 : i32
    %c0_i32_1 = arith.constant 0 : i32
    %c0_i32_2 = arith.constant 0 : i32
    return %c0_i32, %c0_i32_0, %c0_i32_1 : i32, i32, i32
  }
  func.func @transform_12(%arg0: i32) -> (i32, i32, i32) {
    %c0_i32 = arith.constant 0 : i32
    %c0_i32_0 = arith.constant 0 : i32
    %c0_i32_1 = arith.constant 0 : i32
    %c0_i32_2 = arith.constant 0 : i32
    return %c0_i32, %c0_i32_0, %c0_i32_1 : i32, i32, i32
  }
  func.func @transform_13(%arg0: i32) -> (i32, i32, i32) {
    %c0_i32 = arith.constant 0 : i32
    %c0_i32_0 = arith.constant 0 : i32
    %c0_i32_1 = arith.constant 0 : i32
    %c0_i32_2 = arith.constant 0 : i32
    return %c0_i32, %c0_i32_0, %c0_i32_1 : i32, i32, i32
  }
  func.func @transform_14(%arg0: i32) -> (i32, i32, i32) {
    %c0_i32 = arith.constant 0 : i32
    %c0_i32_0 = arith.constant 0 : i32
    %c0_i32_1 = arith.constant 0 : i32
    %c0_i32_2 = arith.constant 0 : i32
    return %c0_i32, %c0_i32_0, %c0_i32_1 : i32, i32, i32
  }
  func.func @transform_15(%arg0: i32) -> (i32, i32, i32) {
    %c0_i32 = arith.constant 0 : i32
    %c0_i32_0 = arith.constant 0 : i32
    %c0_i32_1 = arith.constant 0 : i32
    %c0_i32_2 = arith.constant 0 : i32
    return %c0_i32, %c0_i32_0, %c0_i32_1 : i32, i32, i32
  }
  func.func @transform_16(%arg0: i32) -> (i32, i32, i32) {
    %c0_i32 = arith.constant 0 : i32
    %c0_i32_0 = arith.constant 0 : i32
    %c0_i32_1 = arith.constant 0 : i32
    %c0_i32_2 = arith.constant 0 : i32
    return %c0_i32, %c0_i32_0, %c0_i32_1 : i32, i32, i32
  }
  func.func @transform_17(%arg0: i32) -> (i32, i32, i32) {
    %c0_i32 = arith.constant 0 : i32
    %c0_i32_0 = arith.constant 0 : i32
    %c0_i32_1 = arith.constant 0 : i32
    %c0_i32_2 = arith.constant 0 : i32
    return %c0_i32, %c0_i32_0, %c0_i32_1 : i32, i32, i32
  }
  func.func @transform_18(%arg0: i32) -> (i32, i32, i32) {
    %c0_i32 = arith.constant 0 : i32
    %c0_i32_0 = arith.constant 0 : i32
    %c0_i32_1 = arith.constant 0 : i32
    %c0_i32_2 = arith.constant 0 : i32
    return %c0_i32, %c0_i32_0, %c0_i32_1 : i32, i32, i32
  }
  func.func @transform_19(%arg0: i32) -> (i32, i32) {
    %c0_i32 = arith.constant 0 : i32
    %c0_i32_0 = arith.constant 0 : i32
    %c0_i32_1 = arith.constant 0 : i32
    return %c0_i32, %c0_i32_0 : i32, i32
  }
  func.func @transform_20(%arg0: i32) -> (i32, i32) {
    %c0_i32 = arith.constant 0 : i32
    %c0_i32_0 = arith.constant 0 : i32
    %c0_i32_1 = arith.constant 0 : i32
    return %c0_i32, %c0_i32_0 : i32, i32
  }
  func.func @transform_21(%arg0: i32) -> (i32, i32) {
    %c0_i32 = arith.constant 0 : i32
    %c0_i32_0 = arith.constant 0 : i32
    %c0_i32_1 = arith.constant 0 : i32
    return %c0_i32, %c0_i32_0 : i32, i32
  }
  func.func @transform_22(%arg0: i32) -> (i32, i32) {
    %c0_i32 = arith.constant 0 : i32
    %c0_i32_0 = arith.constant 0 : i32
    %c0_i32_1 = arith.constant 0 : i32
    return %c0_i32, %c0_i32_0 : i32, i32
  }
  func.func @transform_23(%arg0: i32) -> (i32, i32) {
    %c0_i32 = arith.constant 0 : i32
    %c0_i32_0 = arith.constant 0 : i32
    %c0_i32_1 = arith.constant 0 : i32
    return %c0_i32, %c0_i32_0 : i32, i32
  }
  func.func @transform_24(%arg0: i32) -> (i32, i32) {
    %c0_i32 = arith.constant 0 : i32
    %c0_i32_0 = arith.constant 0 : i32
    %c0_i32_1 = arith.constant 0 : i32
    return %c0_i32, %c0_i32_0 : i32, i32
  }
  func.func @transform_25(%arg0: i32) -> (i32, i32) {
    %c0_i32 = arith.constant 0 : i32
    %c0_i32_0 = arith.constant 0 : i32
    %c0_i32_1 = arith.constant 0 : i32
    return %c0_i32, %c0_i32_0 : i32, i32
  }
  func.func @transform_26(%arg0: i32) -> (i32, i32) {
    %c0_i32 = arith.constant 0 : i32
    %c0_i32_0 = arith.constant 0 : i32
    %c0_i32_1 = arith.constant 0 : i32
    return %c0_i32, %c0_i32_0 : i32, i32
  }
  func.func @transform_27(%arg0: i32) -> (i32, i32) {
    %c0_i32 = arith.constant 0 : i32
    %c0_i32_0 = arith.constant 0 : i32
    %c0_i32_1 = arith.constant 0 : i32
    return %c0_i32, %c0_i32_0 : i32, i32
  }
  func.func @transform_28(%arg0: i32) -> (i32, i32) {
    %c0_i32 = arith.constant 0 : i32
    %c0_i32_0 = arith.constant 0 : i32
    %c0_i32_1 = arith.constant 0 : i32
    return %c0_i32, %c0_i32_0 : i32, i32
  }
  func.func @transform_29(%arg0: i32) -> (i32, i32) {
    %c0_i32 = arith.constant 0 : i32
    %c0_i32_0 = arith.constant 0 : i32
    %c0_i32_1 = arith.constant 0 : i32
    return %c0_i32, %c0_i32_0 : i32, i32
  }
  func.func @transform_30(%arg0: i32) -> (i32, i32) {
    %c0_i32 = arith.constant 0 : i32
    %c0_i32_0 = arith.constant 0 : i32
    %c0_i32_1 = arith.constant 0 : i32
    return %c0_i32, %c0_i32_0 : i32, i32
  }
  func.func @transform_31(%arg0: i32) -> (i32, i32) {
    %c0_i32 = arith.constant 0 : i32
    %c0_i32_0 = arith.constant 0 : i32
    %c0_i32_1 = arith.constant 0 : i32
    return %c0_i32, %c0_i32_0 : i32, i32
  }
  func.func @transform_32(%arg0: i32) -> (i32, i32) {
    %c0_i32 = arith.constant 0 : i32
    %c0_i32_0 = arith.constant 0 : i32
    %c0_i32_1 = arith.constant 0 : i32
    return %c0_i32, %c0_i32_0 : i32, i32
  }
  func.func @transform_33(%arg0: i32) -> (i32, i32) {
    %c0_i32 = arith.constant 0 : i32
    %c0_i32_0 = arith.constant 0 : i32
    %c0_i32_1 = arith.constant 0 : i32
    return %c0_i32, %c0_i32_0 : i32, i32
  }
  func.func @transform_34(%arg0: i32) -> (i32, i32) {
    %c0_i32 = arith.constant 0 : i32
    %c0_i32_0 = arith.constant 0 : i32
    %c0_i32_1 = arith.constant 0 : i32
    return %c0_i32, %c0_i32_0 : i32, i32
  }
  func.func @transform_35(%arg0: i32) -> (i32, i32) {
    %c0_i32 = arith.constant 0 : i32
    %c0_i32_0 = arith.constant 0 : i32
    %c0_i32_1 = arith.constant 0 : i32
    return %c0_i32, %c0_i32_0 : i32, i32
  }
}

</mosaic_0001>

<llo_original>
// kernel: tpu_custom_call.1
$region0: #{tpu_custom_call.1}
  #allocation0 [shape = 'u32[]', space=smem, size = 0x4, offset = 0x4, fixed_abs, tag = 'smem constant byte address 0x4 - core index']
  #allocation1 [shape = 'u32[72,128]{1,0:T(1,128)}', space=vmem, size = 0x9000, scoped, tag = 'internal scratch']
  %s0 = inlined_call_operand.smem [shape: u32[36], index: -1, kind: input, shape index: {}]
  %s1 = sld [smem:[%s0]]
  %s2 = scalar_lea.smem %s0, 1
  %s3 = sld [smem:[%s2]]
  %s4 = scalar_lea.smem %s0, 2
  %s5 = sld [smem:[%s4]]
  %s6 = scalar_lea.smem %s0, 3
  %s7 = sld [smem:[%s6]]
  %s8 = scalar_lea.smem %s0, 4
  %s9 = sld [smem:[%s8]]
  %s10 = scalar_lea.smem %s0, 5
  %s11 = sld [smem:[%s10]]
  %s12 = scalar_lea.smem %s0, 6
  %s13 = sld [smem:[%s12]]
  %s14 = scalar_lea.smem %s0, 7
  %s15 = sld [smem:[%s14]]
  %s16 = scalar_lea.smem %s0, 8
  %s17 = sld [smem:[%s16]]
  %s18 = scalar_lea.smem %s0, 9
  %s19 = sld [smem:[%s18]]
  %s20 = scalar_lea.smem %s0, 10
  %s21 = sld [smem:[%s20]]
  %s22 = scalar_lea.smem %s0, 11
  %s23 = sld [smem:[%s22]]
  %s24 = scalar_lea.smem %s0, 12
  %s25 = sld [smem:[%s24]]
  %s26 = scalar_lea.smem %s0, 13
  %s27 = sld [smem:[%s26]]
  %s28 = scalar_lea.smem %s0, 14
  %s29 = sld [smem:[%s28]]
  %s30 = scalar_lea.smem %s0, 15
  %s31 = sld [smem:[%s30]]
  %s32 = scalar_lea.smem %s0, 16
  %s33 = sld [smem:[%s32]]
  %s34 = scalar_lea.smem %s0, 17
  %s35 = sld [smem:[%s34]]
  %s36 = scalar_lea.smem %s0, 18
  %s37 = sld [smem:[%s36]]
  %s38 = scalar_lea.smem %s0, 19
  %s39 = sld [smem:[%s38]]
  %s40 = scalar_lea.smem %s0, 20
  %s41 = sld [smem:[%s40]]
  %s42 = scalar_lea.smem %s0, 21
  %s43 = sld [smem:[%s42]]
  %s44 = scalar_lea.smem %s0, 22
  %s45 = sld [smem:[%s44]]
  %s46 = scalar_lea.smem %s0, 23
  %s47 = sld [smem:[%s46]]
  %s48 = scalar_lea.smem %s0, 24
  %s49 = sld [smem:[%s48]]
  %s50 = scalar_lea.smem %s0, 25
  %s51 = sld [smem:[%s50]]
  %s52 = scalar_lea.smem %s0, 26
  %s53 = sld [smem:[%s52]]
  %s54 = scalar_lea.smem %s0, 27
  %s55 = sld [smem:[%s54]]
  %s56 = scalar_lea.smem %s0, 28
  %s57 = sld [smem:[%s56]]
  %s58 = scalar_lea.smem %s0, 29
  %s59 = sld [smem:[%s58]]
  %s60 = scalar_lea.smem %s0, 30
  %s61 = sld [smem:[%s60]]
  %s62 = scalar_lea.smem %s0, 31
  %s63 = sld [smem:[%s62]]
  %s64 = scalar_lea.smem %s0, 32
  %s65 = sld [smem:[%s64]]
  %s66 = scalar_lea.smem %s0, 33
  %s67 = sld [smem:[%s66]]
  %s68 = scalar_lea.smem %s0, 34
  %s69 = sld [smem:[%s68]]
  %s70 = scalar_lea.smem %s0, 35
  %s71 = sld [smem:[%s70]]
  %s72 = sld [smem:[#allocation0]]
  $region242: #{tpu_custom_call.1} parent=0
    _
  %s74 = ssub.s32 1, %s72
  %s75 = scalar_select 0, %s74, %s72
  $region1: #{tpu_custom_call.1} parent=0
    #allocation2 [shape = 'u8[4096]{0}', space=vmem, size = 0x1000, scoped, tag = 'input window, operand 2, single buffered']
    #allocation3 [shape = 's32[1]{0}', space=sflag, size = 0x4, scoped, tag = 'scoped memory for tpu_custom_call.1']
    #allocation4 [shape = 's32[1]{0}', space=sflag, size = 0x4, scoped, tag = 'scoped memory for tpu_custom_call.1']
    #allocation5 [shape = 'u8[2048]{0}', space=vmem, size = 0x800, scoped, tag = 'input window, operand 3, single buffered']
    #allocation6 [shape = 's32[1]{0}', space=sflag, size = 0x4, scoped, tag = 'scoped memory for tpu_custom_call.1']
    #allocation7 [shape = 'u8[512]{0}', space=vmem, size = 0x400, scoped, tag = 'input window, operand 4, single buffered']
    #allocation8 [shape = 'u8[1024]{0}', space=vmem, size = 0x400, scoped, tag = 'input window, operand 5, single buffered']
    #allocation9 [shape = 's32[1]{0}', space=sflag, size = 0x4, scoped, tag = 'scoped memory for tpu_custom_call.1']
    #allocation10 [shape = 'u8[512]{0}', space=vmem, size = 0x400, scoped, tag = 'input window, operand 6, single buffered']
    #allocation11 [shape = 'u8[2048]{0}', space=vmem, size = 0x800, scoped, tag = 'input window, operand 8, single buffered']
    #allocation12 [shape = 's32[1]{0}', space=sflag, size = 0x4, scoped, tag = 'scoped memory for tpu_custom_call.1']
    #allocation13 [shape = 'u8[2048]{0}', space=vmem, size = 0x800, scoped, tag = 'input window, operand 10, single buffered']
    #allocation14 [shape = 'u8[2048]{0}', space=vmem, size = 0x800, scoped, tag = 'input window, operand 12, single buffered']
    #allocation15 [shape = 's32[1]{0}', space=sflag, size = 0x4, scoped, tag = 'scoped memory for tpu_custom_call.1']
    #allocation16 [shape = 'u8[2048]{0}', space=vmem, size = 0x800, scoped, tag = 'input window, operand 14, single buffered']
    #allocation17 [shape = 'u8[2048]{0}', space=vmem, size = 0x800, scoped, tag = 'input window, operand 15, single buffered']
    #allocation18 [shape = 's32[1]{0}', space=sflag, size = 0x4, scoped, tag = 'scoped memory for tpu_custom_call.1']
    #allocation19 [shape = 'u8[2048]{0}', space=vmem, size = 0x800, scoped, tag = 'input window, operand 16, single buffered']
    #allocation20 [shape = 'u8[2048]{0}', space=vmem, size = 0x800, scoped, tag = 'input window, operand 17, single buffered']
    #allocation21 [shape = 's32[1]{0}', space=sflag, size = 0x4, scoped, tag = 'scoped memory for tpu_custom_call.1']
    #allocation22 [shape = 'u8[2048]{0}', space=vmem, size = 0x800, scoped, tag = 'input window, operand 18, single buffered']
    #allocation23 [shape = 'u8[512]{0}', space=vmem, size = 0x400, scoped, tag = 'input window, operand 20, single buffered']
    #allocation24 [shape = 's32[1]{0}', space=sflag, size = 0x4, scoped, tag = 'scoped memory for tpu_custom_call.1']
    #allocation25 [shape = 'u8[16384]{0}', space=vmem, size = 0x4000, scoped, tag = 'input window, operand 21, single buffered']
    #allocation26 [shape = 'u8[512]{0}', space=vmem, size = 0x400, scoped, tag = 'input window, operand 22, single buffered']
    #allocation27 [shape = 's32[1]{0}', space=sflag, size = 0x4, scoped, tag = 'scoped memory for tpu_custom_call.1']
    #allocation28 [shape = 'u8[16384]{0}', space=vmem, size = 0x4000, scoped, tag = 'input window, operand 23, single buffered']
    #allocation29 [shape = 'u8[512]{0}', space=vmem, size = 0x400, scoped, tag = 'input window, operand 24, single buffered']
    #allocation30 [shape = 's32[1]{0}', space=sflag, size = 0x4, scoped, tag = 'scoped memory for tpu_custom_call.1']
    #allocation31 [shape = 'u8[512]{0}', space=vmem, size = 0x400, scoped, tag = 'input window, operand 26, single buffered']
    #allocation32 [shape = 'u8[16384]{0}', space=vmem, size = 0x4000, scoped, tag = 'input window, operand 27, single buffered']
    #allocation33 [shape = 's32[1]{0}', space=sflag, size = 0x4, scoped, tag = 'scoped memory for tpu_custom_call.1']
    #allocation34 [shape = 'u8[512]{0}', space=vmem, size = 0x400, scoped, tag = 'input window, operand 28, single buffered']
    #allocation35 [shape = 'u8[16384]{0}', space=vmem, size = 0x4000, scoped, tag = 'input window, operand 29, single buffered']
    #allocation36 [shape = 's32[1]{0}', space=sflag, size = 0x4, scoped, tag = 'scoped memory for tpu_custom_call.1']
    #allocation37 [shape = 'u8[16384]{0}', space=vmem, size = 0x4000, scoped, tag = 'input window, operand 33, single buffered']
    #allocation38 [shape = 'u8[1024]{0}', space=vmem, size = 0x400, scoped, tag = 'output window, operand 0, single buffered']
    %76 = vsyncpa [#allocation3], 0
    %77 = vsyncpa [#allocation6], 0
    %78 = vsyncpa [#allocation9], 0
    %79 = vsyncpa [#allocation12], 0
    %80 = vsyncpa [#allocation15], 0
    %81 = vsyncpa [#allocation18], 0
    %82 = vsyncpa [#allocation21], 0
    %83 = vsyncpa [#allocation24], 0
    %84 = vsyncpa [#allocation27], 0
    %85 = vsyncpa [#allocation30], 0
    %86 = vsyncpa [#allocation33], 0
    %87 = vsyncpa [#allocation36], 0
    %88 = vsyncpa [#allocation4], 0
    // Predicated region
    $region2: #{tpu_custom_call.1} parent=1 // pred_check
      _
    $region3: #{tpu_custom_call.1} parent=1 // pred_check_branch
      %90 = sbr.rel (0) target = $region5
    $region4: #{tpu_custom_call.1} parent=1 // pred_region
      _
    $region5: #{tpu_custom_call.1} parent=1 // pred_fallthru
      _
    // Predicated region
    $region6: #{tpu_custom_call.1} parent=1 // pred_check
      _
    $region7: #{tpu_custom_call.1} parent=1 // pred_check_branch
      %92 = sbr.rel (0) target = $region9
    $region8: #{tpu_custom_call.1} parent=1 // pred_region
      _
    $region9: #{tpu_custom_call.1} parent=1 // pred_fallthru
      _
    // Predicated region
    $region10: #{tpu_custom_call.1} parent=1 // pred_check
      _
    $region11: #{tpu_custom_call.1} parent=1 // pred_check_branch
      %94 = sbr.rel (0) target = $region13
    $region12: #{tpu_custom_call.1} parent=1 // pred_region
      %96 = vsyncadd [#allocation3], 0
      %s98 = sshll.u32 %s5, 4
      %s99 = int_to_ptr.hbm [resolvable:$true] %s98
      %s100 = sshll.u32 [#allocation2], 4
      %s101 = int_to_ptr.vmem [resolvable:$true] %s100
      %103 = dma.hbm_to_vmem [thread:$0]  %s99, 128, %s101, [#allocation3]
    $region13: #{tpu_custom_call.1} parent=1 // pred_fallthru
      _
    // Predicated region
    $region14: #{tpu_custom_call.1} parent=1 // pred_check
      _
    $region15: #{tpu_custom_call.1} parent=1 // pred_check_branch
      %105 = sbr.rel (0) target = $region17
    $region16: #{tpu_custom_call.1} parent=1 // pred_region
      %107 = vsyncadd [#allocation6], 0
      %s109 = sshll.u32 %s7, 4
      %s110 = int_to_ptr.hbm [resolvable:$true] %s109
      %s111 = sshll.u32 [#allocation5], 4
      %s112 = int_to_ptr.vmem [resolvable:$true] %s111
      %114 = dma.hbm_to_vmem [thread:$0]  %s110, 64, %s112, [#allocation6]
    $region17: #{tpu_custom_call.1} parent=1 // pred_fallthru
      _
    // Predicated region
    $region18: #{tpu_custom_call.1} parent=1 // pred_check
      _
    $region19: #{tpu_custom_call.1} parent=1 // pred_check_branch
      %116 = sbr.rel (0) target = $region21
    $region20: #{tpu_custom_call.1} parent=1 // pred_region
      %118 = vsyncadd [#allocation6], 0
      %s120 = sshll.u32 %s9, 4
      %s121 = int_to_ptr.hbm [resolvable:$true] %s120
      %s122 = sshll.u32 [#allocation7], 4
      %s123 = int_to_ptr.vmem [resolvable:$true] %s122
      %125 = dma.hbm_to_vmem [thread:$0]  %s121, 16, %s123, [#allocation6]
    $region21: #{tpu_custom_call.1} parent=1 // pred_fallthru
      _
    // Predicated region
    $region22: #{tpu_custom_call.1} parent=1 // pred_check
      _
    $region23: #{tpu_custom_call.1} parent=1 // pred_check_branch
      %127 = sbr.rel (0) target = $region25
    $region24: #{tpu_custom_call.1} parent=1 // pred_region
      %129 = vsyncadd [#allocation9], 0
      %s131 = sshll.u32 %s11, 4
      %s132 = int_to_ptr.hbm [resolvable:$true] %s131
      %s133 = sshll.u32 [#allocation8], 4
      %s134 = int_to_ptr.vmem [resolvable:$true] %s133
      %136 = dma.hbm_to_vmem [thread:$0]  %s132, 32, %s134, [#allocation9]
    $region25: #{tpu_custom_call.1} parent=1 // pred_fallthru
      _
    // Predicated region
    $region26: #{tpu_custom_call.1} parent=1 // pred_check
      _
    $region27: #{tpu_custom_call.1} parent=1 // pred_check_branch
      %138 = sbr.rel (0) target = $region29
    $region28: #{tpu_custom_call.1} parent=1 // pred_region
      %140 = vsyncadd [#allocation9], 0
      %s142 = sshll.u32 %s13, 4
      %s143 = int_to_ptr.hbm [resolvable:$true] %s142
      %s144 = sshll.u32 [#allocation10], 4
      %s145 = int_to_ptr.vmem [resolvable:$true] %s144
      %147 = dma.hbm_to_vmem [thread:$0]  %s143, 16, %s145, [#allocation9]
    $region29: #{tpu_custom_call.1} parent=1 // pred_fallthru
      _
    // Predicated region
    $region30: #{tpu_custom_call.1} parent=1 // pred_check
      _
    $region31: #{tpu_custom_call.1} parent=1 // pred_check_branch
      %149 = sbr.rel (0) target = $region33
    $region32: #{tpu_custom_call.1} parent=1 // pred_region
      _
    $region33: #{tpu_custom_call.1} parent=1 // pred_fallthru
      _
    // Predicated region
    $region34: #{tpu_custom_call.1} parent=1 // pred_check
      _
    $region35: #{tpu_custom_call.1} parent=1 // pred_check_branch
      %151 = sbr.rel (0) target = $region37
    $region36: #{tpu_custom_call.1} parent=1 // pred_region
      %153 = vsyncadd [#allocation12], 0
      %s154 = sshll.u32 %s17, 4
      %s155 = int_to_ptr.hbm [resolvable:$true] %s154
      %s156 = sshll.u32 [#allocation11], 4
      %s157 = int_to_ptr.vmem [resolvable:$true] %s156
      %162 = dma.hbm_to_vmem [thread:$0]  %s155, 64, %s157, [#allocation12], 16, 16, 1
    $region37: #{tpu_custom_call.1} parent=1 // pred_fallthru
      _
    // Predicated region
    $region38: #{tpu_custom_call.1} parent=1 // pred_check
      _
    $region39: #{tpu_custom_call.1} parent=1 // pred_check_branch
      %164 = sbr.rel (0) target = $region41
    $region40: #{tpu_custom_call.1} parent=1 // pred_region
      _
    $region41: #{tpu_custom_call.1} parent=1 // pred_fallthru
      _
    // Predicated region
    $region42: #{tpu_custom_call.1} parent=1 // pred_check
      _
    $region43: #{tpu_custom_call.1} parent=1 // pred_check_branch
      %166 = sbr.rel (0) target = $region45
    $region44: #{tpu_custom_call.1} parent=1 // pred_region
      %168 = vsyncadd [#allocation12], 0
      %s169 = sshll.u32 %s21, 4
      %s170 = int_to_ptr.hbm [resolvable:$true] %s169
      %s171 = sshll.u32 [#allocation13], 4
      %s172 = int_to_ptr.vmem [resolvable:$true] %s171
      %177 = dma.hbm_to_vmem [thread:$0]  %s170, 64, %s172, [#allocation12], 16, 16, 1
    $region45: #{tpu_custom_call.1} parent=1 // pred_fallthru
      _
    // Predicated region
    $region46: #{tpu_custom_call.1} parent=1 // pred_check
      _
    $region47: #{tpu_custom_call.1} parent=1 // pred_check_branch
      %179 = sbr.rel (0) target = $region49
    $region48: #{tpu_custom_call.1} parent=1 // pred_region
      _
    $region49: #{tpu_custom_call.1} parent=1 // pred_fallthru
      _
    // Predicated region
    $region50: #{tpu_custom_call.1} parent=1 // pred_check
      _
    $region51: #{tpu_custom_call.1} parent=1 // pred_check_branch
      %181 = sbr.rel (0) target = $region53
    $region52: #{tpu_custom_call.1} parent=1 // pred_region
      %183 = vsyncadd [#allocation15], 0
      %s184 = sshll.u32 %s25, 4
      %s185 = int_to_ptr.hbm [resolvable:$true] %s184
      %s186 = sshll.u32 [#allocation14], 4
      %s187 = int_to_ptr.vmem [resolvable:$true] %s186
      %192 = dma.hbm_to_vmem [thread:$0]  %s185, 64, %s187, [#allocation15], 16, 16, 1
    $region53: #{tpu_custom_call.1} parent=1 // pred_fallthru
      _
    // Predicated region
    $region54: #{tpu_custom_call.1} parent=1 // pred_check
      _
    $region55: #{tpu_custom_call.1} parent=1 // pred_check_branch
      %194 = sbr.rel (0) target = $region57
    $region56: #{tpu_custom_call.1} parent=1 // pred_region
      _
    $region57: #{tpu_custom_call.1} parent=1 // pred_fallthru
      _
    // Predicated region
    $region58: #{tpu_custom_call.1} parent=1 // pred_check
      _
    $region59: #{tpu_custom_call.1} parent=1 // pred_check_branch
      %196 = sbr.rel (0) target = $region61
    $region60: #{tpu_custom_call.1} parent=1 // pred_region
      %198 = vsyncadd [#allocation15], 0
      %s199 = sshll.u32 %s29, 4
      %s200 = int_to_ptr.hbm [resolvable:$true] %s199
      %s201 = sshll.u32 [#allocation16], 4
      %s202 = int_to_ptr.vmem [resolvable:$true] %s201
      %207 = dma.hbm_to_vmem [thread:$0]  %s200, 64, %s202, [#allocation15], 16, 16, 1
    $region61: #{tpu_custom_call.1} parent=1 // pred_fallthru
      _
    // Predicated region
    $region62: #{tpu_custom_call.1} parent=1 // pred_check
      _
    $region63: #{tpu_custom_call.1} parent=1 // pred_check_branch
      %209 = sbr.rel (0) target = $region65
    $region64: #{tpu_custom_call.1} parent=1 // pred_region
      %211 = vsyncadd [#allocation18], 0
      %s212 = sshll.u32 %s31, 4
      %s213 = int_to_ptr.hbm [resolvable:$true] %s212
      %s214 = sshll.u32 [#allocation17], 4
      %s215 = int_to_ptr.vmem [resolvable:$true] %s214
      %220 = dma.hbm_to_vmem [thread:$0]  %s213, 64, %s215, [#allocation18], 16, 16, 1
    $region65: #{tpu_custom_call.1} parent=1 // pred_fallthru
      _
    // Predicated region
    $region66: #{tpu_custom_call.1} parent=1 // pred_check
      _
    $region67: #{tpu_custom_call.1} parent=1 // pred_check_branch
      %222 = sbr.rel (0) target = $region69
    $region68: #{tpu_custom_call.1} parent=1 // pred_region
      %224 = vsyncadd [#allocation18], 0
      %s225 = sshll.u32 %s33, 4
      %s226 = int_to_ptr.hbm [resolvable:$true] %s225
      %s227 = sshll.u32 [#allocation19], 4
      %s228 = int_to_ptr.vmem [resolvable:$true] %s227
      %233 = dma.hbm_to_vmem [thread:$0]  %s226, 64, %s228, [#allocation18], 16, 16, 1
    $region69: #{tpu_custom_call.1} parent=1 // pred_fallthru
      _
    // Predicated region
    $region70: #{tpu_custom_call.1} parent=1 // pred_check
      _
    $region71: #{tpu_custom_call.1} parent=1 // pred_check_branch
      %235 = sbr.rel (0) target = $region73
    $region72: #{tpu_custom_call.1} parent=1 // pred_region
      %237 = vsyncadd [#allocation21], 0
      %s238 = sshll.u32 %s35, 4
      %s239 = int_to_ptr.hbm [resolvable:$true] %s238
      %s240 = sshll.u32 [#allocation20], 4
      %s241 = int_to_ptr.vmem [resolvable:$true] %s240
      %246 = dma.hbm_to_vmem [thread:$0]  %s239, 64, %s241, [#allocation21], 16, 16, 1
    $region73: #{tpu_custom_call.1} parent=1 // pred_fallthru
      _
    // Predicated region
    $region74: #{tpu_custom_call.1} parent=1 // pred_check
      _
    $region75: #{tpu_custom_call.1} parent=1 // pred_check_branch
      %248 = sbr.rel (0) target = $region77
    $region76: #{tpu_custom_call.1} parent=1 // pred_region
      %250 = vsyncadd [#allocation21], 0
      %s251 = sshll.u32 %s37, 4
      %s252 = int_to_ptr.hbm [resolvable:$true] %s251
      %s253 = sshll.u32 [#allocation22], 4
      %s254 = int_to_ptr.vmem [resolvable:$true] %s253
      %259 = dma.hbm_to_vmem [thread:$0]  %s252, 64, %s254, [#allocation21], 16, 16, 1
    $region77: #{tpu_custom_call.1} parent=1 // pred_fallthru
      _
    // Predicated region
    $region78: #{tpu_custom_call.1} parent=1 // pred_check
      _
    $region79: #{tpu_custom_call.1} parent=1 // pred_check_branch
      %261 = sbr.rel (0) target = $region81
    $region80: #{tpu_custom_call.1} parent=1 // pred_region
      _
    $region81: #{tpu_custom_call.1} parent=1 // pred_fallthru
      _
    // Predicated region
    $region82: #{tpu_custom_call.1} parent=1 // pred_check
      _
    $region83: #{tpu_custom_call.1} parent=1 // pred_check_branch
      %263 = sbr.rel (0) target = $region85
    $region84: #{tpu_custom_call.1} parent=1 // pred_region
      %265 = vsyncadd [#allocation24], 0
      %s267 = sshll.u32 %s41, 4
      %s268 = int_to_ptr.hbm [resolvable:$true] %s267
      %s269 = sshll.u32 [#allocation23], 4
      %s270 = int_to_ptr.vmem [resolvable:$true] %s269
      %272 = dma.hbm_to_vmem [thread:$0]  %s268, 16, %s270, [#allocation24]
    $region85: #{tpu_custom_call.1} parent=1 // pred_fallthru
      _
    // Predicated region
    $region86: #{tpu_custom_call.1} parent=1 // pred_check
      _
    $region87: #{tpu_custom_call.1} parent=1 // pred_check_branch
      %274 = sbr.rel (0) target = $region89
    $region88: #{tpu_custom_call.1} parent=1 // pred_region
      %276 = vsyncadd [#allocation24], 0
      %s277 = sshll.u32 %s43, 4
      %s278 = int_to_ptr.hbm [resolvable:$true] %s277
      %s279 = sshll.u32 [#allocation25], 4
      %s280 = int_to_ptr.vmem [resolvable:$true] %s279
      %285 = dma.hbm_to_vmem [thread:$0]  %s278, 512, %s280, [#allocation24], 128, 128, 8
    $region89: #{tpu_custom_call.1} parent=1 // pred_fallthru
      _
    // Predicated region
    $region90: #{tpu_custom_call.1} parent=1 // pred_check
      _
    $region91: #{tpu_custom_call.1} parent=1 // pred_check_branch
      %287 = sbr.rel (0) target = $region93
    $region92: #{tpu_custom_call.1} parent=1 // pred_region
      %289 = vsyncadd [#allocation27], 0
      %s291 = sshll.u32 %s45, 4
      %s292 = int_to_ptr.hbm [resolvable:$true] %s291
      %s293 = sshll.u32 [#allocation26], 4
      %s294 = int_to_ptr.vmem [resolvable:$true] %s293
      %296 = dma.hbm_to_vmem [thread:$0]  %s292, 16, %s294, [#allocation27]
    $region93: #{tpu_custom_call.1} parent=1 // pred_fallthru
      _
    // Predicated region
    $region94: #{tpu_custom_call.1} parent=1 // pred_check
      _
    $region95: #{tpu_custom_call.1} parent=1 // pred_check_branch
      %298 = sbr.rel (0) target = $region97
    $region96: #{tpu_custom_call.1} parent=1 // pred_region
      %300 = vsyncadd [#allocation27], 0
      %s301 = sshll.u32 %s47, 4
      %s302 = int_to_ptr.hbm [resolvable:$true] %s301
      %s303 = sshll.u32 [#allocation28], 4
      %s304 = int_to_ptr.vmem [resolvable:$true] %s303
      %309 = dma.hbm_to_vmem [thread:$0]  %s302, 512, %s304, [#allocation27], 128, 128, 8
    $region97: #{tpu_custom_call.1} parent=1 // pred_fallthru
      _
    // Predicated region
    $region98: #{tpu_custom_call.1} parent=1 // pred_check
      _
    $region99: #{tpu_custom_call.1} parent=1 // pred_check_branch
      %311 = sbr.rel (0) target = $region101
    $region100: #{tpu_custom_call.1} parent=1 // pred_region
      %313 = vsyncadd [#allocation30], 0
      %s315 = sshll.u32 %s49, 4
      %s316 = int_to_ptr.hbm [resolvable:$true] %s315
      %s317 = sshll.u32 [#allocation29], 4
      %s318 = int_to_ptr.vmem [resolvable:$true] %s317
      %320 = dma.hbm_to_vmem [thread:$0]  %s316, 16, %s318, [#allocation30]
    $region101: #{tpu_custom_call.1} parent=1 // pred_fallthru
      _
    // Predicated region
    $region102: #{tpu_custom_call.1} parent=1 // pred_check
      _
    $region103: #{tpu_custom_call.1} parent=1 // pred_check_branch
      %322 = sbr.rel (0) target = $region105
    $region104: #{tpu_custom_call.1} parent=1 // pred_region
      _
    $region105: #{tpu_custom_call.1} parent=1 // pred_fallthru
      _
    // Predicated region
    $region106: #{tpu_custom_call.1} parent=1 // pred_check
      _
    $region107: #{tpu_custom_call.1} parent=1 // pred_check_branch
      %324 = sbr.rel (0) target = $region109
    $region108: #{tpu_custom_call.1} parent=1 // pred_region
      %326 = vsyncadd [#allocation30], 0
      %s328 = sshll.u32 %s53, 4
      %s329 = int_to_ptr.hbm [resolvable:$true] %s328
      %s330 = sshll.u32 [#allocation31], 4
      %s331 = int_to_ptr.vmem [resolvable:$true] %s330
      %333 = dma.hbm_to_vmem [thread:$0]  %s329, 16, %s331, [#allocation30]
    $region109: #{tpu_custom_call.1} parent=1 // pred_fallthru
      _
    // Predicated region
    $region110: #{tpu_custom_call.1} parent=1 // pred_check
      _
    $region111: #{tpu_custom_call.1} parent=1 // pred_check_branch
      %335 = sbr.rel (0) target = $region113
    $region112: #{tpu_custom_call.1} parent=1 // pred_region
      %337 = vsyncadd [#allocation33], 0
      %s338 = sshll.u32 %s55, 4
      %s339 = int_to_ptr.hbm [resolvable:$true] %s338
      %s340 = sshll.u32 [#allocation32], 4
      %s341 = int_to_ptr.vmem [resolvable:$true] %s340
      %346 = dma.hbm_to_vmem [thread:$0]  %s339, 512, %s341, [#allocation33], 128, 128, 8
    $region113: #{tpu_custom_call.1} parent=1 // pred_fallthru
      _
    // Predicated region
    $region114: #{tpu_custom_call.1} parent=1 // pred_check
      _
    $region115: #{tpu_custom_call.1} parent=1 // pred_check_branch
      %348 = sbr.rel (0) target = $region117
    $region116: #{tpu_custom_call.1} parent=1 // pred_region
      %350 = vsyncadd [#allocation33], 0
      %s352 = sshll.u32 %s57, 4
      %s353 = int_to_ptr.hbm [resolvable:$true] %s352
      %s354 = sshll.u32 [#allocation34], 4
      %s355 = int_to_ptr.vmem [resolvable:$true] %s354
      %357 = dma.hbm_to_vmem [thread:$0]  %s353, 16, %s355, [#allocation33]
    $region117: #{tpu_custom_call.1} parent=1 // pred_fallthru
      _
    // Predicated region
    $region118: #{tpu_custom_call.1} parent=1 // pred_check
      _
    $region119: #{tpu_custom_call.1} parent=1 // pred_check_branch
      %359 = sbr.rel (0) target = $region121
    $region120: #{tpu_custom_call.1} parent=1 // pred_region
      %361 = vsyncadd [#allocation36], 0
      %s362 = sshll.u32 %s59, 4
      %s363 = int_to_ptr.hbm [resolvable:$true] %s362
      %s364 = sshll.u32 [#allocation35], 4
      %s365 = int_to_ptr.vmem [resolvable:$true] %s364
      %370 = dma.hbm_to_vmem [thread:$0]  %s363, 512, %s365, [#allocation36], 128, 128, 8
    $region121: #{tpu_custom_call.1} parent=1 // pred_fallthru
      _
    // Predicated region
    $region122: #{tpu_custom_call.1} parent=1 // pred_check
      _
    $region123: #{tpu_custom_call.1} parent=1 // pred_check_branch
      %372 = sbr.rel (0) target = $region125
    $region124: #{tpu_custom_call.1} parent=1 // pred_region
      _
    $region125: #{tpu_custom_call.1} parent=1 // pred_fallthru
      _
    // Predicated region
    $region126: #{tpu_custom_call.1} parent=1 // pred_check
      _
    $region127: #{tpu_custom_call.1} parent=1 // pred_check_branch
      %374 = sbr.rel (0) target = $region129
    $region128: #{tpu_custom_call.1} parent=1 // pred_region
      _
    $region129: #{tpu_custom_call.1} parent=1 // pred_fallthru
      _
    // Predicated region
    $region130: #{tpu_custom_call.1} parent=1 // pred_check
      _
    $region131: #{tpu_custom_call.1} parent=1 // pred_check_branch
      %376 = sbr.rel (0) target = $region133
    $region132: #{tpu_custom_call.1} parent=1 // pred_region
      _
    $region133: #{tpu_custom_call.1} parent=1 // pred_fallthru
      _
    // Predicated region
    $region134: #{tpu_custom_call.1} parent=1 // pred_check
      _
    $region135: #{tpu_custom_call.1} parent=1 // pred_check_branch
      %378 = sbr.rel (0) target = $region137
    $region136: #{tpu_custom_call.1} parent=1 // pred_region
      %380 = vsyncadd [#allocation36], 0
      %s381 = sshll.u32 %s67, 4
      %s382 = int_to_ptr.hbm [resolvable:$true] %s381
      %s383 = sshll.u32 [#allocation37], 4
      %s384 = int_to_ptr.vmem [resolvable:$true] %s383
      %389 = dma.hbm_to_vmem [thread:$0]  %s382, 512, %s384, [#allocation36], 128, 128, 8
    $region137: #{tpu_custom_call.1} parent=1 // pred_fallthru
      _
    // Predicated region
    $region138: #{tpu_custom_call.1} parent=1 // pred_check
      _
    $region139: #{tpu_custom_call.1} parent=1 // pred_check_branch
      %391 = sbr.rel (0) target = $region141
    $region140: #{tpu_custom_call.1} parent=1 // pred_region
      _
    $region141: #{tpu_custom_call.1} parent=1 // pred_fallthru
      _
    // Predicated region
    $region142: #{tpu_custom_call.1} parent=1 // pred_check
      _
    $region143: #{tpu_custom_call.1} parent=1 // pred_check_branch
      %393 = sbr.rel (0) target = $region145
    $region144: #{tpu_custom_call.1} parent=1 // pred_region
      %395 = dma.done [#allocation3], 128
    $region145: #{tpu_custom_call.1} parent=1 // pred_fallthru
      _
    // Predicated region
    $region146: #{tpu_custom_call.1} parent=1 // pred_check
      _
    $region147: #{tpu_custom_call.1} parent=1 // pred_check_branch
      %397 = sbr.rel (0) target = $region149
    $region148: #{tpu_custom_call.1} parent=1 // pred_region
      %399 = dma.done [#allocation6], 64
    $region149: #{tpu_custom_call.1} parent=1 // pred_fallthru
      _
    // Predicated region
    $region150: #{tpu_custom_call.1} parent=1 // pred_check
      _
    $region151: #{tpu_custom_call.1} parent=1 // pred_check_branch
      %401 = sbr.rel (0) target = $region153
    $region152: #{tpu_custom_call.1} parent=1 // pred_region
      %403 = dma.done [#allocation6], 16
    $region153: #{tpu_custom_call.1} parent=1 // pred_fallthru
      _
    // Predicated region
    $region154: #{tpu_custom_call.1} parent=1 // pred_check
      _
    $region155: #{tpu_custom_call.1} parent=1 // pred_check_branch
      %405 = sbr.rel (0) target = $region157
    $region156: #{tpu_custom_call.1} parent=1 // pred_region
      %407 = dma.done [#allocation9], 32
    $region157: #{tpu_custom_call.1} parent=1 // pred_fallthru
      _
    // Predicated region
    $region158: #{tpu_custom_call.1} parent=1 // pred_check
      _
    $region159: #{tpu_custom_call.1} parent=1 // pred_check_branch
      %409 = sbr.rel (0) target = $region161
    $region160: #{tpu_custom_call.1} parent=1 // pred_region
      %411 = dma.done [#allocation9], 16
    $region161: #{tpu_custom_call.1} parent=1 // pred_fallthru
      _
    // Predicated region
    $region162: #{tpu_custom_call.1} parent=1 // pred_check
      _
    $region163: #{tpu_custom_call.1} parent=1 // pred_check_branch
      %413 = sbr.rel (0) target = $region165
    $region164: #{tpu_custom_call.1} parent=1 // pred_region
      %415 = dma.done [#allocation12], 64
    $region165: #{tpu_custom_call.1} parent=1 // pred_fallthru
      _
    // Predicated region
    $region166: #{tpu_custom_call.1} parent=1 // pred_check
      _
    $region167: #{tpu_custom_call.1} parent=1 // pred_check_branch
      %417 = sbr.rel (0) target = $region169
    $region168: #{tpu_custom_call.1} parent=1 // pred_region
      %419 = dma.done [#allocation12], 64
    $region169: #{tpu_custom_call.1} parent=1 // pred_fallthru
      _
    // Predicated region
    $region170: #{tpu_custom_call.1} parent=1 // pred_check
      _
    $region171: #{tpu_custom_call.1} parent=1 // pred_check_branch
      %421 = sbr.rel (0) target = $region173
    $region172: #{tpu_custom_call.1} parent=1 // pred_region
      %423 = dma.done [#allocation15], 64
    $region173: #{tpu_custom_call.1} parent=1 // pred_fallthru
      _
    // Predicated region
    $region174: #{tpu_custom_call.1} parent=1 // pred_check
      _
    $region175: #{tpu_custom_call.1} parent=1 // pred_check_branch
      %425 = sbr.rel (0) target = $region177
    $region176: #{tpu_custom_call.1} parent=1 // pred_region
      %427 = dma.done [#allocation15], 64
    $region177: #{tpu_custom_call.1} parent=1 // pred_fallthru
      _
    // Predicated region
    $region178: #{tpu_custom_call.1} parent=1 // pred_check
      _
    $region179: #{tpu_custom_call.1} parent=1 // pred_check_branch
      %429 = sbr.rel (0) target = $region181
    $region180: #{tpu_custom_call.1} parent=1 // pred_region
      %431 = dma.done [#allocation18], 64
    $region181: #{tpu_custom_call.1} parent=1 // pred_fallthru
      _
    // Predicated region
    $region182: #{tpu_custom_call.1} parent=1 // pred_check
      _
    $region183: #{tpu_custom_call.1} parent=1 // pred_check_branch
      %433 = sbr.rel (0) target = $region185
    $region184: #{tpu_custom_call.1} parent=1 // pred_region
      %435 = dma.done [#allocation18], 64
    $region185: #{tpu_custom_call.1} parent=1 // pred_fallthru
      _
    // Predicated region
    $region186: #{tpu_custom_call.1} parent=1 // pred_check
      _
    $region187: #{tpu_custom_call.1} parent=1 // pred_check_branch
      %437 = sbr.rel (0) target = $region189
    $region188: #{tpu_custom_call.1} parent=1 // pred_region
      %439 = dma.done [#allocation21], 64
    $region189: #{tpu_custom_call.1} parent=1 // pred_fallthru
      _
    // Predicated region
    $region190: #{tpu_custom_call.1} parent=1 // pred_check
      _
    $region191: #{tpu_custom_call.1} parent=1 // pred_check_branch
      %441 = sbr.rel (0) target = $region193
    $region192: #{tpu_custom_call.1} parent=1 // pred_region
      %443 = dma.done [#allocation21], 64
    $region193: #{tpu_custom_call.1} parent=1 // pred_fallthru
      _
    // Predicated region
    $region194: #{tpu_custom_call.1} parent=1 // pred_check
      _
    $region195: #{tpu_custom_call.1} parent=1 // pred_check_branch
      %445 = sbr.rel (0) target = $region197
    $region196: #{tpu_custom_call.1} parent=1 // pred_region
      %447 = dma.done [#allocation24], 16
    $region197: #{tpu_custom_call.1} parent=1 // pred_fallthru
      _
    // Predicated region
    $region198: #{tpu_custom_call.1} parent=1 // pred_check
      _
    $region199: #{tpu_custom_call.1} parent=1 // pred_check_branch
      %449 = sbr.rel (0) target = $region201
    $region200: #{tpu_custom_call.1} parent=1 // pred_region
      %451 = dma.done [#allocation24], 512
    $region201: #{tpu_custom_call.1} parent=1 // pred_fallthru
      _
    // Predicated region
    $region202: #{tpu_custom_call.1} parent=1 // pred_check
      _
    $region203: #{tpu_custom_call.1} parent=1 // pred_check_branch
      %453 = sbr.rel (0) target = $region205
    $region204: #{tpu_custom_call.1} parent=1 // pred_region
      %455 = dma.done [#allocation27], 16
    $region205: #{tpu_custom_call.1} parent=1 // pred_fallthru
      _
    // Predicated region
    $region206: #{tpu_custom_call.1} parent=1 // pred_check
      _
    $region207: #{tpu_custom_call.1} parent=1 // pred_check_branch
      %457 = sbr.rel (0) target = $region209
    $region208: #{tpu_custom_call.1} parent=1 // pred_region
      %459 = dma.done [#allocation27], 512
    $region209: #{tpu_custom_call.1} parent=1 // pred_fallthru
      _
    // Predicated region
    $region210: #{tpu_custom_call.1} parent=1 // pred_check
      _
    $region211: #{tpu_custom_call.1} parent=1 // pred_check_branch
      %461 = sbr.rel (0) target = $region213
    $region212: #{tpu_custom_call.1} parent=1 // pred_region
      %463 = dma.done [#allocation30], 16
    $region213: #{tpu_custom_call.1} parent=1 // pred_fallthru
      _
    // Predicated region
    $region214: #{tpu_custom_call.1} parent=1 // pred_check
      _
    $region215: #{tpu_custom_call.1} parent=1 // pred_check_branch
      %465 = sbr.rel (0) target = $region217
    $region216: #{tpu_custom_call.1} parent=1 // pred_region
      %467 = dma.done [#allocation30], 16
    $region217: #{tpu_custom_call.1} parent=1 // pred_fallthru
      _
    // Predicated region
    $region218: #{tpu_custom_call.1} parent=1 // pred_check
      _
    $region219: #{tpu_custom_call.1} parent=1 // pred_check_branch
      %469 = sbr.rel (0) target = $region221
    $region220: #{tpu_custom_call.1} parent=1 // pred_region
      %471 = dma.done [#allocation33], 512
    $region221: #{tpu_custom_call.1} parent=1 // pred_fallthru
      _
    // Predicated region
    $region222: #{tpu_custom_call.1} parent=1 // pred_check
      _
    $region223: #{tpu_custom_call.1} parent=1 // pred_check_branch
      %473 = sbr.rel (0) target = $region225
    $region224: #{tpu_custom_call.1} parent=1 // pred_region
      %475 = dma.done [#allocation33], 16
    $region225: #{tpu_custom_call.1} parent=1 // pred_fallthru
      _
    // Predicated region
    $region226: #{tpu_custom_call.1} parent=1 // pred_check
      _
    $region227: #{tpu_custom_call.1} parent=1 // pred_check_branch
      %477 = sbr.rel (0) target = $region229
    $region228: #{tpu_custom_call.1} parent=1 // pred_region
      %479 = dma.done [#allocation36], 512
    $region229: #{tpu_custom_call.1} parent=1 // pred_fallthru
      _
    // Predicated region
    $region230: #{tpu_custom_call.1} parent=1 // pred_check
      _
    $region231: #{tpu_custom_call.1} parent=1 // pred_check_branch
      %481 = sbr.rel (0) target = $region233
    $region232: #{tpu_custom_call.1} parent=1 // pred_region
      %483 = dma.done [#allocation36], 512
    $region233: #{tpu_custom_call.1} parent=1 // pred_fallthru
      _
    %v484 = vld [vmem:[%s1] sm:$0xff]
    %v485 = vld [vmem:[%s1 + $0x8] sm:$0xff]
    %v486 = vld [vmem:[%s3] sm:$0xff]
    %v487 = vld [vmem:[%s3 + $0x8] sm:$0xff]
    %v488 = vld [vmem:[#allocation2] sm:$0xff]
    %v489 = vld [vmem:[#allocation5] sm:$0xf]
    %v490 = vld [vmem:[#allocation7] sm:$0x1]
    %v492 = vperm.slane %v490, 0
    %vm494 = vcmask 31744
    %v496 = vsel %vm494, %v484, 0
    %v499 = vsel %vm494, %v485, 0
    %vm501 = vcmask 1043456
    %v503 = vsel %vm501, %v489, 0
    %505 = vmatpush.msra.mxu0 0.0
    %506 = vmatpush.msra.mxu0 0.0
    %507 = vmatpush.msra.mxu0 0.0
    %508 = vmatpush.msra.mxu0 0.0
    %509 = vmatpush.msra.mxu0 0.0
    %510 = vmatpush.msra.mxu0 0.0
    %511 = vmatpush.msra.mxu0 0.0
    %512 = vmatpush.msra.mxu0 0.0
    %513 = vmatpush.msra.mxu0 0.0
    %514 = vmatpush.msra.mxu0 0.0
    %515 = vmatpush.msra.mxu0 0.0
    %516 = vmatpush.msra.mxu0 0.0
    %517 = vmatpush.msra.mxu0 0.0
    %518 = vmatpush.msra.mxu0 0.0
    %519 = vmatpush.msra.mxu0 0.0
    %520 = vmatpush.msra.mxu0 %v503
    %521 = vmatmul.f32.gmra.mxu0 %v496
    %v522 = vpop.f32.mrf.mxu0
    %v523 = vadd.f32 %v492, %v522
    %524 = vmatmul.f32.gmra.mxu0 %v499
    %v525 = vpop.f32.mrf.mxu0
    %v526 = vadd.f32 %v492, %v525
    %527 = vdwg.mxu0
    %v528 = vadd.f32 %v523, %v488
    %v529 = vadd.f32 %v526, %v488
    %v530 = vld [vmem:[#allocation8] sm:$0x3]
    %v531 = vld [vmem:[#allocation10] sm:$0x1]
    %v533 = vperm.slane %v531, 0
    %vm535 = vcmask 15360
    %v537 = vsel %vm535, %v486, 0
    %v540 = vsel %vm535, %v487, 0
    %vm542 = vcmask 1041408
    %v544 = vsel %vm542, %v530, 0
    %546 = vmatpush.msra.mxu0 0.0
    %547 = vmatpush.msra.mxu0 0.0
    %548 = vmatpush.msra.mxu0 0.0
    %549 = vmatpush.msra.mxu0 0.0
    %550 = vmatpush.msra.mxu0 0.0
    %551 = vmatpush.msra.mxu0 0.0
    %552 = vmatpush.msra.mxu0 0.0
    %553 = vmatpush.msra.mxu0 0.0
    %554 = vmatpush.msra.mxu0 0.0
    %555 = vmatpush.msra.mxu0 0.0
    %556 = vmatpush.msra.mxu0 0.0
    %557 = vmatpush.msra.mxu0 0.0
    %558 = vmatpush.msra.mxu0 0.0
    %559 = vmatpush.msra.mxu0 0.0
    %560 = vmatpush.msra.mxu0 0.0
    %561 = vmatpush.msra.mxu0 %v544
    %562 = vmatmul.f32.gmra.mxu0 %v537
    %v563 = vpop.f32.mrf.mxu0
    %v564 = vadd.f32 %v533, %v563
    %565 = vmatmul.f32.gmra.mxu0 %v540
    %v566 = vpop.f32.mrf.mxu0
    %v567 = vadd.f32 %v533, %v566
    %568 = vdwg.mxu0
    %v569 = vadd.f32 %v564, %v488
    %v570 = vadd.f32 %v567, %v488
    %v571 = vld [vmem:[%s15] sm:$0xff]
    %v572 = vld [vmem:[%s15 + $0x8] sm:$0xff]
    %v573 = vld [vmem:[%s15 + $0x10] sm:$0xff]
    %v574 = vld [vmem:[%s15 + $0x18] sm:$0xff]
    %v575 = vld [vmem:[#allocation11] sm:$0x1]
    %v577 = vperm.slane %v575, 0
    %vm579 = vcmask 261120
    %v581 = vsel %vm579, %v528, 0
    %v584 = vsel %vm579, %v529, 0
    %586 = vmatpush.msra.mxu0 0.0
    %587 = vmatpush.msra.mxu0 0.0
    %588 = vmatpush.msra.mxu0 0.0
    %589 = vmatpush.msra.mxu0 0.0
    %590 = vmatpush.msra.mxu0 0.0
    %591 = vmatpush.msra.mxu0 0.0
    %592 = vmatpush.msra.mxu0 0.0
    %593 = vmatpush.msra.mxu0 0.0
    %594 = vmatpush.msra.mxu0 0.0
    %595 = vmatpush.msra.mxu0 0.0
    %596 = vmatpush.msra.mxu0 0.0
    %597 = vmatpush.msra.mxu0 0.0
    %598 = vmatpush.msra.mxu0 %v574
    %599 = vmatpush.msra.mxu0 %v573
    %600 = vmatpush.msra.mxu0 %v572
    %601 = vmatpush.msra.mxu0 %v571
    %602 = vmatmul.f32.gmra.mxu0 %v581
    %v603 = vpop.f32.mrf.mxu0
    %v604 = vadd.f32 %v577, %v603
    %605 = vmatmul.f32.gmra.mxu0 %v584
    %v606 = vpop.f32.mrf.mxu0
    %v607 = vadd.f32 %v577, %v606
    %608 = vdwg.mxu0
    %v609 = vld [vmem:[%s19] sm:$0xff]
    %v610 = vld [vmem:[%s19 + $0x8] sm:$0xff]
    %v611 = vld [vmem:[%s19 + $0x10] sm:$0xff]
    %v612 = vld [vmem:[%s19 + $0x18] sm:$0xff]
    %v613 = vld [vmem:[#allocation13] sm:$0x1]
    %616 = vrot.lane.b32.xlu0 %v604, 120
    %v617 = vpop.permute.xlu0 %616
    %618 = vrot.lane.b32.xlu0 %v607, 120
    %v619 = vpop.permute.xlu0 %618
    %622 = vrot.lane.b32.xlu0 %v604, 112
    %v623 = vpop.permute.xlu0 %622
    %624 = vrot.lane.b32.xlu0 %v607, 112
    %v625 = vpop.permute.xlu0 %624
    %628 = vrot.lane.b32.xlu0 %v604, 104
    %v629 = vpop.permute.xlu0 %628
    %630 = vrot.lane.b32.xlu0 %v607, 104
    %v631 = vpop.permute.xlu0 %630
    %v634 = vrot.slane %v623, 4
    %vm635 = vcmask 1047556
    %v636 = vsel %vm635, %v634, %v604
    %v637 = vrot.slane %v604, 4
    %v638 = vsel %vm635, %v623, %v637
    %v640 = vunpack.c.l.s4 1983009808
    %v641 = vunpack.c.0.s8 %v640
    %v642 = vperm.slane %v636, %v641
    %v644 = vunpack.c.l.s4 1983009808
    %v645 = vunpack.c.0.s8 %v644
    %v646 = vperm.slane %v638, %v645
    %v647 = vrot.slane %v629, 4
    %v648 = vsel %vm635, %v647, %v617
    %v649 = vrot.slane %v617, 4
    %v650 = vsel %vm635, %v629, %v649
    %v652 = vunpack.c.l.s4 1983009808
    %v653 = vunpack.c.0.s8 %v652
    %v654 = vperm.slane %v648, %v653
    %v656 = vunpack.c.l.s4 1983009808
    %v657 = vunpack.c.0.s8 %v656
    %v658 = vperm.slane %v650, %v657
    %v659 = vrot.slane %v654, 4
    %v660 = vsel %vm635, %v659, %v642
    %v661 = vrot.slane %v642, 4
    %v662 = vsel %vm635, %v654, %v661
    %v664 = vunpack.c.l.s4 1934713408
    %v665 = vunpack.c.0.s8 %v664
    %v666 = vperm.slane %v660, %v665
    %v668 = vunpack.c.l.s4 1934713408
    %v669 = vunpack.c.0.s8 %v668
    %v670 = vperm.slane %v662, %v669
    %v671 = vrot.slane %v658, 4
    %v672 = vsel %vm635, %v671, %v646
    %v673 = vrot.slane %v646, 4
    %v674 = vsel %vm635, %v658, %v673
    %v676 = vunpack.c.l.s4 1934713408
    %v677 = vunpack.c.0.s8 %v676
    %v678 = vperm.slane %v672, %v677
    %v680 = vunpack.c.l.s4 1934713408
    %v681 = vunpack.c.0.s8 %v680
    %v682 = vperm.slane %v674, %v681
    %v683 = vrot.slane %v666, 4
    %v684 = vsel %vm635, 0.0, %v683
    %v685 = vrot.slane %v670, 4
    %v686 = vsel %vm635, 0.0, %v685
    %v687 = vrot.slane %v678, 4
    %v688 = vsel %vm635, 0.0, %v687
    %v689 = vrot.slane %v682, 4
    %v690 = vsel %vm635, 0.0, %v689
    %v691 = vrot.slane %v625, 4
    %v692 = vsel %vm635, %v691, %v607
    %v693 = vrot.slane %v607, 4
    %v694 = vsel %vm635, %v625, %v693
    %v696 = vunpack.c.l.s4 1983009808
    %v697 = vunpack.c.0.s8 %v696
    %v698 = vperm.slane %v692, %v697
    %v700 = vunpack.c.l.s4 1983009808
    %v701 = vunpack.c.0.s8 %v700
    %v702 = vperm.slane %v694, %v701
    %v703 = vrot.slane %v631, 4
    %v704 = vsel %vm635, %v703, %v619
    %v705 = vrot.slane %v619, 4
    %v706 = vsel %vm635, %v631, %v705
    %v708 = vunpack.c.l.s4 1983009808
    %v709 = vunpack.c.0.s8 %v708
    %v710 = vperm.slane %v704, %v709
    %v712 = vunpack.c.l.s4 1983009808
    %v713 = vunpack.c.0.s8 %v712
    %v714 = vperm.slane %v706, %v713
    %v715 = vrot.slane %v710, 4
    %v716 = vsel %vm635, %v715, %v698
    %v717 = vrot.slane %v698, 4
    %v718 = vsel %vm635, %v710, %v717
    %v720 = vunpack.c.l.s4 1934713408
    %v721 = vunpack.c.0.s8 %v720
    %v722 = vperm.slane %v716, %v721
    %v724 = vunpack.c.l.s4 1934713408
    %v725 = vunpack.c.0.s8 %v724
    %v726 = vperm.slane %v718, %v725
    %v727 = vrot.slane %v714, 4
    %v728 = vsel %vm635, %v727, %v702
    %v729 = vrot.slane %v702, 4
    %v730 = vsel %vm635, %v714, %v729
    %v732 = vunpack.c.l.s4 1934713408
    %v733 = vunpack.c.0.s8 %v732
    %v734 = vperm.slane %v728, %v733
    %v736 = vunpack.c.l.s4 1934713408
    %v737 = vunpack.c.0.s8 %v736
    %v738 = vperm.slane %v730, %v737
    %v739 = vrot.slane %v722, 4
    %v740 = vsel %vm635, 0.0, %v739
    %v741 = vrot.slane %v726, 4
    %v742 = vsel %vm635, 0.0, %v741
    %v743 = vrot.slane %v734, 4
    %v744 = vsel %vm635, 0.0, %v743
    %v745 = vrot.slane %v738, 4
    %v746 = vsel %vm635, 0.0, %v745
    %v747 = vsel %vm635, %v685, %v666
    %v749 = vunpack.c.l.s4 1983009808
    %v750 = vunpack.c.0.s8 %v749
    %v751 = vperm.slane %v747, %v750
    %v752 = vrot.slane %v686, 4
    %v753 = vsel %vm635, %v752, %v684
    %v755 = vunpack.c.l.s4 1983009808
    %v756 = vunpack.c.0.s8 %v755
    %v757 = vperm.slane %v753, %v756
    %v758 = vsel %vm635, %v689, %v678
    %v760 = vunpack.c.l.s4 1983009808
    %v761 = vunpack.c.0.s8 %v760
    %v762 = vperm.slane %v758, %v761
    %v763 = vrot.slane %v690, 4
    %v764 = vsel %vm635, %v763, %v688
    %v766 = vunpack.c.l.s4 1983009808
    %v767 = vunpack.c.0.s8 %v766
    %v768 = vperm.slane %v764, %v767
    %v769 = vrot.slane %v757, 4
    %v770 = vsel %vm635, %v769, %v751
    %v771 = vrot.slane %v751, 4
    %v772 = vsel %vm635, %v757, %v771
    %v774 = vunpack.c.l.s4 1934713408
    %v775 = vunpack.c.0.s8 %v774
    %v776 = vperm.slane %v770, %v775
    %v778 = vunpack.c.l.s4 1934713408
    %v779 = vunpack.c.0.s8 %v778
    %v780 = vperm.slane %v772, %v779
    %v781 = vrot.slane %v768, 4
    %v782 = vsel %vm635, %v781, %v762
    %v783 = vrot.slane %v762, 4
    %v784 = vsel %vm635, %v768, %v783
    %v786 = vunpack.c.l.s4 1934713408
    %v787 = vunpack.c.0.s8 %v786
    %v788 = vperm.slane %v782, %v787
    %v790 = vunpack.c.l.s4 1934713408
    %v791 = vunpack.c.0.s8 %v790
    %v792 = vperm.slane %v784, %v791
    %v793 = vrot.slane %v788, 4
    %v794 = vsel %vm635, %v793, %v776
    %v795 = vrot.slane %v776, 4
    %v796 = vsel %vm635, %v788, %v795
    %v797 = vrot.slane %v792, 4
    %v798 = vsel %vm635, %v797, %v780
    %v799 = vrot.slane %v780, 4
    %v800 = vsel %vm635, %v792, %v799
    %v801 = vsel %vm635, %v741, %v722
    %v803 = vunpack.c.l.s4 1983009808
    %v804 = vunpack.c.0.s8 %v803
    %v805 = vperm.slane %v801, %v804
    %v806 = vrot.slane %v742, 4
    %v807 = vsel %vm635, %v806, %v740
    %v809 = vunpack.c.l.s4 1983009808
    %v810 = vunpack.c.0.s8 %v809
    %v811 = vperm.slane %v807, %v810
    %v812 = vsel %vm635, %v745, %v734
    %v814 = vunpack.c.l.s4 1983009808
    %v815 = vunpack.c.0.s8 %v814
    %v816 = vperm.slane %v812, %v815
    %v817 = vrot.slane %v746, 4
    %v818 = vsel %vm635, %v817, %v744
    %v820 = vunpack.c.l.s4 1983009808
    %v821 = vunpack.c.0.s8 %v820
    %v822 = vperm.slane %v818, %v821
    %v823 = vrot.slane %v811, 4
    %v824 = vsel %vm635, %v823, %v805
    %v825 = vrot.slane %v805, 4
    %v826 = vsel %vm635, %v811, %v825
    %v828 = vunpack.c.l.s4 1934713408
    %v829 = vunpack.c.0.s8 %v828
    %v830 = vperm.slane %v824, %v829
    %v832 = vunpack.c.l.s4 1934713408
    %v833 = vunpack.c.0.s8 %v832
    %v834 = vperm.slane %v826, %v833
    %v835 = vrot.slane %v822, 4
    %v836 = vsel %vm635, %v835, %v816
    %v837 = vrot.slane %v816, 4
    %v838 = vsel %vm635, %v822, %v837
    %v840 = vunpack.c.l.s4 1934713408
    %v841 = vunpack.c.0.s8 %v840
    %v842 = vperm.slane %v836, %v841
    %v844 = vunpack.c.l.s4 1934713408
    %v845 = vunpack.c.0.s8 %v844
    %v846 = vperm.slane %v838, %v845
    %v847 = vrot.slane %v842, 4
    %v848 = vsel %vm635, %v847, %v830
    %v849 = vrot.slane %v830, 4
    %v850 = vsel %vm635, %v842, %v849
    %v851 = vrot.slane %v846, 4
    %v852 = vsel %vm635, %v851, %v834
    %v853 = vrot.slane %v834, 4
    %v854 = vsel %vm635, %v846, %v853
    %855 = vrot.lane.b32.xlu0 %v604, 96
    %v856 = vpop.permute.xlu0 %855
    %857 = vrot.lane.b32.xlu0 %v607, 96
    %v858 = vpop.permute.xlu0 %857
    %859 = vrot.lane.b32.xlu0 %v617, 96
    %v860 = vpop.permute.xlu0 %859
    %861 = vrot.lane.b32.xlu0 %v619, 96
    %v862 = vpop.permute.xlu0 %861
    %863 = vrot.lane.b32.xlu0 %v623, 96
    %v864 = vpop.permute.xlu0 %863
    %865 = vrot.lane.b32.xlu0 %v625, 96
    %v866 = vpop.permute.xlu0 %865
    %867 = vrot.lane.b32.xlu0 %v629, 96
    %v868 = vpop.permute.xlu0 %867
    %869 = vrot.lane.b32.xlu0 %v631, 96
    %v870 = vpop.permute.xlu0 %869
    %v879 = vrot.slane %v864, 4
    %v880 = vsel %vm635, %v879, %v856
    %v881 = vrot.slane %v856, 4
    %v882 = vsel %vm635, %v864, %v881
    %v884 = vunpack.c.l.s4 1983009808
    %v885 = vunpack.c.0.s8 %v884
    %v886 = vperm.slane %v880, %v885
    %v888 = vunpack.c.l.s4 1983009808
    %v889 = vunpack.c.0.s8 %v888
    %v890 = vperm.slane %v882, %v889
    %v891 = vrot.slane %v868, 4
    %v892 = vsel %vm635, %v891, %v860
    %v893 = vrot.slane %v860, 4
    %v894 = vsel %vm635, %v868, %v893
    %v896 = vunpack.c.l.s4 1983009808
    %v897 = vunpack.c.0.s8 %v896
    %v898 = vperm.slane %v892, %v897
    %v900 = vunpack.c.l.s4 1983009808
    %v901 = vunpack.c.0.s8 %v900
    %v902 = vperm.slane %v894, %v901
    %v903 = vrot.slane %v898, 4
    %v904 = vsel %vm635, %v903, %v886
    %v905 = vrot.slane %v886, 4
    %v906 = vsel %vm635, %v898, %v905
    %v908 = vunpack.c.l.s4 1934713408
    %v909 = vunpack.c.0.s8 %v908
    %v910 = vperm.slane %v904, %v909
    %v912 = vunpack.c.l.s4 1934713408
    %v913 = vunpack.c.0.s8 %v912
    %v914 = vperm.slane %v906, %v913
    %v915 = vrot.slane %v902, 4
    %v916 = vsel %vm635, %v915, %v890
    %v917 = vrot.slane %v890, 4
    %v918 = vsel %vm635, %v902, %v917
    %v920 = vunpack.c.l.s4 1934713408
    %v921 = vunpack.c.0.s8 %v920
    %v922 = vperm.slane %v916, %v921
    %v924 = vunpack.c.l.s4 1934713408
    %v925 = vunpack.c.0.s8 %v924
    %v926 = vperm.slane %v918, %v925
    %v927 = vrot.slane %v910, 4
    %v928 = vsel %vm635, 0.0, %v927
    %v929 = vrot.slane %v914, 4
    %v930 = vsel %vm635, 0.0, %v929
    %v931 = vrot.slane %v922, 4
    %v932 = vsel %vm635, 0.0, %v931
    %v933 = vrot.slane %v926, 4
    %v934 = vsel %vm635, 0.0, %v933
    %v935 = vrot.slane %v866, 4
    %v936 = vsel %vm635, %v935, %v858
    %v937 = vrot.slane %v858, 4
    %v938 = vsel %vm635, %v866, %v937
    %v940 = vunpack.c.l.s4 1983009808
    %v941 = vunpack.c.0.s8 %v940
    %v942 = vperm.slane %v936, %v941
    %v944 = vunpack.c.l.s4 1983009808
    %v945 = vunpack.c.0.s8 %v944
    %v946 = vperm.slane %v938, %v945
    %v947 = vrot.slane %v870, 4
    %v948 = vsel %vm635, %v947, %v862
    %v949 = vrot.slane %v862, 4
    %v950 = vsel %vm635, %v870, %v949
    %v952 = vunpack.c.l.s4 1983009808
    %v953 = vunpack.c.0.s8 %v952
    %v954 = vperm.slane %v948, %v953
    %v956 = vunpack.c.l.s4 1983009808
    %v957 = vunpack.c.0.s8 %v956
    %v958 = vperm.slane %v950, %v957
    %v959 = vrot.slane %v954, 4
    %v960 = vsel %vm635, %v959, %v942
    %v961 = vrot.slane %v942, 4
    %v962 = vsel %vm635, %v954, %v961
    %v964 = vunpack.c.l.s4 1934713408
    %v965 = vunpack.c.0.s8 %v964
    %v966 = vperm.slane %v960, %v965
    %v968 = vunpack.c.l.s4 1934713408
    %v969 = vunpack.c.0.s8 %v968
    %v970 = vperm.slane %v962, %v969
    %v971 = vrot.slane %v958, 4
    %v972 = vsel %vm635, %v971, %v946
    %v973 = vrot.slane %v946, 4
    %v974 = vsel %vm635, %v958, %v973
    %v976 = vunpack.c.l.s4 1934713408
    %v977 = vunpack.c.0.s8 %v976
    %v978 = vperm.slane %v972, %v977
    %v980 = vunpack.c.l.s4 1934713408
    %v981 = vunpack.c.0.s8 %v980
    %v982 = vperm.slane %v974, %v981
    %v983 = vrot.slane %v966, 4
    %v984 = vsel %vm635, 0.0, %v983
    %v985 = vrot.slane %v970, 4
    %v986 = vsel %vm635, 0.0, %v985
    %v987 = vrot.slane %v978, 4
    %v988 = vsel %vm635, 0.0, %v987
    %v989 = vrot.slane %v982, 4
    %v990 = vsel %vm635, 0.0, %v989
    %v991 = vsel %vm635, %v929, %v910
    %v993 = vunpack.c.l.s4 1983009808
    %v994 = vunpack.c.0.s8 %v993
    %v995 = vperm.slane %v991, %v994
    %v996 = vrot.slane %v930, 4
    %v997 = vsel %vm635, %v996, %v928
    %v999 = vunpack.c.l.s4 1983009808
    %v1000 = vunpack.c.0.s8 %v999
    %v1001 = vperm.slane %v997, %v1000
    %v1002 = vsel %vm635, %v933, %v922
    %v1004 = vunpack.c.l.s4 1983009808
    %v1005 = vunpack.c.0.s8 %v1004
    %v1006 = vperm.slane %v1002, %v1005
    %v1007 = vrot.slane %v934, 4
    %v1008 = vsel %vm635, %v1007, %v932
    %v1010 = vunpack.c.l.s4 1983009808
    %v1011 = vunpack.c.0.s8 %v1010
    %v1012 = vperm.slane %v1008, %v1011
    %v1013 = vrot.slane %v1001, 4
    %v1014 = vsel %vm635, %v1013, %v995
    %v1015 = vrot.slane %v995, 4
    %v1016 = vsel %vm635, %v1001, %v1015
    %v1018 = vunpack.c.l.s4 1934713408
    %v1019 = vunpack.c.0.s8 %v1018
    %v1020 = vperm.slane %v1014, %v1019
    %v1022 = vunpack.c.l.s4 1934713408
    %v1023 = vunpack.c.0.s8 %v1022
    %v1024 = vperm.slane %v1016, %v1023
    %v1025 = vrot.slane %v1012, 4
    %v1026 = vsel %vm635, %v1025, %v1006
    %v1027 = vrot.slane %v1006, 4
    %v1028 = vsel %vm635, %v1012, %v1027
    %v1030 = vunpack.c.l.s4 1934713408
    %v1031 = vunpack.c.0.s8 %v1030
    %v1032 = vperm.slane %v1026, %v1031
    %v1034 = vunpack.c.l.s4 1934713408
    %v1035 = vunpack.c.0.s8 %v1034
    %v1036 = vperm.slane %v1028, %v1035
    %v1037 = vrot.slane %v1032, 4
    %v1038 = vsel %vm635, %v1037, %v1020
    %v1039 = vrot.slane %v1020, 4
    %v1040 = vsel %vm635, %v1032, %v1039
    %v1041 = vrot.slane %v1036, 4
    %v1042 = vsel %vm635, %v1041, %v1024
    %v1043 = vrot.slane %v1024, 4
    %v1044 = vsel %vm635, %v1036, %v1043
    %v1045 = vsel %vm635, %v985, %v966
    %v1047 = vunpack.c.l.s4 1983009808
    %v1048 = vunpack.c.0.s8 %v1047
    %v1049 = vperm.slane %v1045, %v1048
    %v1050 = vrot.slane %v986, 4
    %v1051 = vsel %vm635, %v1050, %v984
    %v1053 = vunpack.c.l.s4 1983009808
    %v1054 = vunpack.c.0.s8 %v1053
    %v1055 = vperm.slane %v1051, %v1054
    %v1056 = vsel %vm635, %v989, %v978
    %v1058 = vunpack.c.l.s4 1983009808
    %v1059 = vunpack.c.0.s8 %v1058
    %v1060 = vperm.slane %v1056, %v1059
    %v1061 = vrot.slane %v990, 4
    %v1062 = vsel %vm635, %v1061, %v988
    %v1064 = vunpack.c.l.s4 1983009808
    %v1065 = vunpack.c.0.s8 %v1064
    %v1066 = vperm.slane %v1062, %v1065
    %v1067 = vrot.slane %v1055, 4
    %v1068 = vsel %vm635, %v1067, %v1049
    %v1069 = vrot.slane %v1049, 4
    %v1070 = vsel %vm635, %v1055, %v1069
    %v1072 = vunpack.c.l.s4 1934713408
    %v1073 = vunpack.c.0.s8 %v1072
    %v1074 = vperm.slane %v1068, %v1073
    %v1076 = vunpack.c.l.s4 1934713408
    %v1077 = vunpack.c.0.s8 %v1076
    %v1078 = vperm.slane %v1070, %v1077
    %v1079 = vrot.slane %v1066, 4
    %v1080 = vsel %vm635, %v1079, %v1060
    %v1081 = vrot.slane %v1060, 4
    %v1082 = vsel %vm635, %v1066, %v1081
    %v1084 = vunpack.c.l.s4 1934713408
    %v1085 = vunpack.c.0.s8 %v1084
    %v1086 = vperm.slane %v1080, %v1085
    %v1088 = vunpack.c.l.s4 1934713408
    %v1089 = vunpack.c.0.s8 %v1088
    %v1090 = vperm.slane %v1082, %v1089
    %v1091 = vrot.slane %v1086, 4
    %v1092 = vsel %vm635, %v1091, %v1074
    %v1093 = vrot.slane %v1074, 4
    %v1094 = vsel %vm635, %v1086, %v1093
    %v1095 = vrot.slane %v1090, 4
    %v1096 = vsel %vm635, %v1095, %v1078
    %v1097 = vrot.slane %v1078, 4
    %v1098 = vsel %vm635, %v1090, %v1097
    %1099 = vrot.lane.b32.xlu0 %v604, 64
    %v1100 = vpop.permute.xlu0 %1099
    %1101 = vrot.lane.b32.xlu0 %v607, 64
    %v1102 = vpop.permute.xlu0 %1101
    %1103 = vrot.lane.b32.xlu0 %v617, 64
    %v1104 = vpop.permute.xlu0 %1103
    %1105 = vrot.lane.b32.xlu0 %v619, 64
    %v1106 = vpop.permute.xlu0 %1105
    %1107 = vrot.lane.b32.xlu0 %v623, 64
    %v1108 = vpop.permute.xlu0 %1107
    %1109 = vrot.lane.b32.xlu0 %v625, 64
    %v1110 = vpop.permute.xlu0 %1109
    %1111 = vrot.lane.b32.xlu0 %v629, 64
    %v1112 = vpop.permute.xlu0 %1111
    %1113 = vrot.lane.b32.xlu0 %v631, 64
    %v1114 = vpop.permute.xlu0 %1113
    %v1123 = vrot.slane %v1108, 4
    %v1124 = vsel %vm635, %v1123, %v1100
    %v1125 = vrot.slane %v1100, 4
    %v1126 = vsel %vm635, %v1108, %v1125
    %v1128 = vunpack.c.l.s4 1983009808
    %v1129 = vunpack.c.0.s8 %v1128
    %v1130 = vperm.slane %v1124, %v1129
    %v1132 = vunpack.c.l.s4 1983009808
    %v1133 = vunpack.c.0.s8 %v1132
    %v1134 = vperm.slane %v1126, %v1133
    %v1135 = vrot.slane %v1112, 4
    %v1136 = vsel %vm635, %v1135, %v1104
    %v1137 = vrot.slane %v1104, 4
    %v1138 = vsel %vm635, %v1112, %v1137
    %v1140 = vunpack.c.l.s4 1983009808
    %v1141 = vunpack.c.0.s8 %v1140
    %v1142 = vperm.slane %v1136, %v1141
    %v1144 = vunpack.c.l.s4 1983009808
    %v1145 = vunpack.c.0.s8 %v1144
    %v1146 = vperm.slane %v1138, %v1145
    %v1147 = vrot.slane %v1142, 4
    %v1148 = vsel %vm635, %v1147, %v1130
    %v1149 = vrot.slane %v1130, 4
    %v1150 = vsel %vm635, %v1142, %v1149
    %v1152 = vunpack.c.l.s4 1934713408
    %v1153 = vunpack.c.0.s8 %v1152
    %v1154 = vperm.slane %v1148, %v1153
    %v1156 = vunpack.c.l.s4 1934713408
    %v1157 = vunpack.c.0.s8 %v1156
    %v1158 = vperm.slane %v1150, %v1157
    %v1159 = vrot.slane %v1146, 4
    %v1160 = vsel %vm635, %v1159, %v1134
    %v1161 = vrot.slane %v1134, 4
    %v1162 = vsel %vm635, %v1146, %v1161
    %v1164 = vunpack.c.l.s4 1934713408
    %v1165 = vunpack.c.0.s8 %v1164
    %v1166 = vperm.slane %v1160, %v1165
    %v1168 = vunpack.c.l.s4 1934713408
    %v1169 = vunpack.c.0.s8 %v1168
    %v1170 = vperm.slane %v1162, %v1169
    %v1171 = vrot.slane %v1154, 4
    %v1172 = vsel %vm635, 0.0, %v1171
    %v1173 = vrot.slane %v1158, 4
    %v1174 = vsel %vm635, 0.0, %v1173
    %v1175 = vrot.slane %v1166, 4
    %v1176 = vsel %vm635, 0.0, %v1175
    %v1177 = vrot.slane %v1170, 4
    %v1178 = vsel %vm635, 0.0, %v1177
    %v1179 = vrot.slane %v1110, 4
    %v1180 = vsel %vm635, %v1179, %v1102
    %v1181 = vrot.slane %v1102, 4
    %v1182 = vsel %vm635, %v1110, %v1181
    %v1184 = vunpack.c.l.s4 1983009808
    %v1185 = vunpack.c.0.s8 %v1184
    %v1186 = vperm.slane %v1180, %v1185
    %v1188 = vunpack.c.l.s4 1983009808
    %v1189 = vunpack.c.0.s8 %v1188
    %v1190 = vperm.slane %v1182, %v1189
    %v1191 = vrot.slane %v1114, 4
    %v1192 = vsel %vm635, %v1191, %v1106
    %v1193 = vrot.slane %v1106, 4
    %v1194 = vsel %vm635, %v1114, %v1193
    %v1196 = vunpack.c.l.s4 1983009808
    %v1197 = vunpack.c.0.s8 %v1196
    %v1198 = vperm.slane %v1192, %v1197
    %v1200 = vunpack.c.l.s4 1983009808
    %v1201 = vunpack.c.0.s8 %v1200
    %v1202 = vperm.slane %v1194, %v1201
    %v1203 = vrot.slane %v1198, 4
    %v1204 = vsel %vm635, %v1203, %v1186
    %v1205 = vrot.slane %v1186, 4
    %v1206 = vsel %vm635, %v1198, %v1205
    %v1208 = vunpack.c.l.s4 1934713408
    %v1209 = vunpack.c.0.s8 %v1208
    %v1210 = vperm.slane %v1204, %v1209
    %v1212 = vunpack.c.l.s4 1934713408
    %v1213 = vunpack.c.0.s8 %v1212
    %v1214 = vperm.slane %v1206, %v1213
    %v1215 = vrot.slane %v1202, 4
    %v1216 = vsel %vm635, %v1215, %v1190
    %v1217 = vrot.slane %v1190, 4
    %v1218 = vsel %vm635, %v1202, %v1217
    %v1220 = vunpack.c.l.s4 1934713408
    %v1221 = vunpack.c.0.s8 %v1220
    %v1222 = vperm.slane %v1216, %v1221
    %v1224 = vunpack.c.l.s4 1934713408
    %v1225 = vunpack.c.0.s8 %v1224
    %v1226 = vperm.slane %v1218, %v1225
    %v1227 = vrot.slane %v1210, 4
    %v1228 = vsel %vm635, 0.0, %v1227
    %v1229 = vrot.slane %v1214, 4
    %v1230 = vsel %vm635, 0.0, %v1229
    %v1231 = vrot.slane %v1222, 4
    %v1232 = vsel %vm635, 0.0, %v1231
    %v1233 = vrot.slane %v1226, 4
    %v1234 = vsel %vm635, 0.0, %v1233
    %v1235 = vsel %vm635, %v1173, %v1154
    %v1237 = vunpack.c.l.s4 1983009808
    %v1238 = vunpack.c.0.s8 %v1237
    %v1239 = vperm.slane %v1235, %v1238
    %v1240 = vrot.slane %v1174, 4
    %v1241 = vsel %vm635, %v1240, %v1172
    %v1243 = vunpack.c.l.s4 1983009808
    %v1244 = vunpack.c.0.s8 %v1243
    %v1245 = vperm.slane %v1241, %v1244
    %v1246 = vsel %vm635, %v1177, %v1166
    %v1248 = vunpack.c.l.s4 1983009808
    %v1249 = vunpack.c.0.s8 %v1248
    %v1250 = vperm.slane %v1246, %v1249
    %v1251 = vrot.slane %v1178, 4
    %v1252 = vsel %vm635, %v1251, %v1176
    %v1254 = vunpack.c.l.s4 1983009808
    %v1255 = vunpack.c.0.s8 %v1254
    %v1256 = vperm.slane %v1252, %v1255
    %v1257 = vrot.slane %v1245, 4
    %v1258 = vsel %vm635, %v1257, %v1239
    %v1259 = vrot.slane %v1239, 4
    %v1260 = vsel %vm635, %v1245, %v1259
    %v1262 = vunpack.c.l.s4 1934713408
    %v1263 = vunpack.c.0.s8 %v1262
    %v1264 = vperm.slane %v1258, %v1263
    %v1266 = vunpack.c.l.s4 1934713408
    %v1267 = vunpack.c.0.s8 %v1266
    %v1268 = vperm.slane %v1260, %v1267
    %v1269 = vrot.slane %v1256, 4
    %v1270 = vsel %vm635, %v1269, %v1250
    %v1271 = vrot.slane %v1250, 4
    %v1272 = vsel %vm635, %v1256, %v1271
    %v1274 = vunpack.c.l.s4 1934713408
    %v1275 = vunpack.c.0.s8 %v1274
    %v1276 = vperm.slane %v1270, %v1275
    %v1278 = vunpack.c.l.s4 1934713408
    %v1279 = vunpack.c.0.s8 %v1278
    %v1280 = vperm.slane %v1272, %v1279
    %v1281 = vrot.slane %v1276, 4
    %v1282 = vsel %vm635, %v1281, %v1264
    %v1283 = vrot.slane %v1264, 4
    %v1284 = vsel %vm635, %v1276, %v1283
    %v1285 = vrot.slane %v1280, 4
    %v1286 = vsel %vm635, %v1285, %v1268
    %v1287 = vrot.slane %v1268, 4
    %v1288 = vsel %vm635, %v1280, %v1287
    %v1289 = vsel %vm635, %v1229, %v1210
    %v1291 = vunpack.c.l.s4 1983009808
    %v1292 = vunpack.c.0.s8 %v1291
    %v1293 = vperm.slane %v1289, %v1292
    %v1294 = vrot.slane %v1230, 4
    %v1295 = vsel %vm635, %v1294, %v1228
    %v1297 = vunpack.c.l.s4 1983009808
    %v1298 = vunpack.c.0.s8 %v1297
    %v1299 = vperm.slane %v1295, %v1298
    %v1300 = vsel %vm635, %v1233, %v1222
    %v1302 = vunpack.c.l.s4 1983009808
    %v1303 = vunpack.c.0.s8 %v1302
    %v1304 = vperm.slane %v1300, %v1303
    %v1305 = vrot.slane %v1234, 4
    %v1306 = vsel %vm635, %v1305, %v1232
    %v1308 = vunpack.c.l.s4 1983009808
    %v1309 = vunpack.c.0.s8 %v1308
    %v1310 = vperm.slane %v1306, %v1309
    %v1311 = vrot.slane %v1299, 4
    %v1312 = vsel %vm635, %v1311, %v1293
    %v1313 = vrot.slane %v1293, 4
    %v1314 = vsel %vm635, %v1299, %v1313
    %v1316 = vunpack.c.l.s4 1934713408
    %v1317 = vunpack.c.0.s8 %v1316
    %v1318 = vperm.slane %v1312, %v1317
    %v1320 = vunpack.c.l.s4 1934713408
    %v1321 = vunpack.c.0.s8 %v1320
    %v1322 = vperm.slane %v1314, %v1321
    %v1323 = vrot.slane %v1310, 4
    %v1324 = vsel %vm635, %v1323, %v1304
    %v1325 = vrot.slane %v1304, 4
    %v1326 = vsel %vm635, %v1310, %v1325
    %v1328 = vunpack.c.l.s4 1934713408
    %v1329 = vunpack.c.0.s8 %v1328
    %v1330 = vperm.slane %v1324, %v1329
    %v1332 = vunpack.c.l.s4 1934713408
    %v1333 = vunpack.c.0.s8 %v1332
    %v1334 = vperm.slane %v1326, %v1333
    %v1335 = vrot.slane %v1330, 4
    %v1336 = vsel %vm635, %v1335, %v1318
    %v1337 = vrot.slane %v1318, 4
    %v1338 = vsel %vm635, %v1330, %v1337
    %v1339 = vrot.slane %v1334, 4
    %v1340 = vsel %vm635, %v1339, %v1322
    %v1341 = vrot.slane %v1322, 4
    %v1342 = vsel %vm635, %v1334, %v1341
    %vm1343 = vcmask 64512
    %v1345 = vsel %vm1343, %v794, 0
    %v1348 = vsel %vm1343, %v1038, 0
    %1350 = vmatpush.xpose.msra.mxu0 0.0
    %1351 = vmatpush.xpose.msra.mxu0 0.0
    %1352 = vmatpush.xpose.msra.mxu0 0.0
    %1353 = vmatpush.xpose.msra.mxu0 0.0
    %1354 = vmatpush.xpose.msra.mxu0 0.0
    %1355 = vmatpush.xpose.msra.mxu0 0.0
    %1356 = vmatpush.xpose.msra.mxu0 0.0
    %1357 = vmatpush.xpose.msra.mxu0 0.0
    %1358 = vmatpush.xpose.msra.mxu0 0.0
    %1359 = vmatpush.xpose.msra.mxu0 0.0
    %1360 = vmatpush.xpose.msra.mxu0 0.0
    %1361 = vmatpush.xpose.msra.mxu0 0.0
    %1362 = vmatpush.xpose.msra.mxu0 0.0
    %1363 = vmatpush.xpose.msra.mxu0 0.0
    %1364 = vmatpush.xpose.msra.mxu0 0.0
    %1365 = vmatpush.xpose.msra.mxu0 %v1348
    %1366 = vmatmul.f32.gmra.mxu0 %v1345
    %v1367 = vpop.f32.mrf.mxu0
    %v1368 = vadd.f32 0.0, %v1367
    %1369 = vdwg.mxu0
    %v1371 = vsel %vm1343, %v796, 0
    %v1374 = vsel %vm1343, %v1040, 0
    %1376 = vmatpush.xpose.msra.mxu0 0.0
    %1377 = vmatpush.xpose.msra.mxu0 0.0
    %1378 = vmatpush.xpose.msra.mxu0 0.0
    %1379 = vmatpush.xpose.msra.mxu0 0.0
    %1380 = vmatpush.xpose.msra.mxu0 0.0
    %1381 = vmatpush.xpose.msra.mxu0 0.0
    %1382 = vmatpush.xpose.msra.mxu0 0.0
    %1383 = vmatpush.xpose.msra.mxu0 0.0
    %1384 = vmatpush.xpose.msra.mxu0 0.0
    %1385 = vmatpush.xpose.msra.mxu0 0.0
    %1386 = vmatpush.xpose.msra.mxu0 0.0
    %1387 = vmatpush.xpose.msra.mxu0 0.0
    %1388 = vmatpush.xpose.msra.mxu0 0.0
    %1389 = vmatpush.xpose.msra.mxu0 0.0
    %1390 = vmatpush.xpose.msra.mxu0 0.0
    %1391 = vmatpush.xpose.msra.mxu0 %v1374
    %1392 = vmatmul.f32.gmra.mxu0 %v1371
    %v1393 = vpop.f32.mrf.mxu0
    %v1394 = vadd.f32 0.0, %v1393
    %1395 = vdwg.mxu0
    %v1397 = vsel %vm1343, %v798, 0
    %v1400 = vsel %vm1343, %v1042, 0
    %1402 = vmatpush.xpose.msra.mxu0 0.0
    %1403 = vmatpush.xpose.msra.mxu0 0.0
    %1404 = vmatpush.xpose.msra.mxu0 0.0
    %1405 = vmatpush.xpose.msra.mxu0 0.0
    %1406 = vmatpush.xpose.msra.mxu0 0.0
    %1407 = vmatpush.xpose.msra.mxu0 0.0
    %1408 = vmatpush.xpose.msra.mxu0 0.0
    %1409 = vmatpush.xpose.msra.mxu0 0.0
    %1410 = vmatpush.xpose.msra.mxu0 0.0
    %1411 = vmatpush.xpose.msra.mxu0 0.0
    %1412 = vmatpush.xpose.msra.mxu0 0.0
    %1413 = vmatpush.xpose.msra.mxu0 0.0
    %1414 = vmatpush.xpose.msra.mxu0 0.0
    %1415 = vmatpush.xpose.msra.mxu0 0.0
    %1416 = vmatpush.xpose.msra.mxu0 0.0
    %1417 = vmatpush.xpose.msra.mxu0 %v1400
    %1418 = vmatmul.f32.gmra.mxu0 %v1397
    %v1419 = vpop.f32.mrf.mxu0
    %v1420 = vadd.f32 0.0, %v1419
    %1421 = vdwg.mxu0
    %v1423 = vsel %vm1343, %v800, 0
    %v1426 = vsel %vm1343, %v1044, 0
    %1428 = vmatpush.xpose.msra.mxu0 0.0
    %1429 = vmatpush.xpose.msra.mxu0 0.0
    %1430 = vmatpush.xpose.msra.mxu0 0.0
    %1431 = vmatpush.xpose.msra.mxu0 0.0
    %1432 = vmatpush.xpose.msra.mxu0 0.0
    %1433 = vmatpush.xpose.msra.mxu0 0.0
    %1434 = vmatpush.xpose.msra.mxu0 0.0
    %1435 = vmatpush.xpose.msra.mxu0 0.0
    %1436 = vmatpush.xpose.msra.mxu0 0.0
    %1437 = vmatpush.xpose.msra.mxu0 0.0
    %1438 = vmatpush.xpose.msra.mxu0 0.0
    %1439 = vmatpush.xpose.msra.mxu0 0.0
    %1440 = vmatpush.xpose.msra.mxu0 0.0
    %1441 = vmatpush.xpose.msra.mxu0 0.0
    %1442 = vmatpush.xpose.msra.mxu0 0.0
    %1443 = vmatpush.xpose.msra.mxu0 %v1426
    %1444 = vmatmul.f32.gmra.mxu0 %v1423
    %v1445 = vpop.f32.mrf.mxu0
    %v1446 = vadd.f32 0.0, %v1445
    %1447 = vdwg.mxu0
    %v1449 = vsel %vm1343, %v848, 0
    %v1452 = vsel %vm1343, %v1092, 0
    %1454 = vmatpush.xpose.msra.mxu0 0.0
    %1455 = vmatpush.xpose.msra.mxu0 0.0
    %1456 = vmatpush.xpose.msra.mxu0 0.0
    %1457 = vmatpush.xpose.msra.mxu0 0.0
    %1458 = vmatpush.xpose.msra.mxu0 0.0
    %1459 = vmatpush.xpose.msra.mxu0 0.0
    %1460 = vmatpush.xpose.msra.mxu0 0.0
    %1461 = vmatpush.xpose.msra.mxu0 0.0
    %1462 = vmatpush.xpose.msra.mxu0 0.0
    %1463 = vmatpush.xpose.msra.mxu0 0.0
    %1464 = vmatpush.xpose.msra.mxu0 0.0
    %1465 = vmatpush.xpose.msra.mxu0 0.0
    %1466 = vmatpush.xpose.msra.mxu0 0.0
    %1467 = vmatpush.xpose.msra.mxu0 0.0
    %1468 = vmatpush.xpose.msra.mxu0 0.0
    %1469 = vmatpush.xpose.msra.mxu0 %v1452
    %1470 = vmatmul.f32.gmra.mxu0 %v1449
    %v1471 = vpop.f32.mrf.mxu0
    %v1472 = vadd.f32 0.0, %v1471
    %1473 = vdwg.mxu0
    %v1475 = vsel %vm1343, %v850, 0
    %v1478 = vsel %vm1343, %v1094, 0
    %1480 = vmatpush.xpose.msra.mxu0 0.0
    %1481 = vmatpush.xpose.msra.mxu0 0.0
    %1482 = vmatpush.xpose.msra.mxu0 0.0
    %1483 = vmatpush.xpose.msra.mxu0 0.0
    %1484 = vmatpush.xpose.msra.mxu0 0.0
    %1485 = vmatpush.xpose.msra.mxu0 0.0
    %1486 = vmatpush.xpose.msra.mxu0 0.0
    %1487 = vmatpush.xpose.msra.mxu0 0.0
    %1488 = vmatpush.xpose.msra.mxu0 0.0
    %1489 = vmatpush.xpose.msra.mxu0 0.0
    %1490 = vmatpush.xpose.msra.mxu0 0.0
    %1491 = vmatpush.xpose.msra.mxu0 0.0
    %1492 = vmatpush.xpose.msra.mxu0 0.0
    %1493 = vmatpush.xpose.msra.mxu0 0.0
    %1494 = vmatpush.xpose.msra.mxu0 0.0
    %1495 = vmatpush.xpose.msra.mxu0 %v1478
    %1496 = vmatmul.f32.gmra.mxu0 %v1475
    %v1497 = vpop.f32.mrf.mxu0
    %v1498 = vadd.f32 0.0, %v1497
    %1499 = vdwg.mxu0
    %v1501 = vsel %vm1343, %v852, 0
    %v1504 = vsel %vm1343, %v1096, 0
    %1506 = vmatpush.xpose.msra.mxu0 0.0
    %1507 = vmatpush.xpose.msra.mxu0 0.0
    %1508 = vmatpush.xpose.msra.mxu0 0.0
    %1509 = vmatpush.xpose.msra.mxu0 0.0
    %1510 = vmatpush.xpose.msra.mxu0 0.0
    %1511 = vmatpush.xpose.msra.mxu0 0.0
    %1512 = vmatpush.xpose.msra.mxu0 0.0
    %1513 = vmatpush.xpose.msra.mxu0 0.0
    %1514 = vmatpush.xpose.msra.mxu0 0.0
    %1515 = vmatpush.xpose.msra.mxu0 0.0
    %1516 = vmatpush.xpose.msra.mxu0 0.0
    %1517 = vmatpush.xpose.msra.mxu0 0.0
    %1518 = vmatpush.xpose.msra.mxu0 0.0
    %1519 = vmatpush.xpose.msra.mxu0 0.0
    %1520 = vmatpush.xpose.msra.mxu0 0.0
    %1521 = vmatpush.xpose.msra.mxu0 %v1504
    %1522 = vmatmul.f32.gmra.mxu0 %v1501
    %v1523 = vpop.f32.mrf.mxu0
    %v1524 = vadd.f32 0.0, %v1523
    %1525 = vdwg.mxu0
    %v1527 = vsel %vm1343, %v854, 0
    %v1530 = vsel %vm1343, %v1098, 0
    %1532 = vmatpush.xpose.msra.mxu0 0.0
    %1533 = vmatpush.xpose.msra.mxu0 0.0
    %1534 = vmatpush.xpose.msra.mxu0 0.0
    %1535 = vmatpush.xpose.msra.mxu0 0.0
    %1536 = vmatpush.xpose.msra.mxu0 0.0
    %1537 = vmatpush.xpose.msra.mxu0 0.0
    %1538 = vmatpush.xpose.msra.mxu0 0.0
    %1539 = vmatpush.xpose.msra.mxu0 0.0
    %1540 = vmatpush.xpose.msra.mxu0 0.0
    %1541 = vmatpush.xpose.msra.mxu0 0.0
    %1542 = vmatpush.xpose.msra.mxu0 0.0
    %1543 = vmatpush.xpose.msra.mxu0 0.0
    %1544 = vmatpush.xpose.msra.mxu0 0.0
    %1545 = vmatpush.xpose.msra.mxu0 0.0
    %1546 = vmatpush.xpose.msra.mxu0 0.0
    %1547 = vmatpush.xpose.msra.mxu0 %v1530
    %1548 = vmatmul.f32.gmra.mxu0 %v1527
    %v1549 = vpop.f32.mrf.mxu0
    %v1550 = vadd.f32 0.0, %v1549
    %1551 = vdwg.mxu0
    %v1552 = vmul.f32 %v1368, 0.35355338
    %v1553 = vmul.f32 %v1394, 0.35355338
    %v1554 = vmul.f32 %v1420, 0.35355338
    %v1555 = vmul.f32 %v1446, 0.35355338
    %v1556 = vmul.f32 %v1472, 0.35355338
    %v1557 = vmul.f32 %v1498, 0.35355338
    %v1558 = vmul.f32 %v1524, 0.35355338
    %v1559 = vmul.f32 %v1550, 0.35355338
    %v1560 = vsel %vm1343, %v1552, -inf
    %1561 = vmax.xlane.f32.xlu0 %v1560
    %v1562 = vpop.xlane.xlu0 %1561
    %v1563 = vsel %vm1343, %v1553, -inf
    %1564 = vmax.xlane.f32.xlu0 %v1563
    %v1565 = vpop.xlane.xlu0 %1564
    %v1566 = vsel %vm1343, %v1554, -inf
    %1567 = vmax.xlane.f32.xlu0 %v1566
    %v1568 = vpop.xlane.xlu0 %1567
    %v1569 = vsel %vm1343, %v1555, -inf
    %1570 = vmax.xlane.f32.xlu0 %v1569
    %v1571 = vpop.xlane.xlu0 %1570
    %v1572 = vsel %vm1343, %v1556, -inf
    %1573 = vmax.xlane.f32.xlu0 %v1572
    %v1574 = vpop.xlane.xlu0 %1573
    %v1575 = vsel %vm1343, %v1557, -inf
    %1576 = vmax.xlane.f32.xlu0 %v1575
    %v1577 = vpop.xlane.xlu0 %1576
    %v1578 = vsel %vm1343, %v1558, -inf
    %1579 = vmax.xlane.f32.xlu0 %v1578
    %v1580 = vpop.xlane.xlu0 %1579
    %v1581 = vsel %vm1343, %v1559, -inf
    %1582 = vmax.xlane.f32.xlu0 %v1581
    %v1583 = vpop.xlane.xlu0 %1582
    %v1584 = vsub.f32 %v1552, %v1562
    %v1585 = vsub.f32 %v1553, %v1565
    %v1586 = vsub.f32 %v1554, %v1568
    %v1587 = vsub.f32 %v1555, %v1571
    %v1588 = vsub.f32 %v1556, %v1574
    %v1589 = vsub.f32 %v1557, %v1577
    %v1590 = vsub.f32 %v1558, %v1580
    %v1591 = vsub.f32 %v1559, %v1583
    %v1592 = vmul.f32 %v1584, 1.442695
    %v1593 = vpow.pop %v1592
    %v1594 = vmul.f32 %v1585, 1.442695
    %v1595 = vpow.pop %v1594
    %v1596 = vmul.f32 %v1586, 1.442695
    %v1597 = vpow.pop %v1596
    %v1598 = vmul.f32 %v1587, 1.442695
    %v1599 = vpow.pop %v1598
    %v1600 = vmul.f32 %v1588, 1.442695
    %v1601 = vpow.pop %v1600
    %v1602 = vmul.f32 %v1589, 1.442695
    %v1603 = vpow.pop %v1602
    %v1604 = vmul.f32 %v1590, 1.442695
    %v1605 = vpow.pop %v1604
    %v1606 = vmul.f32 %v1591, 1.442695
    %v1607 = vpow.pop %v1606
    %v1608 = vsel %vm1343, %v1593, 0.0
    %1609 = vadd.xlane.f32.xlu0 %v1608
    %v1610 = vpop.xlane.xlu0 %1609
    %v1611 = vsel %vm1343, %v1595, 0.0
    %1612 = vadd.xlane.f32.xlu0 %v1611
    %v1613 = vpop.xlane.xlu0 %1612
    %v1614 = vsel %vm1343, %v1597, 0.0
    %1615 = vadd.xlane.f32.xlu0 %v1614
    %v1616 = vpop.xlane.xlu0 %1615
    %v1617 = vsel %vm1343, %v1599, 0.0
    %1618 = vadd.xlane.f32.xlu0 %v1617
    %v1619 = vpop.xlane.xlu0 %1618
    %v1620 = vsel %vm1343, %v1601, 0.0
    %1621 = vadd.xlane.f32.xlu0 %v1620
    %v1622 = vpop.xlane.xlu0 %1621
    %v1623 = vsel %vm1343, %v1603, 0.0
    %1624 = vadd.xlane.f32.xlu0 %v1623
    %v1625 = vpop.xlane.xlu0 %1624
    %v1626 = vsel %vm1343, %v1605, 0.0
    %1627 = vadd.xlane.f32.xlu0 %v1626
    %v1628 = vpop.xlane.xlu0 %1627
    %v1629 = vsel %vm1343, %v1607, 0.0
    %1630 = vadd.xlane.f32.xlu0 %v1629
    %v1631 = vpop.xlane.xlu0 %1630
    %v1632 = vrcp.pop %v1610
    %v1633 = vrcp.pop %v1613
    %v1634 = vrcp.pop %v1616
    %v1635 = vrcp.pop %v1619
    %v1636 = vrcp.pop %v1622
    %v1637 = vrcp.pop %v1625
    %v1638 = vrcp.pop %v1628
    %v1639 = vrcp.pop %v1631
    %v1640 = vmul.f32 %v1593, %v1632
    %v1641 = vmul.f32 %v1595, %v1633
    %v1642 = vmul.f32 %v1597, %v1634
    %v1643 = vmul.f32 %v1599, %v1635
    %v1644 = vmul.f32 %v1601, %v1636
    %v1645 = vmul.f32 %v1603, %v1637
    %v1646 = vmul.f32 %v1605, %v1638
    %v1647 = vmul.f32 %v1607, %v1639
    %v1649 = vsel %vm1343, %v1640, 0
    %1651 = vmatpush.msra.mxu0 0.0
    %1652 = vmatpush.msra.mxu0 0.0
    %1653 = vmatpush.msra.mxu0 0.0
    %1654 = vmatpush.msra.mxu0 0.0
    %1655 = vmatpush.msra.mxu0 0.0
    %1656 = vmatpush.msra.mxu0 0.0
    %1657 = vmatpush.msra.mxu0 0.0
    %1658 = vmatpush.msra.mxu0 0.0
    %1659 = vmatpush.msra.mxu0 0.0
    %1660 = vmatpush.msra.mxu0 0.0
    %1661 = vmatpush.msra.mxu0 0.0
    %1662 = vmatpush.msra.mxu0 0.0
    %1663 = vmatpush.msra.mxu0 0.0
    %1664 = vmatpush.msra.mxu0 0.0
    %1665 = vmatpush.msra.mxu0 0.0
    %1666 = vmatpush.msra.mxu0 %v1282
    %1667 = vmatmul.f32.gmra.mxu0 %v1649
    %v1668 = vpop.f32.mrf.mxu0
    %v1669 = vadd.f32 0.0, %v1668
    %1670 = vdwg.mxu0
    %v1672 = vsel %vm1343, %v1641, 0
    %1674 = vmatpush.msra.mxu0 0.0
    %1675 = vmatpush.msra.mxu0 0.0
    %1676 = vmatpush.msra.mxu0 0.0
    %1677 = vmatpush.msra.mxu0 0.0
    %1678 = vmatpush.msra.mxu0 0.0
    %1679 = vmatpush.msra.mxu0 0.0
    %1680 = vmatpush.msra.mxu0 0.0
    %1681 = vmatpush.msra.mxu0 0.0
    %1682 = vmatpush.msra.mxu0 0.0
    %1683 = vmatpush.msra.mxu0 0.0
    %1684 = vmatpush.msra.mxu0 0.0
    %1685 = vmatpush.msra.mxu0 0.0
    %1686 = vmatpush.msra.mxu0 0.0
    %1687 = vmatpush.msra.mxu0 0.0
    %1688 = vmatpush.msra.mxu0 0.0
    %1689 = vmatpush.msra.mxu0 %v1284
    %1690 = vmatmul.f32.gmra.mxu0 %v1672
    %v1691 = vpop.f32.mrf.mxu0
    %v1692 = vadd.f32 0.0, %v1691
    %1693 = vdwg.mxu0
    %v1695 = vsel %vm1343, %v1642, 0
    %1697 = vmatpush.msra.mxu0 0.0
    %1698 = vmatpush.msra.mxu0 0.0
    %1699 = vmatpush.msra.mxu0 0.0
    %1700 = vmatpush.msra.mxu0 0.0
    %1701 = vmatpush.msra.mxu0 0.0
    %1702 = vmatpush.msra.mxu0 0.0
    %1703 = vmatpush.msra.mxu0 0.0
    %1704 = vmatpush.msra.mxu0 0.0
    %1705 = vmatpush.msra.mxu0 0.0
    %1706 = vmatpush.msra.mxu0 0.0
    %1707 = vmatpush.msra.mxu0 0.0
    %1708 = vmatpush.msra.mxu0 0.0
    %1709 = vmatpush.msra.mxu0 0.0
    %1710 = vmatpush.msra.mxu0 0.0
    %1711 = vmatpush.msra.mxu0 0.0
    %1712 = vmatpush.msra.mxu0 %v1286
    %1713 = vmatmul.f32.gmra.mxu0 %v1695
    %v1714 = vpop.f32.mrf.mxu0
    %v1715 = vadd.f32 0.0, %v1714
    %1716 = vdwg.mxu0
    %v1718 = vsel %vm1343, %v1643, 0
    %1720 = vmatpush.msra.mxu0 0.0
    %1721 = vmatpush.msra.mxu0 0.0
    %1722 = vmatpush.msra.mxu0 0.0
    %1723 = vmatpush.msra.mxu0 0.0
    %1724 = vmatpush.msra.mxu0 0.0
    %1725 = vmatpush.msra.mxu0 0.0
    %1726 = vmatpush.msra.mxu0 0.0
    %1727 = vmatpush.msra.mxu0 0.0
    %1728 = vmatpush.msra.mxu0 0.0
    %1729 = vmatpush.msra.mxu0 0.0
    %1730 = vmatpush.msra.mxu0 0.0
    %1731 = vmatpush.msra.mxu0 0.0
    %1732 = vmatpush.msra.mxu0 0.0
    %1733 = vmatpush.msra.mxu0 0.0
    %1734 = vmatpush.msra.mxu0 0.0
    %1735 = vmatpush.msra.mxu0 %v1288
    %1736 = vmatmul.f32.gmra.mxu0 %v1718
    %v1737 = vpop.f32.mrf.mxu0
    %v1738 = vadd.f32 0.0, %v1737
    %1739 = vdwg.mxu0
    %v1741 = vsel %vm1343, %v1644, 0
    %1743 = vmatpush.msra.mxu0 0.0
    %1744 = vmatpush.msra.mxu0 0.0
    %1745 = vmatpush.msra.mxu0 0.0
    %1746 = vmatpush.msra.mxu0 0.0
    %1747 = vmatpush.msra.mxu0 0.0
    %1748 = vmatpush.msra.mxu0 0.0
    %1749 = vmatpush.msra.mxu0 0.0
    %1750 = vmatpush.msra.mxu0 0.0
    %1751 = vmatpush.msra.mxu0 0.0
    %1752 = vmatpush.msra.mxu0 0.0
    %1753 = vmatpush.msra.mxu0 0.0
    %1754 = vmatpush.msra.mxu0 0.0
    %1755 = vmatpush.msra.mxu0 0.0
    %1756 = vmatpush.msra.mxu0 0.0
    %1757 = vmatpush.msra.mxu0 0.0
    %1758 = vmatpush.msra.mxu0 %v1336
    %1759 = vmatmul.f32.gmra.mxu0 %v1741
    %v1760 = vpop.f32.mrf.mxu0
    %v1761 = vadd.f32 0.0, %v1760
    %1762 = vdwg.mxu0
    %v1764 = vsel %vm1343, %v1645, 0
    %1766 = vmatpush.msra.mxu0 0.0
    %1767 = vmatpush.msra.mxu0 0.0
    %1768 = vmatpush.msra.mxu0 0.0
    %1769 = vmatpush.msra.mxu0 0.0
    %1770 = vmatpush.msra.mxu0 0.0
    %1771 = vmatpush.msra.mxu0 0.0
    %1772 = vmatpush.msra.mxu0 0.0
    %1773 = vmatpush.msra.mxu0 0.0
    %1774 = vmatpush.msra.mxu0 0.0
    %1775 = vmatpush.msra.mxu0 0.0
    %1776 = vmatpush.msra.mxu0 0.0
    %1777 = vmatpush.msra.mxu0 0.0
    %1778 = vmatpush.msra.mxu0 0.0
    %1779 = vmatpush.msra.mxu0 0.0
    %1780 = vmatpush.msra.mxu0 0.0
    %1781 = vmatpush.msra.mxu0 %v1338
    %1782 = vmatmul.f32.gmra.mxu0 %v1764
    %v1783 = vpop.f32.mrf.mxu0
    %v1784 = vadd.f32 0.0, %v1783
    %1785 = vdwg.mxu0
    %v1787 = vsel %vm1343, %v1646, 0
    %1789 = vmatpush.msra.mxu0 0.0
    %1790 = vmatpush.msra.mxu0 0.0
    %1791 = vmatpush.msra.mxu0 0.0
    %1792 = vmatpush.msra.mxu0 0.0
    %1793 = vmatpush.msra.mxu0 0.0
    %1794 = vmatpush.msra.mxu0 0.0
    %1795 = vmatpush.msra.mxu0 0.0
    %1796 = vmatpush.msra.mxu0 0.0
    %1797 = vmatpush.msra.mxu0 0.0
    %1798 = vmatpush.msra.mxu0 0.0
    %1799 = vmatpush.msra.mxu0 0.0
    %1800 = vmatpush.msra.mxu0 0.0
    %1801 = vmatpush.msra.mxu0 0.0
    %1802 = vmatpush.msra.mxu0 0.0
    %1803 = vmatpush.msra.mxu0 0.0
    %1804 = vmatpush.msra.mxu0 %v1340
    %1805 = vmatmul.f32.gmra.mxu0 %v1787
    %v1806 = vpop.f32.mrf.mxu0
    %v1807 = vadd.f32 0.0, %v1806
    %1808 = vdwg.mxu0
    %v1810 = vsel %vm1343, %v1647, 0
    %1812 = vmatpush.msra.mxu0 0.0
    %1813 = vmatpush.msra.mxu0 0.0
    %1814 = vmatpush.msra.mxu0 0.0
    %1815 = vmatpush.msra.mxu0 0.0
    %1816 = vmatpush.msra.mxu0 0.0
    %1817 = vmatpush.msra.mxu0 0.0
    %1818 = vmatpush.msra.mxu0 0.0
    %1819 = vmatpush.msra.mxu0 0.0
    %1820 = vmatpush.msra.mxu0 0.0
    %1821 = vmatpush.msra.mxu0 0.0
    %1822 = vmatpush.msra.mxu0 0.0
    %1823 = vmatpush.msra.mxu0 0.0
    %1824 = vmatpush.msra.mxu0 0.0
    %1825 = vmatpush.msra.mxu0 0.0
    %1826 = vmatpush.msra.mxu0 0.0
    %1827 = vmatpush.msra.mxu0 %v1342
    %1828 = vmatmul.f32.gmra.mxu0 %v1810
    %v1829 = vpop.f32.mrf.mxu0
    %v1830 = vadd.f32 0.0, %v1829
    %1831 = vdwg.mxu0
    %v1832 = vrot.slane %v1715, 4
    %v1833 = vsel %vm635, %v1832, %v1669
    %v1834 = vrot.slane %v1669, 4
    %v1835 = vsel %vm635, %v1715, %v1834
    %v1837 = vunpack.c.l.s4 1983009808
    %v1838 = vunpack.c.0.s8 %v1837
    %v1839 = vperm.slane %v1833, %v1838
    %v1841 = vunpack.c.l.s4 1983009808
    %v1842 = vunpack.c.0.s8 %v1841
    %v1843 = vperm.slane %v1835, %v1842
    %v1844 = vrot.slane %v1738, 4
    %v1845 = vsel %vm635, %v1844, %v1692
    %v1846 = vrot.slane %v1692, 4
    %v1847 = vsel %vm635, %v1738, %v1846
    %v1849 = vunpack.c.l.s4 1983009808
    %v1850 = vunpack.c.0.s8 %v1849
    %v1851 = vperm.slane %v1845, %v1850
    %v1853 = vunpack.c.l.s4 1983009808
    %v1854 = vunpack.c.0.s8 %v1853
    %v1855 = vperm.slane %v1847, %v1854
    %v1856 = vrot.slane %v1851, 4
    %v1857 = vsel %vm635, %v1856, %v1839
    %v1858 = vrot.slane %v1839, 4
    %v1859 = vsel %vm635, %v1851, %v1858
    %v1861 = vunpack.c.l.s4 1934713408
    %v1862 = vunpack.c.0.s8 %v1861
    %v1863 = vperm.slane %v1857, %v1862
    %v1865 = vunpack.c.l.s4 1934713408
    %v1866 = vunpack.c.0.s8 %v1865
    %v1867 = vperm.slane %v1859, %v1866
    %v1868 = vrot.slane %v1855, 4
    %v1869 = vsel %vm635, %v1868, %v1843
    %v1870 = vrot.slane %v1843, 4
    %v1871 = vsel %vm635, %v1855, %v1870
    %v1873 = vunpack.c.l.s4 1934713408
    %v1874 = vunpack.c.0.s8 %v1873
    %v1875 = vperm.slane %v1869, %v1874
    %v1877 = vunpack.c.l.s4 1934713408
    %v1878 = vunpack.c.0.s8 %v1877
    %v1879 = vperm.slane %v1871, %v1878
    %v1880 = vrot.slane %v1863, 4
    %v1881 = vsel %vm635, 0.0, %v1880
    %v1882 = vrot.slane %v1867, 4
    %v1883 = vsel %vm635, 0.0, %v1882
    %v1884 = vrot.slane %v1875, 4
    %v1885 = vsel %vm635, 0.0, %v1884
    %v1886 = vrot.slane %v1879, 4
    %v1887 = vsel %vm635, 0.0, %v1886
    %v1888 = vrot.slane %v1807, 4
    %v1889 = vsel %vm635, %v1888, %v1761
    %v1890 = vrot.slane %v1761, 4
    %v1891 = vsel %vm635, %v1807, %v1890
    %v1893 = vunpack.c.l.s4 1983009808
    %v1894 = vunpack.c.0.s8 %v1893
    %v1895 = vperm.slane %v1889, %v1894
    %v1897 = vunpack.c.l.s4 1983009808
    %v1898 = vunpack.c.0.s8 %v1897
    %v1899 = vperm.slane %v1891, %v1898
    %v1900 = vrot.slane %v1830, 4
    %v1901 = vsel %vm635, %v1900, %v1784
    %v1902 = vrot.slane %v1784, 4
    %v1903 = vsel %vm635, %v1830, %v1902
    %v1905 = vunpack.c.l.s4 1983009808
    %v1906 = vunpack.c.0.s8 %v1905
    %v1907 = vperm.slane %v1901, %v1906
    %v1909 = vunpack.c.l.s4 1983009808
    %v1910 = vunpack.c.0.s8 %v1909
    %v1911 = vperm.slane %v1903, %v1910
    %v1912 = vrot.slane %v1907, 4
    %v1913 = vsel %vm635, %v1912, %v1895
    %v1914 = vrot.slane %v1895, 4
    %v1915 = vsel %vm635, %v1907, %v1914
    %v1917 = vunpack.c.l.s4 1934713408
    %v1918 = vunpack.c.0.s8 %v1917
    %v1919 = vperm.slane %v1913, %v1918
    %v1921 = vunpack.c.l.s4 1934713408
    %v1922 = vunpack.c.0.s8 %v1921
    %v1923 = vperm.slane %v1915, %v1922
    %v1924 = vrot.slane %v1911, 4
    %v1925 = vsel %vm635, %v1924, %v1899
    %v1926 = vrot.slane %v1899, 4
    %v1927 = vsel %vm635, %v1911, %v1926
    %v1929 = vunpack.c.l.s4 1934713408
    %v1930 = vunpack.c.0.s8 %v1929
    %v1931 = vperm.slane %v1925, %v1930
    %v1933 = vunpack.c.l.s4 1934713408
    %v1934 = vunpack.c.0.s8 %v1933
    %v1935 = vperm.slane %v1927, %v1934
    %v1936 = vrot.slane %v1919, 4
    %v1937 = vsel %vm635, 0.0, %v1936
    %v1938 = vrot.slane %v1923, 4
    %v1939 = vsel %vm635, 0.0, %v1938
    %v1940 = vrot.slane %v1931, 4
    %v1941 = vsel %vm635, 0.0, %v1940
    %v1942 = vrot.slane %v1935, 4
    %v1943 = vsel %vm635, 0.0, %v1942
    %v1944 = vsel %vm635, %v1882, %v1863
    %v1946 = vunpack.c.l.s4 1983009808
    %v1947 = vunpack.c.0.s8 %v1946
    %v1948 = vperm.slane %v1944, %v1947
    %v1949 = vrot.slane %v1883, 4
    %v1950 = vsel %vm635, %v1949, %v1881
    %v1952 = vunpack.c.l.s4 1983009808
    %v1953 = vunpack.c.0.s8 %v1952
    %v1954 = vperm.slane %v1950, %v1953
    %v1955 = vsel %vm635, %v1886, %v1875
    %v1957 = vunpack.c.l.s4 1983009808
    %v1958 = vunpack.c.0.s8 %v1957
    %v1959 = vperm.slane %v1955, %v1958
    %v1960 = vrot.slane %v1887, 4
    %v1961 = vsel %vm635, %v1960, %v1885
    %v1963 = vunpack.c.l.s4 1983009808
    %v1964 = vunpack.c.0.s8 %v1963
    %v1965 = vperm.slane %v1961, %v1964
    %v1966 = vrot.slane %v1954, 4
    %v1967 = vsel %vm635, %v1966, %v1948
    %v1968 = vrot.slane %v1948, 4
    %v1969 = vsel %vm635, %v1954, %v1968
    %v1971 = vunpack.c.l.s4 1934713408
    %v1972 = vunpack.c.0.s8 %v1971
    %v1973 = vperm.slane %v1967, %v1972
    %v1975 = vunpack.c.l.s4 1934713408
    %v1976 = vunpack.c.0.s8 %v1975
    %v1977 = vperm.slane %v1969, %v1976
    %v1978 = vrot.slane %v1965, 4
    %v1979 = vsel %vm635, %v1978, %v1959
    %v1980 = vrot.slane %v1959, 4
    %v1981 = vsel %vm635, %v1965, %v1980
    %v1983 = vunpack.c.l.s4 1934713408
    %v1984 = vunpack.c.0.s8 %v1983
    %v1985 = vperm.slane %v1979, %v1984
    %v1987 = vunpack.c.l.s4 1934713408
    %v1988 = vunpack.c.0.s8 %v1987
    %v1989 = vperm.slane %v1981, %v1988
    %v1990 = vrot.slane %v1985, 4
    %v1991 = vsel %vm635, %v1990, %v1973
    %v1992 = vrot.slane %v1973, 4
    %v1993 = vsel %vm635, %v1985, %v1992
    %v1994 = vrot.slane %v1989, 4
    %v1995 = vsel %vm635, %v1994, %v1977
    %v1996 = vrot.slane %v1977, 4
    %v1997 = vsel %vm635, %v1989, %v1996
    %v1998 = vsel %vm635, %v1938, %v1919
    %v2000 = vunpack.c.l.s4 1983009808
    %v2001 = vunpack.c.0.s8 %v2000
    %v2002 = vperm.slane %v1998, %v2001
    %v2003 = vrot.slane %v1939, 4
    %v2004 = vsel %vm635, %v2003, %v1937
    %v2006 = vunpack.c.l.s4 1983009808
    %v2007 = vunpack.c.0.s8 %v2006
    %v2008 = vperm.slane %v2004, %v2007
    %v2009 = vsel %vm635, %v1942, %v1931
    %v2011 = vunpack.c.l.s4 1983009808
    %v2012 = vunpack.c.0.s8 %v2011
    %v2013 = vperm.slane %v2009, %v2012
    %v2014 = vrot.slane %v1943, 4
    %v2015 = vsel %vm635, %v2014, %v1941
    %v2017 = vunpack.c.l.s4 1983009808
    %v2018 = vunpack.c.0.s8 %v2017
    %v2019 = vperm.slane %v2015, %v2018
    %v2020 = vrot.slane %v2008, 4
    %v2021 = vsel %vm635, %v2020, %v2002
    %v2022 = vrot.slane %v2002, 4
    %v2023 = vsel %vm635, %v2008, %v2022
    %v2025 = vunpack.c.l.s4 1934713408
    %v2026 = vunpack.c.0.s8 %v2025
    %v2027 = vperm.slane %v2021, %v2026
    %v2029 = vunpack.c.l.s4 1934713408
    %v2030 = vunpack.c.0.s8 %v2029
    %v2031 = vperm.slane %v2023, %v2030
    %v2032 = vrot.slane %v2019, 4
    %v2033 = vsel %vm635, %v2032, %v2013
    %v2034 = vrot.slane %v2013, 4
    %v2035 = vsel %vm635, %v2019, %v2034
    %v2037 = vunpack.c.l.s4 1934713408
    %v2038 = vunpack.c.0.s8 %v2037
    %v2039 = vperm.slane %v2033, %v2038
    %v2041 = vunpack.c.l.s4 1934713408
    %v2042 = vunpack.c.0.s8 %v2041
    %v2043 = vperm.slane %v2035, %v2042
    %v2044 = vrot.slane %v2039, 4
    %v2045 = vsel %vm635, %v2044, %v2027
    %v2046 = vrot.slane %v2027, 4
    %v2047 = vsel %vm635, %v2039, %v2046
    %v2048 = vrot.slane %v2043, 4
    %v2049 = vsel %vm635, %v2048, %v2031
    %v2050 = vrot.slane %v2031, 4
    %v2051 = vsel %vm635, %v2043, %v2050
    %2054 = vrot.lane.b32.xlu0 %v1993, 8
    %v2055 = vpop.permute.xlu0 %2054
    %2056 = vrot.lane.b32.xlu0 %v2047, 8
    %v2057 = vpop.permute.xlu0 %2056
    %2062 = vrot.lane.b32.xlu0 %v1995, 16
    %v2063 = vpop.permute.xlu0 %2062
    %2064 = vrot.lane.b32.xlu0 %v2049, 16
    %v2065 = vpop.permute.xlu0 %2064
    %2070 = vrot.lane.b32.xlu0 %v1997, 24
    %v2071 = vpop.permute.xlu0 %2070
    %2072 = vrot.lane.b32.xlu0 %v2051, 24
    %v2073 = vpop.permute.xlu0 %2072
    %v2076 = vsel %vm1343, %v1991, %v2055
    %v2077 = vsel %vm1343, %v2045, %v2057
    %vm2078 = vcmask 130048
    %v2079 = vsel %vm2078, %v2076, %v2063
    %v2080 = vsel %vm2078, %v2077, %v2065
    %vm2081 = vcmask 195584
    %v2082 = vsel %vm2081, %v2079, %v2071
    %v2083 = vsel %vm2081, %v2080, %v2073
    %v2085 = vperm.slane %v613, 0
    %v2088 = vsel %vm579, %v2082, 0
    %v2091 = vsel %vm579, %v2083, 0
    %2093 = vmatpush.msra.mxu0 0.0
    %2094 = vmatpush.msra.mxu0 0.0
    %2095 = vmatpush.msra.mxu0 0.0
    %2096 = vmatpush.msra.mxu0 0.0
    %2097 = vmatpush.msra.mxu0 0.0
    %2098 = vmatpush.msra.mxu0 0.0
    %2099 = vmatpush.msra.mxu0 0.0
    %2100 = vmatpush.msra.mxu0 0.0
    %2101 = vmatpush.msra.mxu0 0.0
    %2102 = vmatpush.msra.mxu0 0.0
    %2103 = vmatpush.msra.mxu0 0.0
    %2104 = vmatpush.msra.mxu0 0.0
    %2105 = vmatpush.msra.mxu0 %v612
    %2106 = vmatpush.msra.mxu0 %v611
    %2107 = vmatpush.msra.mxu0 %v610
    %2108 = vmatpush.msra.mxu0 %v609
    %2109 = vmatmul.f32.gmra.mxu0 %v2088
    %v2110 = vpop.f32.mrf.mxu0
    %v2111 = vadd.f32 %v2085, %v2110
    %2112 = vmatmul.f32.gmra.mxu0 %v2091
    %v2113 = vpop.f32.mrf.mxu0
    %v2114 = vadd.f32 %v2085, %v2113
    %2115 = vdwg.mxu0
    %v2116 = vadd.f32 %v528, %v2111
    %v2117 = vadd.f32 %v529, %v2114
    %v2118 = vld [vmem:[#allocation17] sm:$0x1]
    %v2119 = vld [vmem:[#allocation19] sm:$0x1]
    %v2120 = vsel %vm579, %v2116, 0.0
    %2121 = vadd.xlane.f32.xlu0 %v2120
    %v2122 = vpop.xlane.xlu0 %2121
    %v2123 = vsel %vm579, %v2117, 0.0
    %2124 = vadd.xlane.f32.xlu0 %v2123
    %v2125 = vpop.xlane.xlu0 %2124
    %v2126 = vrcp.pop 32.0
    %v2127 = vmul.f32 32.0, %v2126
    %v2128 = vsub.f32 1.0, %v2127
    %v2129 = vmul.f32 %v2126, %v2128
    %v2130 = vadd.f32 %v2126, %v2129
    %vm2131 = vweird.f32 %v2126
    %v2132 = vsel %vm2131, %v2126, %v2130
    %v2133 = vmul.f32 %v2122, %v2132
    %v2134 = vmul.f32 %v2125, %v2132
    %v2135 = vsub.f32 %v2116, %v2133
    %v2136 = vsub.f32 %v2117, %v2134
    %v2137 = vmul.f32 %v2135, %v2135
    %v2138 = vmul.f32 %v2136, %v2136
    %v2139 = vsel %vm579, %v2137, 0.0
    %2140 = vadd.xlane.f32.xlu0 %v2139
    %v2141 = vpop.xlane.xlu0 %2140
    %v2142 = vsel %vm579, %v2138, 0.0
    %2143 = vadd.xlane.f32.xlu0 %v2142
    %v2144 = vpop.xlane.xlu0 %2143
    %v2145 = vmul.f32 %v2141, %v2132
    %v2146 = vmul.f32 %v2144, %v2132
    %v2147 = vadd.f32 %v2145, 1e-05
    %v2148 = vadd.f32 %v2146, 1e-05
    %v2149 = vrsqrt.pop %v2147
    %v2150 = vmul.f32 %v2149, %v2147
    %v2151 = vmul.f32 %v2150, %v2149
    %v2152 = vmul.f32 0.5, %v2151
    %v2153 = vsub.f32 1.5, %v2152
    %v2154 = vmul.f32 %v2149, %v2153
    %vm2155 = vweird.f32 %v2147
    %vm2156 = vweird.f32 %v2149
    %vm2157 = vmor %vm2155, %vm2156
    %v2158 = vsel %vm2157, %v2149, %v2154
    %v2159 = vrsqrt.pop %v2148
    %v2160 = vmul.f32 %v2159, %v2148
    %v2161 = vmul.f32 %v2160, %v2159
    %v2162 = vmul.f32 0.5, %v2161
    %v2163 = vsub.f32 1.5, %v2162
    %v2164 = vmul.f32 %v2159, %v2163
    %vm2165 = vweird.f32 %v2148
    %vm2166 = vweird.f32 %v2159
    %vm2167 = vmor %vm2165, %vm2166
    %v2168 = vsel %vm2167, %v2159, %v2164
    %v2169 = vmul.f32 %v2135, %v2158
    %v2170 = vmul.f32 %v2136, %v2168
    %v2172 = vperm.slane %v2118, 0
    %v2174 = vmul.f32 %v2169, %v2172
    %v2175 = vmul.f32 %v2170, %v2172
    %v2177 = vperm.slane %v2119, 0
    %v2179 = vadd.f32 %v2174, %v2177
    %v2180 = vadd.f32 %v2175, %v2177
    %v2181 = vld [vmem:[%s23] sm:$0xff]
    %v2182 = vld [vmem:[%s23 + $0x8] sm:$0xff]
    %v2183 = vld [vmem:[%s23 + $0x10] sm:$0xff]
    %v2184 = vld [vmem:[%s23 + $0x18] sm:$0xff]
    %v2185 = vld [vmem:[#allocation14] sm:$0x1]
    %v2187 = vperm.slane %v2185, 0
    %v2190 = vsel %vm579, %v2179, 0
    %v2193 = vsel %vm579, %v2180, 0
    %2195 = vmatpush.msra.mxu0 0.0
    %2196 = vmatpush.msra.mxu0 0.0
    %2197 = vmatpush.msra.mxu0 0.0
    %2198 = vmatpush.msra.mxu0 0.0
    %2199 = vmatpush.msra.mxu0 0.0
    %2200 = vmatpush.msra.mxu0 0.0
    %2201 = vmatpush.msra.mxu0 0.0
    %2202 = vmatpush.msra.mxu0 0.0
    %2203 = vmatpush.msra.mxu0 0.0
    %2204 = vmatpush.msra.mxu0 0.0
    %2205 = vmatpush.msra.mxu0 0.0
    %2206 = vmatpush.msra.mxu0 0.0
    %2207 = vmatpush.msra.mxu0 %v2184
    %2208 = vmatpush.msra.mxu0 %v2183
    %2209 = vmatpush.msra.mxu0 %v2182
    %2210 = vmatpush.msra.mxu0 %v2181
    %2211 = vmatmul.f32.gmra.mxu0 %v2190
    %v2212 = vpop.f32.mrf.mxu0
    %v2213 = vadd.f32 %v2187, %v2212
    %2214 = vmatmul.f32.gmra.mxu0 %v2193
    %v2215 = vpop.f32.mrf.mxu0
    %v2216 = vadd.f32 %v2187, %v2215
    %2217 = vdwg.mxu0
    %v2218 = vmax.f32 %v2213, 0.0
    %v2219 = vmax.f32 %v2216, 0.0
    %v2220 = vld [vmem:[%s27] sm:$0xff]
    %v2221 = vld [vmem:[%s27 + $0x8] sm:$0xff]
    %v2222 = vld [vmem:[%s27 + $0x10] sm:$0xff]
    %v2223 = vld [vmem:[%s27 + $0x18] sm:$0xff]
    %v2224 = vld [vmem:[%s27 + $0x20] sm:$0xff]
    %v2225 = vld [vmem:[%s27 + $0x28] sm:$0xff]
    %v2226 = vld [vmem:[%s27 + $0x30] sm:$0xff]
    %v2227 = vld [vmem:[%s27 + $0x38] sm:$0xff]
    %v2228 = vld [vmem:[#allocation16] sm:$0x1]
    %v2230 = vperm.slane %v2228, 0
    %vm2232 = vcmask 523264
    %v2234 = vsel %vm2232, %v2218, 0
    %v2237 = vsel %vm2232, %v2219, 0
    %2239 = vmatpush.msra.mxu0 0.0
    %2240 = vmatpush.msra.mxu0 0.0
    %2241 = vmatpush.msra.mxu0 0.0
    %2242 = vmatpush.msra.mxu0 0.0
    %2243 = vmatpush.msra.mxu0 0.0
    %2244 = vmatpush.msra.mxu0 0.0
    %2245 = vmatpush.msra.mxu0 0.0
    %2246 = vmatpush.msra.mxu0 0.0
    %2247 = vmatpush.msra.mxu0 %v2227
    %2248 = vmatpush.msra.mxu0 %v2226
    %2249 = vmatpush.msra.mxu0 %v2225
    %2250 = vmatpush.msra.mxu0 %v2224
    %2251 = vmatpush.msra.mxu0 %v2223
    %2252 = vmatpush.msra.mxu0 %v2222
    %2253 = vmatpush.msra.mxu0 %v2221
    %2254 = vmatpush.msra.mxu0 %v2220
    %2255 = vmatmul.f32.gmra.mxu0 %v2234
    %v2256 = vpop.f32.mrf.mxu0
    %v2257 = vadd.f32 %v2230, %v2256
    %2258 = vmatmul.f32.gmra.mxu0 %v2237
    %v2259 = vpop.f32.mrf.mxu0
    %v2260 = vadd.f32 %v2230, %v2259
    %2261 = vdwg.mxu0
    %v2262 = vadd.f32 %v2179, %v2257
    %v2263 = vadd.f32 %v2180, %v2260
    %v2264 = vld [vmem:[#allocation20] sm:$0x1]
    %v2265 = vld [vmem:[#allocation22] sm:$0x1]
    %v2266 = vsel %vm579, %v2262, 0.0
    %2267 = vadd.xlane.f32.xlu0 %v2266
    %v2268 = vpop.xlane.xlu0 %2267
    %v2269 = vsel %vm579, %v2263, 0.0
    %2270 = vadd.xlane.f32.xlu0 %v2269
    %v2271 = vpop.xlane.xlu0 %2270
    %v2272 = vmul.f32 %v2268, %v2132
    %v2273 = vmul.f32 %v2271, %v2132
    %v2274 = vsub.f32 %v2262, %v2272
    %v2275 = vsub.f32 %v2263, %v2273
    %v2276 = vmul.f32 %v2274, %v2274
    %v2277 = vmul.f32 %v2275, %v2275
    %v2278 = vsel %vm579, %v2276, 0.0
    %2279 = vadd.xlane.f32.xlu0 %v2278
    %v2280 = vpop.xlane.xlu0 %2279
    %v2281 = vsel %vm579, %v2277, 0.0
    %2282 = vadd.xlane.f32.xlu0 %v2281
    %v2283 = vpop.xlane.xlu0 %2282
    %v2284 = vmul.f32 %v2280, %v2132
    %v2285 = vmul.f32 %v2283, %v2132
    %v2286 = vadd.f32 %v2284, 1e-05
    %v2287 = vadd.f32 %v2285, 1e-05
    %v2288 = vrsqrt.pop %v2286
    %v2289 = vmul.f32 %v2288, %v2286
    %v2290 = vmul.f32 %v2289, %v2288
    %v2291 = vmul.f32 0.5, %v2290
    %v2292 = vsub.f32 1.5, %v2291
    %v2293 = vmul.f32 %v2288, %v2292
    %vm2294 = vweird.f32 %v2286
    %vm2295 = vweird.f32 %v2288
    %vm2296 = vmor %vm2294, %vm2295
    %v2297 = vsel %vm2296, %v2288, %v2293
    %v2298 = vrsqrt.pop %v2287
    %v2299 = vmul.f32 %v2298, %v2287
    %v2300 = vmul.f32 %v2299, %v2298
    %v2301 = vmul.f32 0.5, %v2300
    %v2302 = vsub.f32 1.5, %v2301
    %v2303 = vmul.f32 %v2298, %v2302
    %vm2304 = vweird.f32 %v2287
    %vm2305 = vweird.f32 %v2298
    %vm2306 = vmor %vm2304, %vm2305
    %v2307 = vsel %vm2306, %v2298, %v2303
    %v2308 = vmul.f32 %v2274, %v2297
    %v2309 = vmul.f32 %v2275, %v2307
    %v2311 = vperm.slane %v2264, 0
    %v2313 = vmul.f32 %v2308, %v2311
    %v2314 = vmul.f32 %v2309, %v2311
    %v2316 = vperm.slane %v2265, 0
    %v2318 = vadd.f32 %v2313, %v2316
    %v2319 = vadd.f32 %v2314, %v2316
    %s2320 = scalar_lea.vmem %s15, 32
    %v2321 = vld [vmem:[%s2320] sm:$0xff]
    %v2322 = vld [vmem:[%s2320 + $0x8] sm:$0xff]
    %v2323 = vld [vmem:[%s2320 + $0x10] sm:$0xff]
    %v2324 = vld [vmem:[%s2320 + $0x18] sm:$0xff]
    %s2325 = scalar_lea.vmem [#allocation11], 1
    %v2326 = vld [vmem:[%s2325] sm:$0x1]
    %v2328 = vperm.slane %v2326, 0
    %v2331 = vsel %vm579, %v2318, 0
    %v2334 = vsel %vm579, %v2319, 0
    %2336 = vmatpush.msra.mxu0 0.0
    %2337 = vmatpush.msra.mxu0 0.0
    %2338 = vmatpush.msra.mxu0 0.0
    %2339 = vmatpush.msra.mxu0 0.0
    %2340 = vmatpush.msra.mxu0 0.0
    %2341 = vmatpush.msra.mxu0 0.0
    %2342 = vmatpush.msra.mxu0 0.0
    %2343 = vmatpush.msra.mxu0 0.0
    %2344 = vmatpush.msra.mxu0 0.0
    %2345 = vmatpush.msra.mxu0 0.0
    %2346 = vmatpush.msra.mxu0 0.0
    %2347 = vmatpush.msra.mxu0 0.0
    %2348 = vmatpush.msra.mxu0 %v2324
    %2349 = vmatpush.msra.mxu0 %v2323
    %2350 = vmatpush.msra.mxu0 %v2322
    %2351 = vmatpush.msra.mxu0 %v2321
    %2352 = vmatmul.f32.gmra.mxu0 %v2331
    %v2353 = vpop.f32.mrf.mxu0
    %v2354 = vadd.f32 %v2328, %v2353
    %2355 = vmatmul.f32.gmra.mxu0 %v2334
    %v2356 = vpop.f32.mrf.mxu0
    %v2357 = vadd.f32 %v2328, %v2356
    %2358 = vdwg.mxu0
    %s2359 = scalar_lea.vmem %s19, 32
    %v2360 = vld [vmem:[%s2359] sm:$0xff]
    %v2361 = vld [vmem:[%s2359 + $0x8] sm:$0xff]
    %v2362 = vld [vmem:[%s2359 + $0x10] sm:$0xff]
    %v2363 = vld [vmem:[%s2359 + $0x18] sm:$0xff]
    %s2364 = scalar_lea.vmem [#allocation13], 1
    %v2365 = vld [vmem:[%s2364] sm:$0x1]
    %2368 = vrot.lane.b32.xlu0 %v2354, 120
    %v2369 = vpop.permute.xlu0 %2368
    %2370 = vrot.lane.b32.xlu0 %v2357, 120
    %v2371 = vpop.permute.xlu0 %2370
    %2374 = vrot.lane.b32.xlu0 %v2354, 112
    %v2375 = vpop.permute.xlu0 %2374
    %2376 = vrot.lane.b32.xlu0 %v2357, 112
    %v2377 = vpop.permute.xlu0 %2376
    %2380 = vrot.lane.b32.xlu0 %v2354, 104
    %v2381 = vpop.permute.xlu0 %2380
    %2382 = vrot.lane.b32.xlu0 %v2357, 104
    %v2383 = vpop.permute.xlu0 %2382
    %v2386 = vrot.slane %v2375, 4
    %v2387 = vsel %vm635, %v2386, %v2354
    %v2388 = vrot.slane %v2354, 4
    %v2389 = vsel %vm635, %v2375, %v2388
    %v2391 = vunpack.c.l.s4 1983009808
    %v2392 = vunpack.c.0.s8 %v2391
    %v2393 = vperm.slane %v2387, %v2392
    %v2395 = vunpack.c.l.s4 1983009808
    %v2396 = vunpack.c.0.s8 %v2395
    %v2397 = vperm.slane %v2389, %v2396
    %v2398 = vrot.slane %v2381, 4
    %v2399 = vsel %vm635, %v2398, %v2369
    %v2400 = vrot.slane %v2369, 4
    %v2401 = vsel %vm635, %v2381, %v2400
    %v2403 = vunpack.c.l.s4 1983009808
    %v2404 = vunpack.c.0.s8 %v2403
    %v2405 = vperm.slane %v2399, %v2404
    %v2407 = vunpack.c.l.s4 1983009808
    %v2408 = vunpack.c.0.s8 %v2407
    %v2409 = vperm.slane %v2401, %v2408
    %v2410 = vrot.slane %v2405, 4
    %v2411 = vsel %vm635, %v2410, %v2393
    %v2412 = vrot.slane %v2393, 4
    %v2413 = vsel %vm635, %v2405, %v2412
    %v2415 = vunpack.c.l.s4 1934713408
    %v2416 = vunpack.c.0.s8 %v2415
    %v2417 = vperm.slane %v2411, %v2416
    %v2419 = vunpack.c.l.s4 1934713408
    %v2420 = vunpack.c.0.s8 %v2419
    %v2421 = vperm.slane %v2413, %v2420
    %v2422 = vrot.slane %v2409, 4
    %v2423 = vsel %vm635, %v2422, %v2397
    %v2424 = vrot.slane %v2397, 4
    %v2425 = vsel %vm635, %v2409, %v2424
    %v2427 = vunpack.c.l.s4 1934713408
    %v2428 = vunpack.c.0.s8 %v2427
    %v2429 = vperm.slane %v2423, %v2428
    %v2431 = vunpack.c.l.s4 1934713408
    %v2432 = vunpack.c.0.s8 %v2431
    %v2433 = vperm.slane %v2425, %v2432
    %v2434 = vrot.slane %v2417, 4
    %v2435 = vsel %vm635, 0.0, %v2434
    %v2436 = vrot.slane %v2421, 4
    %v2437 = vsel %vm635, 0.0, %v2436
    %v2438 = vrot.slane %v2429, 4
    %v2439 = vsel %vm635, 0.0, %v2438
    %v2440 = vrot.slane %v2433, 4
    %v2441 = vsel %vm635, 0.0, %v2440
    %v2442 = vrot.slane %v2377, 4
    %v2443 = vsel %vm635, %v2442, %v2357
    %v2444 = vrot.slane %v2357, 4
    %v2445 = vsel %vm635, %v2377, %v2444
    %v2447 = vunpack.c.l.s4 1983009808
    %v2448 = vunpack.c.0.s8 %v2447
    %v2449 = vperm.slane %v2443, %v2448
    %v2451 = vunpack.c.l.s4 1983009808
    %v2452 = vunpack.c.0.s8 %v2451
    %v2453 = vperm.slane %v2445, %v2452
    %v2454 = vrot.slane %v2383, 4
    %v2455 = vsel %vm635, %v2454, %v2371
    %v2456 = vrot.slane %v2371, 4
    %v2457 = vsel %vm635, %v2383, %v2456
    %v2459 = vunpack.c.l.s4 1983009808
    %v2460 = vunpack.c.0.s8 %v2459
    %v2461 = vperm.slane %v2455, %v2460
    %v2463 = vunpack.c.l.s4 1983009808
    %v2464 = vunpack.c.0.s8 %v2463
    %v2465 = vperm.slane %v2457, %v2464
    %v2466 = vrot.slane %v2461, 4
    %v2467 = vsel %vm635, %v2466, %v2449
    %v2468 = vrot.slane %v2449, 4
    %v2469 = vsel %vm635, %v2461, %v2468
    %v2471 = vunpack.c.l.s4 1934713408
    %v2472 = vunpack.c.0.s8 %v2471
    %v2473 = vperm.slane %v2467, %v2472
    %v2475 = vunpack.c.l.s4 1934713408
    %v2476 = vunpack.c.0.s8 %v2475
    %v2477 = vperm.slane %v2469, %v2476
    %v2478 = vrot.slane %v2465, 4
    %v2479 = vsel %vm635, %v2478, %v2453
    %v2480 = vrot.slane %v2453, 4
    %v2481 = vsel %vm635, %v2465, %v2480
    %v2483 = vunpack.c.l.s4 1934713408
    %v2484 = vunpack.c.0.s8 %v2483
    %v2485 = vperm.slane %v2479, %v2484
    %v2487 = vunpack.c.l.s4 1934713408
    %v2488 = vunpack.c.0.s8 %v2487
    %v2489 = vperm.slane %v2481, %v2488
    %v2490 = vrot.slane %v2473, 4
    %v2491 = vsel %vm635, 0.0, %v2490
    %v2492 = vrot.slane %v2477, 4
    %v2493 = vsel %vm635, 0.0, %v2492
    %v2494 = vrot.slane %v2485, 4
    %v2495 = vsel %vm635, 0.0, %v2494
    %v2496 = vrot.slane %v2489, 4
    %v2497 = vsel %vm635, 0.0, %v2496
    %v2498 = vsel %vm635, %v2436, %v2417
    %v2500 = vunpack.c.l.s4 1983009808
    %v2501 = vunpack.c.0.s8 %v2500
    %v2502 = vperm.slane %v2498, %v2501
    %v2503 = vrot.slane %v2437, 4
    %v2504 = vsel %vm635, %v2503, %v2435
    %v2506 = vunpack.c.l.s4 1983009808
    %v2507 = vunpack.c.0.s8 %v2506
    %v2508 = vperm.slane %v2504, %v2507
    %v2509 = vsel %vm635, %v2440, %v2429
    %v2511 = vunpack.c.l.s4 1983009808
    %v2512 = vunpack.c.0.s8 %v2511
    %v2513 = vperm.slane %v2509, %v2512
    %v2514 = vrot.slane %v2441, 4
    %v2515 = vsel %vm635, %v2514, %v2439
    %v2517 = vunpack.c.l.s4 1983009808
    %v2518 = vunpack.c.0.s8 %v2517
    %v2519 = vperm.slane %v2515, %v2518
    %v2520 = vrot.slane %v2508, 4
    %v2521 = vsel %vm635, %v2520, %v2502
    %v2522 = vrot.slane %v2502, 4
    %v2523 = vsel %vm635, %v2508, %v2522
    %v2525 = vunpack.c.l.s4 1934713408
    %v2526 = vunpack.c.0.s8 %v2525
    %v2527 = vperm.slane %v2521, %v2526
    %v2529 = vunpack.c.l.s4 1934713408
    %v2530 = vunpack.c.0.s8 %v2529
    %v2531 = vperm.slane %v2523, %v2530
    %v2532 = vrot.slane %v2519, 4
    %v2533 = vsel %vm635, %v2532, %v2513
    %v2534 = vrot.slane %v2513, 4
    %v2535 = vsel %vm635, %v2519, %v2534
    %v2537 = vunpack.c.l.s4 1934713408
    %v2538 = vunpack.c.0.s8 %v2537
    %v2539 = vperm.slane %v2533, %v2538
    %v2541 = vunpack.c.l.s4 1934713408
    %v2542 = vunpack.c.0.s8 %v2541
    %v2543 = vperm.slane %v2535, %v2542
    %v2544 = vrot.slane %v2539, 4
    %v2545 = vsel %vm635, %v2544, %v2527
    %v2546 = vrot.slane %v2527, 4
    %v2547 = vsel %vm635, %v2539, %v2546
    %v2548 = vrot.slane %v2543, 4
    %v2549 = vsel %vm635, %v2548, %v2531
    %v2550 = vrot.slane %v2531, 4
    %v2551 = vsel %vm635, %v2543, %v2550
    %v2552 = vsel %vm635, %v2492, %v2473
    %v2554 = vunpack.c.l.s4 1983009808
    %v2555 = vunpack.c.0.s8 %v2554
    %v2556 = vperm.slane %v2552, %v2555
    %v2557 = vrot.slane %v2493, 4
    %v2558 = vsel %vm635, %v2557, %v2491
    %v2560 = vunpack.c.l.s4 1983009808
    %v2561 = vunpack.c.0.s8 %v2560
    %v2562 = vperm.slane %v2558, %v2561
    %v2563 = vsel %vm635, %v2496, %v2485
    %v2565 = vunpack.c.l.s4 1983009808
    %v2566 = vunpack.c.0.s8 %v2565
    %v2567 = vperm.slane %v2563, %v2566
    %v2568 = vrot.slane %v2497, 4
    %v2569 = vsel %vm635, %v2568, %v2495
    %v2571 = vunpack.c.l.s4 1983009808
    %v2572 = vunpack.c.0.s8 %v2571
    %v2573 = vperm.slane %v2569, %v2572
    %v2574 = vrot.slane %v2562, 4
    %v2575 = vsel %vm635, %v2574, %v2556
    %v2576 = vrot.slane %v2556, 4
    %v2577 = vsel %vm635, %v2562, %v2576
    %v2579 = vunpack.c.l.s4 1934713408
    %v2580 = vunpack.c.0.s8 %v2579
    %v2581 = vperm.slane %v2575, %v2580
    %v2583 = vunpack.c.l.s4 1934713408
    %v2584 = vunpack.c.0.s8 %v2583
    %v2585 = vperm.slane %v2577, %v2584
    %v2586 = vrot.slane %v2573, 4
    %v2587 = vsel %vm635, %v2586, %v2567
    %v2588 = vrot.slane %v2567, 4
    %v2589 = vsel %vm635, %v2573, %v2588
    %v2591 = vunpack.c.l.s4 1934713408
    %v2592 = vunpack.c.0.s8 %v2591
    %v2593 = vperm.slane %v2587, %v2592
    %v2595 = vunpack.c.l.s4 1934713408
    %v2596 = vunpack.c.0.s8 %v2595
    %v2597 = vperm.slane %v2589, %v2596
    %v2598 = vrot.slane %v2593, 4
    %v2599 = vsel %vm635, %v2598, %v2581
    %v2600 = vrot.slane %v2581, 4
    %v2601 = vsel %vm635, %v2593, %v2600
    %v2602 = vrot.slane %v2597, 4
    %v2603 = vsel %vm635, %v2602, %v2585
    %v2604 = vrot.slane %v2585, 4
    %v2605 = vsel %vm635, %v2597, %v2604
    %2606 = vrot.lane.b32.xlu0 %v2354, 96
    %v2607 = vpop.permute.xlu0 %2606
    %2608 = vrot.lane.b32.xlu0 %v2357, 96
    %v2609 = vpop.permute.xlu0 %2608
    %2610 = vrot.lane.b32.xlu0 %v2369, 96
    %v2611 = vpop.permute.xlu0 %2610
    %2612 = vrot.lane.b32.xlu0 %v2371, 96
    %v2613 = vpop.permute.xlu0 %2612
    %2614 = vrot.lane.b32.xlu0 %v2375, 96
    %v2615 = vpop.permute.xlu0 %2614
    %2616 = vrot.lane.b32.xlu0 %v2377, 96
    %v2617 = vpop.permute.xlu0 %2616
    %2618 = vrot.lane.b32.xlu0 %v2381, 96
    %v2619 = vpop.permute.xlu0 %2618
    %2620 = vrot.lane.b32.xlu0 %v2383, 96
    %v2621 = vpop.permute.xlu0 %2620
    %v2630 = vrot.slane %v2615, 4
    %v2631 = vsel %vm635, %v2630, %v2607
    %v2632 = vrot.slane %v2607, 4
    %v2633 = vsel %vm635, %v2615, %v2632
    %v2635 = vunpack.c.l.s4 1983009808
    %v2636 = vunpack.c.0.s8 %v2635
    %v2637 = vperm.slane %v2631, %v2636
    %v2639 = vunpack.c.l.s4 1983009808
    %v2640 = vunpack.c.0.s8 %v2639
    %v2641 = vperm.slane %v2633, %v2640
    %v2642 = vrot.slane %v2619, 4
    %v2643 = vsel %vm635, %v2642, %v2611
    %v2644 = vrot.slane %v2611, 4
    %v2645 = vsel %vm635, %v2619, %v2644
    %v2647 = vunpack.c.l.s4 1983009808
    %v2648 = vunpack.c.0.s8 %v2647
    %v2649 = vperm.slane %v2643, %v2648
    %v2651 = vunpack.c.l.s4 1983009808
    %v2652 = vunpack.c.0.s8 %v2651
    %v2653 = vperm.slane %v2645, %v2652
    %v2654 = vrot.slane %v2649, 4
    %v2655 = vsel %vm635, %v2654, %v2637
    %v2656 = vrot.slane %v2637, 4
    %v2657 = vsel %vm635, %v2649, %v2656
    %v2659 = vunpack.c.l.s4 1934713408
    %v2660 = vunpack.c.0.s8 %v2659
    %v2661 = vperm.slane %v2655, %v2660
    %v2663 = vunpack.c.l.s4 1934713408
    %v2664 = vunpack.c.0.s8 %v2663
    %v2665 = vperm.slane %v2657, %v2664
    %v2666 = vrot.slane %v2653, 4
    %v2667 = vsel %vm635, %v2666, %v2641
    %v2668 = vrot.slane %v2641, 4
    %v2669 = vsel %vm635, %v2653, %v2668
    %v2671 = vunpack.c.l.s4 1934713408
    %v2672 = vunpack.c.0.s8 %v2671
    %v2673 = vperm.slane %v2667, %v2672
    %v2675 = vunpack.c.l.s4 1934713408
    %v2676 = vunpack.c.0.s8 %v2675
    %v2677 = vperm.slane %v2669, %v2676
    %v2678 = vrot.slane %v2661, 4
    %v2679 = vsel %vm635, 0.0, %v2678
    %v2680 = vrot.slane %v2665, 4
    %v2681 = vsel %vm635, 0.0, %v2680
    %v2682 = vrot.slane %v2673, 4
    %v2683 = vsel %vm635, 0.0, %v2682
    %v2684 = vrot.slane %v2677, 4
    %v2685 = vsel %vm635, 0.0, %v2684
    %v2686 = vrot.slane %v2617, 4
    %v2687 = vsel %vm635, %v2686, %v2609
    %v2688 = vrot.slane %v2609, 4
    %v2689 = vsel %vm635, %v2617, %v2688
    %v2691 = vunpack.c.l.s4 1983009808
    %v2692 = vunpack.c.0.s8 %v2691
    %v2693 = vperm.slane %v2687, %v2692
    %v2695 = vunpack.c.l.s4 1983009808
    %v2696 = vunpack.c.0.s8 %v2695
    %v2697 = vperm.slane %v2689, %v2696
    %v2698 = vrot.slane %v2621, 4
    %v2699 = vsel %vm635, %v2698, %v2613
    %v2700 = vrot.slane %v2613, 4
    %v2701 = vsel %vm635, %v2621, %v2700
    %v2703 = vunpack.c.l.s4 1983009808
    %v2704 = vunpack.c.0.s8 %v2703
    %v2705 = vperm.slane %v2699, %v2704
    %v2707 = vunpack.c.l.s4 1983009808
    %v2708 = vunpack.c.0.s8 %v2707
    %v2709 = vperm.slane %v2701, %v2708
    %v2710 = vrot.slane %v2705, 4
    %v2711 = vsel %vm635, %v2710, %v2693
    %v2712 = vrot.slane %v2693, 4
    %v2713 = vsel %vm635, %v2705, %v2712
    %v2715 = vunpack.c.l.s4 1934713408
    %v2716 = vunpack.c.0.s8 %v2715
    %v2717 = vperm.slane %v2711, %v2716
    %v2719 = vunpack.c.l.s4 1934713408
    %v2720 = vunpack.c.0.s8 %v2719
    %v2721 = vperm.slane %v2713, %v2720
    %v2722 = vrot.slane %v2709, 4
    %v2723 = vsel %vm635, %v2722, %v2697
    %v2724 = vrot.slane %v2697, 4
    %v2725 = vsel %vm635, %v2709, %v2724
    %v2727 = vunpack.c.l.s4 1934713408
    %v2728 = vunpack.c.0.s8 %v2727
    %v2729 = vperm.slane %v2723, %v2728
    %v2731 = vunpack.c.l.s4 1934713408
    %v2732 = vunpack.c.0.s8 %v2731
    %v2733 = vperm.slane %v2725, %v2732
    %v2734 = vrot.slane %v2717, 4
    %v2735 = vsel %vm635, 0.0, %v2734
    %v2736 = vrot.slane %v2721, 4
    %v2737 = vsel %vm635, 0.0, %v2736
    %v2738 = vrot.slane %v2729, 4
    %v2739 = vsel %vm635, 0.0, %v2738
    %v2740 = vrot.slane %v2733, 4
    %v2741 = vsel %vm635, 0.0, %v2740
    %v2742 = vsel %vm635, %v2680, %v2661
    %v2744 = vunpack.c.l.s4 1983009808
    %v2745 = vunpack.c.0.s8 %v2744
    %v2746 = vperm.slane %v2742, %v2745
    %v2747 = vrot.slane %v2681, 4
    %v2748 = vsel %vm635, %v2747, %v2679
    %v2750 = vunpack.c.l.s4 1983009808
    %v2751 = vunpack.c.0.s8 %v2750
    %v2752 = vperm.slane %v2748, %v2751
    %v2753 = vsel %vm635, %v2684, %v2673
    %v2755 = vunpack.c.l.s4 1983009808
    %v2756 = vunpack.c.0.s8 %v2755
    %v2757 = vperm.slane %v2753, %v2756
    %v2758 = vrot.slane %v2685, 4
    %v2759 = vsel %vm635, %v2758, %v2683
    %v2761 = vunpack.c.l.s4 1983009808
    %v2762 = vunpack.c.0.s8 %v2761
    %v2763 = vperm.slane %v2759, %v2762
    %v2764 = vrot.slane %v2752, 4
    %v2765 = vsel %vm635, %v2764, %v2746
    %v2766 = vrot.slane %v2746, 4
    %v2767 = vsel %vm635, %v2752, %v2766
    %v2769 = vunpack.c.l.s4 1934713408
    %v2770 = vunpack.c.0.s8 %v2769
    %v2771 = vperm.slane %v2765, %v2770
    %v2773 = vunpack.c.l.s4 1934713408
    %v2774 = vunpack.c.0.s8 %v2773
    %v2775 = vperm.slane %v2767, %v2774
    %v2776 = vrot.slane %v2763, 4
    %v2777 = vsel %vm635, %v2776, %v2757
    %v2778 = vrot.slane %v2757, 4
    %v2779 = vsel %vm635, %v2763, %v2778
    %v2781 = vunpack.c.l.s4 1934713408
    %v2782 = vunpack.c.0.s8 %v2781
    %v2783 = vperm.slane %v2777, %v2782
    %v2785 = vunpack.c.l.s4 1934713408
    %v2786 = vunpack.c.0.s8 %v2785
    %v2787 = vperm.slane %v2779, %v2786
    %v2788 = vrot.slane %v2783, 4
    %v2789 = vsel %vm635, %v2788, %v2771
    %v2790 = vrot.slane %v2771, 4
    %v2791 = vsel %vm635, %v2783, %v2790
    %v2792 = vrot.slane %v2787, 4
    %v2793 = vsel %vm635, %v2792, %v2775
    %v2794 = vrot.slane %v2775, 4
    %v2795 = vsel %vm635, %v2787, %v2794
    %v2796 = vsel %vm635, %v2736, %v2717
    %v2798 = vunpack.c.l.s4 1983009808
    %v2799 = vunpack.c.0.s8 %v2798
    %v2800 = vperm.slane %v2796, %v2799
    %v2801 = vrot.slane %v2737, 4
    %v2802 = vsel %vm635, %v2801, %v2735
    %v2804 = vunpack.c.l.s4 1983009808
    %v2805 = vunpack.c.0.s8 %v2804
    %v2806 = vperm.slane %v2802, %v2805
    %v2807 = vsel %vm635, %v2740, %v2729
    %v2809 = vunpack.c.l.s4 1983009808
    %v2810 = vunpack.c.0.s8 %v2809
    %v2811 = vperm.slane %v2807, %v2810
    %v2812 = vrot.slane %v2741, 4
    %v2813 = vsel %vm635, %v2812, %v2739
    %v2815 = vunpack.c.l.s4 1983009808
    %v2816 = vunpack.c.0.s8 %v2815
    %v2817 = vperm.slane %v2813, %v2816
    %v2818 = vrot.slane %v2806, 4
    %v2819 = vsel %vm635, %v2818, %v2800
    %v2820 = vrot.slane %v2800, 4
    %v2821 = vsel %vm635, %v2806, %v2820
    %v2823 = vunpack.c.l.s4 1934713408
    %v2824 = vunpack.c.0.s8 %v2823
    %v2825 = vperm.slane %v2819, %v2824
    %v2827 = vunpack.c.l.s4 1934713408
    %v2828 = vunpack.c.0.s8 %v2827
    %v2829 = vperm.slane %v2821, %v2828
    %v2830 = vrot.slane %v2817, 4
    %v2831 = vsel %vm635, %v2830, %v2811
    %v2832 = vrot.slane %v2811, 4
    %v2833 = vsel %vm635, %v2817, %v2832
    %v2835 = vunpack.c.l.s4 1934713408
    %v2836 = vunpack.c.0.s8 %v2835
    %v2837 = vperm.slane %v2831, %v2836
    %v2839 = vunpack.c.l.s4 1934713408
    %v2840 = vunpack.c.0.s8 %v2839
    %v2841 = vperm.slane %v2833, %v2840
    %v2842 = vrot.slane %v2837, 4
    %v2843 = vsel %vm635, %v2842, %v2825
    %v2844 = vrot.slane %v2825, 4
    %v2845 = vsel %vm635, %v2837, %v2844
    %v2846 = vrot.slane %v2841, 4
    %v2847 = vsel %vm635, %v2846, %v2829
    %v2848 = vrot.slane %v2829, 4
    %v2849 = vsel %vm635, %v2841, %v2848
    %2850 = vrot.lane.b32.xlu0 %v2354, 64
    %v2851 = vpop.permute.xlu0 %2850
    %2852 = vrot.lane.b32.xlu0 %v2357, 64
    %v2853 = vpop.permute.xlu0 %2852
    %2854 = vrot.lane.b32.xlu0 %v2369, 64
    %v2855 = vpop.permute.xlu0 %2854
    %2856 = vrot.lane.b32.xlu0 %v2371, 64
    %v2857 = vpop.permute.xlu0 %2856
    %2858 = vrot.lane.b32.xlu0 %v2375, 64
    %v2859 = vpop.permute.xlu0 %2858
    %2860 = vrot.lane.b32.xlu0 %v2377, 64
    %v2861 = vpop.permute.xlu0 %2860
    %2862 = vrot.lane.b32.xlu0 %v2381, 64
    %v2863 = vpop.permute.xlu0 %2862
    %2864 = vrot.lane.b32.xlu0 %v2383, 64
    %v2865 = vpop.permute.xlu0 %2864
    %v2874 = vrot.slane %v2859, 4
    %v2875 = vsel %vm635, %v2874, %v2851
    %v2876 = vrot.slane %v2851, 4
    %v2877 = vsel %vm635, %v2859, %v2876
    %v2879 = vunpack.c.l.s4 1983009808
    %v2880 = vunpack.c.0.s8 %v2879
    %v2881 = vperm.slane %v2875, %v2880
    %v2883 = vunpack.c.l.s4 1983009808
    %v2884 = vunpack.c.0.s8 %v2883
    %v2885 = vperm.slane %v2877, %v2884
    %v2886 = vrot.slane %v2863, 4
    %v2887 = vsel %vm635, %v2886, %v2855
    %v2888 = vrot.slane %v2855, 4
    %v2889 = vsel %vm635, %v2863, %v2888
    %v2891 = vunpack.c.l.s4 1983009808
    %v2892 = vunpack.c.0.s8 %v2891
    %v2893 = vperm.slane %v2887, %v2892
    %v2895 = vunpack.c.l.s4 1983009808
    %v2896 = vunpack.c.0.s8 %v2895
    %v2897 = vperm.slane %v2889, %v2896
    %v2898 = vrot.slane %v2893, 4
    %v2899 = vsel %vm635, %v2898, %v2881
    %v2900 = vrot.slane %v2881, 4
    %v2901 = vsel %vm635, %v2893, %v2900
    %v2903 = vunpack.c.l.s4 1934713408
    %v2904 = vunpack.c.0.s8 %v2903
    %v2905 = vperm.slane %v2899, %v2904
    %v2907 = vunpack.c.l.s4 1934713408
    %v2908 = vunpack.c.0.s8 %v2907
    %v2909 = vperm.slane %v2901, %v2908
    %v2910 = vrot.slane %v2897, 4
    %v2911 = vsel %vm635, %v2910, %v2885
    %v2912 = vrot.slane %v2885, 4
    %v2913 = vsel %vm635, %v2897, %v2912
    %v2915 = vunpack.c.l.s4 1934713408
    %v2916 = vunpack.c.0.s8 %v2915
    %v2917 = vperm.slane %v2911, %v2916
    %v2919 = vunpack.c.l.s4 1934713408
    %v2920 = vunpack.c.0.s8 %v2919
    %v2921 = vperm.slane %v2913, %v2920
    %v2922 = vrot.slane %v2905, 4
    %v2923 = vsel %vm635, 0.0, %v2922
    %v2924 = vrot.slane %v2909, 4
    %v2925 = vsel %vm635, 0.0, %v2924
    %v2926 = vrot.slane %v2917, 4
    %v2927 = vsel %vm635, 0.0, %v2926
    %v2928 = vrot.slane %v2921, 4
    %v2929 = vsel %vm635, 0.0, %v2928
    %v2930 = vrot.slane %v2861, 4
    %v2931 = vsel %vm635, %v2930, %v2853
    %v2932 = vrot.slane %v2853, 4
    %v2933 = vsel %vm635, %v2861, %v2932
    %v2935 = vunpack.c.l.s4 1983009808
    %v2936 = vunpack.c.0.s8 %v2935
    %v2937 = vperm.slane %v2931, %v2936
    %v2939 = vunpack.c.l.s4 1983009808
    %v2940 = vunpack.c.0.s8 %v2939
    %v2941 = vperm.slane %v2933, %v2940
    %v2942 = vrot.slane %v2865, 4
    %v2943 = vsel %vm635, %v2942, %v2857
    %v2944 = vrot.slane %v2857, 4
    %v2945 = vsel %vm635, %v2865, %v2944
    %v2947 = vunpack.c.l.s4 1983009808
    %v2948 = vunpack.c.0.s8 %v2947
    %v2949 = vperm.slane %v2943, %v2948
    %v2951 = vunpack.c.l.s4 1983009808
    %v2952 = vunpack.c.0.s8 %v2951
    %v2953 = vperm.slane %v2945, %v2952
    %v2954 = vrot.slane %v2949, 4
    %v2955 = vsel %vm635, %v2954, %v2937
    %v2956 = vrot.slane %v2937, 4
    %v2957 = vsel %vm635, %v2949, %v2956
    %v2959 = vunpack.c.l.s4 1934713408
    %v2960 = vunpack.c.0.s8 %v2959
    %v2961 = vperm.slane %v2955, %v2960
    %v2963 = vunpack.c.l.s4 1934713408
    %v2964 = vunpack.c.0.s8 %v2963
    %v2965 = vperm.slane %v2957, %v2964
    %v2966 = vrot.slane %v2953, 4
    %v2967 = vsel %vm635, %v2966, %v2941
    %v2968 = vrot.slane %v2941, 4
    %v2969 = vsel %vm635, %v2953, %v2968
    %v2971 = vunpack.c.l.s4 1934713408
    %v2972 = vunpack.c.0.s8 %v2971
    %v2973 = vperm.slane %v2967, %v2972
    %v2975 = vunpack.c.l.s4 1934713408
    %v2976 = vunpack.c.0.s8 %v2975
    %v2977 = vperm.slane %v2969, %v2976
    %v2978 = vrot.slane %v2961, 4
    %v2979 = vsel %vm635, 0.0, %v2978
    %v2980 = vrot.slane %v2965, 4
    %v2981 = vsel %vm635, 0.0, %v2980
    %v2982 = vrot.slane %v2973, 4
    %v2983 = vsel %vm635, 0.0, %v2982
    %v2984 = vrot.slane %v2977, 4
    %v2985 = vsel %vm635, 0.0, %v2984
    %v2986 = vsel %vm635, %v2924, %v2905
    %v2988 = vunpack.c.l.s4 1983009808
    %v2989 = vunpack.c.0.s8 %v2988
    %v2990 = vperm.slane %v2986, %v2989
    %v2991 = vrot.slane %v2925, 4
    %v2992 = vsel %vm635, %v2991, %v2923
    %v2994 = vunpack.c.l.s4 1983009808
    %v2995 = vunpack.c.0.s8 %v2994
    %v2996 = vperm.slane %v2992, %v2995
    %v2997 = vsel %vm635, %v2928, %v2917
    %v2999 = vunpack.c.l.s4 1983009808
    %v3000 = vunpack.c.0.s8 %v2999
    %v3001 = vperm.slane %v2997, %v3000
    %v3002 = vrot.slane %v2929, 4
    %v3003 = vsel %vm635, %v3002, %v2927
    %v3005 = vunpack.c.l.s4 1983009808
    %v3006 = vunpack.c.0.s8 %v3005
    %v3007 = vperm.slane %v3003, %v3006
    %v3008 = vrot.slane %v2996, 4
    %v3009 = vsel %vm635, %v3008, %v2990
    %v3010 = vrot.slane %v2990, 4
    %v3011 = vsel %vm635, %v2996, %v3010
    %v3013 = vunpack.c.l.s4 1934713408
    %v3014 = vunpack.c.0.s8 %v3013
    %v3015 = vperm.slane %v3009, %v3014
    %v3017 = vunpack.c.l.s4 1934713408
    %v3018 = vunpack.c.0.s8 %v3017
    %v3019 = vperm.slane %v3011, %v3018
    %v3020 = vrot.slane %v3007, 4
    %v3021 = vsel %vm635, %v3020, %v3001
    %v3022 = vrot.slane %v3001, 4
    %v3023 = vsel %vm635, %v3007, %v3022
    %v3025 = vunpack.c.l.s4 1934713408
    %v3026 = vunpack.c.0.s8 %v3025
    %v3027 = vperm.slane %v3021, %v3026
    %v3029 = vunpack.c.l.s4 1934713408
    %v3030 = vunpack.c.0.s8 %v3029
    %v3031 = vperm.slane %v3023, %v3030
    %v3032 = vrot.slane %v3027, 4
    %v3033 = vsel %vm635, %v3032, %v3015
    %v3034 = vrot.slane %v3015, 4
    %v3035 = vsel %vm635, %v3027, %v3034
    %v3036 = vrot.slane %v3031, 4
    %v3037 = vsel %vm635, %v3036, %v3019
    %v3038 = vrot.slane %v3019, 4
    %v3039 = vsel %vm635, %v3031, %v3038
    %v3040 = vsel %vm635, %v2980, %v2961
    %v3042 = vunpack.c.l.s4 1983009808
    %v3043 = vunpack.c.0.s8 %v3042
    %v3044 = vperm.slane %v3040, %v3043
    %v3045 = vrot.slane %v2981, 4
    %v3046 = vsel %vm635, %v3045, %v2979
    %v3048 = vunpack.c.l.s4 1983009808
    %v3049 = vunpack.c.0.s8 %v3048
    %v3050 = vperm.slane %v3046, %v3049
    %v3051 = vsel %vm635, %v2984, %v2973
    %v3053 = vunpack.c.l.s4 1983009808
    %v3054 = vunpack.c.0.s8 %v3053
    %v3055 = vperm.slane %v3051, %v3054
    %v3056 = vrot.slane %v2985, 4
    %v3057 = vsel %vm635, %v3056, %v2983
    %v3059 = vunpack.c.l.s4 1983009808
    %v3060 = vunpack.c.0.s8 %v3059
    %v3061 = vperm.slane %v3057, %v3060
    %v3062 = vrot.slane %v3050, 4
    %v3063 = vsel %vm635, %v3062, %v3044
    %v3064 = vrot.slane %v3044, 4
    %v3065 = vsel %vm635, %v3050, %v3064
    %v3067 = vunpack.c.l.s4 1934713408
    %v3068 = vunpack.c.0.s8 %v3067
    %v3069 = vperm.slane %v3063, %v3068
    %v3071 = vunpack.c.l.s4 1934713408
    %v3072 = vunpack.c.0.s8 %v3071
    %v3073 = vperm.slane %v3065, %v3072
    %v3074 = vrot.slane %v3061, 4
    %v3075 = vsel %vm635, %v3074, %v3055
    %v3076 = vrot.slane %v3055, 4
    %v3077 = vsel %vm635, %v3061, %v3076
    %v3079 = vunpack.c.l.s4 1934713408
    %v3080 = vunpack.c.0.s8 %v3079
    %v3081 = vperm.slane %v3075, %v3080
    %v3083 = vunpack.c.l.s4 1934713408
    %v3084 = vunpack.c.0.s8 %v3083
    %v3085 = vperm.slane %v3077, %v3084
    %v3086 = vrot.slane %v3081, 4
    %v3087 = vsel %vm635, %v3086, %v3069
    %v3088 = vrot.slane %v3069, 4
    %v3089 = vsel %vm635, %v3081, %v3088
    %v3090 = vrot.slane %v3085, 4
    %v3091 = vsel %vm635, %v3090, %v3073
    %v3092 = vrot.slane %v3073, 4
    %v3093 = vsel %vm635, %v3085, %v3092
    %v3095 = vsel %vm1343, %v2545, 0
    %v3098 = vsel %vm1343, %v2789, 0
    %3100 = vmatpush.xpose.msra.mxu0 0.0
    %3101 = vmatpush.xpose.msra.mxu0 0.0
    %3102 = vmatpush.xpose.msra.mxu0 0.0
    %3103 = vmatpush.xpose.msra.mxu0 0.0
    %3104 = vmatpush.xpose.msra.mxu0 0.0
    %3105 = vmatpush.xpose.msra.mxu0 0.0
    %3106 = vmatpush.xpose.msra.mxu0 0.0
    %3107 = vmatpush.xpose.msra.mxu0 0.0
    %3108 = vmatpush.xpose.msra.mxu0 0.0
    %3109 = vmatpush.xpose.msra.mxu0 0.0
    %3110 = vmatpush.xpose.msra.mxu0 0.0
    %3111 = vmatpush.xpose.msra.mxu0 0.0
    %3112 = vmatpush.xpose.msra.mxu0 0.0
    %3113 = vmatpush.xpose.msra.mxu0 0.0
    %3114 = vmatpush.xpose.msra.mxu0 0.0
    %3115 = vmatpush.xpose.msra.mxu0 %v3098
    %3116 = vmatmul.f32.gmra.mxu0 %v3095
    %v3117 = vpop.f32.mrf.mxu0
    %v3118 = vadd.f32 0.0, %v3117
    %3119 = vdwg.mxu0
    %v3121 = vsel %vm1343, %v2547, 0
    %v3124 = vsel %vm1343, %v2791, 0
    %3126 = vmatpush.xpose.msra.mxu0 0.0
    %3127 = vmatpush.xpose.msra.mxu0 0.0
    %3128 = vmatpush.xpose.msra.mxu0 0.0
    %3129 = vmatpush.xpose.msra.mxu0 0.0
    %3130 = vmatpush.xpose.msra.mxu0 0.0
    %3131 = vmatpush.xpose.msra.mxu0 0.0
    %3132 = vmatpush.xpose.msra.mxu0 0.0
    %3133 = vmatpush.xpose.msra.mxu0 0.0
    %3134 = vmatpush.xpose.msra.mxu0 0.0
    %3135 = vmatpush.xpose.msra.mxu0 0.0
    %3136 = vmatpush.xpose.msra.mxu0 0.0
    %3137 = vmatpush.xpose.msra.mxu0 0.0
    %3138 = vmatpush.xpose.msra.mxu0 0.0
    %3139 = vmatpush.xpose.msra.mxu0 0.0
    %3140 = vmatpush.xpose.msra.mxu0 0.0
    %3141 = vmatpush.xpose.msra.mxu0 %v3124
    %3142 = vmatmul.f32.gmra.mxu0 %v3121
    %v3143 = vpop.f32.mrf.mxu0
    %v3144 = vadd.f32 0.0, %v3143
    %3145 = vdwg.mxu0
    %v3147 = vsel %vm1343, %v2549, 0
    %v3150 = vsel %vm1343, %v2793, 0
    %3152 = vmatpush.xpose.msra.mxu0 0.0
    %3153 = vmatpush.xpose.msra.mxu0 0.0
    %3154 = vmatpush.xpose.msra.mxu0 0.0
    %3155 = vmatpush.xpose.msra.mxu0 0.0
    %3156 = vmatpush.xpose.msra.mxu0 0.0
    %3157 = vmatpush.xpose.msra.mxu0 0.0
    %3158 = vmatpush.xpose.msra.mxu0 0.0
    %3159 = vmatpush.xpose.msra.mxu0 0.0
    %3160 = vmatpush.xpose.msra.mxu0 0.0
    %3161 = vmatpush.xpose.msra.mxu0 0.0
    %3162 = vmatpush.xpose.msra.mxu0 0.0
    %3163 = vmatpush.xpose.msra.mxu0 0.0
    %3164 = vmatpush.xpose.msra.mxu0 0.0
    %3165 = vmatpush.xpose.msra.mxu0 0.0
    %3166 = vmatpush.xpose.msra.mxu0 0.0
    %3167 = vmatpush.xpose.msra.mxu0 %v3150
    %3168 = vmatmul.f32.gmra.mxu0 %v3147
    %v3169 = vpop.f32.mrf.mxu0
    %v3170 = vadd.f32 0.0, %v3169
    %3171 = vdwg.mxu0
    %v3173 = vsel %vm1343, %v2551, 0
    %v3176 = vsel %vm1343, %v2795, 0
    %3178 = vmatpush.xpose.msra.mxu0 0.0
    %3179 = vmatpush.xpose.msra.mxu0 0.0
    %3180 = vmatpush.xpose.msra.mxu0 0.0
    %3181 = vmatpush.xpose.msra.mxu0 0.0
    %3182 = vmatpush.xpose.msra.mxu0 0.0
    %3183 = vmatpush.xpose.msra.mxu0 0.0
    %3184 = vmatpush.xpose.msra.mxu0 0.0
    %3185 = vmatpush.xpose.msra.mxu0 0.0
    %3186 = vmatpush.xpose.msra.mxu0 0.0
    %3187 = vmatpush.xpose.msra.mxu0 0.0
    %3188 = vmatpush.xpose.msra.mxu0 0.0
    %3189 = vmatpush.xpose.msra.mxu0 0.0
    %3190 = vmatpush.xpose.msra.mxu0 0.0
    %3191 = vmatpush.xpose.msra.mxu0 0.0
    %3192 = vmatpush.xpose.msra.mxu0 0.0
    %3193 = vmatpush.xpose.msra.mxu0 %v3176
    %3194 = vmatmul.f32.gmra.mxu0 %v3173
    %v3195 = vpop.f32.mrf.mxu0
    %v3196 = vadd.f32 0.0, %v3195
    %3197 = vdwg.mxu0
    %v3199 = vsel %vm1343, %v2599, 0
    %v3202 = vsel %vm1343, %v2843, 0
    %3204 = vmatpush.xpose.msra.mxu0 0.0
    %3205 = vmatpush.xpose.msra.mxu0 0.0
    %3206 = vmatpush.xpose.msra.mxu0 0.0
    %3207 = vmatpush.xpose.msra.mxu0 0.0
    %3208 = vmatpush.xpose.msra.mxu0 0.0
    %3209 = vmatpush.xpose.msra.mxu0 0.0
    %3210 = vmatpush.xpose.msra.mxu0 0.0
    %3211 = vmatpush.xpose.msra.mxu0 0.0
    %3212 = vmatpush.xpose.msra.mxu0 0.0
    %3213 = vmatpush.xpose.msra.mxu0 0.0
    %3214 = vmatpush.xpose.msra.mxu0 0.0
    %3215 = vmatpush.xpose.msra.mxu0 0.0
    %3216 = vmatpush.xpose.msra.mxu0 0.0
    %3217 = vmatpush.xpose.msra.mxu0 0.0
    %3218 = vmatpush.xpose.msra.mxu0 0.0
    %3219 = vmatpush.xpose.msra.mxu0 %v3202
    %3220 = vmatmul.f32.gmra.mxu0 %v3199
    %v3221 = vpop.f32.mrf.mxu0
    %v3222 = vadd.f32 0.0, %v3221
    %3223 = vdwg.mxu0
    %v3225 = vsel %vm1343, %v2601, 0
    %v3228 = vsel %vm1343, %v2845, 0
    %3230 = vmatpush.xpose.msra.mxu0 0.0
    %3231 = vmatpush.xpose.msra.mxu0 0.0
    %3232 = vmatpush.xpose.msra.mxu0 0.0
    %3233 = vmatpush.xpose.msra.mxu0 0.0
    %3234 = vmatpush.xpose.msra.mxu0 0.0
    %3235 = vmatpush.xpose.msra.mxu0 0.0
    %3236 = vmatpush.xpose.msra.mxu0 0.0
    %3237 = vmatpush.xpose.msra.mxu0 0.0
    %3238 = vmatpush.xpose.msra.mxu0 0.0
    %3239 = vmatpush.xpose.msra.mxu0 0.0
    %3240 = vmatpush.xpose.msra.mxu0 0.0
    %3241 = vmatpush.xpose.msra.mxu0 0.0
    %3242 = vmatpush.xpose.msra.mxu0 0.0
    %3243 = vmatpush.xpose.msra.mxu0 0.0
    %3244 = vmatpush.xpose.msra.mxu0 0.0
    %3245 = vmatpush.xpose.msra.mxu0 %v3228
    %3246 = vmatmul.f32.gmra.mxu0 %v3225
    %v3247 = vpop.f32.mrf.mxu0
    %v3248 = vadd.f32 0.0, %v3247
    %3249 = vdwg.mxu0
    %v3251 = vsel %vm1343, %v2603, 0
    %v3254 = vsel %vm1343, %v2847, 0
    %3256 = vmatpush.xpose.msra.mxu0 0.0
    %3257 = vmatpush.xpose.msra.mxu0 0.0
    %3258 = vmatpush.xpose.msra.mxu0 0.0
    %3259 = vmatpush.xpose.msra.mxu0 0.0
    %3260 = vmatpush.xpose.msra.mxu0 0.0
    %3261 = vmatpush.xpose.msra.mxu0 0.0
    %3262 = vmatpush.xpose.msra.mxu0 0.0
    %3263 = vmatpush.xpose.msra.mxu0 0.0
    %3264 = vmatpush.xpose.msra.mxu0 0.0
    %3265 = vmatpush.xpose.msra.mxu0 0.0
    %3266 = vmatpush.xpose.msra.mxu0 0.0
    %3267 = vmatpush.xpose.msra.mxu0 0.0
    %3268 = vmatpush.xpose.msra.mxu0 0.0
    %3269 = vmatpush.xpose.msra.mxu0 0.0
    %3270 = vmatpush.xpose.msra.mxu0 0.0
    %3271 = vmatpush.xpose.msra.mxu0 %v3254
    %3272 = vmatmul.f32.gmra.mxu0 %v3251
    %v3273 = vpop.f32.mrf.mxu0
    %v3274 = vadd.f32 0.0, %v3273
    %3275 = vdwg.mxu0
    %v3277 = vsel %vm1343, %v2605, 0
    %v3280 = vsel %vm1343, %v2849, 0
    %3282 = vmatpush.xpose.msra.mxu0 0.0
    %3283 = vmatpush.xpose.msra.mxu0 0.0
    %3284 = vmatpush.xpose.msra.mxu0 0.0
    %3285 = vmatpush.xpose.msra.mxu0 0.0
    %3286 = vmatpush.xpose.msra.mxu0 0.0
    %3287 = vmatpush.xpose.msra.mxu0 0.0
    %3288 = vmatpush.xpose.msra.mxu0 0.0
    %3289 = vmatpush.xpose.msra.mxu0 0.0
    %3290 = vmatpush.xpose.msra.mxu0 0.0
    %3291 = vmatpush.xpose.msra.mxu0 0.0
    %3292 = vmatpush.xpose.msra.mxu0 0.0
    %3293 = vmatpush.xpose.msra.mxu0 0.0
    %3294 = vmatpush.xpose.msra.mxu0 0.0
    %3295 = vmatpush.xpose.msra.mxu0 0.0
    %3296 = vmatpush.xpose.msra.mxu0 0.0
    %3297 = vmatpush.xpose.msra.mxu0 %v3280
    %3298 = vmatmul.f32.gmra.mxu0 %v3277
    %v3299 = vpop.f32.mrf.mxu0
    %v3300 = vadd.f32 0.0, %v3299
    %3301 = vdwg.mxu0
    %v3302 = vmul.f32 %v3118, 0.35355338
    %v3303 = vmul.f32 %v3144, 0.35355338
    %v3304 = vmul.f32 %v3170, 0.35355338
    %v3305 = vmul.f32 %v3196, 0.35355338
    %v3306 = vmul.f32 %v3222, 0.35355338
    %v3307 = vmul.f32 %v3248, 0.35355338
    %v3308 = vmul.f32 %v3274, 0.35355338
    %v3309 = vmul.f32 %v3300, 0.35355338
    %v3310 = vsel %vm1343, %v3302, -inf
    %3311 = vmax.xlane.f32.xlu0 %v3310
    %v3312 = vpop.xlane.xlu0 %3311
    %v3313 = vsel %vm1343, %v3303, -inf
    %3314 = vmax.xlane.f32.xlu0 %v3313
    %v3315 = vpop.xlane.xlu0 %3314
    %v3316 = vsel %vm1343, %v3304, -inf
    %3317 = vmax.xlane.f32.xlu0 %v3316
    %v3318 = vpop.xlane.xlu0 %3317
    %v3319 = vsel %vm1343, %v3305, -inf
    %3320 = vmax.xlane.f32.xlu0 %v3319
    %v3321 = vpop.xlane.xlu0 %3320
    %v3322 = vsel %vm1343, %v3306, -inf
    %3323 = vmax.xlane.f32.xlu0 %v3322
    %v3324 = vpop.xlane.xlu0 %3323
    %v3325 = vsel %vm1343, %v3307, -inf
    %3326 = vmax.xlane.f32.xlu0 %v3325
    %v3327 = vpop.xlane.xlu0 %3326
    %v3328 = vsel %vm1343, %v3308, -inf
    %3329 = vmax.xlane.f32.xlu0 %v3328
    %v3330 = vpop.xlane.xlu0 %3329
    %v3331 = vsel %vm1343, %v3309, -inf
    %3332 = vmax.xlane.f32.xlu0 %v3331
    %v3333 = vpop.xlane.xlu0 %3332
    %v3334 = vsub.f32 %v3302, %v3312
    %v3335 = vsub.f32 %v3303, %v3315
    %v3336 = vsub.f32 %v3304, %v3318
    %v3337 = vsub.f32 %v3305, %v3321
    %v3338 = vsub.f32 %v3306, %v3324
    %v3339 = vsub.f32 %v3307, %v3327
    %v3340 = vsub.f32 %v3308, %v3330
    %v3341 = vsub.f32 %v3309, %v3333
    %v3342 = vmul.f32 %v3334, 1.442695
    %v3343 = vpow.pop %v3342
    %v3344 = vmul.f32 %v3335, 1.442695
    %v3345 = vpow.pop %v3344
    %v3346 = vmul.f32 %v3336, 1.442695
    %v3347 = vpow.pop %v3346
    %v3348 = vmul.f32 %v3337, 1.442695
    %v3349 = vpow.pop %v3348
    %v3350 = vmul.f32 %v3338, 1.442695
    %v3351 = vpow.pop %v3350
    %v3352 = vmul.f32 %v3339, 1.442695
    %v3353 = vpow.pop %v3352
    %v3354 = vmul.f32 %v3340, 1.442695
    %v3355 = vpow.pop %v3354
    %v3356 = vmul.f32 %v3341, 1.442695
    %v3357 = vpow.pop %v3356
    %v3358 = vsel %vm1343, %v3343, 0.0
    %3359 = vadd.xlane.f32.xlu0 %v3358
    %v3360 = vpop.xlane.xlu0 %3359
    %v3361 = vsel %vm1343, %v3345, 0.0
    %3362 = vadd.xlane.f32.xlu0 %v3361
    %v3363 = vpop.xlane.xlu0 %3362
    %v3364 = vsel %vm1343, %v3347, 0.0
    %3365 = vadd.xlane.f32.xlu0 %v3364
    %v3366 = vpop.xlane.xlu0 %3365
    %v3367 = vsel %vm1343, %v3349, 0.0
    %3368 = vadd.xlane.f32.xlu0 %v3367
    %v3369 = vpop.xlane.xlu0 %3368
    %v3370 = vsel %vm1343, %v3351, 0.0
    %3371 = vadd.xlane.f32.xlu0 %v3370
    %v3372 = vpop.xlane.xlu0 %3371
    %v3373 = vsel %vm1343, %v3353, 0.0
    %3374 = vadd.xlane.f32.xlu0 %v3373
    %v3375 = vpop.xlane.xlu0 %3374
    %v3376 = vsel %vm1343, %v3355, 0.0
    %3377 = vadd.xlane.f32.xlu0 %v3376
    %v3378 = vpop.xlane.xlu0 %3377
    %v3379 = vsel %vm1343, %v3357, 0.0
    %3380 = vadd.xlane.f32.xlu0 %v3379
    %v3381 = vpop.xlane.xlu0 %3380
    %v3382 = vrcp.pop %v3360
    %v3383 = vrcp.pop %v3363
    %v3384 = vrcp.pop %v3366
    %v3385 = vrcp.pop %v3369
    %v3386 = vrcp.pop %v3372
    %v3387 = vrcp.pop %v3375
    %v3388 = vrcp.pop %v3378
    %v3389 = vrcp.pop %v3381
    %v3390 = vmul.f32 %v3343, %v3382
    %v3391 = vmul.f32 %v3345, %v3383
    %v3392 = vmul.f32 %v3347, %v3384
    %v3393 = vmul.f32 %v3349, %v3385
    %v3394 = vmul.f32 %v3351, %v3386
    %v3395 = vmul.f32 %v3353, %v3387
    %v3396 = vmul.f32 %v3355, %v3388
    %v3397 = vmul.f32 %v3357, %v3389
    %v3399 = vsel %vm1343, %v3390, 0
    %3401 = vmatpush.msra.mxu0 0.0
    %3402 = vmatpush.msra.mxu0 0.0
    %3403 = vmatpush.msra.mxu0 0.0
    %3404 = vmatpush.msra.mxu0 0.0
    %3405 = vmatpush.msra.mxu0 0.0
    %3406 = vmatpush.msra.mxu0 0.0
    %3407 = vmatpush.msra.mxu0 0.0
    %3408 = vmatpush.msra.mxu0 0.0
    %3409 = vmatpush.msra.mxu0 0.0
    %3410 = vmatpush.msra.mxu0 0.0
    %3411 = vmatpush.msra.mxu0 0.0
    %3412 = vmatpush.msra.mxu0 0.0
    %3413 = vmatpush.msra.mxu0 0.0
    %3414 = vmatpush.msra.mxu0 0.0
    %3415 = vmatpush.msra.mxu0 0.0
    %3416 = vmatpush.msra.mxu0 %v3033
    %3417 = vmatmul.f32.gmra.mxu0 %v3399
    %v3418 = vpop.f32.mrf.mxu0
    %v3419 = vadd.f32 0.0, %v3418
    %3420 = vdwg.mxu0
    %v3422 = vsel %vm1343, %v3391, 0
    %3424 = vmatpush.msra.mxu0 0.0
    %3425 = vmatpush.msra.mxu0 0.0
    %3426 = vmatpush.msra.mxu0 0.0
    %3427 = vmatpush.msra.mxu0 0.0
    %3428 = vmatpush.msra.mxu0 0.0
    %3429 = vmatpush.msra.mxu0 0.0
    %3430 = vmatpush.msra.mxu0 0.0
    %3431 = vmatpush.msra.mxu0 0.0
    %3432 = vmatpush.msra.mxu0 0.0
    %3433 = vmatpush.msra.mxu0 0.0
    %3434 = vmatpush.msra.mxu0 0.0
    %3435 = vmatpush.msra.mxu0 0.0
    %3436 = vmatpush.msra.mxu0 0.0
    %3437 = vmatpush.msra.mxu0 0.0
    %3438 = vmatpush.msra.mxu0 0.0
    %3439 = vmatpush.msra.mxu0 %v3035
    %3440 = vmatmul.f32.gmra.mxu0 %v3422
    %v3441 = vpop.f32.mrf.mxu0
    %v3442 = vadd.f32 0.0, %v3441
    %3443 = vdwg.mxu0
    %v3445 = vsel %vm1343, %v3392, 0
    %3447 = vmatpush.msra.mxu0 0.0
    %3448 = vmatpush.msra.mxu0 0.0
    %3449 = vmatpush.msra.mxu0 0.0
    %3450 = vmatpush.msra.mxu0 0.0
    %3451 = vmatpush.msra.mxu0 0.0
    %3452 = vmatpush.msra.mxu0 0.0
    %3453 = vmatpush.msra.mxu0 0.0
    %3454 = vmatpush.msra.mxu0 0.0
    %3455 = vmatpush.msra.mxu0 0.0
    %3456 = vmatpush.msra.mxu0 0.0
    %3457 = vmatpush.msra.mxu0 0.0
    %3458 = vmatpush.msra.mxu0 0.0
    %3459 = vmatpush.msra.mxu0 0.0
    %3460 = vmatpush.msra.mxu0 0.0
    %3461 = vmatpush.msra.mxu0 0.0
    %3462 = vmatpush.msra.mxu0 %v3037
    %3463 = vmatmul.f32.gmra.mxu0 %v3445
    %v3464 = vpop.f32.mrf.mxu0
    %v3465 = vadd.f32 0.0, %v3464
    %3466 = vdwg.mxu0
    %v3468 = vsel %vm1343, %v3393, 0
    %3470 = vmatpush.msra.mxu0 0.0
    %3471 = vmatpush.msra.mxu0 0.0
    %3472 = vmatpush.msra.mxu0 0.0
    %3473 = vmatpush.msra.mxu0 0.0
    %3474 = vmatpush.msra.mxu0 0.0
    %3475 = vmatpush.msra.mxu0 0.0
    %3476 = vmatpush.msra.mxu0 0.0
    %3477 = vmatpush.msra.mxu0 0.0
    %3478 = vmatpush.msra.mxu0 0.0
    %3479 = vmatpush.msra.mxu0 0.0
    %3480 = vmatpush.msra.mxu0 0.0
    %3481 = vmatpush.msra.mxu0 0.0
    %3482 = vmatpush.msra.mxu0 0.0
    %3483 = vmatpush.msra.mxu0 0.0
    %3484 = vmatpush.msra.mxu0 0.0
    %3485 = vmatpush.msra.mxu0 %v3039
    %3486 = vmatmul.f32.gmra.mxu0 %v3468
    %v3487 = vpop.f32.mrf.mxu0
    %v3488 = vadd.f32 0.0, %v3487
    %3489 = vdwg.mxu0
    %v3491 = vsel %vm1343, %v3394, 0
    %3493 = vmatpush.msra.mxu0 0.0
    %3494 = vmatpush.msra.mxu0 0.0
    %3495 = vmatpush.msra.mxu0 0.0
    %3496 = vmatpush.msra.mxu0 0.0
    %3497 = vmatpush.msra.mxu0 0.0
    %3498 = vmatpush.msra.mxu0 0.0
    %3499 = vmatpush.msra.mxu0 0.0
    %3500 = vmatpush.msra.mxu0 0.0
    %3501 = vmatpush.msra.mxu0 0.0
    %3502 = vmatpush.msra.mxu0 0.0
    %3503 = vmatpush.msra.mxu0 0.0
    %3504 = vmatpush.msra.mxu0 0.0
    %3505 = vmatpush.msra.mxu0 0.0
    %3506 = vmatpush.msra.mxu0 0.0
    %3507 = vmatpush.msra.mxu0 0.0
    %3508 = vmatpush.msra.mxu0 %v3087
    %3509 = vmatmul.f32.gmra.mxu0 %v3491
    %v3510 = vpop.f32.mrf.mxu0
    %v3511 = vadd.f32 0.0, %v3510
    %3512 = vdwg.mxu0
    %v3514 = vsel %vm1343, %v3395, 0
    %3516 = vmatpush.msra.mxu0 0.0
    %3517 = vmatpush.msra.mxu0 0.0
    %3518 = vmatpush.msra.mxu0 0.0
    %3519 = vmatpush.msra.mxu0 0.0
    %3520 = vmatpush.msra.mxu0 0.0
    %3521 = vmatpush.msra.mxu0 0.0
    %3522 = vmatpush.msra.mxu0 0.0
    %3523 = vmatpush.msra.mxu0 0.0
    %3524 = vmatpush.msra.mxu0 0.0
    %3525 = vmatpush.msra.mxu0 0.0
    %3526 = vmatpush.msra.mxu0 0.0
    %3527 = vmatpush.msra.mxu0 0.0
    %3528 = vmatpush.msra.mxu0 0.0
    %3529 = vmatpush.msra.mxu0 0.0
    %3530 = vmatpush.msra.mxu0 0.0
    %3531 = vmatpush.msra.mxu0 %v3089
    %3532 = vmatmul.f32.gmra.mxu0 %v3514
    %v3533 = vpop.f32.mrf.mxu0
    %v3534 = vadd.f32 0.0, %v3533
    %3535 = vdwg.mxu0
    %v3537 = vsel %vm1343, %v3396, 0
    %3539 = vmatpush.msra.mxu0 0.0
    %3540 = vmatpush.msra.mxu0 0.0
    %3541 = vmatpush.msra.mxu0 0.0
    %3542 = vmatpush.msra.mxu0 0.0
    %3543 = vmatpush.msra.mxu0 0.0
    %3544 = vmatpush.msra.mxu0 0.0
    %3545 = vmatpush.msra.mxu0 0.0
    %3546 = vmatpush.msra.mxu0 0.0
    %3547 = vmatpush.msra.mxu0 0.0
    %3548 = vmatpush.msra.mxu0 0.0
    %3549 = vmatpush.msra.mxu0 0.0
    %3550 = vmatpush.msra.mxu0 0.0
    %3551 = vmatpush.msra.mxu0 0.0
    %3552 = vmatpush.msra.mxu0 0.0
    %3553 = vmatpush.msra.mxu0 0.0
    %3554 = vmatpush.msra.mxu0 %v3091
    %3555 = vmatmul.f32.gmra.mxu0 %v3537
    %v3556 = vpop.f32.mrf.mxu0
    %v3557 = vadd.f32 0.0, %v3556
    %3558 = vdwg.mxu0
    %v3560 = vsel %vm1343, %v3397, 0
    %3562 = vmatpush.msra.mxu0 0.0
    %3563 = vmatpush.msra.mxu0 0.0
    %3564 = vmatpush.msra.mxu0 0.0
    %3565 = vmatpush.msra.mxu0 0.0
    %3566 = vmatpush.msra.mxu0 0.0
    %3567 = vmatpush.msra.mxu0 0.0
    %3568 = vmatpush.msra.mxu0 0.0
    %3569 = vmatpush.msra.mxu0 0.0
    %3570 = vmatpush.msra.mxu0 0.0
    %3571 = vmatpush.msra.mxu0 0.0
    %3572 = vmatpush.msra.mxu0 0.0
    %3573 = vmatpush.msra.mxu0 0.0
    %3574 = vmatpush.msra.mxu0 0.0
    %3575 = vmatpush.msra.mxu0 0.0
    %3576 = vmatpush.msra.mxu0 0.0
    %3577 = vmatpush.msra.mxu0 %v3093
    %3578 = vmatmul.f32.gmra.mxu0 %v3560
    %v3579 = vpop.f32.mrf.mxu0
    %v3580 = vadd.f32 0.0, %v3579
    %3581 = vdwg.mxu0
    %v3582 = vrot.slane %v3465, 4
    %v3583 = vsel %vm635, %v3582, %v3419
    %v3584 = vrot.slane %v3419, 4
    %v3585 = vsel %vm635, %v3465, %v3584
    %v3587 = vunpack.c.l.s4 1983009808
    %v3588 = vunpack.c.0.s8 %v3587
    %v3589 = vperm.slane %v3583, %v3588
    %v3591 = vunpack.c.l.s4 1983009808
    %v3592 = vunpack.c.0.s8 %v3591
    %v3593 = vperm.slane %v3585, %v3592
    %v3594 = vrot.slane %v3488, 4
    %v3595 = vsel %vm635, %v3594, %v3442
    %v3596 = vrot.slane %v3442, 4
    %v3597 = vsel %vm635, %v3488, %v3596
    %v3599 = vunpack.c.l.s4 1983009808
    %v3600 = vunpack.c.0.s8 %v3599
    %v3601 = vperm.slane %v3595, %v3600
    %v3603 = vunpack.c.l.s4 1983009808
    %v3604 = vunpack.c.0.s8 %v3603
    %v3605 = vperm.slane %v3597, %v3604
    %v3606 = vrot.slane %v3601, 4
    %v3607 = vsel %vm635, %v3606, %v3589
    %v3608 = vrot.slane %v3589, 4
    %v3609 = vsel %vm635, %v3601, %v3608
    %v3611 = vunpack.c.l.s4 1934713408
    %v3612 = vunpack.c.0.s8 %v3611
    %v3613 = vperm.slane %v3607, %v3612
    %v3615 = vunpack.c.l.s4 1934713408
    %v3616 = vunpack.c.0.s8 %v3615
    %v3617 = vperm.slane %v3609, %v3616
    %v3618 = vrot.slane %v3605, 4
    %v3619 = vsel %vm635, %v3618, %v3593
    %v3620 = vrot.slane %v3593, 4
    %v3621 = vsel %vm635, %v3605, %v3620
    %v3623 = vunpack.c.l.s4 1934713408
    %v3624 = vunpack.c.0.s8 %v3623
    %v3625 = vperm.slane %v3619, %v3624
    %v3627 = vunpack.c.l.s4 1934713408
    %v3628 = vunpack.c.0.s8 %v3627
    %v3629 = vperm.slane %v3621, %v3628
    %v3630 = vrot.slane %v3613, 4
    %v3631 = vsel %vm635, 0.0, %v3630
    %v3632 = vrot.slane %v3617, 4
    %v3633 = vsel %vm635, 0.0, %v3632
    %v3634 = vrot.slane %v3625, 4
    %v3635 = vsel %vm635, 0.0, %v3634
    %v3636 = vrot.slane %v3629, 4
    %v3637 = vsel %vm635, 0.0, %v3636
    %v3638 = vrot.slane %v3557, 4
    %v3639 = vsel %vm635, %v3638, %v3511
    %v3640 = vrot.slane %v3511, 4
    %v3641 = vsel %vm635, %v3557, %v3640
    %v3643 = vunpack.c.l.s4 1983009808
    %v3644 = vunpack.c.0.s8 %v3643
    %v3645 = vperm.slane %v3639, %v3644
    %v3647 = vunpack.c.l.s4 1983009808
    %v3648 = vunpack.c.0.s8 %v3647
    %v3649 = vperm.slane %v3641, %v3648
    %v3650 = vrot.slane %v3580, 4
    %v3651 = vsel %vm635, %v3650, %v3534
    %v3652 = vrot.slane %v3534, 4
    %v3653 = vsel %vm635, %v3580, %v3652
    %v3655 = vunpack.c.l.s4 1983009808
    %v3656 = vunpack.c.0.s8 %v3655
    %v3657 = vperm.slane %v3651, %v3656
    %v3659 = vunpack.c.l.s4 1983009808
    %v3660 = vunpack.c.0.s8 %v3659
    %v3661 = vperm.slane %v3653, %v3660
    %v3662 = vrot.slane %v3657, 4
    %v3663 = vsel %vm635, %v3662, %v3645
    %v3664 = vrot.slane %v3645, 4
    %v3665 = vsel %vm635, %v3657, %v3664
    %v3667 = vunpack.c.l.s4 1934713408
    %v3668 = vunpack.c.0.s8 %v3667
    %v3669 = vperm.slane %v3663, %v3668
    %v3671 = vunpack.c.l.s4 1934713408
    %v3672 = vunpack.c.0.s8 %v3671
    %v3673 = vperm.slane %v3665, %v3672
    %v3674 = vrot.slane %v3661, 4
    %v3675 = vsel %vm635, %v3674, %v3649
    %v3676 = vrot.slane %v3649, 4
    %v3677 = vsel %vm635, %v3661, %v3676
    %v3679 = vunpack.c.l.s4 1934713408
    %v3680 = vunpack.c.0.s8 %v3679
    %v3681 = vperm.slane %v3675, %v3680
    %v3683 = vunpack.c.l.s4 1934713408
    %v3684 = vunpack.c.0.s8 %v3683
    %v3685 = vperm.slane %v3677, %v3684
    %v3686 = vrot.slane %v3669, 4
    %v3687 = vsel %vm635, 0.0, %v3686
    %v3688 = vrot.slane %v3673, 4
    %v3689 = vsel %vm635, 0.0, %v3688
    %v3690 = vrot.slane %v3681, 4
    %v3691 = vsel %vm635, 0.0, %v3690
    %v3692 = vrot.slane %v3685, 4
    %v3693 = vsel %vm635, 0.0, %v3692
    %v3694 = vsel %vm635, %v3632, %v3613
    %v3696 = vunpack.c.l.s4 1983009808
    %v3697 = vunpack.c.0.s8 %v3696
    %v3698 = vperm.slane %v3694, %v3697
    %v3699 = vrot.slane %v3633, 4
    %v3700 = vsel %vm635, %v3699, %v3631
    %v3702 = vunpack.c.l.s4 1983009808
    %v3703 = vunpack.c.0.s8 %v3702
    %v3704 = vperm.slane %v3700, %v3703
    %v3705 = vsel %vm635, %v3636, %v3625
    %v3707 = vunpack.c.l.s4 1983009808
    %v3708 = vunpack.c.0.s8 %v3707
    %v3709 = vperm.slane %v3705, %v3708
    %v3710 = vrot.slane %v3637, 4
    %v3711 = vsel %vm635, %v3710, %v3635
    %v3713 = vunpack.c.l.s4 1983009808
    %v3714 = vunpack.c.0.s8 %v3713
    %v3715 = vperm.slane %v3711, %v3714
    %v3716 = vrot.slane %v3704, 4
    %v3717 = vsel %vm635, %v3716, %v3698
    %v3718 = vrot.slane %v3698, 4
    %v3719 = vsel %vm635, %v3704, %v3718
    %v3721 = vunpack.c.l.s4 1934713408
    %v3722 = vunpack.c.0.s8 %v3721
    %v3723 = vperm.slane %v3717, %v3722
    %v3725 = vunpack.c.l.s4 1934713408
    %v3726 = vunpack.c.0.s8 %v3725
    %v3727 = vperm.slane %v3719, %v3726
    %v3728 = vrot.slane %v3715, 4
    %v3729 = vsel %vm635, %v3728, %v3709
    %v3730 = vrot.slane %v3709, 4
    %v3731 = vsel %vm635, %v3715, %v3730
    %v3733 = vunpack.c.l.s4 1934713408
    %v3734 = vunpack.c.0.s8 %v3733
    %v3735 = vperm.slane %v3729, %v3734
    %v3737 = vunpack.c.l.s4 1934713408
    %v3738 = vunpack.c.0.s8 %v3737
    %v3739 = vperm.slane %v3731, %v3738
    %v3740 = vrot.slane %v3735, 4
    %v3741 = vsel %vm635, %v3740, %v3723
    %v3742 = vrot.slane %v3723, 4
    %v3743 = vsel %vm635, %v3735, %v3742
    %v3744 = vrot.slane %v3739, 4
    %v3745 = vsel %vm635, %v3744, %v3727
    %v3746 = vrot.slane %v3727, 4
    %v3747 = vsel %vm635, %v3739, %v3746
    %v3748 = vsel %vm635, %v3688, %v3669
    %v3750 = vunpack.c.l.s4 1983009808
    %v3751 = vunpack.c.0.s8 %v3750
    %v3752 = vperm.slane %v3748, %v3751
    %v3753 = vrot.slane %v3689, 4
    %v3754 = vsel %vm635, %v3753, %v3687
    %v3756 = vunpack.c.l.s4 1983009808
    %v3757 = vunpack.c.0.s8 %v3756
    %v3758 = vperm.slane %v3754, %v3757
    %v3759 = vsel %vm635, %v3692, %v3681
    %v3761 = vunpack.c.l.s4 1983009808
    %v3762 = vunpack.c.0.s8 %v3761
    %v3763 = vperm.slane %v3759, %v3762
    %v3764 = vrot.slane %v3693, 4
    %v3765 = vsel %vm635, %v3764, %v3691
    %v3767 = vunpack.c.l.s4 1983009808
    %v3768 = vunpack.c.0.s8 %v3767
    %v3769 = vperm.slane %v3765, %v3768
    %v3770 = vrot.slane %v3758, 4
    %v3771 = vsel %vm635, %v3770, %v3752
    %v3772 = vrot.slane %v3752, 4
    %v3773 = vsel %vm635, %v3758, %v3772
    %v3775 = vunpack.c.l.s4 1934713408
    %v3776 = vunpack.c.0.s8 %v3775
    %v3777 = vperm.slane %v3771, %v3776
    %v3779 = vunpack.c.l.s4 1934713408
    %v3780 = vunpack.c.0.s8 %v3779
    %v3781 = vperm.slane %v3773, %v3780
    %v3782 = vrot.slane %v3769, 4
    %v3783 = vsel %vm635, %v3782, %v3763
    %v3784 = vrot.slane %v3763, 4
    %v3785 = vsel %vm635, %v3769, %v3784
    %v3787 = vunpack.c.l.s4 1934713408
    %v3788 = vunpack.c.0.s8 %v3787
    %v3789 = vperm.slane %v3783, %v3788
    %v3791 = vunpack.c.l.s4 1934713408
    %v3792 = vunpack.c.0.s8 %v3791
    %v3793 = vperm.slane %v3785, %v3792
    %v3794 = vrot.slane %v3789, 4
    %v3795 = vsel %vm635, %v3794, %v3777
    %v3796 = vrot.slane %v3777, 4
    %v3797 = vsel %vm635, %v3789, %v3796
    %v3798 = vrot.slane %v3793, 4
    %v3799 = vsel %vm635, %v3798, %v3781
    %v3800 = vrot.slane %v3781, 4
    %v3801 = vsel %vm635, %v3793, %v3800
    %3804 = vrot.lane.b32.xlu0 %v3743, 8
    %v3805 = vpop.permute.xlu0 %3804
    %3806 = vrot.lane.b32.xlu0 %v3797, 8
    %v3807 = vpop.permute.xlu0 %3806
    %3812 = vrot.lane.b32.xlu0 %v3745, 16
    %v3813 = vpop.permute.xlu0 %3812
    %3814 = vrot.lane.b32.xlu0 %v3799, 16
    %v3815 = vpop.permute.xlu0 %3814
    %3820 = vrot.lane.b32.xlu0 %v3747, 24
    %v3821 = vpop.permute.xlu0 %3820
    %3822 = vrot.lane.b32.xlu0 %v3801, 24
    %v3823 = vpop.permute.xlu0 %3822
    %v3826 = vsel %vm1343, %v3741, %v3805
    %v3827 = vsel %vm1343, %v3795, %v3807
    %v3828 = vsel %vm2078, %v3826, %v3813
    %v3829 = vsel %vm2078, %v3827, %v3815
    %v3830 = vsel %vm2081, %v3828, %v3821
    %v3831 = vsel %vm2081, %v3829, %v3823
    %v3833 = vperm.slane %v2365, 0
    %v3836 = vsel %vm579, %v3830, 0
    %v3839 = vsel %vm579, %v3831, 0
    %3841 = vmatpush.msra.mxu0 0.0
    %3842 = vmatpush.msra.mxu0 0.0
    %3843 = vmatpush.msra.mxu0 0.0
    %3844 = vmatpush.msra.mxu0 0.0
    %3845 = vmatpush.msra.mxu0 0.0
    %3846 = vmatpush.msra.mxu0 0.0
    %3847 = vmatpush.msra.mxu0 0.0
    %3848 = vmatpush.msra.mxu0 0.0
    %3849 = vmatpush.msra.mxu0 0.0
    %3850 = vmatpush.msra.mxu0 0.0
    %3851 = vmatpush.msra.mxu0 0.0
    %3852 = vmatpush.msra.mxu0 0.0
    %3853 = vmatpush.msra.mxu0 %v2363
    %3854 = vmatpush.msra.mxu0 %v2362
    %3855 = vmatpush.msra.mxu0 %v2361
    %3856 = vmatpush.msra.mxu0 %v2360
    %3857 = vmatmul.f32.gmra.mxu0 %v3836
    %v3858 = vpop.f32.mrf.mxu0
    %v3859 = vadd.f32 %v3833, %v3858
    %3860 = vmatmul.f32.gmra.mxu0 %v3839
    %v3861 = vpop.f32.mrf.mxu0
    %v3862 = vadd.f32 %v3833, %v3861
    %3863 = vdwg.mxu0
    %v3864 = vadd.f32 %v2318, %v3859
    %v3865 = vadd.f32 %v2319, %v3862
    %s3866 = scalar_lea.vmem [#allocation17], 1
    %v3867 = vld [vmem:[%s3866] sm:$0x1]
    %s3868 = scalar_lea.vmem [#allocation19], 1
    %v3869 = vld [vmem:[%s3868] sm:$0x1]
    %v3870 = vsel %vm579, %v3864, 0.0
    %3871 = vadd.xlane.f32.xlu0 %v3870
    %v3872 = vpop.xlane.xlu0 %3871
    %v3873 = vsel %vm579, %v3865, 0.0
    %3874 = vadd.xlane.f32.xlu0 %v3873
    %v3875 = vpop.xlane.xlu0 %3874
    %v3876 = vmul.f32 %v3872, %v2132
    %v3877 = vmul.f32 %v3875, %v2132
    %v3878 = vsub.f32 %v3864, %v3876
    %v3879 = vsub.f32 %v3865, %v3877
    %v3880 = vmul.f32 %v3878, %v3878
    %v3881 = vmul.f32 %v3879, %v3879
    %v3882 = vsel %vm579, %v3880, 0.0
    %3883 = vadd.xlane.f32.xlu0 %v3882
    %v3884 = vpop.xlane.xlu0 %3883
    %v3885 = vsel %vm579, %v3881, 0.0
    %3886 = vadd.xlane.f32.xlu0 %v3885
    %v3887 = vpop.xlane.xlu0 %3886
    %v3888 = vmul.f32 %v3884, %v2132
    %v3889 = vmul.f32 %v3887, %v2132
    %v3890 = vadd.f32 %v3888, 1e-05
    %v3891 = vadd.f32 %v3889, 1e-05
    %v3892 = vrsqrt.pop %v3890
    %v3893 = vmul.f32 %v3892, %v3890
    %v3894 = vmul.f32 %v3893, %v3892
    %v3895 = vmul.f32 0.5, %v3894
    %v3896 = vsub.f32 1.5, %v3895
    %v3897 = vmul.f32 %v3892, %v3896
    %vm3898 = vweird.f32 %v3890
    %vm3899 = vweird.f32 %v3892
    %vm3900 = vmor %vm3898, %vm3899
    %v3901 = vsel %vm3900, %v3892, %v3897
    %v3902 = vrsqrt.pop %v3891
    %v3903 = vmul.f32 %v3902, %v3891
    %v3904 = vmul.f32 %v3903, %v3902
    %v3905 = vmul.f32 0.5, %v3904
    %v3906 = vsub.f32 1.5, %v3905
    %v3907 = vmul.f32 %v3902, %v3906
    %vm3908 = vweird.f32 %v3891
    %vm3909 = vweird.f32 %v3902
    %vm3910 = vmor %vm3908, %vm3909
    %v3911 = vsel %vm3910, %v3902, %v3907
    %v3912 = vmul.f32 %v3878, %v3901
    %v3913 = vmul.f32 %v3879, %v3911
    %v3915 = vperm.slane %v3867, 0
    %v3917 = vmul.f32 %v3912, %v3915
    %v3918 = vmul.f32 %v3913, %v3915
    %v3920 = vperm.slane %v3869, 0
    %v3922 = vadd.f32 %v3917, %v3920
    %v3923 = vadd.f32 %v3918, %v3920
    %s3924 = scalar_lea.vmem %s23, 32
    %v3925 = vld [vmem:[%s3924] sm:$0xff]
    %v3926 = vld [vmem:[%s3924 + $0x8] sm:$0xff]
    %v3927 = vld [vmem:[%s3924 + $0x10] sm:$0xff]
    %v3928 = vld [vmem:[%s3924 + $0x18] sm:$0xff]
    %s3929 = scalar_lea.vmem [#allocation14], 1
    %v3930 = vld [vmem:[%s3929] sm:$0x1]
    %v3932 = vperm.slane %v3930, 0
    %v3935 = vsel %vm579, %v3922, 0
    %v3938 = vsel %vm579, %v3923, 0
    %3940 = vmatpush.msra.mxu0 0.0
    %3941 = vmatpush.msra.mxu0 0.0
    %3942 = vmatpush.msra.mxu0 0.0
    %3943 = vmatpush.msra.mxu0 0.0
    %3944 = vmatpush.msra.mxu0 0.0
    %3945 = vmatpush.msra.mxu0 0.0
    %3946 = vmatpush.msra.mxu0 0.0
    %3947 = vmatpush.msra.mxu0 0.0
    %3948 = vmatpush.msra.mxu0 0.0
    %3949 = vmatpush.msra.mxu0 0.0
    %3950 = vmatpush.msra.mxu0 0.0
    %3951 = vmatpush.msra.mxu0 0.0
    %3952 = vmatpush.msra.mxu0 %v3928
    %3953 = vmatpush.msra.mxu0 %v3927
    %3954 = vmatpush.msra.mxu0 %v3926
    %3955 = vmatpush.msra.mxu0 %v3925
    %3956 = vmatmul.f32.gmra.mxu0 %v3935
    %v3957 = vpop.f32.mrf.mxu0
    %v3958 = vadd.f32 %v3932, %v3957
    %3959 = vmatmul.f32.gmra.mxu0 %v3938
    %v3960 = vpop.f32.mrf.mxu0
    %v3961 = vadd.f32 %v3932, %v3960
    %3962 = vdwg.mxu0
    %v3963 = vmax.f32 %v3958, 0.0
    %v3964 = vmax.f32 %v3961, 0.0
    %s3965 = scalar_lea.vmem %s27, 64
    %v3966 = vld [vmem:[%s3965] sm:$0xff]
    %v3967 = vld [vmem:[%s3965 + $0x8] sm:$0xff]
    %v3968 = vld [vmem:[%s3965 + $0x10] sm:$0xff]
    %v3969 = vld [vmem:[%s3965 + $0x18] sm:$0xff]
    %v3970 = vld [vmem:[%s3965 + $0x20] sm:$0xff]
    %v3971 = vld [vmem:[%s3965 + $0x28] sm:$0xff]
    %v3972 = vld [vmem:[%s3965 + $0x30] sm:$0xff]
    %v3973 = vld [vmem:[%s3965 + $0x38] sm:$0xff]
    %s3974 = scalar_lea.vmem [#allocation16], 1
    %v3975 = vld [vmem:[%s3974] sm:$0x1]
    %v3977 = vperm.slane %v3975, 0
    %v3980 = vsel %vm2232, %v3963, 0
    %v3983 = vsel %vm2232, %v3964, 0
    %3985 = vmatpush.msra.mxu0 0.0
    %3986 = vmatpush.msra.mxu0 0.0
    %3987 = vmatpush.msra.mxu0 0.0
    %3988 = vmatpush.msra.mxu0 0.0
    %3989 = vmatpush.msra.mxu0 0.0
    %3990 = vmatpush.msra.mxu0 0.0
    %3991 = vmatpush.msra.mxu0 0.0
    %3992 = vmatpush.msra.mxu0 0.0
    %3993 = vmatpush.msra.mxu0 %v3973
    %3994 = vmatpush.msra.mxu0 %v3972
    %3995 = vmatpush.msra.mxu0 %v3971
    %3996 = vmatpush.msra.mxu0 %v3970
    %3997 = vmatpush.msra.mxu0 %v3969
    %3998 = vmatpush.msra.mxu0 %v3968
    %3999 = vmatpush.msra.mxu0 %v3967
    %4000 = vmatpush.msra.mxu0 %v3966
    %4001 = vmatmul.f32.gmra.mxu0 %v3980
    %v4002 = vpop.f32.mrf.mxu0
    %v4003 = vadd.f32 %v3977, %v4002
    %4004 = vmatmul.f32.gmra.mxu0 %v3983
    %v4005 = vpop.f32.mrf.mxu0
    %v4006 = vadd.f32 %v3977, %v4005
    %4007 = vdwg.mxu0
    %v4008 = vadd.f32 %v3922, %v4003
    %v4009 = vadd.f32 %v3923, %v4006
    %s4010 = scalar_lea.vmem [#allocation20], 1
    %v4011 = vld [vmem:[%s4010] sm:$0x1]
    %s4012 = scalar_lea.vmem [#allocation22], 1
    %v4013 = vld [vmem:[%s4012] sm:$0x1]
    %v4014 = vsel %vm579, %v4008, 0.0
    %4015 = vadd.xlane.f32.xlu0 %v4014
    %v4016 = vpop.xlane.xlu0 %4015
    %v4017 = vsel %vm579, %v4009, 0.0
    %4018 = vadd.xlane.f32.xlu0 %v4017
    %v4019 = vpop.xlane.xlu0 %4018
    %v4020 = vmul.f32 %v4016, %v2132
    %v4021 = vmul.f32 %v4019, %v2132
    %v4022 = vsub.f32 %v4008, %v4020
    %v4023 = vsub.f32 %v4009, %v4021
    %v4024 = vmul.f32 %v4022, %v4022
    %v4025 = vmul.f32 %v4023, %v4023
    %v4026 = vsel %vm579, %v4024, 0.0
    %4027 = vadd.xlane.f32.xlu0 %v4026
    %v4028 = vpop.xlane.xlu0 %4027
    %v4029 = vsel %vm579, %v4025, 0.0
    %4030 = vadd.xlane.f32.xlu0 %v4029
    %v4031 = vpop.xlane.xlu0 %4030
    %v4032 = vmul.f32 %v4028, %v2132
    %v4033 = vmul.f32 %v4031, %v2132
    %v4034 = vadd.f32 %v4032, 1e-05
    %v4035 = vadd.f32 %v4033, 1e-05
    %v4036 = vrsqrt.pop %v4034
    %v4037 = vmul.f32 %v4036, %v4034
    %v4038 = vmul.f32 %v4037, %v4036
    %v4039 = vmul.f32 0.5, %v4038
    %v4040 = vsub.f32 1.5, %v4039
    %v4041 = vmul.f32 %v4036, %v4040
    %vm4042 = vweird.f32 %v4034
    %vm4043 = vweird.f32 %v4036
    %vm4044 = vmor %vm4042, %vm4043
    %v4045 = vsel %vm4044, %v4036, %v4041
    %v4046 = vrsqrt.pop %v4035
    %v4047 = vmul.f32 %v4046, %v4035
    %v4048 = vmul.f32 %v4047, %v4046
    %v4049 = vmul.f32 0.5, %v4048
    %v4050 = vsub.f32 1.5, %v4049
    %v4051 = vmul.f32 %v4046, %v4050
    %vm4052 = vweird.f32 %v4035
    %vm4053 = vweird.f32 %v4046
    %vm4054 = vmor %vm4052, %vm4053
    %v4055 = vsel %vm4054, %v4046, %v4051
    %v4056 = vmul.f32 %v4022, %v4045
    %v4057 = vmul.f32 %v4023, %v4055
    %v4059 = vperm.slane %v4011, 0
    %v4061 = vmul.f32 %v4056, %v4059
    %v4062 = vmul.f32 %v4057, %v4059
    %v4064 = vperm.slane %v4013, 0
    %v4066 = vadd.f32 %v4061, %v4064
    %v4067 = vadd.f32 %v4062, %v4064
    %s4068 = scalar_lea.vmem %s15, 64
    %v4069 = vld [vmem:[%s4068] sm:$0xff]
    %v4070 = vld [vmem:[%s4068 + $0x8] sm:$0xff]
    %v4071 = vld [vmem:[%s4068 + $0x10] sm:$0xff]
    %v4072 = vld [vmem:[%s4068 + $0x18] sm:$0xff]
    %s4073 = scalar_lea.vmem [#allocation11], 2
    %v4074 = vld [vmem:[%s4073] sm:$0x1]
    %v4076 = vperm.slane %v4074, 0
    %v4079 = vsel %vm579, %v569, 0
    %v4082 = vsel %vm579, %v570, 0
    %4084 = vmatpush.msra.mxu0 0.0
    %4085 = vmatpush.msra.mxu0 0.0
    %4086 = vmatpush.msra.mxu0 0.0
    %4087 = vmatpush.msra.mxu0 0.0
    %4088 = vmatpush.msra.mxu0 0.0
    %4089 = vmatpush.msra.mxu0 0.0
    %4090 = vmatpush.msra.mxu0 0.0
    %4091 = vmatpush.msra.mxu0 0.0
    %4092 = vmatpush.msra.mxu0 0.0
    %4093 = vmatpush.msra.mxu0 0.0
    %4094 = vmatpush.msra.mxu0 0.0
    %4095 = vmatpush.msra.mxu0 0.0
    %4096 = vmatpush.msra.mxu0 %v4072
    %4097 = vmatpush.msra.mxu0 %v4071
    %4098 = vmatpush.msra.mxu0 %v4070
    %4099 = vmatpush.msra.mxu0 %v4069
    %4100 = vmatmul.f32.gmra.mxu0 %v4079
    %v4101 = vpop.f32.mrf.mxu0
    %v4102 = vadd.f32 %v4076, %v4101
    %4103 = vmatmul.f32.gmra.mxu0 %v4082
    %v4104 = vpop.f32.mrf.mxu0
    %v4105 = vadd.f32 %v4076, %v4104
    %4106 = vdwg.mxu0
    %s4107 = scalar_lea.vmem %s19, 64
    %v4108 = vld [vmem:[%s4107] sm:$0xff]
    %v4109 = vld [vmem:[%s4107 + $0x8] sm:$0xff]
    %v4110 = vld [vmem:[%s4107 + $0x10] sm:$0xff]
    %v4111 = vld [vmem:[%s4107 + $0x18] sm:$0xff]
    %s4112 = scalar_lea.vmem [#allocation13], 2
    %v4113 = vld [vmem:[%s4112] sm:$0x1]
    %4116 = vrot.lane.b32.xlu0 %v4102, 120
    %v4117 = vpop.permute.xlu0 %4116
    %4118 = vrot.lane.b32.xlu0 %v4105, 120
    %v4119 = vpop.permute.xlu0 %4118
    %4122 = vrot.lane.b32.xlu0 %v4102, 112
    %v4123 = vpop.permute.xlu0 %4122
    %4124 = vrot.lane.b32.xlu0 %v4105, 112
    %v4125 = vpop.permute.xlu0 %4124
    %4128 = vrot.lane.b32.xlu0 %v4102, 104
    %v4129 = vpop.permute.xlu0 %4128
    %4130 = vrot.lane.b32.xlu0 %v4105, 104
    %v4131 = vpop.permute.xlu0 %4130
    %v4134 = vrot.slane %v4123, 4
    %v4135 = vsel %vm635, %v4134, %v4102
    %v4136 = vrot.slane %v4102, 4
    %v4137 = vsel %vm635, %v4123, %v4136
    %v4139 = vunpack.c.l.s4 1983009808
    %v4140 = vunpack.c.0.s8 %v4139
    %v4141 = vperm.slane %v4135, %v4140
    %v4143 = vunpack.c.l.s4 1983009808
    %v4144 = vunpack.c.0.s8 %v4143
    %v4145 = vperm.slane %v4137, %v4144
    %v4146 = vrot.slane %v4129, 4
    %v4147 = vsel %vm635, %v4146, %v4117
    %v4148 = vrot.slane %v4117, 4
    %v4149 = vsel %vm635, %v4129, %v4148
    %v4151 = vunpack.c.l.s4 1983009808
    %v4152 = vunpack.c.0.s8 %v4151
    %v4153 = vperm.slane %v4147, %v4152
    %v4155 = vunpack.c.l.s4 1983009808
    %v4156 = vunpack.c.0.s8 %v4155
    %v4157 = vperm.slane %v4149, %v4156
    %v4158 = vrot.slane %v4153, 4
    %v4159 = vsel %vm635, %v4158, %v4141
    %v4160 = vrot.slane %v4141, 4
    %v4161 = vsel %vm635, %v4153, %v4160
    %v4163 = vunpack.c.l.s4 1934713408
    %v4164 = vunpack.c.0.s8 %v4163
    %v4165 = vperm.slane %v4159, %v4164
    %v4167 = vunpack.c.l.s4 1934713408
    %v4168 = vunpack.c.0.s8 %v4167
    %v4169 = vperm.slane %v4161, %v4168
    %v4170 = vrot.slane %v4157, 4
    %v4171 = vsel %vm635, %v4170, %v4145
    %v4172 = vrot.slane %v4145, 4
    %v4173 = vsel %vm635, %v4157, %v4172
    %v4175 = vunpack.c.l.s4 1934713408
    %v4176 = vunpack.c.0.s8 %v4175
    %v4177 = vperm.slane %v4171, %v4176
    %v4179 = vunpack.c.l.s4 1934713408
    %v4180 = vunpack.c.0.s8 %v4179
    %v4181 = vperm.slane %v4173, %v4180
    %v4182 = vrot.slane %v4165, 4
    %v4183 = vsel %vm635, 0.0, %v4182
    %v4184 = vrot.slane %v4169, 4
    %v4185 = vsel %vm635, 0.0, %v4184
    %v4186 = vrot.slane %v4177, 4
    %v4187 = vsel %vm635, 0.0, %v4186
    %v4188 = vrot.slane %v4181, 4
    %v4189 = vsel %vm635, 0.0, %v4188
    %v4190 = vrot.slane %v4125, 4
    %v4191 = vsel %vm635, %v4190, %v4105
    %v4192 = vrot.slane %v4105, 4
    %v4193 = vsel %vm635, %v4125, %v4192
    %v4195 = vunpack.c.l.s4 1983009808
    %v4196 = vunpack.c.0.s8 %v4195
    %v4197 = vperm.slane %v4191, %v4196
    %v4199 = vunpack.c.l.s4 1983009808
    %v4200 = vunpack.c.0.s8 %v4199
    %v4201 = vperm.slane %v4193, %v4200
    %v4202 = vrot.slane %v4131, 4
    %v4203 = vsel %vm635, %v4202, %v4119
    %v4204 = vrot.slane %v4119, 4
    %v4205 = vsel %vm635, %v4131, %v4204
    %v4207 = vunpack.c.l.s4 1983009808
    %v4208 = vunpack.c.0.s8 %v4207
    %v4209 = vperm.slane %v4203, %v4208
    %v4211 = vunpack.c.l.s4 1983009808
    %v4212 = vunpack.c.0.s8 %v4211
    %v4213 = vperm.slane %v4205, %v4212
    %v4214 = vrot.slane %v4209, 4
    %v4215 = vsel %vm635, %v4214, %v4197
    %v4216 = vrot.slane %v4197, 4
    %v4217 = vsel %vm635, %v4209, %v4216
    %v4219 = vunpack.c.l.s4 1934713408
    %v4220 = vunpack.c.0.s8 %v4219
    %v4221 = vperm.slane %v4215, %v4220
    %v4223 = vunpack.c.l.s4 1934713408
    %v4224 = vunpack.c.0.s8 %v4223
    %v4225 = vperm.slane %v4217, %v4224
    %v4226 = vrot.slane %v4213, 4
    %v4227 = vsel %vm635, %v4226, %v4201
    %v4228 = vrot.slane %v4201, 4
    %v4229 = vsel %vm635, %v4213, %v4228
    %v4231 = vunpack.c.l.s4 1934713408
    %v4232 = vunpack.c.0.s8 %v4231
    %v4233 = vperm.slane %v4227, %v4232
    %v4235 = vunpack.c.l.s4 1934713408
    %v4236 = vunpack.c.0.s8 %v4235
    %v4237 = vperm.slane %v4229, %v4236
    %v4238 = vrot.slane %v4221, 4
    %v4239 = vsel %vm635, 0.0, %v4238
    %v4240 = vrot.slane %v4225, 4
    %v4241 = vsel %vm635, 0.0, %v4240
    %v4242 = vrot.slane %v4233, 4
    %v4243 = vsel %vm635, 0.0, %v4242
    %v4244 = vrot.slane %v4237, 4
    %v4245 = vsel %vm635, 0.0, %v4244
    %v4246 = vsel %vm635, %v4184, %v4165
    %v4248 = vunpack.c.l.s4 1983009808
    %v4249 = vunpack.c.0.s8 %v4248
    %v4250 = vperm.slane %v4246, %v4249
    %v4251 = vrot.slane %v4185, 4
    %v4252 = vsel %vm635, %v4251, %v4183
    %v4254 = vunpack.c.l.s4 1983009808
    %v4255 = vunpack.c.0.s8 %v4254
    %v4256 = vperm.slane %v4252, %v4255
    %v4257 = vsel %vm635, %v4188, %v4177
    %v4259 = vunpack.c.l.s4 1983009808
    %v4260 = vunpack.c.0.s8 %v4259
    %v4261 = vperm.slane %v4257, %v4260
    %v4262 = vrot.slane %v4189, 4
    %v4263 = vsel %vm635, %v4262, %v4187
    %v4265 = vunpack.c.l.s4 1983009808
    %v4266 = vunpack.c.0.s8 %v4265
    %v4267 = vperm.slane %v4263, %v4266
    %v4268 = vrot.slane %v4256, 4
    %v4269 = vsel %vm635, %v4268, %v4250
    %v4270 = vrot.slane %v4250, 4
    %v4271 = vsel %vm635, %v4256, %v4270
    %v4273 = vunpack.c.l.s4 1934713408
    %v4274 = vunpack.c.0.s8 %v4273
    %v4275 = vperm.slane %v4269, %v4274
    %v4277 = vunpack.c.l.s4 1934713408
    %v4278 = vunpack.c.0.s8 %v4277
    %v4279 = vperm.slane %v4271, %v4278
    %v4280 = vrot.slane %v4267, 4
    %v4281 = vsel %vm635, %v4280, %v4261
    %v4282 = vrot.slane %v4261, 4
    %v4283 = vsel %vm635, %v4267, %v4282
    %v4285 = vunpack.c.l.s4 1934713408
    %v4286 = vunpack.c.0.s8 %v4285
    %v4287 = vperm.slane %v4281, %v4286
    %v4289 = vunpack.c.l.s4 1934713408
    %v4290 = vunpack.c.0.s8 %v4289
    %v4291 = vperm.slane %v4283, %v4290
    %v4292 = vrot.slane %v4287, 4
    %v4293 = vsel %vm635, %v4292, %v4275
    %v4294 = vrot.slane %v4275, 4
    %v4295 = vsel %vm635, %v4287, %v4294
    %v4296 = vrot.slane %v4291, 4
    %v4297 = vsel %vm635, %v4296, %v4279
    %v4298 = vrot.slane %v4279, 4
    %v4299 = vsel %vm635, %v4291, %v4298
    %v4300 = vsel %vm635, %v4240, %v4221
    %v4302 = vunpack.c.l.s4 1983009808
    %v4303 = vunpack.c.0.s8 %v4302
    %v4304 = vperm.slane %v4300, %v4303
    %v4305 = vrot.slane %v4241, 4
    %v4306 = vsel %vm635, %v4305, %v4239
    %v4308 = vunpack.c.l.s4 1983009808
    %v4309 = vunpack.c.0.s8 %v4308
    %v4310 = vperm.slane %v4306, %v4309
    %v4311 = vsel %vm635, %v4244, %v4233
    %v4313 = vunpack.c.l.s4 1983009808
    %v4314 = vunpack.c.0.s8 %v4313
    %v4315 = vperm.slane %v4311, %v4314
    %v4316 = vrot.slane %v4245, 4
    %v4317 = vsel %vm635, %v4316, %v4243
    %v4319 = vunpack.c.l.s4 1983009808
    %v4320 = vunpack.c.0.s8 %v4319
    %v4321 = vperm.slane %v4317, %v4320
    %v4322 = vrot.slane %v4310, 4
    %v4323 = vsel %vm635, %v4322, %v4304
    %v4324 = vrot.slane %v4304, 4
    %v4325 = vsel %vm635, %v4310, %v4324
    %v4327 = vunpack.c.l.s4 1934713408
    %v4328 = vunpack.c.0.s8 %v4327
    %v4329 = vperm.slane %v4323, %v4328
    %v4331 = vunpack.c.l.s4 1934713408
    %v4332 = vunpack.c.0.s8 %v4331
    %v4333 = vperm.slane %v4325, %v4332
    %v4334 = vrot.slane %v4321, 4
    %v4335 = vsel %vm635, %v4334, %v4315
    %v4336 = vrot.slane %v4315, 4
    %v4337 = vsel %vm635, %v4321, %v4336
    %v4339 = vunpack.c.l.s4 1934713408
    %v4340 = vunpack.c.0.s8 %v4339
    %v4341 = vperm.slane %v4335, %v4340
    %v4343 = vunpack.c.l.s4 1934713408
    %v4344 = vunpack.c.0.s8 %v4343
    %v4345 = vperm.slane %v4337, %v4344
    %v4346 = vrot.slane %v4341, 4
    %v4347 = vsel %vm635, %v4346, %v4329
    %v4348 = vrot.slane %v4329, 4
    %v4349 = vsel %vm635, %v4341, %v4348
    %v4350 = vrot.slane %v4345, 4
    %v4351 = vsel %vm635, %v4350, %v4333
    %v4352 = vrot.slane %v4333, 4
    %v4353 = vsel %vm635, %v4345, %v4352
    %4354 = vrot.lane.b32.xlu0 %v4102, 96
    %v4355 = vpop.permute.xlu0 %4354
    %4356 = vrot.lane.b32.xlu0 %v4105, 96
    %v4357 = vpop.permute.xlu0 %4356
    %4358 = vrot.lane.b32.xlu0 %v4117, 96
    %v4359 = vpop.permute.xlu0 %4358
    %4360 = vrot.lane.b32.xlu0 %v4119, 96
    %v4361 = vpop.permute.xlu0 %4360
    %4362 = vrot.lane.b32.xlu0 %v4123, 96
    %v4363 = vpop.permute.xlu0 %4362
    %4364 = vrot.lane.b32.xlu0 %v4125, 96
    %v4365 = vpop.permute.xlu0 %4364
    %4366 = vrot.lane.b32.xlu0 %v4129, 96
    %v4367 = vpop.permute.xlu0 %4366
    %4368 = vrot.lane.b32.xlu0 %v4131, 96
    %v4369 = vpop.permute.xlu0 %4368
    %v4378 = vrot.slane %v4363, 4
    %v4379 = vsel %vm635, %v4378, %v4355
    %v4380 = vrot.slane %v4355, 4
    %v4381 = vsel %vm635, %v4363, %v4380
    %v4383 = vunpack.c.l.s4 1983009808
    %v4384 = vunpack.c.0.s8 %v4383
    %v4385 = vperm.slane %v4379, %v4384
    %v4387 = vunpack.c.l.s4 1983009808
    %v4388 = vunpack.c.0.s8 %v4387
    %v4389 = vperm.slane %v4381, %v4388
    %v4390 = vrot.slane %v4367, 4
    %v4391 = vsel %vm635, %v4390, %v4359
    %v4392 = vrot.slane %v4359, 4
    %v4393 = vsel %vm635, %v4367, %v4392
    %v4395 = vunpack.c.l.s4 1983009808
    %v4396 = vunpack.c.0.s8 %v4395
    %v4397 = vperm.slane %v4391, %v4396
    %v4399 = vunpack.c.l.s4 1983009808
    %v4400 = vunpack.c.0.s8 %v4399
    %v4401 = vperm.slane %v4393, %v4400
    %v4402 = vrot.slane %v4397, 4
    %v4403 = vsel %vm635, %v4402, %v4385
    %v4404 = vrot.slane %v4385, 4
    %v4405 = vsel %vm635, %v4397, %v4404
    %v4407 = vunpack.c.l.s4 1934713408
    %v4408 = vunpack.c.0.s8 %v4407
    %v4409 = vperm.slane %v4403, %v4408
    %v4411 = vunpack.c.l.s4 1934713408
    %v4412 = vunpack.c.0.s8 %v4411
    %v4413 = vperm.slane %v4405, %v4412
    %v4414 = vrot.slane %v4401, 4
    %v4415 = vsel %vm635, %v4414, %v4389
    %v4416 = vrot.slane %v4389, 4
    %v4417 = vsel %vm635, %v4401, %v4416
    %v4419 = vunpack.c.l.s4 1934713408
    %v4420 = vunpack.c.0.s8 %v4419
    %v4421 = vperm.slane %v4415, %v4420
    %v4423 = vunpack.c.l.s4 1934713408
    %v4424 = vunpack.c.0.s8 %v4423
    %v4425 = vperm.slane %v4417, %v4424
    %v4426 = vrot.slane %v4409, 4
    %v4427 = vsel %vm635, 0.0, %v4426
    %v4428 = vrot.slane %v4413, 4
    %v4429 = vsel %vm635, 0.0, %v4428
    %v4430 = vrot.slane %v4421, 4
    %v4431 = vsel %vm635, 0.0, %v4430
    %v4432 = vrot.slane %v4425, 4
    %v4433 = vsel %vm635, 0.0, %v4432
    %v4434 = vrot.slane %v4365, 4
    %v4435 = vsel %vm635, %v4434, %v4357
    %v4436 = vrot.slane %v4357, 4
    %v4437 = vsel %vm635, %v4365, %v4436
    %v4439 = vunpack.c.l.s4 1983009808
    %v4440 = vunpack.c.0.s8 %v4439
    %v4441 = vperm.slane %v4435, %v4440
    %v4443 = vunpack.c.l.s4 1983009808
    %v4444 = vunpack.c.0.s8 %v4443
    %v4445 = vperm.slane %v4437, %v4444
    %v4446 = vrot.slane %v4369, 4
    %v4447 = vsel %vm635, %v4446, %v4361
    %v4448 = vrot.slane %v4361, 4
    %v4449 = vsel %vm635, %v4369, %v4448
    %v4451 = vunpack.c.l.s4 1983009808
    %v4452 = vunpack.c.0.s8 %v4451
    %v4453 = vperm.slane %v4447, %v4452
    %v4455 = vunpack.c.l.s4 1983009808
    %v4456 = vunpack.c.0.s8 %v4455
    %v4457 = vperm.slane %v4449, %v4456
    %v4458 = vrot.slane %v4453, 4
    %v4459 = vsel %vm635, %v4458, %v4441
    %v4460 = vrot.slane %v4441, 4
    %v4461 = vsel %vm635, %v4453, %v4460
    %v4463 = vunpack.c.l.s4 1934713408
    %v4464 = vunpack.c.0.s8 %v4463
    %v4465 = vperm.slane %v4459, %v4464
    %v4467 = vunpack.c.l.s4 1934713408
    %v4468 = vunpack.c.0.s8 %v4467
    %v4469 = vperm.slane %v4461, %v4468
    %v4470 = vrot.slane %v4457, 4
    %v4471 = vsel %vm635, %v4470, %v4445
    %v4472 = vrot.slane %v4445, 4
    %v4473 = vsel %vm635, %v4457, %v4472
    %v4475 = vunpack.c.l.s4 1934713408
    %v4476 = vunpack.c.0.s8 %v4475
    %v4477 = vperm.slane %v4471, %v4476
    %v4479 = vunpack.c.l.s4 1934713408
    %v4480 = vunpack.c.0.s8 %v4479
    %v4481 = vperm.slane %v4473, %v4480
    %v4482 = vrot.slane %v4465, 4
    %v4483 = vsel %vm635, 0.0, %v4482
    %v4484 = vrot.slane %v4469, 4
    %v4485 = vsel %vm635, 0.0, %v4484
    %v4486 = vrot.slane %v4477, 4
    %v4487 = vsel %vm635, 0.0, %v4486
    %v4488 = vrot.slane %v4481, 4
    %v4489 = vsel %vm635, 0.0, %v4488
    %v4490 = vsel %vm635, %v4428, %v4409
    %v4492 = vunpack.c.l.s4 1983009808
    %v4493 = vunpack.c.0.s8 %v4492
    %v4494 = vperm.slane %v4490, %v4493
    %v4495 = vrot.slane %v4429, 4
    %v4496 = vsel %vm635, %v4495, %v4427
    %v4498 = vunpack.c.l.s4 1983009808
    %v4499 = vunpack.c.0.s8 %v4498
    %v4500 = vperm.slane %v4496, %v4499
    %v4501 = vsel %vm635, %v4432, %v4421
    %v4503 = vunpack.c.l.s4 1983009808
    %v4504 = vunpack.c.0.s8 %v4503
    %v4505 = vperm.slane %v4501, %v4504
    %v4506 = vrot.slane %v4433, 4
    %v4507 = vsel %vm635, %v4506, %v4431
    %v4509 = vunpack.c.l.s4 1983009808
    %v4510 = vunpack.c.0.s8 %v4509
    %v4511 = vperm.slane %v4507, %v4510
    %v4512 = vrot.slane %v4500, 4
    %v4513 = vsel %vm635, %v4512, %v4494
    %v4514 = vrot.slane %v4494, 4
    %v4515 = vsel %vm635, %v4500, %v4514
    %v4517 = vunpack.c.l.s4 1934713408
    %v4518 = vunpack.c.0.s8 %v4517
    %v4519 = vperm.slane %v4513, %v4518
    %v4521 = vunpack.c.l.s4 1934713408
    %v4522 = vunpack.c.0.s8 %v4521
    %v4523 = vperm.slane %v4515, %v4522
    %v4524 = vrot.slane %v4511, 4
    %v4525 = vsel %vm635, %v4524, %v4505
    %v4526 = vrot.slane %v4505, 4
    %v4527 = vsel %vm635, %v4511, %v4526
    %v4529 = vunpack.c.l.s4 1934713408
    %v4530 = vunpack.c.0.s8 %v4529
    %v4531 = vperm.slane %v4525, %v4530
    %v4533 = vunpack.c.l.s4 1934713408
    %v4534 = vunpack.c.0.s8 %v4533
    %v4535 = vperm.slane %v4527, %v4534
    %v4536 = vrot.slane %v4531, 4
    %v4537 = vsel %vm635, %v4536, %v4519
    %v4538 = vrot.slane %v4519, 4
    %v4539 = vsel %vm635, %v4531, %v4538
    %v4540 = vrot.slane %v4535, 4
    %v4541 = vsel %vm635, %v4540, %v4523
    %v4542 = vrot.slane %v4523, 4
    %v4543 = vsel %vm635, %v4535, %v4542
    %v4544 = vsel %vm635, %v4484, %v4465
    %v4546 = vunpack.c.l.s4 1983009808
    %v4547 = vunpack.c.0.s8 %v4546
    %v4548 = vperm.slane %v4544, %v4547
    %v4549 = vrot.slane %v4485, 4
    %v4550 = vsel %vm635, %v4549, %v4483
    %v4552 = vunpack.c.l.s4 1983009808
    %v4553 = vunpack.c.0.s8 %v4552
    %v4554 = vperm.slane %v4550, %v4553
    %v4555 = vsel %vm635, %v4488, %v4477
    %v4557 = vunpack.c.l.s4 1983009808
    %v4558 = vunpack.c.0.s8 %v4557
    %v4559 = vperm.slane %v4555, %v4558
    %v4560 = vrot.slane %v4489, 4
    %v4561 = vsel %vm635, %v4560, %v4487
    %v4563 = vunpack.c.l.s4 1983009808
    %v4564 = vunpack.c.0.s8 %v4563
    %v4565 = vperm.slane %v4561, %v4564
    %v4566 = vrot.slane %v4554, 4
    %v4567 = vsel %vm635, %v4566, %v4548
    %v4568 = vrot.slane %v4548, 4
    %v4569 = vsel %vm635, %v4554, %v4568
    %v4571 = vunpack.c.l.s4 1934713408
    %v4572 = vunpack.c.0.s8 %v4571
    %v4573 = vperm.slane %v4567, %v4572
    %v4575 = vunpack.c.l.s4 1934713408
    %v4576 = vunpack.c.0.s8 %v4575
    %v4577 = vperm.slane %v4569, %v4576
    %v4578 = vrot.slane %v4565, 4
    %v4579 = vsel %vm635, %v4578, %v4559
    %v4580 = vrot.slane %v4559, 4
    %v4581 = vsel %vm635, %v4565, %v4580
    %v4583 = vunpack.c.l.s4 1934713408
    %v4584 = vunpack.c.0.s8 %v4583
    %v4585 = vperm.slane %v4579, %v4584
    %v4587 = vunpack.c.l.s4 1934713408
    %v4588 = vunpack.c.0.s8 %v4587
    %v4589 = vperm.slane %v4581, %v4588
    %v4590 = vrot.slane %v4585, 4
    %v4591 = vsel %vm635, %v4590, %v4573
    %v4592 = vrot.slane %v4573, 4
    %v4593 = vsel %vm635, %v4585, %v4592
    %v4594 = vrot.slane %v4589, 4
    %v4595 = vsel %vm635, %v4594, %v4577
    %v4596 = vrot.slane %v4577, 4
    %v4597 = vsel %vm635, %v4589, %v4596
    %4598 = vrot.lane.b32.xlu0 %v4102, 64
    %v4599 = vpop.permute.xlu0 %4598
    %4600 = vrot.lane.b32.xlu0 %v4105, 64
    %v4601 = vpop.permute.xlu0 %4600
    %4602 = vrot.lane.b32.xlu0 %v4117, 64
    %v4603 = vpop.permute.xlu0 %4602
    %4604 = vrot.lane.b32.xlu0 %v4119, 64
    %v4605 = vpop.permute.xlu0 %4604
    %4606 = vrot.lane.b32.xlu0 %v4123, 64
    %v4607 = vpop.permute.xlu0 %4606
    %4608 = vrot.lane.b32.xlu0 %v4125, 64
    %v4609 = vpop.permute.xlu0 %4608
    %4610 = vrot.lane.b32.xlu0 %v4129, 64
    %v4611 = vpop.permute.xlu0 %4610
    %4612 = vrot.lane.b32.xlu0 %v4131, 64
    %v4613 = vpop.permute.xlu0 %4612
    %v4622 = vrot.slane %v4607, 4
    %v4623 = vsel %vm635, %v4622, %v4599
    %v4624 = vrot.slane %v4599, 4
    %v4625 = vsel %vm635, %v4607, %v4624
    %v4627 = vunpack.c.l.s4 1983009808
    %v4628 = vunpack.c.0.s8 %v4627
    %v4629 = vperm.slane %v4623, %v4628
    %v4631 = vunpack.c.l.s4 1983009808
    %v4632 = vunpack.c.0.s8 %v4631
    %v4633 = vperm.slane %v4625, %v4632
    %v4634 = vrot.slane %v4611, 4
    %v4635 = vsel %vm635, %v4634, %v4603
    %v4636 = vrot.slane %v4603, 4
    %v4637 = vsel %vm635, %v4611, %v4636
    %v4639 = vunpack.c.l.s4 1983009808
    %v4640 = vunpack.c.0.s8 %v4639
    %v4641 = vperm.slane %v4635, %v4640
    %v4643 = vunpack.c.l.s4 1983009808
    %v4644 = vunpack.c.0.s8 %v4643
    %v4645 = vperm.slane %v4637, %v4644
    %v4646 = vrot.slane %v4641, 4
    %v4647 = vsel %vm635, %v4646, %v4629
    %v4648 = vrot.slane %v4629, 4
    %v4649 = vsel %vm635, %v4641, %v4648
    %v4651 = vunpack.c.l.s4 1934713408
    %v4652 = vunpack.c.0.s8 %v4651
    %v4653 = vperm.slane %v4647, %v4652
    %v4655 = vunpack.c.l.s4 1934713408
    %v4656 = vunpack.c.0.s8 %v4655
    %v4657 = vperm.slane %v4649, %v4656
    %v4658 = vrot.slane %v4645, 4
    %v4659 = vsel %vm635, %v4658, %v4633
    %v4660 = vrot.slane %v4633, 4
    %v4661 = vsel %vm635, %v4645, %v4660
    %v4663 = vunpack.c.l.s4 1934713408
    %v4664 = vunpack.c.0.s8 %v4663
    %v4665 = vperm.slane %v4659, %v4664
    %v4667 = vunpack.c.l.s4 1934713408
    %v4668 = vunpack.c.0.s8 %v4667
    %v4669 = vperm.slane %v4661, %v4668
    %v4670 = vrot.slane %v4653, 4
    %v4671 = vsel %vm635, 0.0, %v4670
    %v4672 = vrot.slane %v4657, 4
    %v4673 = vsel %vm635, 0.0, %v4672
    %v4674 = vrot.slane %v4665, 4
    %v4675 = vsel %vm635, 0.0, %v4674
    %v4676 = vrot.slane %v4669, 4
    %v4677 = vsel %vm635, 0.0, %v4676
    %v4678 = vrot.slane %v4609, 4
    %v4679 = vsel %vm635, %v4678, %v4601
    %v4680 = vrot.slane %v4601, 4
    %v4681 = vsel %vm635, %v4609, %v4680
    %v4683 = vunpack.c.l.s4 1983009808
    %v4684 = vunpack.c.0.s8 %v4683
    %v4685 = vperm.slane %v4679, %v4684
    %v4687 = vunpack.c.l.s4 1983009808
    %v4688 = vunpack.c.0.s8 %v4687
    %v4689 = vperm.slane %v4681, %v4688
    %v4690 = vrot.slane %v4613, 4
    %v4691 = vsel %vm635, %v4690, %v4605
    %v4692 = vrot.slane %v4605, 4
    %v4693 = vsel %vm635, %v4613, %v4692
    %v4695 = vunpack.c.l.s4 1983009808
    %v4696 = vunpack.c.0.s8 %v4695
    %v4697 = vperm.slane %v4691, %v4696
    %v4699 = vunpack.c.l.s4 1983009808
    %v4700 = vunpack.c.0.s8 %v4699
    %v4701 = vperm.slane %v4693, %v4700
    %v4702 = vrot.slane %v4697, 4
    %v4703 = vsel %vm635, %v4702, %v4685
    %v4704 = vrot.slane %v4685, 4
    %v4705 = vsel %vm635, %v4697, %v4704
    %v4707 = vunpack.c.l.s4 1934713408
    %v4708 = vunpack.c.0.s8 %v4707
    %v4709 = vperm.slane %v4703, %v4708
    %v4711 = vunpack.c.l.s4 1934713408
    %v4712 = vunpack.c.0.s8 %v4711
    %v4713 = vperm.slane %v4705, %v4712
    %v4714 = vrot.slane %v4701, 4
    %v4715 = vsel %vm635, %v4714, %v4689
    %v4716 = vrot.slane %v4689, 4
    %v4717 = vsel %vm635, %v4701, %v4716
    %v4719 = vunpack.c.l.s4 1934713408
    %v4720 = vunpack.c.0.s8 %v4719
    %v4721 = vperm.slane %v4715, %v4720
    %v4723 = vunpack.c.l.s4 1934713408
    %v4724 = vunpack.c.0.s8 %v4723
    %v4725 = vperm.slane %v4717, %v4724
    %v4726 = vrot.slane %v4709, 4
    %v4727 = vsel %vm635, 0.0, %v4726
    %v4728 = vrot.slane %v4713, 4
    %v4729 = vsel %vm635, 0.0, %v4728
    %v4730 = vrot.slane %v4721, 4
    %v4731 = vsel %vm635, 0.0, %v4730
    %v4732 = vrot.slane %v4725, 4
    %v4733 = vsel %vm635, 0.0, %v4732
    %v4734 = vsel %vm635, %v4672, %v4653
    %v4736 = vunpack.c.l.s4 1983009808
    %v4737 = vunpack.c.0.s8 %v4736
    %v4738 = vperm.slane %v4734, %v4737
    %v4739 = vrot.slane %v4673, 4
    %v4740 = vsel %vm635, %v4739, %v4671
    %v4742 = vunpack.c.l.s4 1983009808
    %v4743 = vunpack.c.0.s8 %v4742
    %v4744 = vperm.slane %v4740, %v4743
    %v4745 = vsel %vm635, %v4676, %v4665
    %v4747 = vunpack.c.l.s4 1983009808
    %v4748 = vunpack.c.0.s8 %v4747
    %v4749 = vperm.slane %v4745, %v4748
    %v4750 = vrot.slane %v4677, 4
    %v4751 = vsel %vm635, %v4750, %v4675
    %v4753 = vunpack.c.l.s4 1983009808
    %v4754 = vunpack.c.0.s8 %v4753
    %v4755 = vperm.slane %v4751, %v4754
    %v4756 = vrot.slane %v4744, 4
    %v4757 = vsel %vm635, %v4756, %v4738
    %v4758 = vrot.slane %v4738, 4
    %v4759 = vsel %vm635, %v4744, %v4758
    %v4761 = vunpack.c.l.s4 1934713408
    %v4762 = vunpack.c.0.s8 %v4761
    %v4763 = vperm.slane %v4757, %v4762
    %v4765 = vunpack.c.l.s4 1934713408
    %v4766 = vunpack.c.0.s8 %v4765
    %v4767 = vperm.slane %v4759, %v4766
    %v4768 = vrot.slane %v4755, 4
    %v4769 = vsel %vm635, %v4768, %v4749
    %v4770 = vrot.slane %v4749, 4
    %v4771 = vsel %vm635, %v4755, %v4770
    %v4773 = vunpack.c.l.s4 1934713408
    %v4774 = vunpack.c.0.s8 %v4773
    %v4775 = vperm.slane %v4769, %v4774
    %v4777 = vunpack.c.l.s4 1934713408
    %v4778 = vunpack.c.0.s8 %v4777
    %v4779 = vperm.slane %v4771, %v4778
    %v4780 = vrot.slane %v4775, 4
    %v4781 = vsel %vm635, %v4780, %v4763
    %v4782 = vrot.slane %v4763, 4
    %v4783 = vsel %vm635, %v4775, %v4782
    %v4784 = vrot.slane %v4779, 4
    %v4785 = vsel %vm635, %v4784, %v4767
    %v4786 = vrot.slane %v4767, 4
    %v4787 = vsel %vm635, %v4779, %v4786
    %v4788 = vsel %vm635, %v4728, %v4709
    %v4790 = vunpack.c.l.s4 1983009808
    %v4791 = vunpack.c.0.s8 %v4790
    %v4792 = vperm.slane %v4788, %v4791
    %v4793 = vrot.slane %v4729, 4
    %v4794 = vsel %vm635, %v4793, %v4727
    %v4796 = vunpack.c.l.s4 1983009808
    %v4797 = vunpack.c.0.s8 %v4796
    %v4798 = vperm.slane %v4794, %v4797
    %v4799 = vsel %vm635, %v4732, %v4721
    %v4801 = vunpack.c.l.s4 1983009808
    %v4802 = vunpack.c.0.s8 %v4801
    %v4803 = vperm.slane %v4799, %v4802
    %v4804 = vrot.slane %v4733, 4
    %v4805 = vsel %vm635, %v4804, %v4731
    %v4807 = vunpack.c.l.s4 1983009808
    %v4808 = vunpack.c.0.s8 %v4807
    %v4809 = vperm.slane %v4805, %v4808
    %v4810 = vrot.slane %v4798, 4
    %v4811 = vsel %vm635, %v4810, %v4792
    %v4812 = vrot.slane %v4792, 4
    %v4813 = vsel %vm635, %v4798, %v4812
    %v4815 = vunpack.c.l.s4 1934713408
    %v4816 = vunpack.c.0.s8 %v4815
    %v4817 = vperm.slane %v4811, %v4816
    %v4819 = vunpack.c.l.s4 1934713408
    %v4820 = vunpack.c.0.s8 %v4819
    %v4821 = vperm.slane %v4813, %v4820
    %v4822 = vrot.slane %v4809, 4
    %v4823 = vsel %vm635, %v4822, %v4803
    %v4824 = vrot.slane %v4803, 4
    %v4825 = vsel %vm635, %v4809, %v4824
    %v4827 = vunpack.c.l.s4 1934713408
    %v4828 = vunpack.c.0.s8 %v4827
    %v4829 = vperm.slane %v4823, %v4828
    %v4831 = vunpack.c.l.s4 1934713408
    %v4832 = vunpack.c.0.s8 %v4831
    %v4833 = vperm.slane %v4825, %v4832
    %v4834 = vrot.slane %v4829, 4
    %v4835 = vsel %vm635, %v4834, %v4817
    %v4836 = vrot.slane %v4817, 4
    %v4837 = vsel %vm635, %v4829, %v4836
    %v4838 = vrot.slane %v4833, 4
    %v4839 = vsel %vm635, %v4838, %v4821
    %v4840 = vrot.slane %v4821, 4
    %v4841 = vsel %vm635, %v4833, %v4840
    %v4843 = vsel %vm1343, %v4293, 0
    %v4846 = vsel %vm1343, %v4537, 0
    %4848 = vmatpush.xpose.msra.mxu0 0.0
    %4849 = vmatpush.xpose.msra.mxu0 0.0
    %4850 = vmatpush.xpose.msra.mxu0 0.0
    %4851 = vmatpush.xpose.msra.mxu0 0.0
    %4852 = vmatpush.xpose.msra.mxu0 0.0
    %4853 = vmatpush.xpose.msra.mxu0 0.0
    %4854 = vmatpush.xpose.msra.mxu0 0.0
    %4855 = vmatpush.xpose.msra.mxu0 0.0
    %4856 = vmatpush.xpose.msra.mxu0 0.0
    %4857 = vmatpush.xpose.msra.mxu0 0.0
    %4858 = vmatpush.xpose.msra.mxu0 0.0
    %4859 = vmatpush.xpose.msra.mxu0 0.0
    %4860 = vmatpush.xpose.msra.mxu0 0.0
    %4861 = vmatpush.xpose.msra.mxu0 0.0
    %4862 = vmatpush.xpose.msra.mxu0 0.0
    %4863 = vmatpush.xpose.msra.mxu0 %v4846
    %4864 = vmatmul.f32.gmra.mxu0 %v4843
    %v4865 = vpop.f32.mrf.mxu0
    %v4866 = vadd.f32 0.0, %v4865
    %4867 = vdwg.mxu0
    %v4869 = vsel %vm1343, %v4295, 0
    %v4872 = vsel %vm1343, %v4539, 0
    %4874 = vmatpush.xpose.msra.mxu0 0.0
    %4875 = vmatpush.xpose.msra.mxu0 0.0
    %4876 = vmatpush.xpose.msra.mxu0 0.0
    %4877 = vmatpush.xpose.msra.mxu0 0.0
    %4878 = vmatpush.xpose.msra.mxu0 0.0
    %4879 = vmatpush.xpose.msra.mxu0 0.0
    %4880 = vmatpush.xpose.msra.mxu0 0.0
    %4881 = vmatpush.xpose.msra.mxu0 0.0
    %4882 = vmatpush.xpose.msra.mxu0 0.0
    %4883 = vmatpush.xpose.msra.mxu0 0.0
    %4884 = vmatpush.xpose.msra.mxu0 0.0
    %4885 = vmatpush.xpose.msra.mxu0 0.0
    %4886 = vmatpush.xpose.msra.mxu0 0.0
    %4887 = vmatpush.xpose.msra.mxu0 0.0
    %4888 = vmatpush.xpose.msra.mxu0 0.0
    %4889 = vmatpush.xpose.msra.mxu0 %v4872
    %4890 = vmatmul.f32.gmra.mxu0 %v4869
    %v4891 = vpop.f32.mrf.mxu0
    %v4892 = vadd.f32 0.0, %v4891
    %4893 = vdwg.mxu0
    %v4895 = vsel %vm1343, %v4297, 0
    %v4898 = vsel %vm1343, %v4541, 0
    %4900 = vmatpush.xpose.msra.mxu0 0.0
    %4901 = vmatpush.xpose.msra.mxu0 0.0
    %4902 = vmatpush.xpose.msra.mxu0 0.0
    %4903 = vmatpush.xpose.msra.mxu0 0.0
    %4904 = vmatpush.xpose.msra.mxu0 0.0
    %4905 = vmatpush.xpose.msra.mxu0 0.0
    %4906 = vmatpush.xpose.msra.mxu0 0.0
    %4907 = vmatpush.xpose.msra.mxu0 0.0
    %4908 = vmatpush.xpose.msra.mxu0 0.0
    %4909 = vmatpush.xpose.msra.mxu0 0.0
    %4910 = vmatpush.xpose.msra.mxu0 0.0
    %4911 = vmatpush.xpose.msra.mxu0 0.0
    %4912 = vmatpush.xpose.msra.mxu0 0.0
    %4913 = vmatpush.xpose.msra.mxu0 0.0
    %4914 = vmatpush.xpose.msra.mxu0 0.0
    %4915 = vmatpush.xpose.msra.mxu0 %v4898
    %4916 = vmatmul.f32.gmra.mxu0 %v4895
    %v4917 = vpop.f32.mrf.mxu0
    %v4918 = vadd.f32 0.0, %v4917
    %4919 = vdwg.mxu0
    %v4921 = vsel %vm1343, %v4299, 0
    %v4924 = vsel %vm1343, %v4543, 0
    %4926 = vmatpush.xpose.msra.mxu0 0.0
    %4927 = vmatpush.xpose.msra.mxu0 0.0
    %4928 = vmatpush.xpose.msra.mxu0 0.0
    %4929 = vmatpush.xpose.msra.mxu0 0.0
    %4930 = vmatpush.xpose.msra.mxu0 0.0
    %4931 = vmatpush.xpose.msra.mxu0 0.0
    %4932 = vmatpush.xpose.msra.mxu0 0.0
    %4933 = vmatpush.xpose.msra.mxu0 0.0
    %4934 = vmatpush.xpose.msra.mxu0 0.0
    %4935 = vmatpush.xpose.msra.mxu0 0.0
    %4936 = vmatpush.xpose.msra.mxu0 0.0
    %4937 = vmatpush.xpose.msra.mxu0 0.0
    %4938 = vmatpush.xpose.msra.mxu0 0.0
    %4939 = vmatpush.xpose.msra.mxu0 0.0
    %4940 = vmatpush.xpose.msra.mxu0 0.0
    %4941 = vmatpush.xpose.msra.mxu0 %v4924
    %4942 = vmatmul.f32.gmra.mxu0 %v4921
    %v4943 = vpop.f32.mrf.mxu0
    %v4944 = vadd.f32 0.0, %v4943
    %4945 = vdwg.mxu0
    %v4947 = vsel %vm1343, %v4347, 0
    %v4950 = vsel %vm1343, %v4591, 0
    %4952 = vmatpush.xpose.msra.mxu0 0.0
    %4953 = vmatpush.xpose.msra.mxu0 0.0
    %4954 = vmatpush.xpose.msra.mxu0 0.0
    %4955 = vmatpush.xpose.msra.mxu0 0.0
    %4956 = vmatpush.xpose.msra.mxu0 0.0
    %4957 = vmatpush.xpose.msra.mxu0 0.0
    %4958 = vmatpush.xpose.msra.mxu0 0.0
    %4959 = vmatpush.xpose.msra.mxu0 0.0
    %4960 = vmatpush.xpose.msra.mxu0 0.0
    %4961 = vmatpush.xpose.msra.mxu0 0.0
    %4962 = vmatpush.xpose.msra.mxu0 0.0
    %4963 = vmatpush.xpose.msra.mxu0 0.0
    %4964 = vmatpush.xpose.msra.mxu0 0.0
    %4965 = vmatpush.xpose.msra.mxu0 0.0
    %4966 = vmatpush.xpose.msra.mxu0 0.0
    %4967 = vmatpush.xpose.msra.mxu0 %v4950
    %4968 = vmatmul.f32.gmra.mxu0 %v4947
    %v4969 = vpop.f32.mrf.mxu0
    %v4970 = vadd.f32 0.0, %v4969
    %4971 = vdwg.mxu0
    %v4973 = vsel %vm1343, %v4349, 0
    %v4976 = vsel %vm1343, %v4593, 0
    %4978 = vmatpush.xpose.msra.mxu0 0.0
    %4979 = vmatpush.xpose.msra.mxu0 0.0
    %4980 = vmatpush.xpose.msra.mxu0 0.0
    %4981 = vmatpush.xpose.msra.mxu0 0.0
    %4982 = vmatpush.xpose.msra.mxu0 0.0
    %4983 = vmatpush.xpose.msra.mxu0 0.0
    %4984 = vmatpush.xpose.msra.mxu0 0.0
    %4985 = vmatpush.xpose.msra.mxu0 0.0
    %4986 = vmatpush.xpose.msra.mxu0 0.0
    %4987 = vmatpush.xpose.msra.mxu0 0.0
    %4988 = vmatpush.xpose.msra.mxu0 0.0
    %4989 = vmatpush.xpose.msra.mxu0 0.0
    %4990 = vmatpush.xpose.msra.mxu0 0.0
    %4991 = vmatpush.xpose.msra.mxu0 0.0
    %4992 = vmatpush.xpose.msra.mxu0 0.0
    %4993 = vmatpush.xpose.msra.mxu0 %v4976
    %4994 = vmatmul.f32.gmra.mxu0 %v4973
    %v4995 = vpop.f32.mrf.mxu0
    %v4996 = vadd.f32 0.0, %v4995
    %4997 = vdwg.mxu0
    %v4999 = vsel %vm1343, %v4351, 0
    %v5002 = vsel %vm1343, %v4595, 0
    %5004 = vmatpush.xpose.msra.mxu0 0.0
    %5005 = vmatpush.xpose.msra.mxu0 0.0
    %5006 = vmatpush.xpose.msra.mxu0 0.0
    %5007 = vmatpush.xpose.msra.mxu0 0.0
    %5008 = vmatpush.xpose.msra.mxu0 0.0
    %5009 = vmatpush.xpose.msra.mxu0 0.0
    %5010 = vmatpush.xpose.msra.mxu0 0.0
    %5011 = vmatpush.xpose.msra.mxu0 0.0
    %5012 = vmatpush.xpose.msra.mxu0 0.0
    %5013 = vmatpush.xpose.msra.mxu0 0.0
    %5014 = vmatpush.xpose.msra.mxu0 0.0
    %5015 = vmatpush.xpose.msra.mxu0 0.0
    %5016 = vmatpush.xpose.msra.mxu0 0.0
    %5017 = vmatpush.xpose.msra.mxu0 0.0
    %5018 = vmatpush.xpose.msra.mxu0 0.0
    %5019 = vmatpush.xpose.msra.mxu0 %v5002
    %5020 = vmatmul.f32.gmra.mxu0 %v4999
    %v5021 = vpop.f32.mrf.mxu0
    %v5022 = vadd.f32 0.0, %v5021
    %5023 = vdwg.mxu0
    %v5025 = vsel %vm1343, %v4353, 0
    %v5028 = vsel %vm1343, %v4597, 0
    %5030 = vmatpush.xpose.msra.mxu0 0.0
    %5031 = vmatpush.xpose.msra.mxu0 0.0
    %5032 = vmatpush.xpose.msra.mxu0 0.0
    %5033 = vmatpush.xpose.msra.mxu0 0.0
    %5034 = vmatpush.xpose.msra.mxu0 0.0
    %5035 = vmatpush.xpose.msra.mxu0 0.0
    %5036 = vmatpush.xpose.msra.mxu0 0.0
    %5037 = vmatpush.xpose.msra.mxu0 0.0
    %5038 = vmatpush.xpose.msra.mxu0 0.0
    %5039 = vmatpush.xpose.msra.mxu0 0.0
    %5040 = vmatpush.xpose.msra.mxu0 0.0
    %5041 = vmatpush.xpose.msra.mxu0 0.0
    %5042 = vmatpush.xpose.msra.mxu0 0.0
    %5043 = vmatpush.xpose.msra.mxu0 0.0
    %5044 = vmatpush.xpose.msra.mxu0 0.0
    %5045 = vmatpush.xpose.msra.mxu0 %v5028
    %5046 = vmatmul.f32.gmra.mxu0 %v5025
    %v5047 = vpop.f32.mrf.mxu0
    %v5048 = vadd.f32 0.0, %v5047
    %5049 = vdwg.mxu0
    %v5050 = vmul.f32 %v4866, 0.35355338
    %v5051 = vmul.f32 %v4892, 0.35355338
    %v5052 = vmul.f32 %v4918, 0.35355338
    %v5053 = vmul.f32 %v4944, 0.35355338
    %v5054 = vmul.f32 %v4970, 0.35355338
    %v5055 = vmul.f32 %v4996, 0.35355338
    %v5056 = vmul.f32 %v5022, 0.35355338
    %v5057 = vmul.f32 %v5048, 0.35355338
    %v5058 = vsel %vm1343, %v5050, -inf
    %5059 = vmax.xlane.f32.xlu0 %v5058
    %v5060 = vpop.xlane.xlu0 %5059
    %v5061 = vsel %vm1343, %v5051, -inf
    %5062 = vmax.xlane.f32.xlu0 %v5061
    %v5063 = vpop.xlane.xlu0 %5062
    %v5064 = vsel %vm1343, %v5052, -inf
    %5065 = vmax.xlane.f32.xlu0 %v5064
    %v5066 = vpop.xlane.xlu0 %5065
    %v5067 = vsel %vm1343, %v5053, -inf
    %5068 = vmax.xlane.f32.xlu0 %v5067
    %v5069 = vpop.xlane.xlu0 %5068
    %v5070 = vsel %vm1343, %v5054, -inf
    %5071 = vmax.xlane.f32.xlu0 %v5070
    %v5072 = vpop.xlane.xlu0 %5071
    %v5073 = vsel %vm1343, %v5055, -inf
    %5074 = vmax.xlane.f32.xlu0 %v5073
    %v5075 = vpop.xlane.xlu0 %5074
    %v5076 = vsel %vm1343, %v5056, -inf
    %5077 = vmax.xlane.f32.xlu0 %v5076
    %v5078 = vpop.xlane.xlu0 %5077
    %v5079 = vsel %vm1343, %v5057, -inf
    %5080 = vmax.xlane.f32.xlu0 %v5079
    %v5081 = vpop.xlane.xlu0 %5080
    %v5082 = vsub.f32 %v5050, %v5060
    %v5083 = vsub.f32 %v5051, %v5063
    %v5084 = vsub.f32 %v5052, %v5066
    %v5085 = vsub.f32 %v5053, %v5069
    %v5086 = vsub.f32 %v5054, %v5072
    %v5087 = vsub.f32 %v5055, %v5075
    %v5088 = vsub.f32 %v5056, %v5078
    %v5089 = vsub.f32 %v5057, %v5081
    %v5090 = vmul.f32 %v5082, 1.442695
    %v5091 = vpow.pop %v5090
    %v5092 = vmul.f32 %v5083, 1.442695
    %v5093 = vpow.pop %v5092
    %v5094 = vmul.f32 %v5084, 1.442695
    %v5095 = vpow.pop %v5094
    %v5096 = vmul.f32 %v5085, 1.442695
    %v5097 = vpow.pop %v5096
    %v5098 = vmul.f32 %v5086, 1.442695
    %v5099 = vpow.pop %v5098
    %v5100 = vmul.f32 %v5087, 1.442695
    %v5101 = vpow.pop %v5100
    %v5102 = vmul.f32 %v5088, 1.442695
    %v5103 = vpow.pop %v5102
    %v5104 = vmul.f32 %v5089, 1.442695
    %v5105 = vpow.pop %v5104
    %v5106 = vsel %vm1343, %v5091, 0.0
    %5107 = vadd.xlane.f32.xlu0 %v5106
    %v5108 = vpop.xlane.xlu0 %5107
    %v5109 = vsel %vm1343, %v5093, 0.0
    %5110 = vadd.xlane.f32.xlu0 %v5109
    %v5111 = vpop.xlane.xlu0 %5110
    %v5112 = vsel %vm1343, %v5095, 0.0
    %5113 = vadd.xlane.f32.xlu0 %v5112
    %v5114 = vpop.xlane.xlu0 %5113
    %v5115 = vsel %vm1343, %v5097, 0.0
    %5116 = vadd.xlane.f32.xlu0 %v5115
    %v5117 = vpop.xlane.xlu0 %5116
    %v5118 = vsel %vm1343, %v5099, 0.0
    %5119 = vadd.xlane.f32.xlu0 %v5118
    %v5120 = vpop.xlane.xlu0 %5119
    %v5121 = vsel %vm1343, %v5101, 0.0
    %5122 = vadd.xlane.f32.xlu0 %v5121
    %v5123 = vpop.xlane.xlu0 %5122
    %v5124 = vsel %vm1343, %v5103, 0.0
    %5125 = vadd.xlane.f32.xlu0 %v5124
    %v5126 = vpop.xlane.xlu0 %5125
    %v5127 = vsel %vm1343, %v5105, 0.0
    %5128 = vadd.xlane.f32.xlu0 %v5127
    %v5129 = vpop.xlane.xlu0 %5128
    %v5130 = vrcp.pop %v5108
    %v5131 = vrcp.pop %v5111
    %v5132 = vrcp.pop %v5114
    %v5133 = vrcp.pop %v5117
    %v5134 = vrcp.pop %v5120
    %v5135 = vrcp.pop %v5123
    %v5136 = vrcp.pop %v5126
    %v5137 = vrcp.pop %v5129
    %v5138 = vmul.f32 %v5091, %v5130
    %v5139 = vmul.f32 %v5093, %v5131
    %v5140 = vmul.f32 %v5095, %v5132
    %v5141 = vmul.f32 %v5097, %v5133
    %v5142 = vmul.f32 %v5099, %v5134
    %v5143 = vmul.f32 %v5101, %v5135
    %v5144 = vmul.f32 %v5103, %v5136
    %v5145 = vmul.f32 %v5105, %v5137
    %v5147 = vsel %vm1343, %v5138, 0
    %5149 = vmatpush.msra.mxu0 0.0
    %5150 = vmatpush.msra.mxu0 0.0
    %5151 = vmatpush.msra.mxu0 0.0
    %5152 = vmatpush.msra.mxu0 0.0
    %5153 = vmatpush.msra.mxu0 0.0
    %5154 = vmatpush.msra.mxu0 0.0
    %5155 = vmatpush.msra.mxu0 0.0
    %5156 = vmatpush.msra.mxu0 0.0
    %5157 = vmatpush.msra.mxu0 0.0
    %5158 = vmatpush.msra.mxu0 0.0
    %5159 = vmatpush.msra.mxu0 0.0
    %5160 = vmatpush.msra.mxu0 0.0
    %5161 = vmatpush.msra.mxu0 0.0
    %5162 = vmatpush.msra.mxu0 0.0
    %5163 = vmatpush.msra.mxu0 0.0
    %5164 = vmatpush.msra.mxu0 %v4781
    %5165 = vmatmul.f32.gmra.mxu0 %v5147
    %v5166 = vpop.f32.mrf.mxu0
    %v5167 = vadd.f32 0.0, %v5166
    %5168 = vdwg.mxu0
    %v5170 = vsel %vm1343, %v5139, 0
    %5172 = vmatpush.msra.mxu0 0.0
    %5173 = vmatpush.msra.mxu0 0.0
    %5174 = vmatpush.msra.mxu0 0.0
    %5175 = vmatpush.msra.mxu0 0.0
    %5176 = vmatpush.msra.mxu0 0.0
    %5177 = vmatpush.msra.mxu0 0.0
    %5178 = vmatpush.msra.mxu0 0.0
    %5179 = vmatpush.msra.mxu0 0.0
    %5180 = vmatpush.msra.mxu0 0.0
    %5181 = vmatpush.msra.mxu0 0.0
    %5182 = vmatpush.msra.mxu0 0.0
    %5183 = vmatpush.msra.mxu0 0.0
    %5184 = vmatpush.msra.mxu0 0.0
    %5185 = vmatpush.msra.mxu0 0.0
    %5186 = vmatpush.msra.mxu0 0.0
    %5187 = vmatpush.msra.mxu0 %v4783
    %5188 = vmatmul.f32.gmra.mxu0 %v5170
    %v5189 = vpop.f32.mrf.mxu0
    %v5190 = vadd.f32 0.0, %v5189
    %5191 = vdwg.mxu0
    %v5193 = vsel %vm1343, %v5140, 0
    %5195 = vmatpush.msra.mxu0 0.0
    %5196 = vmatpush.msra.mxu0 0.0
    %5197 = vmatpush.msra.mxu0 0.0
    %5198 = vmatpush.msra.mxu0 0.0
    %5199 = vmatpush.msra.mxu0 0.0
    %5200 = vmatpush.msra.mxu0 0.0
    %5201 = vmatpush.msra.mxu0 0.0
    %5202 = vmatpush.msra.mxu0 0.0
    %5203 = vmatpush.msra.mxu0 0.0
    %5204 = vmatpush.msra.mxu0 0.0
    %5205 = vmatpush.msra.mxu0 0.0
    %5206 = vmatpush.msra.mxu0 0.0
    %5207 = vmatpush.msra.mxu0 0.0
    %5208 = vmatpush.msra.mxu0 0.0
    %5209 = vmatpush.msra.mxu0 0.0
    %5210 = vmatpush.msra.mxu0 %v4785
    %5211 = vmatmul.f32.gmra.mxu0 %v5193
    %v5212 = vpop.f32.mrf.mxu0
    %v5213 = vadd.f32 0.0, %v5212
    %5214 = vdwg.mxu0
    %v5216 = vsel %vm1343, %v5141, 0
    %5218 = vmatpush.msra.mxu0 0.0
    %5219 = vmatpush.msra.mxu0 0.0
    %5220 = vmatpush.msra.mxu0 0.0
    %5221 = vmatpush.msra.mxu0 0.0
    %5222 = vmatpush.msra.mxu0 0.0
    %5223 = vmatpush.msra.mxu0 0.0
    %5224 = vmatpush.msra.mxu0 0.0
    %5225 = vmatpush.msra.mxu0 0.0
    %5226 = vmatpush.msra.mxu0 0.0
    %5227 = vmatpush.msra.mxu0 0.0
    %5228 = vmatpush.msra.mxu0 0.0
    %5229 = vmatpush.msra.mxu0 0.0
    %5230 = vmatpush.msra.mxu0 0.0
    %5231 = vmatpush.msra.mxu0 0.0
    %5232 = vmatpush.msra.mxu0 0.0
    %5233 = vmatpush.msra.mxu0 %v4787
    %5234 = vmatmul.f32.gmra.mxu0 %v5216
    %v5235 = vpop.f32.mrf.mxu0
    %v5236 = vadd.f32 0.0, %v5235
    %5237 = vdwg.mxu0
    %v5239 = vsel %vm1343, %v5142, 0
    %5241 = vmatpush.msra.mxu0 0.0
    %5242 = vmatpush.msra.mxu0 0.0
    %5243 = vmatpush.msra.mxu0 0.0
    %5244 = vmatpush.msra.mxu0 0.0
    %5245 = vmatpush.msra.mxu0 0.0
    %5246 = vmatpush.msra.mxu0 0.0
    %5247 = vmatpush.msra.mxu0 0.0
    %5248 = vmatpush.msra.mxu0 0.0
    %5249 = vmatpush.msra.mxu0 0.0
    %5250 = vmatpush.msra.mxu0 0.0
    %5251 = vmatpush.msra.mxu0 0.0
    %5252 = vmatpush.msra.mxu0 0.0
    %5253 = vmatpush.msra.mxu0 0.0
    %5254 = vmatpush.msra.mxu0 0.0
    %5255 = vmatpush.msra.mxu0 0.0
    %5256 = vmatpush.msra.mxu0 %v4835
    %5257 = vmatmul.f32.gmra.mxu0 %v5239
    %v5258 = vpop.f32.mrf.mxu0
    %v5259 = vadd.f32 0.0, %v5258
    %5260 = vdwg.mxu0
    %v5262 = vsel %vm1343, %v5143, 0
    %5264 = vmatpush.msra.mxu0 0.0
    %5265 = vmatpush.msra.mxu0 0.0
    %5266 = vmatpush.msra.mxu0 0.0
    %5267 = vmatpush.msra.mxu0 0.0
    %5268 = vmatpush.msra.mxu0 0.0
    %5269 = vmatpush.msra.mxu0 0.0
    %5270 = vmatpush.msra.mxu0 0.0
    %5271 = vmatpush.msra.mxu0 0.0
    %5272 = vmatpush.msra.mxu0 0.0
    %5273 = vmatpush.msra.mxu0 0.0
    %5274 = vmatpush.msra.mxu0 0.0
    %5275 = vmatpush.msra.mxu0 0.0
    %5276 = vmatpush.msra.mxu0 0.0
    %5277 = vmatpush.msra.mxu0 0.0
    %5278 = vmatpush.msra.mxu0 0.0
    %5279 = vmatpush.msra.mxu0 %v4837
    %5280 = vmatmul.f32.gmra.mxu0 %v5262
    %v5281 = vpop.f32.mrf.mxu0
    %v5282 = vadd.f32 0.0, %v5281
    %5283 = vdwg.mxu0
    %v5285 = vsel %vm1343, %v5144, 0
    %5287 = vmatpush.msra.mxu0 0.0
    %5288 = vmatpush.msra.mxu0 0.0
    %5289 = vmatpush.msra.mxu0 0.0
    %5290 = vmatpush.msra.mxu0 0.0
    %5291 = vmatpush.msra.mxu0 0.0
    %5292 = vmatpush.msra.mxu0 0.0
    %5293 = vmatpush.msra.mxu0 0.0
    %5294 = vmatpush.msra.mxu0 0.0
    %5295 = vmatpush.msra.mxu0 0.0
    %5296 = vmatpush.msra.mxu0 0.0
    %5297 = vmatpush.msra.mxu0 0.0
    %5298 = vmatpush.msra.mxu0 0.0
    %5299 = vmatpush.msra.mxu0 0.0
    %5300 = vmatpush.msra.mxu0 0.0
    %5301 = vmatpush.msra.mxu0 0.0
    %5302 = vmatpush.msra.mxu0 %v4839
    %5303 = vmatmul.f32.gmra.mxu0 %v5285
    %v5304 = vpop.f32.mrf.mxu0
    %v5305 = vadd.f32 0.0, %v5304
    %5306 = vdwg.mxu0
    %v5308 = vsel %vm1343, %v5145, 0
    %5310 = vmatpush.msra.mxu0 0.0
    %5311 = vmatpush.msra.mxu0 0.0
    %5312 = vmatpush.msra.mxu0 0.0
    %5313 = vmatpush.msra.mxu0 0.0
    %5314 = vmatpush.msra.mxu0 0.0
    %5315 = vmatpush.msra.mxu0 0.0
    %5316 = vmatpush.msra.mxu0 0.0
    %5317 = vmatpush.msra.mxu0 0.0
    %5318 = vmatpush.msra.mxu0 0.0
    %5319 = vmatpush.msra.mxu0 0.0
    %5320 = vmatpush.msra.mxu0 0.0
    %5321 = vmatpush.msra.mxu0 0.0
    %5322 = vmatpush.msra.mxu0 0.0
    %5323 = vmatpush.msra.mxu0 0.0
    %5324 = vmatpush.msra.mxu0 0.0
    %5325 = vmatpush.msra.mxu0 %v4841
    %5326 = vmatmul.f32.gmra.mxu0 %v5308
    %v5327 = vpop.f32.mrf.mxu0
    %v5328 = vadd.f32 0.0, %v5327
    %5329 = vdwg.mxu0
    %v5330 = vrot.slane %v5213, 4
    %v5331 = vsel %vm635, %v5330, %v5167
    %v5332 = vrot.slane %v5167, 4
    %v5333 = vsel %vm635, %v5213, %v5332
    %v5335 = vunpack.c.l.s4 1983009808
    %v5336 = vunpack.c.0.s8 %v5335
    %v5337 = vperm.slane %v5331, %v5336
    %v5339 = vunpack.c.l.s4 1983009808
    %v5340 = vunpack.c.0.s8 %v5339
    %v5341 = vperm.slane %v5333, %v5340
    %v5342 = vrot.slane %v5236, 4
    %v5343 = vsel %vm635, %v5342, %v5190
    %v5344 = vrot.slane %v5190, 4
    %v5345 = vsel %vm635, %v5236, %v5344
    %v5347 = vunpack.c.l.s4 1983009808
    %v5348 = vunpack.c.0.s8 %v5347
    %v5349 = vperm.slane %v5343, %v5348
    %v5351 = vunpack.c.l.s4 1983009808
    %v5352 = vunpack.c.0.s8 %v5351
    %v5353 = vperm.slane %v5345, %v5352
    %v5354 = vrot.slane %v5349, 4
    %v5355 = vsel %vm635, %v5354, %v5337
    %v5356 = vrot.slane %v5337, 4
    %v5357 = vsel %vm635, %v5349, %v5356
    %v5359 = vunpack.c.l.s4 1934713408
    %v5360 = vunpack.c.0.s8 %v5359
    %v5361 = vperm.slane %v5355, %v5360
    %v5363 = vunpack.c.l.s4 1934713408
    %v5364 = vunpack.c.0.s8 %v5363
    %v5365 = vperm.slane %v5357, %v5364
    %v5366 = vrot.slane %v5353, 4
    %v5367 = vsel %vm635, %v5366, %v5341
    %v5368 = vrot.slane %v5341, 4
    %v5369 = vsel %vm635, %v5353, %v5368
    %v5371 = vunpack.c.l.s4 1934713408
    %v5372 = vunpack.c.0.s8 %v5371
    %v5373 = vperm.slane %v5367, %v5372
    %v5375 = vunpack.c.l.s4 1934713408
    %v5376 = vunpack.c.0.s8 %v5375
    %v5377 = vperm.slane %v5369, %v5376
    %v5378 = vrot.slane %v5361, 4
    %v5379 = vsel %vm635, 0.0, %v5378
    %v5380 = vrot.slane %v5365, 4
    %v5381 = vsel %vm635, 0.0, %v5380
    %v5382 = vrot.slane %v5373, 4
    %v5383 = vsel %vm635, 0.0, %v5382
    %v5384 = vrot.slane %v5377, 4
    %v5385 = vsel %vm635, 0.0, %v5384
    %v5386 = vrot.slane %v5305, 4
    %v5387 = vsel %vm635, %v5386, %v5259
    %v5388 = vrot.slane %v5259, 4
    %v5389 = vsel %vm635, %v5305, %v5388
    %v5391 = vunpack.c.l.s4 1983009808
    %v5392 = vunpack.c.0.s8 %v5391
    %v5393 = vperm.slane %v5387, %v5392
    %v5395 = vunpack.c.l.s4 1983009808
    %v5396 = vunpack.c.0.s8 %v5395
    %v5397 = vperm.slane %v5389, %v5396
    %v5398 = vrot.slane %v5328, 4
    %v5399 = vsel %vm635, %v5398, %v5282
    %v5400 = vrot.slane %v5282, 4
    %v5401 = vsel %vm635, %v5328, %v5400
    %v5403 = vunpack.c.l.s4 1983009808
    %v5404 = vunpack.c.0.s8 %v5403
    %v5405 = vperm.slane %v5399, %v5404
    %v5407 = vunpack.c.l.s4 1983009808
    %v5408 = vunpack.c.0.s8 %v5407
    %v5409 = vperm.slane %v5401, %v5408
    %v5410 = vrot.slane %v5405, 4
    %v5411 = vsel %vm635, %v5410, %v5393
    %v5412 = vrot.slane %v5393, 4
    %v5413 = vsel %vm635, %v5405, %v5412
    %v5415 = vunpack.c.l.s4 1934713408
    %v5416 = vunpack.c.0.s8 %v5415
    %v5417 = vperm.slane %v5411, %v5416
    %v5419 = vunpack.c.l.s4 1934713408
    %v5420 = vunpack.c.0.s8 %v5419
    %v5421 = vperm.slane %v5413, %v5420
    %v5422 = vrot.slane %v5409, 4
    %v5423 = vsel %vm635, %v5422, %v5397
    %v5424 = vrot.slane %v5397, 4
    %v5425 = vsel %vm635, %v5409, %v5424
    %v5427 = vunpack.c.l.s4 1934713408
    %v5428 = vunpack.c.0.s8 %v5427
    %v5429 = vperm.slane %v5423, %v5428
    %v5431 = vunpack.c.l.s4 1934713408
    %v5432 = vunpack.c.0.s8 %v5431
    %v5433 = vperm.slane %v5425, %v5432
    %v5434 = vrot.slane %v5417, 4
    %v5435 = vsel %vm635, 0.0, %v5434
    %v5436 = vrot.slane %v5421, 4
    %v5437 = vsel %vm635, 0.0, %v5436
    %v5438 = vrot.slane %v5429, 4
    %v5439 = vsel %vm635, 0.0, %v5438
    %v5440 = vrot.slane %v5433, 4
    %v5441 = vsel %vm635, 0.0, %v5440
    %v5442 = vsel %vm635, %v5380, %v5361
    %v5444 = vunpack.c.l.s4 1983009808
    %v5445 = vunpack.c.0.s8 %v5444
    %v5446 = vperm.slane %v5442, %v5445
    %v5447 = vrot.slane %v5381, 4
    %v5448 = vsel %vm635, %v5447, %v5379
    %v5450 = vunpack.c.l.s4 1983009808
    %v5451 = vunpack.c.0.s8 %v5450
    %v5452 = vperm.slane %v5448, %v5451
    %v5453 = vsel %vm635, %v5384, %v5373
    %v5455 = vunpack.c.l.s4 1983009808
    %v5456 = vunpack.c.0.s8 %v5455
    %v5457 = vperm.slane %v5453, %v5456
    %v5458 = vrot.slane %v5385, 4
    %v5459 = vsel %vm635, %v5458, %v5383
    %v5461 = vunpack.c.l.s4 1983009808
    %v5462 = vunpack.c.0.s8 %v5461
    %v5463 = vperm.slane %v5459, %v5462
    %v5464 = vrot.slane %v5452, 4
    %v5465 = vsel %vm635, %v5464, %v5446
    %v5466 = vrot.slane %v5446, 4
    %v5467 = vsel %vm635, %v5452, %v5466
    %v5469 = vunpack.c.l.s4 1934713408
    %v5470 = vunpack.c.0.s8 %v5469
    %v5471 = vperm.slane %v5465, %v5470
    %v5473 = vunpack.c.l.s4 1934713408
    %v5474 = vunpack.c.0.s8 %v5473
    %v5475 = vperm.slane %v5467, %v5474
    %v5476 = vrot.slane %v5463, 4
    %v5477 = vsel %vm635, %v5476, %v5457
    %v5478 = vrot.slane %v5457, 4
    %v5479 = vsel %vm635, %v5463, %v5478
    %v5481 = vunpack.c.l.s4 1934713408
    %v5482 = vunpack.c.0.s8 %v5481
    %v5483 = vperm.slane %v5477, %v5482
    %v5485 = vunpack.c.l.s4 1934713408
    %v5486 = vunpack.c.0.s8 %v5485
    %v5487 = vperm.slane %v5479, %v5486
    %v5488 = vrot.slane %v5483, 4
    %v5489 = vsel %vm635, %v5488, %v5471
    %v5490 = vrot.slane %v5471, 4
    %v5491 = vsel %vm635, %v5483, %v5490
    %v5492 = vrot.slane %v5487, 4
    %v5493 = vsel %vm635, %v5492, %v5475
    %v5494 = vrot.slane %v5475, 4
    %v5495 = vsel %vm635, %v5487, %v5494
    %v5496 = vsel %vm635, %v5436, %v5417
    %v5498 = vunpack.c.l.s4 1983009808
    %v5499 = vunpack.c.0.s8 %v5498
    %v5500 = vperm.slane %v5496, %v5499
    %v5501 = vrot.slane %v5437, 4
    %v5502 = vsel %vm635, %v5501, %v5435
    %v5504 = vunpack.c.l.s4 1983009808
    %v5505 = vunpack.c.0.s8 %v5504
    %v5506 = vperm.slane %v5502, %v5505
    %v5507 = vsel %vm635, %v5440, %v5429
    %v5509 = vunpack.c.l.s4 1983009808
    %v5510 = vunpack.c.0.s8 %v5509
    %v5511 = vperm.slane %v5507, %v5510
    %v5512 = vrot.slane %v5441, 4
    %v5513 = vsel %vm635, %v5512, %v5439
    %v5515 = vunpack.c.l.s4 1983009808
    %v5516 = vunpack.c.0.s8 %v5515
    %v5517 = vperm.slane %v5513, %v5516
    %v5518 = vrot.slane %v5506, 4
    %v5519 = vsel %vm635, %v5518, %v5500
    %v5520 = vrot.slane %v5500, 4
    %v5521 = vsel %vm635, %v5506, %v5520
    %v5523 = vunpack.c.l.s4 1934713408
    %v5524 = vunpack.c.0.s8 %v5523
    %v5525 = vperm.slane %v5519, %v5524
    %v5527 = vunpack.c.l.s4 1934713408
    %v5528 = vunpack.c.0.s8 %v5527
    %v5529 = vperm.slane %v5521, %v5528
    %v5530 = vrot.slane %v5517, 4
    %v5531 = vsel %vm635, %v5530, %v5511
    %v5532 = vrot.slane %v5511, 4
    %v5533 = vsel %vm635, %v5517, %v5532
    %v5535 = vunpack.c.l.s4 1934713408
    %v5536 = vunpack.c.0.s8 %v5535
    %v5537 = vperm.slane %v5531, %v5536
    %v5539 = vunpack.c.l.s4 1934713408
    %v5540 = vunpack.c.0.s8 %v5539
    %v5541 = vperm.slane %v5533, %v5540
    %v5542 = vrot.slane %v5537, 4
    %v5543 = vsel %vm635, %v5542, %v5525
    %v5544 = vrot.slane %v5525, 4
    %v5545 = vsel %vm635, %v5537, %v5544
    %v5546 = vrot.slane %v5541, 4
    %v5547 = vsel %vm635, %v5546, %v5529
    %v5548 = vrot.slane %v5529, 4
    %v5549 = vsel %vm635, %v5541, %v5548
    %5552 = vrot.lane.b32.xlu0 %v5491, 8
    %v5553 = vpop.permute.xlu0 %5552
    %5554 = vrot.lane.b32.xlu0 %v5545, 8
    %v5555 = vpop.permute.xlu0 %5554
    %5560 = vrot.lane.b32.xlu0 %v5493, 16
    %v5561 = vpop.permute.xlu0 %5560
    %5562 = vrot.lane.b32.xlu0 %v5547, 16
    %v5563 = vpop.permute.xlu0 %5562
    %5568 = vrot.lane.b32.xlu0 %v5495, 24
    %v5569 = vpop.permute.xlu0 %5568
    %5570 = vrot.lane.b32.xlu0 %v5549, 24
    %v5571 = vpop.permute.xlu0 %5570
    %v5574 = vsel %vm1343, %v5489, %v5553
    %v5575 = vsel %vm1343, %v5543, %v5555
    %v5576 = vsel %vm2078, %v5574, %v5561
    %v5577 = vsel %vm2078, %v5575, %v5563
    %v5578 = vsel %vm2081, %v5576, %v5569
    %v5579 = vsel %vm2081, %v5577, %v5571
    %v5581 = vperm.slane %v4113, 0
    %v5584 = vsel %vm579, %v5578, 0
    %v5587 = vsel %vm579, %v5579, 0
    %5589 = vmatpush.msra.mxu0 0.0
    %5590 = vmatpush.msra.mxu0 0.0
    %5591 = vmatpush.msra.mxu0 0.0
    %5592 = vmatpush.msra.mxu0 0.0
    %5593 = vmatpush.msra.mxu0 0.0
    %5594 = vmatpush.msra.mxu0 0.0
    %5595 = vmatpush.msra.mxu0 0.0
    %5596 = vmatpush.msra.mxu0 0.0
    %5597 = vmatpush.msra.mxu0 0.0
    %5598 = vmatpush.msra.mxu0 0.0
    %5599 = vmatpush.msra.mxu0 0.0
    %5600 = vmatpush.msra.mxu0 0.0
    %5601 = vmatpush.msra.mxu0 %v4111
    %5602 = vmatpush.msra.mxu0 %v4110
    %5603 = vmatpush.msra.mxu0 %v4109
    %5604 = vmatpush.msra.mxu0 %v4108
    %5605 = vmatmul.f32.gmra.mxu0 %v5584
    %v5606 = vpop.f32.mrf.mxu0
    %v5607 = vadd.f32 %v5581, %v5606
    %5608 = vmatmul.f32.gmra.mxu0 %v5587
    %v5609 = vpop.f32.mrf.mxu0
    %v5610 = vadd.f32 %v5581, %v5609
    %5611 = vdwg.mxu0
    %v5612 = vadd.f32 %v569, %v5607
    %v5613 = vadd.f32 %v570, %v5610
    %s5614 = scalar_lea.vmem [#allocation17], 2
    %v5615 = vld [vmem:[%s5614] sm:$0x1]
    %s5616 = scalar_lea.vmem [#allocation19], 2
    %v5617 = vld [vmem:[%s5616] sm:$0x1]
    %v5618 = vsel %vm579, %v5612, 0.0
    %5619 = vadd.xlane.f32.xlu0 %v5618
    %v5620 = vpop.xlane.xlu0 %5619
    %v5621 = vsel %vm579, %v5613, 0.0
    %5622 = vadd.xlane.f32.xlu0 %v5621
    %v5623 = vpop.xlane.xlu0 %5622
    %v5624 = vmul.f32 %v5620, %v2132
    %v5625 = vmul.f32 %v5623, %v2132
    %v5626 = vsub.f32 %v5612, %v5624
    %v5627 = vsub.f32 %v5613, %v5625
    %v5628 = vmul.f32 %v5626, %v5626
    %v5629 = vmul.f32 %v5627, %v5627
    %v5630 = vsel %vm579, %v5628, 0.0
    %5631 = vadd.xlane.f32.xlu0 %v5630
    %v5632 = vpop.xlane.xlu0 %5631
    %v5633 = vsel %vm579, %v5629, 0.0
    %5634 = vadd.xlane.f32.xlu0 %v5633
    %v5635 = vpop.xlane.xlu0 %5634
    %v5636 = vmul.f32 %v5632, %v2132
    %v5637 = vmul.f32 %v5635, %v2132
    %v5638 = vadd.f32 %v5636, 1e-05
    %v5639 = vadd.f32 %v5637, 1e-05
    %v5640 = vrsqrt.pop %v5638
    %v5641 = vmul.f32 %v5640, %v5638
    %v5642 = vmul.f32 %v5641, %v5640
    %v5643 = vmul.f32 0.5, %v5642
    %v5644 = vsub.f32 1.5, %v5643
    %v5645 = vmul.f32 %v5640, %v5644
    %vm5646 = vweird.f32 %v5638
    %vm5647 = vweird.f32 %v5640
    %vm5648 = vmor %vm5646, %vm5647
    %v5649 = vsel %vm5648, %v5640, %v5645
    %v5650 = vrsqrt.pop %v5639
    %v5651 = vmul.f32 %v5650, %v5639
    %v5652 = vmul.f32 %v5651, %v5650
    %v5653 = vmul.f32 0.5, %v5652
    %v5654 = vsub.f32 1.5, %v5653
    %v5655 = vmul.f32 %v5650, %v5654
    %vm5656 = vweird.f32 %v5639
    %vm5657 = vweird.f32 %v5650
    %vm5658 = vmor %vm5656, %vm5657
    %v5659 = vsel %vm5658, %v5650, %v5655
    %v5660 = vmul.f32 %v5626, %v5649
    %v5661 = vmul.f32 %v5627, %v5659
    %v5663 = vperm.slane %v5615, 0
    %v5665 = vmul.f32 %v5660, %v5663
    %v5666 = vmul.f32 %v5661, %v5663
    %v5668 = vperm.slane %v5617, 0
    %v5670 = vadd.f32 %v5665, %v5668
    %v5671 = vadd.f32 %v5666, %v5668
    %s5672 = scalar_lea.vmem %s23, 64
    %v5673 = vld [vmem:[%s5672] sm:$0xff]
    %v5674 = vld [vmem:[%s5672 + $0x8] sm:$0xff]
    %v5675 = vld [vmem:[%s5672 + $0x10] sm:$0xff]
    %v5676 = vld [vmem:[%s5672 + $0x18] sm:$0xff]
    %s5677 = scalar_lea.vmem [#allocation14], 2
    %v5678 = vld [vmem:[%s5677] sm:$0x1]
    %v5680 = vperm.slane %v5678, 0
    %v5683 = vsel %vm579, %v5670, 0
    %v5686 = vsel %vm579, %v5671, 0
    %5688 = vmatpush.msra.mxu0 0.0
    %5689 = vmatpush.msra.mxu0 0.0
    %5690 = vmatpush.msra.mxu0 0.0
    %5691 = vmatpush.msra.mxu0 0.0
    %5692 = vmatpush.msra.mxu0 0.0
    %5693 = vmatpush.msra.mxu0 0.0
    %5694 = vmatpush.msra.mxu0 0.0
    %5695 = vmatpush.msra.mxu0 0.0
    %5696 = vmatpush.msra.mxu0 0.0
    %5697 = vmatpush.msra.mxu0 0.0
    %5698 = vmatpush.msra.mxu0 0.0
    %5699 = vmatpush.msra.mxu0 0.0
    %5700 = vmatpush.msra.mxu0 %v5676
    %5701 = vmatpush.msra.mxu0 %v5675
    %5702 = vmatpush.msra.mxu0 %v5674
    %5703 = vmatpush.msra.mxu0 %v5673
    %5704 = vmatmul.f32.gmra.mxu0 %v5683
    %v5705 = vpop.f32.mrf.mxu0
    %v5706 = vadd.f32 %v5680, %v5705
    %5707 = vmatmul.f32.gmra.mxu0 %v5686
    %v5708 = vpop.f32.mrf.mxu0
    %v5709 = vadd.f32 %v5680, %v5708
    %5710 = vdwg.mxu0
    %v5711 = vmax.f32 %v5706, 0.0
    %v5712 = vmax.f32 %v5709, 0.0
    %s5713 = scalar_lea.vmem %s27, 128
    %v5714 = vld [vmem:[%s5713] sm:$0xff]
    %v5715 = vld [vmem:[%s5713 + $0x8] sm:$0xff]
    %v5716 = vld [vmem:[%s5713 + $0x10] sm:$0xff]
    %v5717 = vld [vmem:[%s5713 + $0x18] sm:$0xff]
    %v5718 = vld [vmem:[%s5713 + $0x20] sm:$0xff]
    %v5719 = vld [vmem:[%s5713 + $0x28] sm:$0xff]
    %v5720 = vld [vmem:[%s5713 + $0x30] sm:$0xff]
    %v5721 = vld [vmem:[%s5713 + $0x38] sm:$0xff]
    %s5722 = scalar_lea.vmem [#allocation16], 2
    %v5723 = vld [vmem:[%s5722] sm:$0x1]
    %v5725 = vperm.slane %v5723, 0
    %v5728 = vsel %vm2232, %v5711, 0
    %v5731 = vsel %vm2232, %v5712, 0
    %5733 = vmatpush.msra.mxu0 0.0
    %5734 = vmatpush.msra.mxu0 0.0
    %5735 = vmatpush.msra.mxu0 0.0
    %5736 = vmatpush.msra.mxu0 0.0
    %5737 = vmatpush.msra.mxu0 0.0
    %5738 = vmatpush.msra.mxu0 0.0
    %5739 = vmatpush.msra.mxu0 0.0
    %5740 = vmatpush.msra.mxu0 0.0
    %5741 = vmatpush.msra.mxu0 %v5721
    %5742 = vmatpush.msra.mxu0 %v5720
    %5743 = vmatpush.msra.mxu0 %v5719
    %5744 = vmatpush.msra.mxu0 %v5718
    %5745 = vmatpush.msra.mxu0 %v5717
    %5746 = vmatpush.msra.mxu0 %v5716
    %5747 = vmatpush.msra.mxu0 %v5715
    %5748 = vmatpush.msra.mxu0 %v5714
    %5749 = vmatmul.f32.gmra.mxu0 %v5728
    %v5750 = vpop.f32.mrf.mxu0
    %v5751 = vadd.f32 %v5725, %v5750
    %5752 = vmatmul.f32.gmra.mxu0 %v5731
    %v5753 = vpop.f32.mrf.mxu0
    %v5754 = vadd.f32 %v5725, %v5753
    %5755 = vdwg.mxu0
    %v5756 = vadd.f32 %v5670, %v5751
    %v5757 = vadd.f32 %v5671, %v5754
    %s5758 = scalar_lea.vmem [#allocation20], 2
    %v5759 = vld [vmem:[%s5758] sm:$0x1]
    %s5760 = scalar_lea.vmem [#allocation22], 2
    %v5761 = vld [vmem:[%s5760] sm:$0x1]
    %v5762 = vsel %vm579, %v5756, 0.0
    %5763 = vadd.xlane.f32.xlu0 %v5762
    %v5764 = vpop.xlane.xlu0 %5763
    %v5765 = vsel %vm579, %v5757, 0.0
    %5766 = vadd.xlane.f32.xlu0 %v5765
    %v5767 = vpop.xlane.xlu0 %5766
    %v5768 = vmul.f32 %v5764, %v2132
    %v5769 = vmul.f32 %v5767, %v2132
    %v5770 = vsub.f32 %v5756, %v5768
    %v5771 = vsub.f32 %v5757, %v5769
    %v5772 = vmul.f32 %v5770, %v5770
    %v5773 = vmul.f32 %v5771, %v5771
    %v5774 = vsel %vm579, %v5772, 0.0
    %5775 = vadd.xlane.f32.xlu0 %v5774
    %v5776 = vpop.xlane.xlu0 %5775
    %v5777 = vsel %vm579, %v5773, 0.0
    %5778 = vadd.xlane.f32.xlu0 %v5777
    %v5779 = vpop.xlane.xlu0 %5778
    %v5780 = vmul.f32 %v5776, %v2132
    %v5781 = vmul.f32 %v5779, %v2132
    %v5782 = vadd.f32 %v5780, 1e-05
    %v5783 = vadd.f32 %v5781, 1e-05
    %v5784 = vrsqrt.pop %v5782
    %v5785 = vmul.f32 %v5784, %v5782
    %v5786 = vmul.f32 %v5785, %v5784
    %v5787 = vmul.f32 0.5, %v5786
    %v5788 = vsub.f32 1.5, %v5787
    %v5789 = vmul.f32 %v5784, %v5788
    %vm5790 = vweird.f32 %v5782
    %vm5791 = vweird.f32 %v5784
    %vm5792 = vmor %vm5790, %vm5791
    %v5793 = vsel %vm5792, %v5784, %v5789
    %v5794 = vrsqrt.pop %v5783
    %v5795 = vmul.f32 %v5794, %v5783
    %v5796 = vmul.f32 %v5795, %v5794
    %v5797 = vmul.f32 0.5, %v5796
    %v5798 = vsub.f32 1.5, %v5797
    %v5799 = vmul.f32 %v5794, %v5798
    %vm5800 = vweird.f32 %v5783
    %vm5801 = vweird.f32 %v5794
    %vm5802 = vmor %vm5800, %vm5801
    %v5803 = vsel %vm5802, %v5794, %v5799
    %v5804 = vmul.f32 %v5770, %v5793
    %v5805 = vmul.f32 %v5771, %v5803
    %v5807 = vperm.slane %v5759, 0
    %v5809 = vmul.f32 %v5804, %v5807
    %v5810 = vmul.f32 %v5805, %v5807
    %v5812 = vperm.slane %v5761, 0
    %v5814 = vadd.f32 %v5809, %v5812
    %v5815 = vadd.f32 %v5810, %v5812
    %s5816 = scalar_lea.vmem %s15, 96
    %v5817 = vld [vmem:[%s5816] sm:$0xff]
    %v5818 = vld [vmem:[%s5816 + $0x8] sm:$0xff]
    %v5819 = vld [vmem:[%s5816 + $0x10] sm:$0xff]
    %v5820 = vld [vmem:[%s5816 + $0x18] sm:$0xff]
    %s5821 = scalar_lea.vmem [#allocation11], 3
    %v5822 = vld [vmem:[%s5821] sm:$0x1]
    %v5824 = vperm.slane %v5822, 0
    %v5827 = vsel %vm579, %v5814, 0
    %v5830 = vsel %vm579, %v5815, 0
    %5832 = vmatpush.msra.mxu0 0.0
    %5833 = vmatpush.msra.mxu0 0.0
    %5834 = vmatpush.msra.mxu0 0.0
    %5835 = vmatpush.msra.mxu0 0.0
    %5836 = vmatpush.msra.mxu0 0.0
    %5837 = vmatpush.msra.mxu0 0.0
    %5838 = vmatpush.msra.mxu0 0.0
    %5839 = vmatpush.msra.mxu0 0.0
    %5840 = vmatpush.msra.mxu0 0.0
    %5841 = vmatpush.msra.mxu0 0.0
    %5842 = vmatpush.msra.mxu0 0.0
    %5843 = vmatpush.msra.mxu0 0.0
    %5844 = vmatpush.msra.mxu0 %v5820
    %5845 = vmatpush.msra.mxu0 %v5819
    %5846 = vmatpush.msra.mxu0 %v5818
    %5847 = vmatpush.msra.mxu0 %v5817
    %5848 = vmatmul.f32.gmra.mxu0 %v5827
    %v5849 = vpop.f32.mrf.mxu0
    %v5850 = vadd.f32 %v5824, %v5849
    %5851 = vmatmul.f32.gmra.mxu0 %v5830
    %v5852 = vpop.f32.mrf.mxu0
    %v5853 = vadd.f32 %v5824, %v5852
    %5854 = vdwg.mxu0
    %s5855 = scalar_lea.vmem %s19, 96
    %v5856 = vld [vmem:[%s5855] sm:$0xff]
    %v5857 = vld [vmem:[%s5855 + $0x8] sm:$0xff]
    %v5858 = vld [vmem:[%s5855 + $0x10] sm:$0xff]
    %v5859 = vld [vmem:[%s5855 + $0x18] sm:$0xff]
    %s5860 = scalar_lea.vmem [#allocation13], 3
    %v5861 = vld [vmem:[%s5860] sm:$0x1]
    %5864 = vrot.lane.b32.xlu0 %v5850, 120
    %v5865 = vpop.permute.xlu0 %5864
    %5866 = vrot.lane.b32.xlu0 %v5853, 120
    %v5867 = vpop.permute.xlu0 %5866
    %5870 = vrot.lane.b32.xlu0 %v5850, 112
    %v5871 = vpop.permute.xlu0 %5870
    %5872 = vrot.lane.b32.xlu0 %v5853, 112
    %v5873 = vpop.permute.xlu0 %5872
    %5876 = vrot.lane.b32.xlu0 %v5850, 104
    %v5877 = vpop.permute.xlu0 %5876
    %5878 = vrot.lane.b32.xlu0 %v5853, 104
    %v5879 = vpop.permute.xlu0 %5878
    %v5882 = vrot.slane %v5871, 4
    %v5883 = vsel %vm635, %v5882, %v5850
    %v5884 = vrot.slane %v5850, 4
    %v5885 = vsel %vm635, %v5871, %v5884
    %v5887 = vunpack.c.l.s4 1983009808
    %v5888 = vunpack.c.0.s8 %v5887
    %v5889 = vperm.slane %v5883, %v5888
    %v5891 = vunpack.c.l.s4 1983009808
    %v5892 = vunpack.c.0.s8 %v5891
    %v5893 = vperm.slane %v5885, %v5892
    %v5894 = vrot.slane %v5877, 4
    %v5895 = vsel %vm635, %v5894, %v5865
    %v5896 = vrot.slane %v5865, 4
    %v5897 = vsel %vm635, %v5877, %v5896
    %v5899 = vunpack.c.l.s4 1983009808
    %v5900 = vunpack.c.0.s8 %v5899
    %v5901 = vperm.slane %v5895, %v5900
    %v5903 = vunpack.c.l.s4 1983009808
    %v5904 = vunpack.c.0.s8 %v5903
    %v5905 = vperm.slane %v5897, %v5904
    %v5906 = vrot.slane %v5901, 4
    %v5907 = vsel %vm635, %v5906, %v5889
    %v5908 = vrot.slane %v5889, 4
    %v5909 = vsel %vm635, %v5901, %v5908
    %v5911 = vunpack.c.l.s4 1934713408
    %v5912 = vunpack.c.0.s8 %v5911
    %v5913 = vperm.slane %v5907, %v5912
    %v5915 = vunpack.c.l.s4 1934713408
    %v5916 = vunpack.c.0.s8 %v5915
    %v5917 = vperm.slane %v5909, %v5916
    %v5918 = vrot.slane %v5905, 4
    %v5919 = vsel %vm635, %v5918, %v5893
    %v5920 = vrot.slane %v5893, 4
    %v5921 = vsel %vm635, %v5905, %v5920
    %v5923 = vunpack.c.l.s4 1934713408
    %v5924 = vunpack.c.0.s8 %v5923
    %v5925 = vperm.slane %v5919, %v5924
    %v5927 = vunpack.c.l.s4 1934713408
    %v5928 = vunpack.c.0.s8 %v5927
    %v5929 = vperm.slane %v5921, %v5928
    %v5930 = vrot.slane %v5913, 4
    %v5931 = vsel %vm635, 0.0, %v5930
    %v5932 = vrot.slane %v5917, 4
    %v5933 = vsel %vm635, 0.0, %v5932
    %v5934 = vrot.slane %v5925, 4
    %v5935 = vsel %vm635, 0.0, %v5934
    %v5936 = vrot.slane %v5929, 4
    %v5937 = vsel %vm635, 0.0, %v5936
    %v5938 = vrot.slane %v5873, 4
    %v5939 = vsel %vm635, %v5938, %v5853
    %v5940 = vrot.slane %v5853, 4
    %v5941 = vsel %vm635, %v5873, %v5940
    %v5943 = vunpack.c.l.s4 1983009808
    %v5944 = vunpack.c.0.s8 %v5943
    %v5945 = vperm.slane %v5939, %v5944
    %v5947 = vunpack.c.l.s4 1983009808
    %v5948 = vunpack.c.0.s8 %v5947
    %v5949 = vperm.slane %v5941, %v5948
    %v5950 = vrot.slane %v5879, 4
    %v5951 = vsel %vm635, %v5950, %v5867
    %v5952 = vrot.slane %v5867, 4
    %v5953 = vsel %vm635, %v5879, %v5952
    %v5955 = vunpack.c.l.s4 1983009808
    %v5956 = vunpack.c.0.s8 %v5955
    %v5957 = vperm.slane %v5951, %v5956
    %v5959 = vunpack.c.l.s4 1983009808
    %v5960 = vunpack.c.0.s8 %v5959
    %v5961 = vperm.slane %v5953, %v5960
    %v5962 = vrot.slane %v5957, 4
    %v5963 = vsel %vm635, %v5962, %v5945
    %v5964 = vrot.slane %v5945, 4
    %v5965 = vsel %vm635, %v5957, %v5964
    %v5967 = vunpack.c.l.s4 1934713408
    %v5968 = vunpack.c.0.s8 %v5967
    %v5969 = vperm.slane %v5963, %v5968
    %v5971 = vunpack.c.l.s4 1934713408
    %v5972 = vunpack.c.0.s8 %v5971
    %v5973 = vperm.slane %v5965, %v5972
    %v5974 = vrot.slane %v5961, 4
    %v5975 = vsel %vm635, %v5974, %v5949
    %v5976 = vrot.slane %v5949, 4
    %v5977 = vsel %vm635, %v5961, %v5976
    %v5979 = vunpack.c.l.s4 1934713408
    %v5980 = vunpack.c.0.s8 %v5979
    %v5981 = vperm.slane %v5975, %v5980
    %v5983 = vunpack.c.l.s4 1934713408
    %v5984 = vunpack.c.0.s8 %v5983
    %v5985 = vperm.slane %v5977, %v5984
    %v5986 = vrot.slane %v5969, 4
    %v5987 = vsel %vm635, 0.0, %v5986
    %v5988 = vrot.slane %v5973, 4
    %v5989 = vsel %vm635, 0.0, %v5988
    %v5990 = vrot.slane %v5981, 4
    %v5991 = vsel %vm635, 0.0, %v5990
    %v5992 = vrot.slane %v5985, 4
    %v5993 = vsel %vm635, 0.0, %v5992
    %v5994 = vsel %vm635, %v5932, %v5913
    %v5996 = vunpack.c.l.s4 1983009808
    %v5997 = vunpack.c.0.s8 %v5996
    %v5998 = vperm.slane %v5994, %v5997
    %v5999 = vrot.slane %v5933, 4
    %v6000 = vsel %vm635, %v5999, %v5931
    %v6002 = vunpack.c.l.s4 1983009808
    %v6003 = vunpack.c.0.s8 %v6002
    %v6004 = vperm.slane %v6000, %v6003
    %v6005 = vsel %vm635, %v5936, %v5925
    %v6007 = vunpack.c.l.s4 1983009808
    %v6008 = vunpack.c.0.s8 %v6007
    %v6009 = vperm.slane %v6005, %v6008
    %v6010 = vrot.slane %v5937, 4
    %v6011 = vsel %vm635, %v6010, %v5935
    %v6013 = vunpack.c.l.s4 1983009808
    %v6014 = vunpack.c.0.s8 %v6013
    %v6015 = vperm.slane %v6011, %v6014
    %v6016 = vrot.slane %v6004, 4
    %v6017 = vsel %vm635, %v6016, %v5998
    %v6018 = vrot.slane %v5998, 4
    %v6019 = vsel %vm635, %v6004, %v6018
    %v6021 = vunpack.c.l.s4 1934713408
    %v6022 = vunpack.c.0.s8 %v6021
    %v6023 = vperm.slane %v6017, %v6022
    %v6025 = vunpack.c.l.s4 1934713408
    %v6026 = vunpack.c.0.s8 %v6025
    %v6027 = vperm.slane %v6019, %v6026
    %v6028 = vrot.slane %v6015, 4
    %v6029 = vsel %vm635, %v6028, %v6009
    %v6030 = vrot.slane %v6009, 4
    %v6031 = vsel %vm635, %v6015, %v6030
    %v6033 = vunpack.c.l.s4 1934713408
    %v6034 = vunpack.c.0.s8 %v6033
    %v6035 = vperm.slane %v6029, %v6034
    %v6037 = vunpack.c.l.s4 1934713408
    %v6038 = vunpack.c.0.s8 %v6037
    %v6039 = vperm.slane %v6031, %v6038
    %v6040 = vrot.slane %v6035, 4
    %v6041 = vsel %vm635, %v6040, %v6023
    %v6042 = vrot.slane %v6023, 4
    %v6043 = vsel %vm635, %v6035, %v6042
    %v6044 = vrot.slane %v6039, 4
    %v6045 = vsel %vm635, %v6044, %v6027
    %v6046 = vrot.slane %v6027, 4
    %v6047 = vsel %vm635, %v6039, %v6046
    %v6048 = vsel %vm635, %v5988, %v5969
    %v6050 = vunpack.c.l.s4 1983009808
    %v6051 = vunpack.c.0.s8 %v6050
    %v6052 = vperm.slane %v6048, %v6051
    %v6053 = vrot.slane %v5989, 4
    %v6054 = vsel %vm635, %v6053, %v5987
    %v6056 = vunpack.c.l.s4 1983009808
    %v6057 = vunpack.c.0.s8 %v6056
    %v6058 = vperm.slane %v6054, %v6057
    %v6059 = vsel %vm635, %v5992, %v5981
    %v6061 = vunpack.c.l.s4 1983009808
    %v6062 = vunpack.c.0.s8 %v6061
    %v6063 = vperm.slane %v6059, %v6062
    %v6064 = vrot.slane %v5993, 4
    %v6065 = vsel %vm635, %v6064, %v5991
    %v6067 = vunpack.c.l.s4 1983009808
    %v6068 = vunpack.c.0.s8 %v6067
    %v6069 = vperm.slane %v6065, %v6068
    %v6070 = vrot.slane %v6058, 4
    %v6071 = vsel %vm635, %v6070, %v6052
    %v6072 = vrot.slane %v6052, 4
    %v6073 = vsel %vm635, %v6058, %v6072
    %v6075 = vunpack.c.l.s4 1934713408
    %v6076 = vunpack.c.0.s8 %v6075
    %v6077 = vperm.slane %v6071, %v6076
    %v6079 = vunpack.c.l.s4 1934713408
    %v6080 = vunpack.c.0.s8 %v6079
    %v6081 = vperm.slane %v6073, %v6080
    %v6082 = vrot.slane %v6069, 4
    %v6083 = vsel %vm635, %v6082, %v6063
    %v6084 = vrot.slane %v6063, 4
    %v6085 = vsel %vm635, %v6069, %v6084
    %v6087 = vunpack.c.l.s4 1934713408
    %v6088 = vunpack.c.0.s8 %v6087
    %v6089 = vperm.slane %v6083, %v6088
    %v6091 = vunpack.c.l.s4 1934713408
    %v6092 = vunpack.c.0.s8 %v6091
    %v6093 = vperm.slane %v6085, %v6092
    %v6094 = vrot.slane %v6089, 4
    %v6095 = vsel %vm635, %v6094, %v6077
    %v6096 = vrot.slane %v6077, 4
    %v6097 = vsel %vm635, %v6089, %v6096
    %v6098 = vrot.slane %v6093, 4
    %v6099 = vsel %vm635, %v6098, %v6081
    %v6100 = vrot.slane %v6081, 4
    %v6101 = vsel %vm635, %v6093, %v6100
    %6102 = vrot.lane.b32.xlu0 %v5850, 96
    %v6103 = vpop.permute.xlu0 %6102
    %6104 = vrot.lane.b32.xlu0 %v5853, 96
    %v6105 = vpop.permute.xlu0 %6104
    %6106 = vrot.lane.b32.xlu0 %v5865, 96
    %v6107 = vpop.permute.xlu0 %6106
    %6108 = vrot.lane.b32.xlu0 %v5867, 96
    %v6109 = vpop.permute.xlu0 %6108
    %6110 = vrot.lane.b32.xlu0 %v5871, 96
    %v6111 = vpop.permute.xlu0 %6110
    %6112 = vrot.lane.b32.xlu0 %v5873, 96
    %v6113 = vpop.permute.xlu0 %6112
    %6114 = vrot.lane.b32.xlu0 %v5877, 96
    %v6115 = vpop.permute.xlu0 %6114
    %6116 = vrot.lane.b32.xlu0 %v5879, 96
    %v6117 = vpop.permute.xlu0 %6116
    %v6126 = vrot.slane %v6111, 4
    %v6127 = vsel %vm635, %v6126, %v6103
    %v6128 = vrot.slane %v6103, 4
    %v6129 = vsel %vm635, %v6111, %v6128
    %v6131 = vunpack.c.l.s4 1983009808
    %v6132 = vunpack.c.0.s8 %v6131
    %v6133 = vperm.slane %v6127, %v6132
    %v6135 = vunpack.c.l.s4 1983009808
    %v6136 = vunpack.c.0.s8 %v6135
    %v6137 = vperm.slane %v6129, %v6136
    %v6138 = vrot.slane %v6115, 4
    %v6139 = vsel %vm635, %v6138, %v6107
    %v6140 = vrot.slane %v6107, 4
    %v6141 = vsel %vm635, %v6115, %v6140
    %v6143 = vunpack.c.l.s4 1983009808
    %v6144 = vunpack.c.0.s8 %v6143
    %v6145 = vperm.slane %v6139, %v6144
    %v6147 = vunpack.c.l.s4 1983009808
    %v6148 = vunpack.c.0.s8 %v6147
    %v6149 = vperm.slane %v6141, %v6148
    %v6150 = vrot.slane %v6145, 4
    %v6151 = vsel %vm635, %v6150, %v6133
    %v6152 = vrot.slane %v6133, 4
    %v6153 = vsel %vm635, %v6145, %v6152
    %v6155 = vunpack.c.l.s4 1934713408
    %v6156 = vunpack.c.0.s8 %v6155
    %v6157 = vperm.slane %v6151, %v6156
    %v6159 = vunpack.c.l.s4 1934713408
    %v6160 = vunpack.c.0.s8 %v6159
    %v6161 = vperm.slane %v6153, %v6160
    %v6162 = vrot.slane %v6149, 4
    %v6163 = vsel %vm635, %v6162, %v6137
    %v6164 = vrot.slane %v6137, 4
    %v6165 = vsel %vm635, %v6149, %v6164
    %v6167 = vunpack.c.l.s4 1934713408
    %v6168 = vunpack.c.0.s8 %v6167
    %v6169 = vperm.slane %v6163, %v6168
    %v6171 = vunpack.c.l.s4 1934713408
    %v6172 = vunpack.c.0.s8 %v6171
    %v6173 = vperm.slane %v6165, %v6172
    %v6174 = vrot.slane %v6157, 4
    %v6175 = vsel %vm635, 0.0, %v6174
    %v6176 = vrot.slane %v6161, 4
    %v6177 = vsel %vm635, 0.0, %v6176
    %v6178 = vrot.slane %v6169, 4
    %v6179 = vsel %vm635, 0.0, %v6178
    %v6180 = vrot.slane %v6173, 4
    %v6181 = vsel %vm635, 0.0, %v6180
    %v6182 = vrot.slane %v6113, 4
    %v6183 = vsel %vm635, %v6182, %v6105
    %v6184 = vrot.slane %v6105, 4
    %v6185 = vsel %vm635, %v6113, %v6184
    %v6187 = vunpack.c.l.s4 1983009808
    %v6188 = vunpack.c.0.s8 %v6187
    %v6189 = vperm.slane %v6183, %v6188
    %v6191 = vunpack.c.l.s4 1983009808
    %v6192 = vunpack.c.0.s8 %v6191
    %v6193 = vperm.slane %v6185, %v6192
    %v6194 = vrot.slane %v6117, 4
    %v6195 = vsel %vm635, %v6194, %v6109
    %v6196 = vrot.slane %v6109, 4
    %v6197 = vsel %vm635, %v6117, %v6196
    %v6199 = vunpack.c.l.s4 1983009808
    %v6200 = vunpack.c.0.s8 %v6199
    %v6201 = vperm.slane %v6195, %v6200
    %v6203 = vunpack.c.l.s4 1983009808
    %v6204 = vunpack.c.0.s8 %v6203
    %v6205 = vperm.slane %v6197, %v6204
    %v6206 = vrot.slane %v6201, 4
    %v6207 = vsel %vm635, %v6206, %v6189
    %v6208 = vrot.slane %v6189, 4
    %v6209 = vsel %vm635, %v6201, %v6208
    %v6211 = vunpack.c.l.s4 1934713408
    %v6212 = vunpack.c.0.s8 %v6211
    %v6213 = vperm.slane %v6207, %v6212
    %v6215 = vunpack.c.l.s4 1934713408
    %v6216 = vunpack.c.0.s8 %v6215
    %v6217 = vperm.slane %v6209, %v6216
    %v6218 = vrot.slane %v6205, 4
    %v6219 = vsel %vm635, %v6218, %v6193
    %v6220 = vrot.slane %v6193, 4
    %v6221 = vsel %vm635, %v6205, %v6220
    %v6223 = vunpack.c.l.s4 1934713408
    %v6224 = vunpack.c.0.s8 %v6223
    %v6225 = vperm.slane %v6219, %v6224
    %v6227 = vunpack.c.l.s4 1934713408
    %v6228 = vunpack.c.0.s8 %v6227
    %v6229 = vperm.slane %v6221, %v6228
    %v6230 = vrot.slane %v6213, 4
    %v6231 = vsel %vm635, 0.0, %v6230
    %v6232 = vrot.slane %v6217, 4
    %v6233 = vsel %vm635, 0.0, %v6232
    %v6234 = vrot.slane %v6225, 4
    %v6235 = vsel %vm635, 0.0, %v6234
    %v6236 = vrot.slane %v6229, 4
    %v6237 = vsel %vm635, 0.0, %v6236
    %v6238 = vsel %vm635, %v6176, %v6157
    %v6240 = vunpack.c.l.s4 1983009808
    %v6241 = vunpack.c.0.s8 %v6240
    %v6242 = vperm.slane %v6238, %v6241
    %v6243 = vrot.slane %v6177, 4
    %v6244 = vsel %vm635, %v6243, %v6175
    %v6246 = vunpack.c.l.s4 1983009808
    %v6247 = vunpack.c.0.s8 %v6246
    %v6248 = vperm.slane %v6244, %v6247
    %v6249 = vsel %vm635, %v6180, %v6169
    %v6251 = vunpack.c.l.s4 1983009808
    %v6252 = vunpack.c.0.s8 %v6251
    %v6253 = vperm.slane %v6249, %v6252
    %v6254 = vrot.slane %v6181, 4
    %v6255 = vsel %vm635, %v6254, %v6179
    %v6257 = vunpack.c.l.s4 1983009808
    %v6258 = vunpack.c.0.s8 %v6257
    %v6259 = vperm.slane %v6255, %v6258
    %v6260 = vrot.slane %v6248, 4
    %v6261 = vsel %vm635, %v6260, %v6242
    %v6262 = vrot.slane %v6242, 4
    %v6263 = vsel %vm635, %v6248, %v6262
    %v6265 = vunpack.c.l.s4 1934713408
    %v6266 = vunpack.c.0.s8 %v6265
    %v6267 = vperm.slane %v6261, %v6266
    %v6269 = vunpack.c.l.s4 1934713408
    %v6270 = vunpack.c.0.s8 %v6269
    %v6271 = vperm.slane %v6263, %v6270
    %v6272 = vrot.slane %v6259, 4
    %v6273 = vsel %vm635, %v6272, %v6253
    %v6274 = vrot.slane %v6253, 4
    %v6275 = vsel %vm635, %v6259, %v6274
    %v6277 = vunpack.c.l.s4 1934713408
    %v6278 = vunpack.c.0.s8 %v6277
    %v6279 = vperm.slane %v6273, %v6278
    %v6281 = vunpack.c.l.s4 1934713408
    %v6282 = vunpack.c.0.s8 %v6281
    %v6283 = vperm.slane %v6275, %v6282
    %v6284 = vrot.slane %v6279, 4
    %v6285 = vsel %vm635, %v6284, %v6267
    %v6286 = vrot.slane %v6267, 4
    %v6287 = vsel %vm635, %v6279, %v6286
    %v6288 = vrot.slane %v6283, 4
    %v6289 = vsel %vm635, %v6288, %v6271
    %v6290 = vrot.slane %v6271, 4
    %v6291 = vsel %vm635, %v6283, %v6290
    %v6292 = vsel %vm635, %v6232, %v6213
    %v6294 = vunpack.c.l.s4 1983009808
    %v6295 = vunpack.c.0.s8 %v6294
    %v6296 = vperm.slane %v6292, %v6295
    %v6297 = vrot.slane %v6233, 4
    %v6298 = vsel %vm635, %v6297, %v6231
    %v6300 = vunpack.c.l.s4 1983009808
    %v6301 = vunpack.c.0.s8 %v6300
    %v6302 = vperm.slane %v6298, %v6301
    %v6303 = vsel %vm635, %v6236, %v6225
    %v6305 = vunpack.c.l.s4 1983009808
    %v6306 = vunpack.c.0.s8 %v6305
    %v6307 = vperm.slane %v6303, %v6306
    %v6308 = vrot.slane %v6237, 4
    %v6309 = vsel %vm635, %v6308, %v6235
    %v6311 = vunpack.c.l.s4 1983009808
    %v6312 = vunpack.c.0.s8 %v6311
    %v6313 = vperm.slane %v6309, %v6312
    %v6314 = vrot.slane %v6302, 4
    %v6315 = vsel %vm635, %v6314, %v6296
    %v6316 = vrot.slane %v6296, 4
    %v6317 = vsel %vm635, %v6302, %v6316
    %v6319 = vunpack.c.l.s4 1934713408
    %v6320 = vunpack.c.0.s8 %v6319
    %v6321 = vperm.slane %v6315, %v6320
    %v6323 = vunpack.c.l.s4 1934713408
    %v6324 = vunpack.c.0.s8 %v6323
    %v6325 = vperm.slane %v6317, %v6324
    %v6326 = vrot.slane %v6313, 4
    %v6327 = vsel %vm635, %v6326, %v6307
    %v6328 = vrot.slane %v6307, 4
    %v6329 = vsel %vm635, %v6313, %v6328
    %v6331 = vunpack.c.l.s4 1934713408
    %v6332 = vunpack.c.0.s8 %v6331
    %v6333 = vperm.slane %v6327, %v6332
    %v6335 = vunpack.c.l.s4 1934713408
    %v6336 = vunpack.c.0.s8 %v6335
    %v6337 = vperm.slane %v6329, %v6336
    %v6338 = vrot.slane %v6333, 4
    %v6339 = vsel %vm635, %v6338, %v6321
    %v6340 = vrot.slane %v6321, 4
    %v6341 = vsel %vm635, %v6333, %v6340
    %v6342 = vrot.slane %v6337, 4
    %v6343 = vsel %vm635, %v6342, %v6325
    %v6344 = vrot.slane %v6325, 4
    %v6345 = vsel %vm635, %v6337, %v6344
    %6346 = vrot.lane.b32.xlu0 %v5850, 64
    %v6347 = vpop.permute.xlu0 %6346
    %6348 = vrot.lane.b32.xlu0 %v5853, 64
    %v6349 = vpop.permute.xlu0 %6348
    %6350 = vrot.lane.b32.xlu0 %v5865, 64
    %v6351 = vpop.permute.xlu0 %6350
    %6352 = vrot.lane.b32.xlu0 %v5867, 64
    %v6353 = vpop.permute.xlu0 %6352
    %6354 = vrot.lane.b32.xlu0 %v5871, 64
    %v6355 = vpop.permute.xlu0 %6354
    %6356 = vrot.lane.b32.xlu0 %v5873, 64
    %v6357 = vpop.permute.xlu0 %6356
    %6358 = vrot.lane.b32.xlu0 %v5877, 64
    %v6359 = vpop.permute.xlu0 %6358
    %6360 = vrot.lane.b32.xlu0 %v5879, 64
    %v6361 = vpop.permute.xlu0 %6360
    %v6370 = vrot.slane %v6355, 4
    %v6371 = vsel %vm635, %v6370, %v6347
    %v6372 = vrot.slane %v6347, 4
    %v6373 = vsel %vm635, %v6355, %v6372
    %v6375 = vunpack.c.l.s4 1983009808
    %v6376 = vunpack.c.0.s8 %v6375
    %v6377 = vperm.slane %v6371, %v6376
    %v6379 = vunpack.c.l.s4 1983009808
    %v6380 = vunpack.c.0.s8 %v6379
    %v6381 = vperm.slane %v6373, %v6380
    %v6382 = vrot.slane %v6359, 4
    %v6383 = vsel %vm635, %v6382, %v6351
    %v6384 = vrot.slane %v6351, 4
    %v6385 = vsel %vm635, %v6359, %v6384
    %v6387 = vunpack.c.l.s4 1983009808
    %v6388 = vunpack.c.0.s8 %v6387
    %v6389 = vperm.slane %v6383, %v6388
    %v6391 = vunpack.c.l.s4 1983009808
    %v6392 = vunpack.c.0.s8 %v6391
    %v6393 = vperm.slane %v6385, %v6392
    %v6394 = vrot.slane %v6389, 4
    %v6395 = vsel %vm635, %v6394, %v6377
    %v6396 = vrot.slane %v6377, 4
    %v6397 = vsel %vm635, %v6389, %v6396
    %v6399 = vunpack.c.l.s4 1934713408
    %v6400 = vunpack.c.0.s8 %v6399
    %v6401 = vperm.slane %v6395, %v6400
    %v6403 = vunpack.c.l.s4 1934713408
    %v6404 = vunpack.c.0.s8 %v6403
    %v6405 = vperm.slane %v6397, %v6404
    %v6406 = vrot.slane %v6393, 4
    %v6407 = vsel %vm635, %v6406, %v6381
    %v6408 = vrot.slane %v6381, 4
    %v6409 = vsel %vm635, %v6393, %v6408
    %v6411 = vunpack.c.l.s4 1934713408
    %v6412 = vunpack.c.0.s8 %v6411
    %v6413 = vperm.slane %v6407, %v6412
    %v6415 = vunpack.c.l.s4 1934713408
    %v6416 = vunpack.c.0.s8 %v6415
    %v6417 = vperm.slane %v6409, %v6416
    %v6418 = vrot.slane %v6401, 4
    %v6419 = vsel %vm635, 0.0, %v6418
    %v6420 = vrot.slane %v6405, 4
    %v6421 = vsel %vm635, 0.0, %v6420
    %v6422 = vrot.slane %v6413, 4
    %v6423 = vsel %vm635, 0.0, %v6422
    %v6424 = vrot.slane %v6417, 4
    %v6425 = vsel %vm635, 0.0, %v6424
    %v6426 = vrot.slane %v6357, 4
    %v6427 = vsel %vm635, %v6426, %v6349
    %v6428 = vrot.slane %v6349, 4
    %v6429 = vsel %vm635, %v6357, %v6428
    %v6431 = vunpack.c.l.s4 1983009808
    %v6432 = vunpack.c.0.s8 %v6431
    %v6433 = vperm.slane %v6427, %v6432
    %v6435 = vunpack.c.l.s4 1983009808
    %v6436 = vunpack.c.0.s8 %v6435
    %v6437 = vperm.slane %v6429, %v6436
    %v6438 = vrot.slane %v6361, 4
    %v6439 = vsel %vm635, %v6438, %v6353
    %v6440 = vrot.slane %v6353, 4
    %v6441 = vsel %vm635, %v6361, %v6440
    %v6443 = vunpack.c.l.s4 1983009808
    %v6444 = vunpack.c.0.s8 %v6443
    %v6445 = vperm.slane %v6439, %v6444
    %v6447 = vunpack.c.l.s4 1983009808
    %v6448 = vunpack.c.0.s8 %v6447
    %v6449 = vperm.slane %v6441, %v6448
    %v6450 = vrot.slane %v6445, 4
    %v6451 = vsel %vm635, %v6450, %v6433
    %v6452 = vrot.slane %v6433, 4
    %v6453 = vsel %vm635, %v6445, %v6452
    %v6455 = vunpack.c.l.s4 1934713408
    %v6456 = vunpack.c.0.s8 %v6455
    %v6457 = vperm.slane %v6451, %v6456
    %v6459 = vunpack.c.l.s4 1934713408
    %v6460 = vunpack.c.0.s8 %v6459
    %v6461 = vperm.slane %v6453, %v6460
    %v6462 = vrot.slane %v6449, 4
    %v6463 = vsel %vm635, %v6462, %v6437
    %v6464 = vrot.slane %v6437, 4
    %v6465 = vsel %vm635, %v6449, %v6464
    %v6467 = vunpack.c.l.s4 1934713408
    %v6468 = vunpack.c.0.s8 %v6467
    %v6469 = vperm.slane %v6463, %v6468
    %v6471 = vunpack.c.l.s4 1934713408
    %v6472 = vunpack.c.0.s8 %v6471
    %v6473 = vperm.slane %v6465, %v6472
    %v6474 = vrot.slane %v6457, 4
    %v6475 = vsel %vm635, 0.0, %v6474
    %v6476 = vrot.slane %v6461, 4
    %v6477 = vsel %vm635, 0.0, %v6476
    %v6478 = vrot.slane %v6469, 4
    %v6479 = vsel %vm635, 0.0, %v6478
    %v6480 = vrot.slane %v6473, 4
    %v6481 = vsel %vm635, 0.0, %v6480
    %v6482 = vsel %vm635, %v6420, %v6401
    %v6484 = vunpack.c.l.s4 1983009808
    %v6485 = vunpack.c.0.s8 %v6484
    %v6486 = vperm.slane %v6482, %v6485
    %v6487 = vrot.slane %v6421, 4
    %v6488 = vsel %vm635, %v6487, %v6419
    %v6490 = vunpack.c.l.s4 1983009808
    %v6491 = vunpack.c.0.s8 %v6490
    %v6492 = vperm.slane %v6488, %v6491
    %v6493 = vsel %vm635, %v6424, %v6413
    %v6495 = vunpack.c.l.s4 1983009808
    %v6496 = vunpack.c.0.s8 %v6495
    %v6497 = vperm.slane %v6493, %v6496
    %v6498 = vrot.slane %v6425, 4
    %v6499 = vsel %vm635, %v6498, %v6423
    %v6501 = vunpack.c.l.s4 1983009808
    %v6502 = vunpack.c.0.s8 %v6501
    %v6503 = vperm.slane %v6499, %v6502
    %v6504 = vrot.slane %v6492, 4
    %v6505 = vsel %vm635, %v6504, %v6486
    %v6506 = vrot.slane %v6486, 4
    %v6507 = vsel %vm635, %v6492, %v6506
    %v6509 = vunpack.c.l.s4 1934713408
    %v6510 = vunpack.c.0.s8 %v6509
    %v6511 = vperm.slane %v6505, %v6510
    %v6513 = vunpack.c.l.s4 1934713408
    %v6514 = vunpack.c.0.s8 %v6513
    %v6515 = vperm.slane %v6507, %v6514
    %v6516 = vrot.slane %v6503, 4
    %v6517 = vsel %vm635, %v6516, %v6497
    %v6518 = vrot.slane %v6497, 4
    %v6519 = vsel %vm635, %v6503, %v6518
    %v6521 = vunpack.c.l.s4 1934713408
    %v6522 = vunpack.c.0.s8 %v6521
    %v6523 = vperm.slane %v6517, %v6522
    %v6525 = vunpack.c.l.s4 1934713408
    %v6526 = vunpack.c.0.s8 %v6525
    %v6527 = vperm.slane %v6519, %v6526
    %v6528 = vrot.slane %v6523, 4
    %v6529 = vsel %vm635, %v6528, %v6511
    %v6530 = vrot.slane %v6511, 4
    %v6531 = vsel %vm635, %v6523, %v6530
    %v6532 = vrot.slane %v6527, 4
    %v6533 = vsel %vm635, %v6532, %v6515
    %v6534 = vrot.slane %v6515, 4
    %v6535 = vsel %vm635, %v6527, %v6534
    %v6536 = vsel %vm635, %v6476, %v6457
    %v6538 = vunpack.c.l.s4 1983009808
    %v6539 = vunpack.c.0.s8 %v6538
    %v6540 = vperm.slane %v6536, %v6539
    %v6541 = vrot.slane %v6477, 4
    %v6542 = vsel %vm635, %v6541, %v6475
    %v6544 = vunpack.c.l.s4 1983009808
    %v6545 = vunpack.c.0.s8 %v6544
    %v6546 = vperm.slane %v6542, %v6545
    %v6547 = vsel %vm635, %v6480, %v6469
    %v6549 = vunpack.c.l.s4 1983009808
    %v6550 = vunpack.c.0.s8 %v6549
    %v6551 = vperm.slane %v6547, %v6550
    %v6552 = vrot.slane %v6481, 4
    %v6553 = vsel %vm635, %v6552, %v6479
    %v6555 = vunpack.c.l.s4 1983009808
    %v6556 = vunpack.c.0.s8 %v6555
    %v6557 = vperm.slane %v6553, %v6556
    %v6558 = vrot.slane %v6546, 4
    %v6559 = vsel %vm635, %v6558, %v6540
    %v6560 = vrot.slane %v6540, 4
    %v6561 = vsel %vm635, %v6546, %v6560
    %v6563 = vunpack.c.l.s4 1934713408
    %v6564 = vunpack.c.0.s8 %v6563
    %v6565 = vperm.slane %v6559, %v6564
    %v6567 = vunpack.c.l.s4 1934713408
    %v6568 = vunpack.c.0.s8 %v6567
    %v6569 = vperm.slane %v6561, %v6568
    %v6570 = vrot.slane %v6557, 4
    %v6571 = vsel %vm635, %v6570, %v6551
    %v6572 = vrot.slane %v6551, 4
    %v6573 = vsel %vm635, %v6557, %v6572
    %v6575 = vunpack.c.l.s4 1934713408
    %v6576 = vunpack.c.0.s8 %v6575
    %v6577 = vperm.slane %v6571, %v6576
    %v6579 = vunpack.c.l.s4 1934713408
    %v6580 = vunpack.c.0.s8 %v6579
    %v6581 = vperm.slane %v6573, %v6580
    %v6582 = vrot.slane %v6577, 4
    %v6583 = vsel %vm635, %v6582, %v6565
    %v6584 = vrot.slane %v6565, 4
    %v6585 = vsel %vm635, %v6577, %v6584
    %v6586 = vrot.slane %v6581, 4
    %v6587 = vsel %vm635, %v6586, %v6569
    %v6588 = vrot.slane %v6569, 4
    %v6589 = vsel %vm635, %v6581, %v6588
    %v6591 = vsel %vm1343, %v6041, 0
    %v6594 = vsel %vm1343, %v6285, 0
    %6596 = vmatpush.xpose.msra.mxu0 0.0
    %6597 = vmatpush.xpose.msra.mxu0 0.0
    %6598 = vmatpush.xpose.msra.mxu0 0.0
    %6599 = vmatpush.xpose.msra.mxu0 0.0
    %6600 = vmatpush.xpose.msra.mxu0 0.0
    %6601 = vmatpush.xpose.msra.mxu0 0.0
    %6602 = vmatpush.xpose.msra.mxu0 0.0
    %6603 = vmatpush.xpose.msra.mxu0 0.0
    %6604 = vmatpush.xpose.msra.mxu0 0.0
    %6605 = vmatpush.xpose.msra.mxu0 0.0
    %6606 = vmatpush.xpose.msra.mxu0 0.0
    %6607 = vmatpush.xpose.msra.mxu0 0.0
    %6608 = vmatpush.xpose.msra.mxu0 0.0
    %6609 = vmatpush.xpose.msra.mxu0 0.0
    %6610 = vmatpush.xpose.msra.mxu0 0.0
    %6611 = vmatpush.xpose.msra.mxu0 %v6594
    %6612 = vmatmul.f32.gmra.mxu0 %v6591
    %v6613 = vpop.f32.mrf.mxu0
    %v6614 = vadd.f32 0.0, %v6613
    %6615 = vdwg.mxu0
    %v6617 = vsel %vm1343, %v6043, 0
    %v6620 = vsel %vm1343, %v6287, 0
    %6622 = vmatpush.xpose.msra.mxu0 0.0
    %6623 = vmatpush.xpose.msra.mxu0 0.0
    %6624 = vmatpush.xpose.msra.mxu0 0.0
    %6625 = vmatpush.xpose.msra.mxu0 0.0
    %6626 = vmatpush.xpose.msra.mxu0 0.0
    %6627 = vmatpush.xpose.msra.mxu0 0.0
    %6628 = vmatpush.xpose.msra.mxu0 0.0
    %6629 = vmatpush.xpose.msra.mxu0 0.0
    %6630 = vmatpush.xpose.msra.mxu0 0.0
    %6631 = vmatpush.xpose.msra.mxu0 0.0
    %6632 = vmatpush.xpose.msra.mxu0 0.0
    %6633 = vmatpush.xpose.msra.mxu0 0.0
    %6634 = vmatpush.xpose.msra.mxu0 0.0
    %6635 = vmatpush.xpose.msra.mxu0 0.0
    %6636 = vmatpush.xpose.msra.mxu0 0.0
    %6637 = vmatpush.xpose.msra.mxu0 %v6620
    %6638 = vmatmul.f32.gmra.mxu0 %v6617
    %v6639 = vpop.f32.mrf.mxu0
    %v6640 = vadd.f32 0.0, %v6639
    %6641 = vdwg.mxu0
    %v6643 = vsel %vm1343, %v6045, 0
    %v6646 = vsel %vm1343, %v6289, 0
    %6648 = vmatpush.xpose.msra.mxu0 0.0
    %6649 = vmatpush.xpose.msra.mxu0 0.0
    %6650 = vmatpush.xpose.msra.mxu0 0.0
    %6651 = vmatpush.xpose.msra.mxu0 0.0
    %6652 = vmatpush.xpose.msra.mxu0 0.0
    %6653 = vmatpush.xpose.msra.mxu0 0.0
    %6654 = vmatpush.xpose.msra.mxu0 0.0
    %6655 = vmatpush.xpose.msra.mxu0 0.0
    %6656 = vmatpush.xpose.msra.mxu0 0.0
    %6657 = vmatpush.xpose.msra.mxu0 0.0
    %6658 = vmatpush.xpose.msra.mxu0 0.0
    %6659 = vmatpush.xpose.msra.mxu0 0.0
    %6660 = vmatpush.xpose.msra.mxu0 0.0
    %6661 = vmatpush.xpose.msra.mxu0 0.0
    %6662 = vmatpush.xpose.msra.mxu0 0.0
    %6663 = vmatpush.xpose.msra.mxu0 %v6646
    %6664 = vmatmul.f32.gmra.mxu0 %v6643
    %v6665 = vpop.f32.mrf.mxu0
    %v6666 = vadd.f32 0.0, %v6665
    %6667 = vdwg.mxu0
    %v6669 = vsel %vm1343, %v6047, 0
    %v6672 = vsel %vm1343, %v6291, 0
    %6674 = vmatpush.xpose.msra.mxu0 0.0
    %6675 = vmatpush.xpose.msra.mxu0 0.0
    %6676 = vmatpush.xpose.msra.mxu0 0.0
    %6677 = vmatpush.xpose.msra.mxu0 0.0
    %6678 = vmatpush.xpose.msra.mxu0 0.0
    %6679 = vmatpush.xpose.msra.mxu0 0.0
    %6680 = vmatpush.xpose.msra.mxu0 0.0
    %6681 = vmatpush.xpose.msra.mxu0 0.0
    %6682 = vmatpush.xpose.msra.mxu0 0.0
    %6683 = vmatpush.xpose.msra.mxu0 0.0
    %6684 = vmatpush.xpose.msra.mxu0 0.0
    %6685 = vmatpush.xpose.msra.mxu0 0.0
    %6686 = vmatpush.xpose.msra.mxu0 0.0
    %6687 = vmatpush.xpose.msra.mxu0 0.0
    %6688 = vmatpush.xpose.msra.mxu0 0.0
    %6689 = vmatpush.xpose.msra.mxu0 %v6672
    %6690 = vmatmul.f32.gmra.mxu0 %v6669
    %v6691 = vpop.f32.mrf.mxu0
    %v6692 = vadd.f32 0.0, %v6691
    %6693 = vdwg.mxu0
    %v6695 = vsel %vm1343, %v6095, 0
    %v6698 = vsel %vm1343, %v6339, 0
    %6700 = vmatpush.xpose.msra.mxu0 0.0
    %6701 = vmatpush.xpose.msra.mxu0 0.0
    %6702 = vmatpush.xpose.msra.mxu0 0.0
    %6703 = vmatpush.xpose.msra.mxu0 0.0
    %6704 = vmatpush.xpose.msra.mxu0 0.0
    %6705 = vmatpush.xpose.msra.mxu0 0.0
    %6706 = vmatpush.xpose.msra.mxu0 0.0
    %6707 = vmatpush.xpose.msra.mxu0 0.0
    %6708 = vmatpush.xpose.msra.mxu0 0.0
    %6709 = vmatpush.xpose.msra.mxu0 0.0
    %6710 = vmatpush.xpose.msra.mxu0 0.0
    %6711 = vmatpush.xpose.msra.mxu0 0.0
    %6712 = vmatpush.xpose.msra.mxu0 0.0
    %6713 = vmatpush.xpose.msra.mxu0 0.0
    %6714 = vmatpush.xpose.msra.mxu0 0.0
    %6715 = vmatpush.xpose.msra.mxu0 %v6698
    %6716 = vmatmul.f32.gmra.mxu0 %v6695
    %v6717 = vpop.f32.mrf.mxu0
    %v6718 = vadd.f32 0.0, %v6717
    %6719 = vdwg.mxu0
    %v6721 = vsel %vm1343, %v6097, 0
    %v6724 = vsel %vm1343, %v6341, 0
    %6726 = vmatpush.xpose.msra.mxu0 0.0
    %6727 = vmatpush.xpose.msra.mxu0 0.0
    %6728 = vmatpush.xpose.msra.mxu0 0.0
    %6729 = vmatpush.xpose.msra.mxu0 0.0
    %6730 = vmatpush.xpose.msra.mxu0 0.0
    %6731 = vmatpush.xpose.msra.mxu0 0.0
    %6732 = vmatpush.xpose.msra.mxu0 0.0
    %6733 = vmatpush.xpose.msra.mxu0 0.0
    %6734 = vmatpush.xpose.msra.mxu0 0.0
    %6735 = vmatpush.xpose.msra.mxu0 0.0
    %6736 = vmatpush.xpose.msra.mxu0 0.0
    %6737 = vmatpush.xpose.msra.mxu0 0.0
    %6738 = vmatpush.xpose.msra.mxu0 0.0
    %6739 = vmatpush.xpose.msra.mxu0 0.0
    %6740 = vmatpush.xpose.msra.mxu0 0.0
    %6741 = vmatpush.xpose.msra.mxu0 %v6724
    %6742 = vmatmul.f32.gmra.mxu0 %v6721
    %v6743 = vpop.f32.mrf.mxu0
    %v6744 = vadd.f32 0.0, %v6743
    %6745 = vdwg.mxu0
    %v6747 = vsel %vm1343, %v6099, 0
    %v6750 = vsel %vm1343, %v6343, 0
    %6752 = vmatpush.xpose.msra.mxu0 0.0
    %6753 = vmatpush.xpose.msra.mxu0 0.0
    %6754 = vmatpush.xpose.msra.mxu0 0.0
    %6755 = vmatpush.xpose.msra.mxu0 0.0
    %6756 = vmatpush.xpose.msra.mxu0 0.0
    %6757 = vmatpush.xpose.msra.mxu0 0.0
    %6758 = vmatpush.xpose.msra.mxu0 0.0
    %6759 = vmatpush.xpose.msra.mxu0 0.0
    %6760 = vmatpush.xpose.msra.mxu0 0.0
    %6761 = vmatpush.xpose.msra.mxu0 0.0
    %6762 = vmatpush.xpose.msra.mxu0 0.0
    %6763 = vmatpush.xpose.msra.mxu0 0.0
    %6764 = vmatpush.xpose.msra.mxu0 0.0
    %6765 = vmatpush.xpose.msra.mxu0 0.0
    %6766 = vmatpush.xpose.msra.mxu0 0.0
    %6767 = vmatpush.xpose.msra.mxu0 %v6750
    %6768 = vmatmul.f32.gmra.mxu0 %v6747
    %v6769 = vpop.f32.mrf.mxu0
    %v6770 = vadd.f32 0.0, %v6769
    %6771 = vdwg.mxu0
    %v6773 = vsel %vm1343, %v6101, 0
    %v6776 = vsel %vm1343, %v6345, 0
    %6778 = vmatpush.xpose.msra.mxu0 0.0
    %6779 = vmatpush.xpose.msra.mxu0 0.0
    %6780 = vmatpush.xpose.msra.mxu0 0.0
    %6781 = vmatpush.xpose.msra.mxu0 0.0
    %6782 = vmatpush.xpose.msra.mxu0 0.0
    %6783 = vmatpush.xpose.msra.mxu0 0.0
    %6784 = vmatpush.xpose.msra.mxu0 0.0
    %6785 = vmatpush.xpose.msra.mxu0 0.0
    %6786 = vmatpush.xpose.msra.mxu0 0.0
    %6787 = vmatpush.xpose.msra.mxu0 0.0
    %6788 = vmatpush.xpose.msra.mxu0 0.0
    %6789 = vmatpush.xpose.msra.mxu0 0.0
    %6790 = vmatpush.xpose.msra.mxu0 0.0
    %6791 = vmatpush.xpose.msra.mxu0 0.0
    %6792 = vmatpush.xpose.msra.mxu0 0.0
    %6793 = vmatpush.xpose.msra.mxu0 %v6776
    %6794 = vmatmul.f32.gmra.mxu0 %v6773
    %v6795 = vpop.f32.mrf.mxu0
    %v6796 = vadd.f32 0.0, %v6795
    %6797 = vdwg.mxu0
    %v6798 = vmul.f32 %v6614, 0.35355338
    %v6799 = vmul.f32 %v6640, 0.35355338
    %v6800 = vmul.f32 %v6666, 0.35355338
    %v6801 = vmul.f32 %v6692, 0.35355338
    %v6802 = vmul.f32 %v6718, 0.35355338
    %v6803 = vmul.f32 %v6744, 0.35355338
    %v6804 = vmul.f32 %v6770, 0.35355338
    %v6805 = vmul.f32 %v6796, 0.35355338
    %v6806 = vsel %vm1343, %v6798, -inf
    %6807 = vmax.xlane.f32.xlu0 %v6806
    %v6808 = vpop.xlane.xlu0 %6807
    %v6809 = vsel %vm1343, %v6799, -inf
    %6810 = vmax.xlane.f32.xlu0 %v6809
    %v6811 = vpop.xlane.xlu0 %6810
    %v6812 = vsel %vm1343, %v6800, -inf
    %6813 = vmax.xlane.f32.xlu0 %v6812
    %v6814 = vpop.xlane.xlu0 %6813
    %v6815 = vsel %vm1343, %v6801, -inf
    %6816 = vmax.xlane.f32.xlu0 %v6815
    %v6817 = vpop.xlane.xlu0 %6816
    %v6818 = vsel %vm1343, %v6802, -inf
    %6819 = vmax.xlane.f32.xlu0 %v6818
    %v6820 = vpop.xlane.xlu0 %6819
    %v6821 = vsel %vm1343, %v6803, -inf
    %6822 = vmax.xlane.f32.xlu0 %v6821
    %v6823 = vpop.xlane.xlu0 %6822
    %v6824 = vsel %vm1343, %v6804, -inf
    %6825 = vmax.xlane.f32.xlu0 %v6824
    %v6826 = vpop.xlane.xlu0 %6825
    %v6827 = vsel %vm1343, %v6805, -inf
    %6828 = vmax.xlane.f32.xlu0 %v6827
    %v6829 = vpop.xlane.xlu0 %6828
    %v6830 = vsub.f32 %v6798, %v6808
    %v6831 = vsub.f32 %v6799, %v6811
    %v6832 = vsub.f32 %v6800, %v6814
    %v6833 = vsub.f32 %v6801, %v6817
    %v6834 = vsub.f32 %v6802, %v6820
    %v6835 = vsub.f32 %v6803, %v6823
    %v6836 = vsub.f32 %v6804, %v6826
    %v6837 = vsub.f32 %v6805, %v6829
    %v6838 = vmul.f32 %v6830, 1.442695
    %v6839 = vpow.pop %v6838
    %v6840 = vmul.f32 %v6831, 1.442695
    %v6841 = vpow.pop %v6840
    %v6842 = vmul.f32 %v6832, 1.442695
    %v6843 = vpow.pop %v6842
    %v6844 = vmul.f32 %v6833, 1.442695
    %v6845 = vpow.pop %v6844
    %v6846 = vmul.f32 %v6834, 1.442695
    %v6847 = vpow.pop %v6846
    %v6848 = vmul.f32 %v6835, 1.442695
    %v6849 = vpow.pop %v6848
    %v6850 = vmul.f32 %v6836, 1.442695
    %v6851 = vpow.pop %v6850
    %v6852 = vmul.f32 %v6837, 1.442695
    %v6853 = vpow.pop %v6852
    %v6854 = vsel %vm1343, %v6839, 0.0
    %6855 = vadd.xlane.f32.xlu0 %v6854
    %v6856 = vpop.xlane.xlu0 %6855
    %v6857 = vsel %vm1343, %v6841, 0.0
    %6858 = vadd.xlane.f32.xlu0 %v6857
    %v6859 = vpop.xlane.xlu0 %6858
    %v6860 = vsel %vm1343, %v6843, 0.0
    %6861 = vadd.xlane.f32.xlu0 %v6860
    %v6862 = vpop.xlane.xlu0 %6861
    %v6863 = vsel %vm1343, %v6845, 0.0
    %6864 = vadd.xlane.f32.xlu0 %v6863
    %v6865 = vpop.xlane.xlu0 %6864
    %v6866 = vsel %vm1343, %v6847, 0.0
    %6867 = vadd.xlane.f32.xlu0 %v6866
    %v6868 = vpop.xlane.xlu0 %6867
    %v6869 = vsel %vm1343, %v6849, 0.0
    %6870 = vadd.xlane.f32.xlu0 %v6869
    %v6871 = vpop.xlane.xlu0 %6870
    %v6872 = vsel %vm1343, %v6851, 0.0
    %6873 = vadd.xlane.f32.xlu0 %v6872
    %v6874 = vpop.xlane.xlu0 %6873
    %v6875 = vsel %vm1343, %v6853, 0.0
    %6876 = vadd.xlane.f32.xlu0 %v6875
    %v6877 = vpop.xlane.xlu0 %6876
    %v6878 = vrcp.pop %v6856
    %v6879 = vrcp.pop %v6859
    %v6880 = vrcp.pop %v6862
    %v6881 = vrcp.pop %v6865
    %v6882 = vrcp.pop %v6868
    %v6883 = vrcp.pop %v6871
    %v6884 = vrcp.pop %v6874
    %v6885 = vrcp.pop %v6877
    %v6886 = vmul.f32 %v6839, %v6878
    %v6887 = vmul.f32 %v6841, %v6879
    %v6888 = vmul.f32 %v6843, %v6880
    %v6889 = vmul.f32 %v6845, %v6881
    %v6890 = vmul.f32 %v6847, %v6882
    %v6891 = vmul.f32 %v6849, %v6883
    %v6892 = vmul.f32 %v6851, %v6884
    %v6893 = vmul.f32 %v6853, %v6885
    %v6895 = vsel %vm1343, %v6886, 0
    %6897 = vmatpush.msra.mxu0 0.0
    %6898 = vmatpush.msra.mxu0 0.0
    %6899 = vmatpush.msra.mxu0 0.0
    %6900 = vmatpush.msra.mxu0 0.0
    %6901 = vmatpush.msra.mxu0 0.0
    %6902 = vmatpush.msra.mxu0 0.0
    %6903 = vmatpush.msra.mxu0 0.0
    %6904 = vmatpush.msra.mxu0 0.0
    %6905 = vmatpush.msra.mxu0 0.0
    %6906 = vmatpush.msra.mxu0 0.0
    %6907 = vmatpush.msra.mxu0 0.0
    %6908 = vmatpush.msra.mxu0 0.0
    %6909 = vmatpush.msra.mxu0 0.0
    %6910 = vmatpush.msra.mxu0 0.0
    %6911 = vmatpush.msra.mxu0 0.0
    %6912 = vmatpush.msra.mxu0 %v6529
    %6913 = vmatmul.f32.gmra.mxu0 %v6895
    %v6914 = vpop.f32.mrf.mxu0
    %v6915 = vadd.f32 0.0, %v6914
    %6916 = vdwg.mxu0
    %v6918 = vsel %vm1343, %v6887, 0
    %6920 = vmatpush.msra.mxu0 0.0
    %6921 = vmatpush.msra.mxu0 0.0
    %6922 = vmatpush.msra.mxu0 0.0
    %6923 = vmatpush.msra.mxu0 0.0
    %6924 = vmatpush.msra.mxu0 0.0
    %6925 = vmatpush.msra.mxu0 0.0
    %6926 = vmatpush.msra.mxu0 0.0
    %6927 = vmatpush.msra.mxu0 0.0
    %6928 = vmatpush.msra.mxu0 0.0
    %6929 = vmatpush.msra.mxu0 0.0
    %6930 = vmatpush.msra.mxu0 0.0
    %6931 = vmatpush.msra.mxu0 0.0
    %6932 = vmatpush.msra.mxu0 0.0
    %6933 = vmatpush.msra.mxu0 0.0
    %6934 = vmatpush.msra.mxu0 0.0
    %6935 = vmatpush.msra.mxu0 %v6531
    %6936 = vmatmul.f32.gmra.mxu0 %v6918
    %v6937 = vpop.f32.mrf.mxu0
    %v6938 = vadd.f32 0.0, %v6937
    %6939 = vdwg.mxu0
    %v6941 = vsel %vm1343, %v6888, 0
    %6943 = vmatpush.msra.mxu0 0.0
    %6944 = vmatpush.msra.mxu0 0.0
    %6945 = vmatpush.msra.mxu0 0.0
    %6946 = vmatpush.msra.mxu0 0.0
    %6947 = vmatpush.msra.mxu0 0.0
    %6948 = vmatpush.msra.mxu0 0.0
    %6949 = vmatpush.msra.mxu0 0.0
    %6950 = vmatpush.msra.mxu0 0.0
    %6951 = vmatpush.msra.mxu0 0.0
    %6952 = vmatpush.msra.mxu0 0.0
    %6953 = vmatpush.msra.mxu0 0.0
    %6954 = vmatpush.msra.mxu0 0.0
    %6955 = vmatpush.msra.mxu0 0.0
    %6956 = vmatpush.msra.mxu0 0.0
    %6957 = vmatpush.msra.mxu0 0.0
    %6958 = vmatpush.msra.mxu0 %v6533
    %6959 = vmatmul.f32.gmra.mxu0 %v6941
    %v6960 = vpop.f32.mrf.mxu0
    %v6961 = vadd.f32 0.0, %v6960
    %6962 = vdwg.mxu0
    %v6964 = vsel %vm1343, %v6889, 0
    %6966 = vmatpush.msra.mxu0 0.0
    %6967 = vmatpush.msra.mxu0 0.0
    %6968 = vmatpush.msra.mxu0 0.0
    %6969 = vmatpush.msra.mxu0 0.0
    %6970 = vmatpush.msra.mxu0 0.0
    %6971 = vmatpush.msra.mxu0 0.0
    %6972 = vmatpush.msra.mxu0 0.0
    %6973 = vmatpush.msra.mxu0 0.0
    %6974 = vmatpush.msra.mxu0 0.0
    %6975 = vmatpush.msra.mxu0 0.0
    %6976 = vmatpush.msra.mxu0 0.0
    %6977 = vmatpush.msra.mxu0 0.0
    %6978 = vmatpush.msra.mxu0 0.0
    %6979 = vmatpush.msra.mxu0 0.0
    %6980 = vmatpush.msra.mxu0 0.0
    %6981 = vmatpush.msra.mxu0 %v6535
    %6982 = vmatmul.f32.gmra.mxu0 %v6964
    %v6983 = vpop.f32.mrf.mxu0
    %v6984 = vadd.f32 0.0, %v6983
    %6985 = vdwg.mxu0
    %v6987 = vsel %vm1343, %v6890, 0
    %6989 = vmatpush.msra.mxu0 0.0
    %6990 = vmatpush.msra.mxu0 0.0
    %6991 = vmatpush.msra.mxu0 0.0
    %6992 = vmatpush.msra.mxu0 0.0
    %6993 = vmatpush.msra.mxu0 0.0
    %6994 = vmatpush.msra.mxu0 0.0
    %6995 = vmatpush.msra.mxu0 0.0
    %6996 = vmatpush.msra.mxu0 0.0
    %6997 = vmatpush.msra.mxu0 0.0
    %6998 = vmatpush.msra.mxu0 0.0
    %6999 = vmatpush.msra.mxu0 0.0
    %7000 = vmatpush.msra.mxu0 0.0
    %7001 = vmatpush.msra.mxu0 0.0
    %7002 = vmatpush.msra.mxu0 0.0
    %7003 = vmatpush.msra.mxu0 0.0
    %7004 = vmatpush.msra.mxu0 %v6583
    %7005 = vmatmul.f32.gmra.mxu0 %v6987
    %v7006 = vpop.f32.mrf.mxu0
    %v7007 = vadd.f32 0.0, %v7006
    %7008 = vdwg.mxu0
    %v7010 = vsel %vm1343, %v6891, 0
    %7012 = vmatpush.msra.mxu0 0.0
    %7013 = vmatpush.msra.mxu0 0.0
    %7014 = vmatpush.msra.mxu0 0.0
    %7015 = vmatpush.msra.mxu0 0.0
    %7016 = vmatpush.msra.mxu0 0.0
    %7017 = vmatpush.msra.mxu0 0.0
    %7018 = vmatpush.msra.mxu0 0.0
    %7019 = vmatpush.msra.mxu0 0.0
    %7020 = vmatpush.msra.mxu0 0.0
    %7021 = vmatpush.msra.mxu0 0.0
    %7022 = vmatpush.msra.mxu0 0.0
    %7023 = vmatpush.msra.mxu0 0.0
    %7024 = vmatpush.msra.mxu0 0.0
    %7025 = vmatpush.msra.mxu0 0.0
    %7026 = vmatpush.msra.mxu0 0.0
    %7027 = vmatpush.msra.mxu0 %v6585
    %7028 = vmatmul.f32.gmra.mxu0 %v7010
    %v7029 = vpop.f32.mrf.mxu0
    %v7030 = vadd.f32 0.0, %v7029
    %7031 = vdwg.mxu0
    %v7033 = vsel %vm1343, %v6892, 0
    %7035 = vmatpush.msra.mxu0 0.0
    %7036 = vmatpush.msra.mxu0 0.0
    %7037 = vmatpush.msra.mxu0 0.0
    %7038 = vmatpush.msra.mxu0 0.0
    %7039 = vmatpush.msra.mxu0 0.0
    %7040 = vmatpush.msra.mxu0 0.0
    %7041 = vmatpush.msra.mxu0 0.0
    %7042 = vmatpush.msra.mxu0 0.0
    %7043 = vmatpush.msra.mxu0 0.0
    %7044 = vmatpush.msra.mxu0 0.0
    %7045 = vmatpush.msra.mxu0 0.0
    %7046 = vmatpush.msra.mxu0 0.0
    %7047 = vmatpush.msra.mxu0 0.0
    %7048 = vmatpush.msra.mxu0 0.0
    %7049 = vmatpush.msra.mxu0 0.0
    %7050 = vmatpush.msra.mxu0 %v6587
    %7051 = vmatmul.f32.gmra.mxu0 %v7033
    %v7052 = vpop.f32.mrf.mxu0
    %v7053 = vadd.f32 0.0, %v7052
    %7054 = vdwg.mxu0
    %v7056 = vsel %vm1343, %v6893, 0
    %7058 = vmatpush.msra.mxu0 0.0
    %7059 = vmatpush.msra.mxu0 0.0
    %7060 = vmatpush.msra.mxu0 0.0
    %7061 = vmatpush.msra.mxu0 0.0
    %7062 = vmatpush.msra.mxu0 0.0
    %7063 = vmatpush.msra.mxu0 0.0
    %7064 = vmatpush.msra.mxu0 0.0
    %7065 = vmatpush.msra.mxu0 0.0
    %7066 = vmatpush.msra.mxu0 0.0
    %7067 = vmatpush.msra.mxu0 0.0
    %7068 = vmatpush.msra.mxu0 0.0
    %7069 = vmatpush.msra.mxu0 0.0
    %7070 = vmatpush.msra.mxu0 0.0
    %7071 = vmatpush.msra.mxu0 0.0
    %7072 = vmatpush.msra.mxu0 0.0
    %7073 = vmatpush.msra.mxu0 %v6589
    %7074 = vmatmul.f32.gmra.mxu0 %v7056
    %v7075 = vpop.f32.mrf.mxu0
    %v7076 = vadd.f32 0.0, %v7075
    %7077 = vdwg.mxu0
    %v7078 = vrot.slane %v6961, 4
    %v7079 = vsel %vm635, %v7078, %v6915
    %v7080 = vrot.slane %v6915, 4
    %v7081 = vsel %vm635, %v6961, %v7080
    %v7083 = vunpack.c.l.s4 1983009808
    %v7084 = vunpack.c.0.s8 %v7083
    %v7085 = vperm.slane %v7079, %v7084
    %v7087 = vunpack.c.l.s4 1983009808
    %v7088 = vunpack.c.0.s8 %v7087
    %v7089 = vperm.slane %v7081, %v7088
    %v7090 = vrot.slane %v6984, 4
    %v7091 = vsel %vm635, %v7090, %v6938
    %v7092 = vrot.slane %v6938, 4
    %v7093 = vsel %vm635, %v6984, %v7092
    %v7095 = vunpack.c.l.s4 1983009808
    %v7096 = vunpack.c.0.s8 %v7095
    %v7097 = vperm.slane %v7091, %v7096
    %v7099 = vunpack.c.l.s4 1983009808
    %v7100 = vunpack.c.0.s8 %v7099
    %v7101 = vperm.slane %v7093, %v7100
    %v7102 = vrot.slane %v7097, 4
    %v7103 = vsel %vm635, %v7102, %v7085
    %v7104 = vrot.slane %v7085, 4
    %v7105 = vsel %vm635, %v7097, %v7104
    %v7107 = vunpack.c.l.s4 1934713408
    %v7108 = vunpack.c.0.s8 %v7107
    %v7109 = vperm.slane %v7103, %v7108
    %v7111 = vunpack.c.l.s4 1934713408
    %v7112 = vunpack.c.0.s8 %v7111
    %v7113 = vperm.slane %v7105, %v7112
    %v7114 = vrot.slane %v7101, 4
    %v7115 = vsel %vm635, %v7114, %v7089
    %v7116 = vrot.slane %v7089, 4
    %v7117 = vsel %vm635, %v7101, %v7116
    %v7119 = vunpack.c.l.s4 1934713408
    %v7120 = vunpack.c.0.s8 %v7119
    %v7121 = vperm.slane %v7115, %v7120
    %v7123 = vunpack.c.l.s4 1934713408
    %v7124 = vunpack.c.0.s8 %v7123
    %v7125 = vperm.slane %v7117, %v7124
    %v7126 = vrot.slane %v7109, 4
    %v7127 = vsel %vm635, 0.0, %v7126
    %v7128 = vrot.slane %v7113, 4
    %v7129 = vsel %vm635, 0.0, %v7128
    %v7130 = vrot.slane %v7121, 4
    %v7131 = vsel %vm635, 0.0, %v7130
    %v7132 = vrot.slane %v7125, 4
    %v7133 = vsel %vm635, 0.0, %v7132
    %v7134 = vrot.slane %v7053, 4
    %v7135 = vsel %vm635, %v7134, %v7007
    %v7136 = vrot.slane %v7007, 4
    %v7137 = vsel %vm635, %v7053, %v7136
    %v7139 = vunpack.c.l.s4 1983009808
    %v7140 = vunpack.c.0.s8 %v7139
    %v7141 = vperm.slane %v7135, %v7140
    %v7143 = vunpack.c.l.s4 1983009808
    %v7144 = vunpack.c.0.s8 %v7143
    %v7145 = vperm.slane %v7137, %v7144
    %v7146 = vrot.slane %v7076, 4
    %v7147 = vsel %vm635, %v7146, %v7030
    %v7148 = vrot.slane %v7030, 4
    %v7149 = vsel %vm635, %v7076, %v7148
    %v7151 = vunpack.c.l.s4 1983009808
    %v7152 = vunpack.c.0.s8 %v7151
    %v7153 = vperm.slane %v7147, %v7152
    %v7155 = vunpack.c.l.s4 1983009808
    %v7156 = vunpack.c.0.s8 %v7155
    %v7157 = vperm.slane %v7149, %v7156
    %v7158 = vrot.slane %v7153, 4
    %v7159 = vsel %vm635, %v7158, %v7141
    %v7160 = vrot.slane %v7141, 4
    %v7161 = vsel %vm635, %v7153, %v7160
    %v7163 = vunpack.c.l.s4 1934713408
    %v7164 = vunpack.c.0.s8 %v7163
    %v7165 = vperm.slane %v7159, %v7164
    %v7167 = vunpack.c.l.s4 1934713408
    %v7168 = vunpack.c.0.s8 %v7167
    %v7169 = vperm.slane %v7161, %v7168
    %v7170 = vrot.slane %v7157, 4
    %v7171 = vsel %vm635, %v7170, %v7145
    %v7172 = vrot.slane %v7145, 4
    %v7173 = vsel %vm635, %v7157, %v7172
    %v7175 = vunpack.c.l.s4 1934713408
    %v7176 = vunpack.c.0.s8 %v7175
    %v7177 = vperm.slane %v7171, %v7176
    %v7179 = vunpack.c.l.s4 1934713408
    %v7180 = vunpack.c.0.s8 %v7179
    %v7181 = vperm.slane %v7173, %v7180
    %v7182 = vrot.slane %v7165, 4
    %v7183 = vsel %vm635, 0.0, %v7182
    %v7184 = vrot.slane %v7169, 4
    %v7185 = vsel %vm635, 0.0, %v7184
    %v7186 = vrot.slane %v7177, 4
    %v7187 = vsel %vm635, 0.0, %v7186
    %v7188 = vrot.slane %v7181, 4
    %v7189 = vsel %vm635, 0.0, %v7188
    %v7190 = vsel %vm635, %v7128, %v7109
    %v7192 = vunpack.c.l.s4 1983009808
    %v7193 = vunpack.c.0.s8 %v7192
    %v7194 = vperm.slane %v7190, %v7193
    %v7195 = vrot.slane %v7129, 4
    %v7196 = vsel %vm635, %v7195, %v7127
    %v7198 = vunpack.c.l.s4 1983009808
    %v7199 = vunpack.c.0.s8 %v7198
    %v7200 = vperm.slane %v7196, %v7199
    %v7201 = vsel %vm635, %v7132, %v7121
    %v7203 = vunpack.c.l.s4 1983009808
    %v7204 = vunpack.c.0.s8 %v7203
    %v7205 = vperm.slane %v7201, %v7204
    %v7206 = vrot.slane %v7133, 4
    %v7207 = vsel %vm635, %v7206, %v7131
    %v7209 = vunpack.c.l.s4 1983009808
    %v7210 = vunpack.c.0.s8 %v7209
    %v7211 = vperm.slane %v7207, %v7210
    %v7212 = vrot.slane %v7200, 4
    %v7213 = vsel %vm635, %v7212, %v7194
    %v7214 = vrot.slane %v7194, 4
    %v7215 = vsel %vm635, %v7200, %v7214
    %v7217 = vunpack.c.l.s4 1934713408
    %v7218 = vunpack.c.0.s8 %v7217
    %v7219 = vperm.slane %v7213, %v7218
    %v7221 = vunpack.c.l.s4 1934713408
    %v7222 = vunpack.c.0.s8 %v7221
    %v7223 = vperm.slane %v7215, %v7222
    %v7224 = vrot.slane %v7211, 4
    %v7225 = vsel %vm635, %v7224, %v7205
    %v7226 = vrot.slane %v7205, 4
    %v7227 = vsel %vm635, %v7211, %v7226
    %v7229 = vunpack.c.l.s4 1934713408
    %v7230 = vunpack.c.0.s8 %v7229
    %v7231 = vperm.slane %v7225, %v7230
    %v7233 = vunpack.c.l.s4 1934713408
    %v7234 = vunpack.c.0.s8 %v7233
    %v7235 = vperm.slane %v7227, %v7234
    %v7236 = vrot.slane %v7231, 4
    %v7237 = vsel %vm635, %v7236, %v7219
    %v7238 = vrot.slane %v7219, 4
    %v7239 = vsel %vm635, %v7231, %v7238
    %v7240 = vrot.slane %v7235, 4
    %v7241 = vsel %vm635, %v7240, %v7223
    %v7242 = vrot.slane %v7223, 4
    %v7243 = vsel %vm635, %v7235, %v7242
    %v7244 = vsel %vm635, %v7184, %v7165
    %v7246 = vunpack.c.l.s4 1983009808
    %v7247 = vunpack.c.0.s8 %v7246
    %v7248 = vperm.slane %v7244, %v7247
    %v7249 = vrot.slane %v7185, 4
    %v7250 = vsel %vm635, %v7249, %v7183
    %v7252 = vunpack.c.l.s4 1983009808
    %v7253 = vunpack.c.0.s8 %v7252
    %v7254 = vperm.slane %v7250, %v7253
    %v7255 = vsel %vm635, %v7188, %v7177
    %v7257 = vunpack.c.l.s4 1983009808
    %v7258 = vunpack.c.0.s8 %v7257
    %v7259 = vperm.slane %v7255, %v7258
    %v7260 = vrot.slane %v7189, 4
    %v7261 = vsel %vm635, %v7260, %v7187
    %v7263 = vunpack.c.l.s4 1983009808
    %v7264 = vunpack.c.0.s8 %v7263
    %v7265 = vperm.slane %v7261, %v7264
    %v7266 = vrot.slane %v7254, 4
    %v7267 = vsel %vm635, %v7266, %v7248
    %v7268 = vrot.slane %v7248, 4
    %v7269 = vsel %vm635, %v7254, %v7268
    %v7271 = vunpack.c.l.s4 1934713408
    %v7272 = vunpack.c.0.s8 %v7271
    %v7273 = vperm.slane %v7267, %v7272
    %v7275 = vunpack.c.l.s4 1934713408
    %v7276 = vunpack.c.0.s8 %v7275
    %v7277 = vperm.slane %v7269, %v7276
    %v7278 = vrot.slane %v7265, 4
    %v7279 = vsel %vm635, %v7278, %v7259
    %v7280 = vrot.slane %v7259, 4
    %v7281 = vsel %vm635, %v7265, %v7280
    %v7283 = vunpack.c.l.s4 1934713408
    %v7284 = vunpack.c.0.s8 %v7283
    %v7285 = vperm.slane %v7279, %v7284
    %v7287 = vunpack.c.l.s4 1934713408
    %v7288 = vunpack.c.0.s8 %v7287
    %v7289 = vperm.slane %v7281, %v7288
    %v7290 = vrot.slane %v7285, 4
    %v7291 = vsel %vm635, %v7290, %v7273
    %v7292 = vrot.slane %v7273, 4
    %v7293 = vsel %vm635, %v7285, %v7292
    %v7294 = vrot.slane %v7289, 4
    %v7295 = vsel %vm635, %v7294, %v7277
    %v7296 = vrot.slane %v7277, 4
    %v7297 = vsel %vm635, %v7289, %v7296
    %7300 = vrot.lane.b32.xlu0 %v7239, 8
    %v7301 = vpop.permute.xlu0 %7300
    %7302 = vrot.lane.b32.xlu0 %v7293, 8
    %v7303 = vpop.permute.xlu0 %7302
    %7308 = vrot.lane.b32.xlu0 %v7241, 16
    %v7309 = vpop.permute.xlu0 %7308
    %7310 = vrot.lane.b32.xlu0 %v7295, 16
    %v7311 = vpop.permute.xlu0 %7310
    %7316 = vrot.lane.b32.xlu0 %v7243, 24
    %v7317 = vpop.permute.xlu0 %7316
    %7318 = vrot.lane.b32.xlu0 %v7297, 24
    %v7319 = vpop.permute.xlu0 %7318
    %v7322 = vsel %vm1343, %v7237, %v7301
    %v7323 = vsel %vm1343, %v7291, %v7303
    %v7324 = vsel %vm2078, %v7322, %v7309
    %v7325 = vsel %vm2078, %v7323, %v7311
    %v7326 = vsel %vm2081, %v7324, %v7317
    %v7327 = vsel %vm2081, %v7325, %v7319
    %v7329 = vperm.slane %v5861, 0
    %v7332 = vsel %vm579, %v7326, 0
    %v7335 = vsel %vm579, %v7327, 0
    %7337 = vmatpush.msra.mxu0 0.0
    %7338 = vmatpush.msra.mxu0 0.0
    %7339 = vmatpush.msra.mxu0 0.0
    %7340 = vmatpush.msra.mxu0 0.0
    %7341 = vmatpush.msra.mxu0 0.0
    %7342 = vmatpush.msra.mxu0 0.0
    %7343 = vmatpush.msra.mxu0 0.0
    %7344 = vmatpush.msra.mxu0 0.0
    %7345 = vmatpush.msra.mxu0 0.0
    %7346 = vmatpush.msra.mxu0 0.0
    %7347 = vmatpush.msra.mxu0 0.0
    %7348 = vmatpush.msra.mxu0 0.0
    %7349 = vmatpush.msra.mxu0 %v5859
    %7350 = vmatpush.msra.mxu0 %v5858
    %7351 = vmatpush.msra.mxu0 %v5857
    %7352 = vmatpush.msra.mxu0 %v5856
    %7353 = vmatmul.f32.gmra.mxu0 %v7332
    %v7354 = vpop.f32.mrf.mxu0
    %v7355 = vadd.f32 %v7329, %v7354
    %7356 = vmatmul.f32.gmra.mxu0 %v7335
    %v7357 = vpop.f32.mrf.mxu0
    %v7358 = vadd.f32 %v7329, %v7357
    %7359 = vdwg.mxu0
    %v7360 = vadd.f32 %v5814, %v7355
    %v7361 = vadd.f32 %v5815, %v7358
    %s7362 = scalar_lea.vmem [#allocation17], 3
    %v7363 = vld [vmem:[%s7362] sm:$0x1]
    %s7364 = scalar_lea.vmem [#allocation19], 3
    %v7365 = vld [vmem:[%s7364] sm:$0x1]
    %v7366 = vsel %vm579, %v7360, 0.0
    %7367 = vadd.xlane.f32.xlu0 %v7366
    %v7368 = vpop.xlane.xlu0 %7367
    %v7369 = vsel %vm579, %v7361, 0.0
    %7370 = vadd.xlane.f32.xlu0 %v7369
    %v7371 = vpop.xlane.xlu0 %7370
    %v7372 = vmul.f32 %v7368, %v2132
    %v7373 = vmul.f32 %v7371, %v2132
    %v7374 = vsub.f32 %v7360, %v7372
    %v7375 = vsub.f32 %v7361, %v7373
    %v7376 = vmul.f32 %v7374, %v7374
    %v7377 = vmul.f32 %v7375, %v7375
    %v7378 = vsel %vm579, %v7376, 0.0
    %7379 = vadd.xlane.f32.xlu0 %v7378
    %v7380 = vpop.xlane.xlu0 %7379
    %v7381 = vsel %vm579, %v7377, 0.0
    %7382 = vadd.xlane.f32.xlu0 %v7381
    %v7383 = vpop.xlane.xlu0 %7382
    %v7384 = vmul.f32 %v7380, %v2132
    %v7385 = vmul.f32 %v7383, %v2132
    %v7386 = vadd.f32 %v7384, 1e-05
    %v7387 = vadd.f32 %v7385, 1e-05
    %v7388 = vrsqrt.pop %v7386
    %v7389 = vmul.f32 %v7388, %v7386
    %v7390 = vmul.f32 %v7389, %v7388
    %v7391 = vmul.f32 0.5, %v7390
    %v7392 = vsub.f32 1.5, %v7391
    %v7393 = vmul.f32 %v7388, %v7392
    %vm7394 = vweird.f32 %v7386
    %vm7395 = vweird.f32 %v7388
    %vm7396 = vmor %vm7394, %vm7395
    %v7397 = vsel %vm7396, %v7388, %v7393
    %v7398 = vrsqrt.pop %v7387
    %v7399 = vmul.f32 %v7398, %v7387
    %v7400 = vmul.f32 %v7399, %v7398
    %v7401 = vmul.f32 0.5, %v7400
    %v7402 = vsub.f32 1.5, %v7401
    %v7403 = vmul.f32 %v7398, %v7402
    %vm7404 = vweird.f32 %v7387
    %vm7405 = vweird.f32 %v7398
    %vm7406 = vmor %vm7404, %vm7405
    %v7407 = vsel %vm7406, %v7398, %v7403
    %v7408 = vmul.f32 %v7374, %v7397
    %v7409 = vmul.f32 %v7375, %v7407
    %v7411 = vperm.slane %v7363, 0
    %v7413 = vmul.f32 %v7408, %v7411
    %v7414 = vmul.f32 %v7409, %v7411
    %v7416 = vperm.slane %v7365, 0
    %v7418 = vadd.f32 %v7413, %v7416
    %v7419 = vadd.f32 %v7414, %v7416
    %s7420 = scalar_lea.vmem %s23, 96
    %v7421 = vld [vmem:[%s7420] sm:$0xff]
    %v7422 = vld [vmem:[%s7420 + $0x8] sm:$0xff]
    %v7423 = vld [vmem:[%s7420 + $0x10] sm:$0xff]
    %v7424 = vld [vmem:[%s7420 + $0x18] sm:$0xff]
    %s7425 = scalar_lea.vmem [#allocation14], 3
    %v7426 = vld [vmem:[%s7425] sm:$0x1]
    %v7428 = vperm.slane %v7426, 0
    %v7431 = vsel %vm579, %v7418, 0
    %v7434 = vsel %vm579, %v7419, 0
    %7436 = vmatpush.msra.mxu0 0.0
    %7437 = vmatpush.msra.mxu0 0.0
    %7438 = vmatpush.msra.mxu0 0.0
    %7439 = vmatpush.msra.mxu0 0.0
    %7440 = vmatpush.msra.mxu0 0.0
    %7441 = vmatpush.msra.mxu0 0.0
    %7442 = vmatpush.msra.mxu0 0.0
    %7443 = vmatpush.msra.mxu0 0.0
    %7444 = vmatpush.msra.mxu0 0.0
    %7445 = vmatpush.msra.mxu0 0.0
    %7446 = vmatpush.msra.mxu0 0.0
    %7447 = vmatpush.msra.mxu0 0.0
    %7448 = vmatpush.msra.mxu0 %v7424
    %7449 = vmatpush.msra.mxu0 %v7423
    %7450 = vmatpush.msra.mxu0 %v7422
    %7451 = vmatpush.msra.mxu0 %v7421
    %7452 = vmatmul.f32.gmra.mxu0 %v7431
    %v7453 = vpop.f32.mrf.mxu0
    %v7454 = vadd.f32 %v7428, %v7453
    %7455 = vmatmul.f32.gmra.mxu0 %v7434
    %v7456 = vpop.f32.mrf.mxu0
    %v7457 = vadd.f32 %v7428, %v7456
    %7458 = vdwg.mxu0
    %v7459 = vmax.f32 %v7454, 0.0
    %v7460 = vmax.f32 %v7457, 0.0
    %s7461 = scalar_lea.vmem %s27, 192
    %v7462 = vld [vmem:[%s7461] sm:$0xff]
    %v7463 = vld [vmem:[%s7461 + $0x8] sm:$0xff]
    %v7464 = vld [vmem:[%s7461 + $0x10] sm:$0xff]
    %v7465 = vld [vmem:[%s7461 + $0x18] sm:$0xff]
    %v7466 = vld [vmem:[%s7461 + $0x20] sm:$0xff]
    %v7467 = vld [vmem:[%s7461 + $0x28] sm:$0xff]
    %v7468 = vld [vmem:[%s7461 + $0x30] sm:$0xff]
    %v7469 = vld [vmem:[%s7461 + $0x38] sm:$0xff]
    %s7470 = scalar_lea.vmem [#allocation16], 3
    %v7471 = vld [vmem:[%s7470] sm:$0x1]
    %v7473 = vperm.slane %v7471, 0
    %v7476 = vsel %vm2232, %v7459, 0
    %v7479 = vsel %vm2232, %v7460, 0
    %7481 = vmatpush.msra.mxu0 0.0
    %7482 = vmatpush.msra.mxu0 0.0
    %7483 = vmatpush.msra.mxu0 0.0
    %7484 = vmatpush.msra.mxu0 0.0
    %7485 = vmatpush.msra.mxu0 0.0
    %7486 = vmatpush.msra.mxu0 0.0
    %7487 = vmatpush.msra.mxu0 0.0
    %7488 = vmatpush.msra.mxu0 0.0
    %7489 = vmatpush.msra.mxu0 %v7469
    %7490 = vmatpush.msra.mxu0 %v7468
    %7491 = vmatpush.msra.mxu0 %v7467
    %7492 = vmatpush.msra.mxu0 %v7466
    %7493 = vmatpush.msra.mxu0 %v7465
    %7494 = vmatpush.msra.mxu0 %v7464
    %7495 = vmatpush.msra.mxu0 %v7463
    %7496 = vmatpush.msra.mxu0 %v7462
    %7497 = vmatmul.f32.gmra.mxu0 %v7476
    %v7498 = vpop.f32.mrf.mxu0
    %v7499 = vadd.f32 %v7473, %v7498
    %7500 = vmatmul.f32.gmra.mxu0 %v7479
    %v7501 = vpop.f32.mrf.mxu0
    %v7502 = vadd.f32 %v7473, %v7501
    %7503 = vdwg.mxu0
    %v7504 = vadd.f32 %v7418, %v7499
    %v7505 = vadd.f32 %v7419, %v7502
    %s7506 = scalar_lea.vmem [#allocation20], 3
    %v7507 = vld [vmem:[%s7506] sm:$0x1]
    %s7508 = scalar_lea.vmem [#allocation22], 3
    %v7509 = vld [vmem:[%s7508] sm:$0x1]
    %v7510 = vsel %vm579, %v7504, 0.0
    %7511 = vadd.xlane.f32.xlu0 %v7510
    %v7512 = vpop.xlane.xlu0 %7511
    %v7513 = vsel %vm579, %v7505, 0.0
    %7514 = vadd.xlane.f32.xlu0 %v7513
    %v7515 = vpop.xlane.xlu0 %7514
    %v7516 = vmul.f32 %v7512, %v2132
    %v7517 = vmul.f32 %v7515, %v2132
    %v7518 = vsub.f32 %v7504, %v7516
    %v7519 = vsub.f32 %v7505, %v7517
    %v7520 = vmul.f32 %v7518, %v7518
    %v7521 = vmul.f32 %v7519, %v7519
    %v7522 = vsel %vm579, %v7520, 0.0
    %7523 = vadd.xlane.f32.xlu0 %v7522
    %v7524 = vpop.xlane.xlu0 %7523
    %v7525 = vsel %vm579, %v7521, 0.0
    %7526 = vadd.xlane.f32.xlu0 %v7525
    %v7527 = vpop.xlane.xlu0 %7526
    %v7528 = vmul.f32 %v7524, %v2132
    %v7529 = vmul.f32 %v7527, %v2132
    %v7530 = vadd.f32 %v7528, 1e-05
    %v7531 = vadd.f32 %v7529, 1e-05
    %v7532 = vrsqrt.pop %v7530
    %v7533 = vmul.f32 %v7532, %v7530
    %v7534 = vmul.f32 %v7533, %v7532
    %v7535 = vmul.f32 0.5, %v7534
    %v7536 = vsub.f32 1.5, %v7535
    %v7537 = vmul.f32 %v7532, %v7536
    %vm7538 = vweird.f32 %v7530
    %vm7539 = vweird.f32 %v7532
    %vm7540 = vmor %vm7538, %vm7539
    %v7541 = vsel %vm7540, %v7532, %v7537
    %v7542 = vrsqrt.pop %v7531
    %v7543 = vmul.f32 %v7542, %v7531
    %v7544 = vmul.f32 %v7543, %v7542
    %v7545 = vmul.f32 0.5, %v7544
    %v7546 = vsub.f32 1.5, %v7545
    %v7547 = vmul.f32 %v7542, %v7546
    %vm7548 = vweird.f32 %v7531
    %vm7549 = vweird.f32 %v7542
    %vm7550 = vmor %vm7548, %vm7549
    %v7551 = vsel %vm7550, %v7542, %v7547
    %v7552 = vmul.f32 %v7518, %v7541
    %v7553 = vmul.f32 %v7519, %v7551
    %v7555 = vperm.slane %v7507, 0
    %v7557 = vmul.f32 %v7552, %v7555
    %v7558 = vmul.f32 %v7553, %v7555
    %v7560 = vperm.slane %v7509, 0
    %v7562 = vadd.f32 %v7557, %v7560
    %v7563 = vadd.f32 %v7558, %v7560
    %v7564 = vld [vmem:[%s39] sm:$0xff]
    %v7565 = vld [vmem:[%s39 + $0x8] sm:$0xff]
    %v7566 = vld [vmem:[%s39 + $0x10] sm:$0xff]
    %v7567 = vld [vmem:[%s39 + $0x18] sm:$0xff]
    %v7568 = vld [vmem:[#allocation23] sm:$0x1]
    %v7570 = vperm.slane %v7568, 0
    %v7574 = vrot.slane %v4066, 7
    %v7575 = vrot.slane %v4067, 6
    %vm7576 = vcmask 1041409
    %v7577 = vsel %vm7576, %v7575, %v7574
    %v7578 = vsel %vm579, %v7577, 0
    %7580 = vmatpush.msra.mxu0 0.0
    %7581 = vmatpush.msra.mxu0 0.0
    %7582 = vmatpush.msra.mxu0 0.0
    %7583 = vmatpush.msra.mxu0 0.0
    %7584 = vmatpush.msra.mxu0 0.0
    %7585 = vmatpush.msra.mxu0 0.0
    %7586 = vmatpush.msra.mxu0 0.0
    %7587 = vmatpush.msra.mxu0 0.0
    %7588 = vmatpush.msra.mxu0 0.0
    %7589 = vmatpush.msra.mxu0 0.0
    %7590 = vmatpush.msra.mxu0 0.0
    %7591 = vmatpush.msra.mxu0 0.0
    %7592 = vmatpush.msra.mxu0 %v7567
    %7593 = vmatpush.msra.mxu0 %v7566
    %7594 = vmatpush.msra.mxu0 %v7565
    %7595 = vmatpush.msra.mxu0 %v7564
    %7596 = vmatmul.f32.gmra.mxu0 %v7578
    %v7597 = vpop.f32.mrf.mxu0
    %v7598 = vadd.f32 %v7570, %v7597
    %7599 = vdwg.mxu0
    %v7600 = vld [vmem:[#allocation25] sm:$0xff]
    %v7601 = vld [vmem:[#allocation25 + $0x8] sm:$0xff]
    %v7602 = vld [vmem:[#allocation25 + $0x10] sm:$0xff]
    %v7603 = vld [vmem:[#allocation25 + $0x18] sm:$0xff]
    %v7604 = vld [vmem:[#allocation26] sm:$0x1]
    %v7606 = vperm.slane %v7604, 0
    %v7609 = vsel %vm579, %v7562, 0
    %v7612 = vsel %vm579, %v7563, 0
    %7614 = vmatpush.msra.mxu0 0.0
    %7615 = vmatpush.msra.mxu0 0.0
    %7616 = vmatpush.msra.mxu0 0.0
    %7617 = vmatpush.msra.mxu0 0.0
    %7618 = vmatpush.msra.mxu0 0.0
    %7619 = vmatpush.msra.mxu0 0.0
    %7620 = vmatpush.msra.mxu0 0.0
    %7621 = vmatpush.msra.mxu0 0.0
    %7622 = vmatpush.msra.mxu0 0.0
    %7623 = vmatpush.msra.mxu0 0.0
    %7624 = vmatpush.msra.mxu0 0.0
    %7625 = vmatpush.msra.mxu0 0.0
    %7626 = vmatpush.msra.mxu0 %v7603
    %7627 = vmatpush.msra.mxu0 %v7602
    %7628 = vmatpush.msra.mxu0 %v7601
    %7629 = vmatpush.msra.mxu0 %v7600
    %7630 = vmatmul.f32.gmra.mxu0 %v7609
    %v7631 = vpop.f32.mrf.mxu0
    %v7632 = vadd.f32 %v7606, %v7631
    %7633 = vmatmul.f32.gmra.mxu0 %v7612
    %v7634 = vpop.f32.mrf.mxu0
    %v7635 = vadd.f32 %v7606, %v7634
    %7636 = vdwg.mxu0
    %v7637 = vld [vmem:[#allocation28] sm:$0xff]
    %v7638 = vld [vmem:[#allocation28 + $0x8] sm:$0xff]
    %v7639 = vld [vmem:[#allocation28 + $0x10] sm:$0xff]
    %v7640 = vld [vmem:[#allocation28 + $0x18] sm:$0xff]
    %v7641 = vld [vmem:[#allocation29] sm:$0x1]
    %7643 = vrot.lane.b32.xlu0 %v7598, 120
    %v7644 = vpop.permute.xlu0 %7643
    %7646 = vrot.lane.b32.xlu0 %v7598, 112
    %v7647 = vpop.permute.xlu0 %7646
    %7649 = vrot.lane.b32.xlu0 %v7598, 104
    %v7650 = vpop.permute.xlu0 %7649
    %v7652 = vrot.slane %v7647, 4
    %v7653 = vsel %vm635, %v7652, %v7598
    %v7655 = vunpack.c.l.s4 1983009808
    %v7656 = vunpack.c.0.s8 %v7655
    %v7657 = vperm.slane %v7653, %v7656
    %v7658 = vrot.slane %v7650, 4
    %v7659 = vsel %vm635, %v7658, %v7644
    %v7661 = vunpack.c.l.s4 1983009808
    %v7662 = vunpack.c.0.s8 %v7661
    %v7663 = vperm.slane %v7659, %v7662
    %v7664 = vrot.slane %v7663, 4
    %v7665 = vsel %vm635, %v7664, %v7657
    %v7667 = vunpack.c.l.s4 1934713408
    %v7668 = vunpack.c.0.s8 %v7667
    %v7669 = vperm.slane %v7665, %v7668
    %v7671 = vunpack.c.l.s4 1983009808
    %v7672 = vunpack.c.0.s8 %v7671
    %v7673 = vperm.slane %v7669, %v7672
    %v7674 = vrot.slane %v7673, 4
    %v7675 = vsel %vm635, 0.0, %v7674
    %v7677 = vunpack.c.l.s4 1934713408
    %v7678 = vunpack.c.0.s8 %v7677
    %v7679 = vperm.slane %v7673, %v7678
    %v7681 = vunpack.c.l.s4 1934713408
    %v7682 = vunpack.c.0.s8 %v7681
    %v7683 = vperm.slane %v7675, %v7682
    %v7684 = vrot.slane %v7679, 4
    %v7685 = vsel %vm635, 0.0, %v7684
    %v7686 = vrot.slane %v7683, 4
    %v7687 = vsel %vm635, 0.0, %v7686
    %v7688 = vrot.slane %v7669, 4
    %v7689 = vsel %vm635, 0.0, %v7688
    %v7691 = vunpack.c.l.s4 1983009808
    %v7692 = vunpack.c.0.s8 %v7691
    %v7693 = vperm.slane %v7689, %v7692
    %v7694 = vrot.slane %v7693, 4
    %v7695 = vsel %vm635, 0.0, %v7694
    %v7697 = vunpack.c.l.s4 1934713408
    %v7698 = vunpack.c.0.s8 %v7697
    %v7699 = vperm.slane %v7693, %v7698
    %v7701 = vunpack.c.l.s4 1934713408
    %v7702 = vunpack.c.0.s8 %v7701
    %v7703 = vperm.slane %v7695, %v7702
    %v7704 = vrot.slane %v7699, 4
    %v7705 = vsel %vm635, 0.0, %v7704
    %v7706 = vrot.slane %v7703, 4
    %v7707 = vsel %vm635, 0.0, %v7706
    %7710 = vrot.lane.b32.xlu0 %v7632, 120
    %v7711 = vpop.permute.xlu0 %7710
    %7712 = vrot.lane.b32.xlu0 %v7635, 120
    %v7713 = vpop.permute.xlu0 %7712
    %7716 = vrot.lane.b32.xlu0 %v7632, 112
    %v7717 = vpop.permute.xlu0 %7716
    %7718 = vrot.lane.b32.xlu0 %v7635, 112
    %v7719 = vpop.permute.xlu0 %7718
    %7722 = vrot.lane.b32.xlu0 %v7632, 104
    %v7723 = vpop.permute.xlu0 %7722
    %7724 = vrot.lane.b32.xlu0 %v7635, 104
    %v7725 = vpop.permute.xlu0 %7724
    %v7728 = vrot.slane %v7717, 4
    %v7729 = vsel %vm635, %v7728, %v7632
    %v7730 = vrot.slane %v7632, 4
    %v7731 = vsel %vm635, %v7717, %v7730
    %v7733 = vunpack.c.l.s4 1983009808
    %v7734 = vunpack.c.0.s8 %v7733
    %v7735 = vperm.slane %v7729, %v7734
    %v7737 = vunpack.c.l.s4 1983009808
    %v7738 = vunpack.c.0.s8 %v7737
    %v7739 = vperm.slane %v7731, %v7738
    %v7740 = vrot.slane %v7723, 4
    %v7741 = vsel %vm635, %v7740, %v7711
    %v7742 = vrot.slane %v7711, 4
    %v7743 = vsel %vm635, %v7723, %v7742
    %v7745 = vunpack.c.l.s4 1983009808
    %v7746 = vunpack.c.0.s8 %v7745
    %v7747 = vperm.slane %v7741, %v7746
    %v7749 = vunpack.c.l.s4 1983009808
    %v7750 = vunpack.c.0.s8 %v7749
    %v7751 = vperm.slane %v7743, %v7750
    %v7752 = vrot.slane %v7747, 4
    %v7753 = vsel %vm635, %v7752, %v7735
    %v7754 = vrot.slane %v7735, 4
    %v7755 = vsel %vm635, %v7747, %v7754
    %v7757 = vunpack.c.l.s4 1934713408
    %v7758 = vunpack.c.0.s8 %v7757
    %v7759 = vperm.slane %v7753, %v7758
    %v7761 = vunpack.c.l.s4 1934713408
    %v7762 = vunpack.c.0.s8 %v7761
    %v7763 = vperm.slane %v7755, %v7762
    %v7764 = vrot.slane %v7751, 4
    %v7765 = vsel %vm635, %v7764, %v7739
    %v7766 = vrot.slane %v7739, 4
    %v7767 = vsel %vm635, %v7751, %v7766
    %v7769 = vunpack.c.l.s4 1934713408
    %v7770 = vunpack.c.0.s8 %v7769
    %v7771 = vperm.slane %v7765, %v7770
    %v7773 = vunpack.c.l.s4 1934713408
    %v7774 = vunpack.c.0.s8 %v7773
    %v7775 = vperm.slane %v7767, %v7774
    %v7776 = vrot.slane %v7759, 4
    %v7777 = vsel %vm635, 0.0, %v7776
    %v7778 = vrot.slane %v7763, 4
    %v7779 = vsel %vm635, 0.0, %v7778
    %v7780 = vrot.slane %v7771, 4
    %v7781 = vsel %vm635, 0.0, %v7780
    %v7782 = vrot.slane %v7775, 4
    %v7783 = vsel %vm635, 0.0, %v7782
    %v7784 = vrot.slane %v7719, 4
    %v7785 = vsel %vm635, %v7784, %v7635
    %v7786 = vrot.slane %v7635, 4
    %v7787 = vsel %vm635, %v7719, %v7786
    %v7789 = vunpack.c.l.s4 1983009808
    %v7790 = vunpack.c.0.s8 %v7789
    %v7791 = vperm.slane %v7785, %v7790
    %v7793 = vunpack.c.l.s4 1983009808
    %v7794 = vunpack.c.0.s8 %v7793
    %v7795 = vperm.slane %v7787, %v7794
    %v7796 = vrot.slane %v7725, 4
    %v7797 = vsel %vm635, %v7796, %v7713
    %v7798 = vrot.slane %v7713, 4
    %v7799 = vsel %vm635, %v7725, %v7798
    %v7801 = vunpack.c.l.s4 1983009808
    %v7802 = vunpack.c.0.s8 %v7801
    %v7803 = vperm.slane %v7797, %v7802
    %v7805 = vunpack.c.l.s4 1983009808
    %v7806 = vunpack.c.0.s8 %v7805
    %v7807 = vperm.slane %v7799, %v7806
    %v7808 = vrot.slane %v7803, 4
    %v7809 = vsel %vm635, %v7808, %v7791
    %v7810 = vrot.slane %v7791, 4
    %v7811 = vsel %vm635, %v7803, %v7810
    %v7813 = vunpack.c.l.s4 1934713408
    %v7814 = vunpack.c.0.s8 %v7813
    %v7815 = vperm.slane %v7809, %v7814
    %v7817 = vunpack.c.l.s4 1934713408
    %v7818 = vunpack.c.0.s8 %v7817
    %v7819 = vperm.slane %v7811, %v7818
    %v7820 = vrot.slane %v7807, 4
    %v7821 = vsel %vm635, %v7820, %v7795
    %v7822 = vrot.slane %v7795, 4
    %v7823 = vsel %vm635, %v7807, %v7822
    %v7825 = vunpack.c.l.s4 1934713408
    %v7826 = vunpack.c.0.s8 %v7825
    %v7827 = vperm.slane %v7821, %v7826
    %v7829 = vunpack.c.l.s4 1934713408
    %v7830 = vunpack.c.0.s8 %v7829
    %v7831 = vperm.slane %v7823, %v7830
    %v7832 = vrot.slane %v7815, 4
    %v7833 = vsel %vm635, 0.0, %v7832
    %v7834 = vrot.slane %v7819, 4
    %v7835 = vsel %vm635, 0.0, %v7834
    %v7836 = vrot.slane %v7827, 4
    %v7837 = vsel %vm635, 0.0, %v7836
    %v7838 = vrot.slane %v7831, 4
    %v7839 = vsel %vm635, 0.0, %v7838
    %v7840 = vsel %vm635, %v7778, %v7759
    %v7842 = vunpack.c.l.s4 1983009808
    %v7843 = vunpack.c.0.s8 %v7842
    %v7844 = vperm.slane %v7840, %v7843
    %v7845 = vrot.slane %v7779, 4
    %v7846 = vsel %vm635, %v7845, %v7777
    %v7848 = vunpack.c.l.s4 1983009808
    %v7849 = vunpack.c.0.s8 %v7848
    %v7850 = vperm.slane %v7846, %v7849
    %v7851 = vsel %vm635, %v7782, %v7771
    %v7853 = vunpack.c.l.s4 1983009808
    %v7854 = vunpack.c.0.s8 %v7853
    %v7855 = vperm.slane %v7851, %v7854
    %v7856 = vrot.slane %v7783, 4
    %v7857 = vsel %vm635, %v7856, %v7781
    %v7859 = vunpack.c.l.s4 1983009808
    %v7860 = vunpack.c.0.s8 %v7859
    %v7861 = vperm.slane %v7857, %v7860
    %v7862 = vrot.slane %v7850, 4
    %v7863 = vsel %vm635, %v7862, %v7844
    %v7864 = vrot.slane %v7844, 4
    %v7865 = vsel %vm635, %v7850, %v7864
    %v7867 = vunpack.c.l.s4 1934713408
    %v7868 = vunpack.c.0.s8 %v7867
    %v7869 = vperm.slane %v7863, %v7868
    %v7871 = vunpack.c.l.s4 1934713408
    %v7872 = vunpack.c.0.s8 %v7871
    %v7873 = vperm.slane %v7865, %v7872
    %v7874 = vrot.slane %v7861, 4
    %v7875 = vsel %vm635, %v7874, %v7855
    %v7876 = vrot.slane %v7855, 4
    %v7877 = vsel %vm635, %v7861, %v7876
    %v7879 = vunpack.c.l.s4 1934713408
    %v7880 = vunpack.c.0.s8 %v7879
    %v7881 = vperm.slane %v7875, %v7880
    %v7883 = vunpack.c.l.s4 1934713408
    %v7884 = vunpack.c.0.s8 %v7883
    %v7885 = vperm.slane %v7877, %v7884
    %v7886 = vrot.slane %v7881, 4
    %v7887 = vsel %vm635, %v7886, %v7869
    %v7888 = vrot.slane %v7869, 4
    %v7889 = vsel %vm635, %v7881, %v7888
    %v7890 = vrot.slane %v7885, 4
    %v7891 = vsel %vm635, %v7890, %v7873
    %v7892 = vrot.slane %v7873, 4
    %v7893 = vsel %vm635, %v7885, %v7892
    %v7894 = vsel %vm635, %v7834, %v7815
    %v7896 = vunpack.c.l.s4 1983009808
    %v7897 = vunpack.c.0.s8 %v7896
    %v7898 = vperm.slane %v7894, %v7897
    %v7899 = vrot.slane %v7835, 4
    %v7900 = vsel %vm635, %v7899, %v7833
    %v7902 = vunpack.c.l.s4 1983009808
    %v7903 = vunpack.c.0.s8 %v7902
    %v7904 = vperm.slane %v7900, %v7903
    %v7905 = vsel %vm635, %v7838, %v7827
    %v7907 = vunpack.c.l.s4 1983009808
    %v7908 = vunpack.c.0.s8 %v7907
    %v7909 = vperm.slane %v7905, %v7908
    %v7910 = vrot.slane %v7839, 4
    %v7911 = vsel %vm635, %v7910, %v7837
    %v7913 = vunpack.c.l.s4 1983009808
    %v7914 = vunpack.c.0.s8 %v7913
    %v7915 = vperm.slane %v7911, %v7914
    %v7916 = vrot.slane %v7904, 4
    %v7917 = vsel %vm635, %v7916, %v7898
    %v7918 = vrot.slane %v7898, 4
    %v7919 = vsel %vm635, %v7904, %v7918
    %v7921 = vunpack.c.l.s4 1934713408
    %v7922 = vunpack.c.0.s8 %v7921
    %v7923 = vperm.slane %v7917, %v7922
    %v7925 = vunpack.c.l.s4 1934713408
    %v7926 = vunpack.c.0.s8 %v7925
    %v7927 = vperm.slane %v7919, %v7926
    %v7928 = vrot.slane %v7915, 4
    %v7929 = vsel %vm635, %v7928, %v7909
    %v7930 = vrot.slane %v7909, 4
    %v7931 = vsel %vm635, %v7915, %v7930
    %v7933 = vunpack.c.l.s4 1934713408
    %v7934 = vunpack.c.0.s8 %v7933
    %v7935 = vperm.slane %v7929, %v7934
    %v7937 = vunpack.c.l.s4 1934713408
    %v7938 = vunpack.c.0.s8 %v7937
    %v7939 = vperm.slane %v7931, %v7938
    %v7940 = vrot.slane %v7935, 4
    %v7941 = vsel %vm635, %v7940, %v7923
    %v7942 = vrot.slane %v7923, 4
    %v7943 = vsel %vm635, %v7935, %v7942
    %v7944 = vrot.slane %v7939, 4
    %v7945 = vsel %vm635, %v7944, %v7927
    %v7946 = vrot.slane %v7927, 4
    %v7947 = vsel %vm635, %v7939, %v7946
    %7948 = vrot.lane.b32.xlu0 %v7632, 96
    %v7949 = vpop.permute.xlu0 %7948
    %7950 = vrot.lane.b32.xlu0 %v7635, 96
    %v7951 = vpop.permute.xlu0 %7950
    %7952 = vrot.lane.b32.xlu0 %v7711, 96
    %v7953 = vpop.permute.xlu0 %7952
    %7954 = vrot.lane.b32.xlu0 %v7713, 96
    %v7955 = vpop.permute.xlu0 %7954
    %7956 = vrot.lane.b32.xlu0 %v7717, 96
    %v7957 = vpop.permute.xlu0 %7956
    %7958 = vrot.lane.b32.xlu0 %v7719, 96
    %v7959 = vpop.permute.xlu0 %7958
    %7960 = vrot.lane.b32.xlu0 %v7723, 96
    %v7961 = vpop.permute.xlu0 %7960
    %7962 = vrot.lane.b32.xlu0 %v7725, 96
    %v7963 = vpop.permute.xlu0 %7962
    %v7972 = vrot.slane %v7957, 4
    %v7973 = vsel %vm635, %v7972, %v7949
    %v7974 = vrot.slane %v7949, 4
    %v7975 = vsel %vm635, %v7957, %v7974
    %v7977 = vunpack.c.l.s4 1983009808
    %v7978 = vunpack.c.0.s8 %v7977
    %v7979 = vperm.slane %v7973, %v7978
    %v7981 = vunpack.c.l.s4 1983009808
    %v7982 = vunpack.c.0.s8 %v7981
    %v7983 = vperm.slane %v7975, %v7982
    %v7984 = vrot.slane %v7961, 4
    %v7985 = vsel %vm635, %v7984, %v7953
    %v7986 = vrot.slane %v7953, 4
    %v7987 = vsel %vm635, %v7961, %v7986
    %v7989 = vunpack.c.l.s4 1983009808
    %v7990 = vunpack.c.0.s8 %v7989
    %v7991 = vperm.slane %v7985, %v7990
    %v7993 = vunpack.c.l.s4 1983009808
    %v7994 = vunpack.c.0.s8 %v7993
    %v7995 = vperm.slane %v7987, %v7994
    %v7996 = vrot.slane %v7991, 4
    %v7997 = vsel %vm635, %v7996, %v7979
    %v7998 = vrot.slane %v7979, 4
    %v7999 = vsel %vm635, %v7991, %v7998
    %v8001 = vunpack.c.l.s4 1934713408
    %v8002 = vunpack.c.0.s8 %v8001
    %v8003 = vperm.slane %v7997, %v8002
    %v8005 = vunpack.c.l.s4 1934713408
    %v8006 = vunpack.c.0.s8 %v8005
    %v8007 = vperm.slane %v7999, %v8006
    %v8008 = vrot.slane %v7995, 4
    %v8009 = vsel %vm635, %v8008, %v7983
    %v8010 = vrot.slane %v7983, 4
    %v8011 = vsel %vm635, %v7995, %v8010
    %v8013 = vunpack.c.l.s4 1934713408
    %v8014 = vunpack.c.0.s8 %v8013
    %v8015 = vperm.slane %v8009, %v8014
    %v8017 = vunpack.c.l.s4 1934713408
    %v8018 = vunpack.c.0.s8 %v8017
    %v8019 = vperm.slane %v8011, %v8018
    %v8020 = vrot.slane %v8003, 4
    %v8021 = vsel %vm635, 0.0, %v8020
    %v8022 = vrot.slane %v8007, 4
    %v8023 = vsel %vm635, 0.0, %v8022
    %v8024 = vrot.slane %v8015, 4
    %v8025 = vsel %vm635, 0.0, %v8024
    %v8026 = vrot.slane %v8019, 4
    %v8027 = vsel %vm635, 0.0, %v8026
    %v8028 = vrot.slane %v7959, 4
    %v8029 = vsel %vm635, %v8028, %v7951
    %v8030 = vrot.slane %v7951, 4
    %v8031 = vsel %vm635, %v7959, %v8030
    %v8033 = vunpack.c.l.s4 1983009808
    %v8034 = vunpack.c.0.s8 %v8033
    %v8035 = vperm.slane %v8029, %v8034
    %v8037 = vunpack.c.l.s4 1983009808
    %v8038 = vunpack.c.0.s8 %v8037
    %v8039 = vperm.slane %v8031, %v8038
    %v8040 = vrot.slane %v7963, 4
    %v8041 = vsel %vm635, %v8040, %v7955
    %v8042 = vrot.slane %v7955, 4
    %v8043 = vsel %vm635, %v7963, %v8042
    %v8045 = vunpack.c.l.s4 1983009808
    %v8046 = vunpack.c.0.s8 %v8045
    %v8047 = vperm.slane %v8041, %v8046
    %v8049 = vunpack.c.l.s4 1983009808
    %v8050 = vunpack.c.0.s8 %v8049
    %v8051 = vperm.slane %v8043, %v8050
    %v8052 = vrot.slane %v8047, 4
    %v8053 = vsel %vm635, %v8052, %v8035
    %v8054 = vrot.slane %v8035, 4
    %v8055 = vsel %vm635, %v8047, %v8054
    %v8057 = vunpack.c.l.s4 1934713408
    %v8058 = vunpack.c.0.s8 %v8057
    %v8059 = vperm.slane %v8053, %v8058
    %v8061 = vunpack.c.l.s4 1934713408
    %v8062 = vunpack.c.0.s8 %v8061
    %v8063 = vperm.slane %v8055, %v8062
    %v8064 = vrot.slane %v8051, 4
    %v8065 = vsel %vm635, %v8064, %v8039
    %v8066 = vrot.slane %v8039, 4
    %v8067 = vsel %vm635, %v8051, %v8066
    %v8069 = vunpack.c.l.s4 1934713408
    %v8070 = vunpack.c.0.s8 %v8069
    %v8071 = vperm.slane %v8065, %v8070
    %v8073 = vunpack.c.l.s4 1934713408
    %v8074 = vunpack.c.0.s8 %v8073
    %v8075 = vperm.slane %v8067, %v8074
    %v8076 = vrot.slane %v8059, 4
    %v8077 = vsel %vm635, 0.0, %v8076
    %v8078 = vrot.slane %v8063, 4
    %v8079 = vsel %vm635, 0.0, %v8078
    %v8080 = vrot.slane %v8071, 4
    %v8081 = vsel %vm635, 0.0, %v8080
    %v8082 = vrot.slane %v8075, 4
    %v8083 = vsel %vm635, 0.0, %v8082
    %v8084 = vsel %vm635, %v8022, %v8003
    %v8086 = vunpack.c.l.s4 1983009808
    %v8087 = vunpack.c.0.s8 %v8086
    %v8088 = vperm.slane %v8084, %v8087
    %v8089 = vrot.slane %v8023, 4
    %v8090 = vsel %vm635, %v8089, %v8021
    %v8092 = vunpack.c.l.s4 1983009808
    %v8093 = vunpack.c.0.s8 %v8092
    %v8094 = vperm.slane %v8090, %v8093
    %v8095 = vsel %vm635, %v8026, %v8015
    %v8097 = vunpack.c.l.s4 1983009808
    %v8098 = vunpack.c.0.s8 %v8097
    %v8099 = vperm.slane %v8095, %v8098
    %v8100 = vrot.slane %v8027, 4
    %v8101 = vsel %vm635, %v8100, %v8025
    %v8103 = vunpack.c.l.s4 1983009808
    %v8104 = vunpack.c.0.s8 %v8103
    %v8105 = vperm.slane %v8101, %v8104
    %v8106 = vrot.slane %v8094, 4
    %v8107 = vsel %vm635, %v8106, %v8088
    %v8108 = vrot.slane %v8088, 4
    %v8109 = vsel %vm635, %v8094, %v8108
    %v8111 = vunpack.c.l.s4 1934713408
    %v8112 = vunpack.c.0.s8 %v8111
    %v8113 = vperm.slane %v8107, %v8112
    %v8115 = vunpack.c.l.s4 1934713408
    %v8116 = vunpack.c.0.s8 %v8115
    %v8117 = vperm.slane %v8109, %v8116
    %v8118 = vrot.slane %v8105, 4
    %v8119 = vsel %vm635, %v8118, %v8099
    %v8120 = vrot.slane %v8099, 4
    %v8121 = vsel %vm635, %v8105, %v8120
    %v8123 = vunpack.c.l.s4 1934713408
    %v8124 = vunpack.c.0.s8 %v8123
    %v8125 = vperm.slane %v8119, %v8124
    %v8127 = vunpack.c.l.s4 1934713408
    %v8128 = vunpack.c.0.s8 %v8127
    %v8129 = vperm.slane %v8121, %v8128
    %v8130 = vrot.slane %v8125, 4
    %v8131 = vsel %vm635, %v8130, %v8113
    %v8132 = vrot.slane %v8113, 4
    %v8133 = vsel %vm635, %v8125, %v8132
    %v8134 = vrot.slane %v8129, 4
    %v8135 = vsel %vm635, %v8134, %v8117
    %v8136 = vrot.slane %v8117, 4
    %v8137 = vsel %vm635, %v8129, %v8136
    %v8138 = vsel %vm635, %v8078, %v8059
    %v8140 = vunpack.c.l.s4 1983009808
    %v8141 = vunpack.c.0.s8 %v8140
    %v8142 = vperm.slane %v8138, %v8141
    %v8143 = vrot.slane %v8079, 4
    %v8144 = vsel %vm635, %v8143, %v8077
    %v8146 = vunpack.c.l.s4 1983009808
    %v8147 = vunpack.c.0.s8 %v8146
    %v8148 = vperm.slane %v8144, %v8147
    %v8149 = vsel %vm635, %v8082, %v8071
    %v8151 = vunpack.c.l.s4 1983009808
    %v8152 = vunpack.c.0.s8 %v8151
    %v8153 = vperm.slane %v8149, %v8152
    %v8154 = vrot.slane %v8083, 4
    %v8155 = vsel %vm635, %v8154, %v8081
    %v8157 = vunpack.c.l.s4 1983009808
    %v8158 = vunpack.c.0.s8 %v8157
    %v8159 = vperm.slane %v8155, %v8158
    %v8160 = vrot.slane %v8148, 4
    %v8161 = vsel %vm635, %v8160, %v8142
    %v8162 = vrot.slane %v8142, 4
    %v8163 = vsel %vm635, %v8148, %v8162
    %v8165 = vunpack.c.l.s4 1934713408
    %v8166 = vunpack.c.0.s8 %v8165
    %v8167 = vperm.slane %v8161, %v8166
    %v8169 = vunpack.c.l.s4 1934713408
    %v8170 = vunpack.c.0.s8 %v8169
    %v8171 = vperm.slane %v8163, %v8170
    %v8172 = vrot.slane %v8159, 4
    %v8173 = vsel %vm635, %v8172, %v8153
    %v8174 = vrot.slane %v8153, 4
    %v8175 = vsel %vm635, %v8159, %v8174
    %v8177 = vunpack.c.l.s4 1934713408
    %v8178 = vunpack.c.0.s8 %v8177
    %v8179 = vperm.slane %v8173, %v8178
    %v8181 = vunpack.c.l.s4 1934713408
    %v8182 = vunpack.c.0.s8 %v8181
    %v8183 = vperm.slane %v8175, %v8182
    %v8184 = vrot.slane %v8179, 4
    %v8185 = vsel %vm635, %v8184, %v8167
    %v8186 = vrot.slane %v8167, 4
    %v8187 = vsel %vm635, %v8179, %v8186
    %v8188 = vrot.slane %v8183, 4
    %v8189 = vsel %vm635, %v8188, %v8171
    %v8190 = vrot.slane %v8171, 4
    %v8191 = vsel %vm635, %v8183, %v8190
    %v8193 = vsel %vm1343, %v7679, 0
    %v8196 = vsel %vm1343, %v7887, 0
    %8198 = vmatpush.xpose.msra.mxu0 0.0
    %8199 = vmatpush.xpose.msra.mxu0 0.0
    %8200 = vmatpush.xpose.msra.mxu0 0.0
    %8201 = vmatpush.xpose.msra.mxu0 0.0
    %8202 = vmatpush.xpose.msra.mxu0 0.0
    %8203 = vmatpush.xpose.msra.mxu0 0.0
    %8204 = vmatpush.xpose.msra.mxu0 0.0
    %8205 = vmatpush.xpose.msra.mxu0 0.0
    %8206 = vmatpush.xpose.msra.mxu0 0.0
    %8207 = vmatpush.xpose.msra.mxu0 0.0
    %8208 = vmatpush.xpose.msra.mxu0 0.0
    %8209 = vmatpush.xpose.msra.mxu0 0.0
    %8210 = vmatpush.xpose.msra.mxu0 0.0
    %8211 = vmatpush.xpose.msra.mxu0 0.0
    %8212 = vmatpush.xpose.msra.mxu0 0.0
    %8213 = vmatpush.xpose.msra.mxu0 %v8196
    %8214 = vmatmul.f32.gmra.mxu0 %v8193
    %v8215 = vpop.f32.mrf.mxu0
    %v8216 = vadd.f32 0.0, %v8215
    %8217 = vdwg.mxu0
    %v8219 = vsel %vm1343, %v7685, 0
    %v8222 = vsel %vm1343, %v7889, 0
    %8224 = vmatpush.xpose.msra.mxu0 0.0
    %8225 = vmatpush.xpose.msra.mxu0 0.0
    %8226 = vmatpush.xpose.msra.mxu0 0.0
    %8227 = vmatpush.xpose.msra.mxu0 0.0
    %8228 = vmatpush.xpose.msra.mxu0 0.0
    %8229 = vmatpush.xpose.msra.mxu0 0.0
    %8230 = vmatpush.xpose.msra.mxu0 0.0
    %8231 = vmatpush.xpose.msra.mxu0 0.0
    %8232 = vmatpush.xpose.msra.mxu0 0.0
    %8233 = vmatpush.xpose.msra.mxu0 0.0
    %8234 = vmatpush.xpose.msra.mxu0 0.0
    %8235 = vmatpush.xpose.msra.mxu0 0.0
    %8236 = vmatpush.xpose.msra.mxu0 0.0
    %8237 = vmatpush.xpose.msra.mxu0 0.0
    %8238 = vmatpush.xpose.msra.mxu0 0.0
    %8239 = vmatpush.xpose.msra.mxu0 %v8222
    %8240 = vmatmul.f32.gmra.mxu0 %v8219
    %v8241 = vpop.f32.mrf.mxu0
    %v8242 = vadd.f32 0.0, %v8241
    %8243 = vdwg.mxu0
    %v8245 = vsel %vm1343, %v7683, 0
    %v8248 = vsel %vm1343, %v7891, 0
    %8250 = vmatpush.xpose.msra.mxu0 0.0
    %8251 = vmatpush.xpose.msra.mxu0 0.0
    %8252 = vmatpush.xpose.msra.mxu0 0.0
    %8253 = vmatpush.xpose.msra.mxu0 0.0
    %8254 = vmatpush.xpose.msra.mxu0 0.0
    %8255 = vmatpush.xpose.msra.mxu0 0.0
    %8256 = vmatpush.xpose.msra.mxu0 0.0
    %8257 = vmatpush.xpose.msra.mxu0 0.0
    %8258 = vmatpush.xpose.msra.mxu0 0.0
    %8259 = vmatpush.xpose.msra.mxu0 0.0
    %8260 = vmatpush.xpose.msra.mxu0 0.0
    %8261 = vmatpush.xpose.msra.mxu0 0.0
    %8262 = vmatpush.xpose.msra.mxu0 0.0
    %8263 = vmatpush.xpose.msra.mxu0 0.0
    %8264 = vmatpush.xpose.msra.mxu0 0.0
    %8265 = vmatpush.xpose.msra.mxu0 %v8248
    %8266 = vmatmul.f32.gmra.mxu0 %v8245
    %v8267 = vpop.f32.mrf.mxu0
    %v8268 = vadd.f32 0.0, %v8267
    %8269 = vdwg.mxu0
    %v8271 = vsel %vm1343, %v7687, 0
    %v8274 = vsel %vm1343, %v7893, 0
    %8276 = vmatpush.xpose.msra.mxu0 0.0
    %8277 = vmatpush.xpose.msra.mxu0 0.0
    %8278 = vmatpush.xpose.msra.mxu0 0.0
    %8279 = vmatpush.xpose.msra.mxu0 0.0
    %8280 = vmatpush.xpose.msra.mxu0 0.0
    %8281 = vmatpush.xpose.msra.mxu0 0.0
    %8282 = vmatpush.xpose.msra.mxu0 0.0
    %8283 = vmatpush.xpose.msra.mxu0 0.0
    %8284 = vmatpush.xpose.msra.mxu0 0.0
    %8285 = vmatpush.xpose.msra.mxu0 0.0
    %8286 = vmatpush.xpose.msra.mxu0 0.0
    %8287 = vmatpush.xpose.msra.mxu0 0.0
    %8288 = vmatpush.xpose.msra.mxu0 0.0
    %8289 = vmatpush.xpose.msra.mxu0 0.0
    %8290 = vmatpush.xpose.msra.mxu0 0.0
    %8291 = vmatpush.xpose.msra.mxu0 %v8274
    %8292 = vmatmul.f32.gmra.mxu0 %v8271
    %v8293 = vpop.f32.mrf.mxu0
    %v8294 = vadd.f32 0.0, %v8293
    %8295 = vdwg.mxu0
    %v8297 = vsel %vm1343, %v7699, 0
    %v8300 = vsel %vm1343, %v7941, 0
    %8302 = vmatpush.xpose.msra.mxu0 0.0
    %8303 = vmatpush.xpose.msra.mxu0 0.0
    %8304 = vmatpush.xpose.msra.mxu0 0.0
    %8305 = vmatpush.xpose.msra.mxu0 0.0
    %8306 = vmatpush.xpose.msra.mxu0 0.0
    %8307 = vmatpush.xpose.msra.mxu0 0.0
    %8308 = vmatpush.xpose.msra.mxu0 0.0
    %8309 = vmatpush.xpose.msra.mxu0 0.0
    %8310 = vmatpush.xpose.msra.mxu0 0.0
    %8311 = vmatpush.xpose.msra.mxu0 0.0
    %8312 = vmatpush.xpose.msra.mxu0 0.0
    %8313 = vmatpush.xpose.msra.mxu0 0.0
    %8314 = vmatpush.xpose.msra.mxu0 0.0
    %8315 = vmatpush.xpose.msra.mxu0 0.0
    %8316 = vmatpush.xpose.msra.mxu0 0.0
    %8317 = vmatpush.xpose.msra.mxu0 %v8300
    %8318 = vmatmul.f32.gmra.mxu0 %v8297
    %v8319 = vpop.f32.mrf.mxu0
    %v8320 = vadd.f32 0.0, %v8319
    %8321 = vdwg.mxu0
    %v8323 = vsel %vm1343, %v7705, 0
    %v8326 = vsel %vm1343, %v7943, 0
    %8328 = vmatpush.xpose.msra.mxu0 0.0
    %8329 = vmatpush.xpose.msra.mxu0 0.0
    %8330 = vmatpush.xpose.msra.mxu0 0.0
    %8331 = vmatpush.xpose.msra.mxu0 0.0
    %8332 = vmatpush.xpose.msra.mxu0 0.0
    %8333 = vmatpush.xpose.msra.mxu0 0.0
    %8334 = vmatpush.xpose.msra.mxu0 0.0
    %8335 = vmatpush.xpose.msra.mxu0 0.0
    %8336 = vmatpush.xpose.msra.mxu0 0.0
    %8337 = vmatpush.xpose.msra.mxu0 0.0
    %8338 = vmatpush.xpose.msra.mxu0 0.0
    %8339 = vmatpush.xpose.msra.mxu0 0.0
    %8340 = vmatpush.xpose.msra.mxu0 0.0
    %8341 = vmatpush.xpose.msra.mxu0 0.0
    %8342 = vmatpush.xpose.msra.mxu0 0.0
    %8343 = vmatpush.xpose.msra.mxu0 %v8326
    %8344 = vmatmul.f32.gmra.mxu0 %v8323
    %v8345 = vpop.f32.mrf.mxu0
    %v8346 = vadd.f32 0.0, %v8345
    %8347 = vdwg.mxu0
    %v8349 = vsel %vm1343, %v7703, 0
    %v8352 = vsel %vm1343, %v7945, 0
    %8354 = vmatpush.xpose.msra.mxu0 0.0
    %8355 = vmatpush.xpose.msra.mxu0 0.0
    %8356 = vmatpush.xpose.msra.mxu0 0.0
    %8357 = vmatpush.xpose.msra.mxu0 0.0
    %8358 = vmatpush.xpose.msra.mxu0 0.0
    %8359 = vmatpush.xpose.msra.mxu0 0.0
    %8360 = vmatpush.xpose.msra.mxu0 0.0
    %8361 = vmatpush.xpose.msra.mxu0 0.0
    %8362 = vmatpush.xpose.msra.mxu0 0.0
    %8363 = vmatpush.xpose.msra.mxu0 0.0
    %8364 = vmatpush.xpose.msra.mxu0 0.0
    %8365 = vmatpush.xpose.msra.mxu0 0.0
    %8366 = vmatpush.xpose.msra.mxu0 0.0
    %8367 = vmatpush.xpose.msra.mxu0 0.0
    %8368 = vmatpush.xpose.msra.mxu0 0.0
    %8369 = vmatpush.xpose.msra.mxu0 %v8352
    %8370 = vmatmul.f32.gmra.mxu0 %v8349
    %v8371 = vpop.f32.mrf.mxu0
    %v8372 = vadd.f32 0.0, %v8371
    %8373 = vdwg.mxu0
    %v8375 = vsel %vm1343, %v7707, 0
    %v8378 = vsel %vm1343, %v7947, 0
    %8380 = vmatpush.xpose.msra.mxu0 0.0
    %8381 = vmatpush.xpose.msra.mxu0 0.0
    %8382 = vmatpush.xpose.msra.mxu0 0.0
    %8383 = vmatpush.xpose.msra.mxu0 0.0
    %8384 = vmatpush.xpose.msra.mxu0 0.0
    %8385 = vmatpush.xpose.msra.mxu0 0.0
    %8386 = vmatpush.xpose.msra.mxu0 0.0
    %8387 = vmatpush.xpose.msra.mxu0 0.0
    %8388 = vmatpush.xpose.msra.mxu0 0.0
    %8389 = vmatpush.xpose.msra.mxu0 0.0
    %8390 = vmatpush.xpose.msra.mxu0 0.0
    %8391 = vmatpush.xpose.msra.mxu0 0.0
    %8392 = vmatpush.xpose.msra.mxu0 0.0
    %8393 = vmatpush.xpose.msra.mxu0 0.0
    %8394 = vmatpush.xpose.msra.mxu0 0.0
    %8395 = vmatpush.xpose.msra.mxu0 %v8378
    %8396 = vmatmul.f32.gmra.mxu0 %v8375
    %v8397 = vpop.f32.mrf.mxu0
    %v8398 = vadd.f32 0.0, %v8397
    %8399 = vdwg.mxu0
    %v8400 = vmul.f32 %v8216, 0.35355338
    %v8401 = vmul.f32 %v8242, 0.35355338
    %v8402 = vmul.f32 %v8268, 0.35355338
    %v8403 = vmul.f32 %v8294, 0.35355338
    %v8404 = vmul.f32 %v8320, 0.35355338
    %v8405 = vmul.f32 %v8346, 0.35355338
    %v8406 = vmul.f32 %v8372, 0.35355338
    %v8407 = vmul.f32 %v8398, 0.35355338
    %vm8408 = vcmask 57344
    %v8409 = vsel %vm8408, %v8400, -inf
    %8410 = vmax.xlane.f32.xlu0 %v8409
    %v8411 = vpop.xlane.xlu0 %8410
    %v8412 = vsel %vm8408, %v8401, -inf
    %8413 = vmax.xlane.f32.xlu0 %v8412
    %v8414 = vpop.xlane.xlu0 %8413
    %v8415 = vsel %vm8408, %v8402, -inf
    %8416 = vmax.xlane.f32.xlu0 %v8415
    %v8417 = vpop.xlane.xlu0 %8416
    %v8418 = vsel %vm8408, %v8403, -inf
    %8419 = vmax.xlane.f32.xlu0 %v8418
    %v8420 = vpop.xlane.xlu0 %8419
    %v8421 = vsel %vm8408, %v8404, -inf
    %8422 = vmax.xlane.f32.xlu0 %v8421
    %v8423 = vpop.xlane.xlu0 %8422
    %v8424 = vsel %vm8408, %v8405, -inf
    %8425 = vmax.xlane.f32.xlu0 %v8424
    %v8426 = vpop.xlane.xlu0 %8425
    %v8427 = vsel %vm8408, %v8406, -inf
    %8428 = vmax.xlane.f32.xlu0 %v8427
    %v8429 = vpop.xlane.xlu0 %8428
    %v8430 = vsel %vm8408, %v8407, -inf
    %8431 = vmax.xlane.f32.xlu0 %v8430
    %v8432 = vpop.xlane.xlu0 %8431
    %v8433 = vsub.f32 %v8400, %v8411
    %v8434 = vsub.f32 %v8401, %v8414
    %v8435 = vsub.f32 %v8402, %v8417
    %v8436 = vsub.f32 %v8403, %v8420
    %v8437 = vsub.f32 %v8404, %v8423
    %v8438 = vsub.f32 %v8405, %v8426
    %v8439 = vsub.f32 %v8406, %v8429
    %v8440 = vsub.f32 %v8407, %v8432
    %v8441 = vmul.f32 %v8433, 1.442695
    %v8442 = vpow.pop %v8441
    %v8443 = vmul.f32 %v8434, 1.442695
    %v8444 = vpow.pop %v8443
    %v8445 = vmul.f32 %v8435, 1.442695
    %v8446 = vpow.pop %v8445
    %v8447 = vmul.f32 %v8436, 1.442695
    %v8448 = vpow.pop %v8447
    %v8449 = vmul.f32 %v8437, 1.442695
    %v8450 = vpow.pop %v8449
    %v8451 = vmul.f32 %v8438, 1.442695
    %v8452 = vpow.pop %v8451
    %v8453 = vmul.f32 %v8439, 1.442695
    %v8454 = vpow.pop %v8453
    %v8455 = vmul.f32 %v8440, 1.442695
    %v8456 = vpow.pop %v8455
    %v8457 = vsel %vm8408, %v8442, 0.0
    %8458 = vadd.xlane.f32.xlu0 %v8457
    %v8459 = vpop.xlane.xlu0 %8458
    %v8460 = vsel %vm8408, %v8444, 0.0
    %8461 = vadd.xlane.f32.xlu0 %v8460
    %v8462 = vpop.xlane.xlu0 %8461
    %v8463 = vsel %vm8408, %v8446, 0.0
    %8464 = vadd.xlane.f32.xlu0 %v8463
    %v8465 = vpop.xlane.xlu0 %8464
    %v8466 = vsel %vm8408, %v8448, 0.0
    %8467 = vadd.xlane.f32.xlu0 %v8466
    %v8468 = vpop.xlane.xlu0 %8467
    %v8469 = vsel %vm8408, %v8450, 0.0
    %8470 = vadd.xlane.f32.xlu0 %v8469
    %v8471 = vpop.xlane.xlu0 %8470
    %v8472 = vsel %vm8408, %v8452, 0.0
    %8473 = vadd.xlane.f32.xlu0 %v8472
    %v8474 = vpop.xlane.xlu0 %8473
    %v8475 = vsel %vm8408, %v8454, 0.0
    %8476 = vadd.xlane.f32.xlu0 %v8475
    %v8477 = vpop.xlane.xlu0 %8476
    %v8478 = vsel %vm8408, %v8456, 0.0
    %8479 = vadd.xlane.f32.xlu0 %v8478
    %v8480 = vpop.xlane.xlu0 %8479
    %v8481 = vrcp.pop %v8459
    %v8482 = vrcp.pop %v8462
    %v8483 = vrcp.pop %v8465
    %v8484 = vrcp.pop %v8468
    %v8485 = vrcp.pop %v8471
    %v8486 = vrcp.pop %v8474
    %v8487 = vrcp.pop %v8477
    %v8488 = vrcp.pop %v8480
    %v8489 = vmul.f32 %v8442, %v8481
    %v8490 = vmul.f32 %v8444, %v8482
    %v8491 = vmul.f32 %v8446, %v8483
    %v8492 = vmul.f32 %v8448, %v8484
    %v8493 = vmul.f32 %v8450, %v8485
    %v8494 = vmul.f32 %v8452, %v8486
    %v8495 = vmul.f32 %v8454, %v8487
    %v8496 = vmul.f32 %v8456, %v8488
    %v8498 = vsel %vm1343, %v8489, 0
    %8500 = vmatpush.msra.mxu0 0.0
    %8501 = vmatpush.msra.mxu0 0.0
    %8502 = vmatpush.msra.mxu0 0.0
    %8503 = vmatpush.msra.mxu0 0.0
    %8504 = vmatpush.msra.mxu0 0.0
    %8505 = vmatpush.msra.mxu0 0.0
    %8506 = vmatpush.msra.mxu0 0.0
    %8507 = vmatpush.msra.mxu0 0.0
    %8508 = vmatpush.msra.mxu0 0.0
    %8509 = vmatpush.msra.mxu0 0.0
    %8510 = vmatpush.msra.mxu0 0.0
    %8511 = vmatpush.msra.mxu0 0.0
    %8512 = vmatpush.msra.mxu0 0.0
    %8513 = vmatpush.msra.mxu0 0.0
    %8514 = vmatpush.msra.mxu0 0.0
    %8515 = vmatpush.msra.mxu0 %v8131
    %8516 = vmatmul.f32.gmra.mxu0 %v8498
    %v8517 = vpop.f32.mrf.mxu0
    %v8518 = vadd.f32 0.0, %v8517
    %8519 = vdwg.mxu0
    %v8521 = vsel %vm1343, %v8490, 0
    %8523 = vmatpush.msra.mxu0 0.0
    %8524 = vmatpush.msra.mxu0 0.0
    %8525 = vmatpush.msra.mxu0 0.0
    %8526 = vmatpush.msra.mxu0 0.0
    %8527 = vmatpush.msra.mxu0 0.0
    %8528 = vmatpush.msra.mxu0 0.0
    %8529 = vmatpush.msra.mxu0 0.0
    %8530 = vmatpush.msra.mxu0 0.0
    %8531 = vmatpush.msra.mxu0 0.0
    %8532 = vmatpush.msra.mxu0 0.0
    %8533 = vmatpush.msra.mxu0 0.0
    %8534 = vmatpush.msra.mxu0 0.0
    %8535 = vmatpush.msra.mxu0 0.0
    %8536 = vmatpush.msra.mxu0 0.0
    %8537 = vmatpush.msra.mxu0 0.0
    %8538 = vmatpush.msra.mxu0 %v8133
    %8539 = vmatmul.f32.gmra.mxu0 %v8521
    %v8540 = vpop.f32.mrf.mxu0
    %v8541 = vadd.f32 0.0, %v8540
    %8542 = vdwg.mxu0
    %v8544 = vsel %vm1343, %v8491, 0
    %8546 = vmatpush.msra.mxu0 0.0
    %8547 = vmatpush.msra.mxu0 0.0
    %8548 = vmatpush.msra.mxu0 0.0
    %8549 = vmatpush.msra.mxu0 0.0
    %8550 = vmatpush.msra.mxu0 0.0
    %8551 = vmatpush.msra.mxu0 0.0
    %8552 = vmatpush.msra.mxu0 0.0
    %8553 = vmatpush.msra.mxu0 0.0
    %8554 = vmatpush.msra.mxu0 0.0
    %8555 = vmatpush.msra.mxu0 0.0
    %8556 = vmatpush.msra.mxu0 0.0
    %8557 = vmatpush.msra.mxu0 0.0
    %8558 = vmatpush.msra.mxu0 0.0
    %8559 = vmatpush.msra.mxu0 0.0
    %8560 = vmatpush.msra.mxu0 0.0
    %8561 = vmatpush.msra.mxu0 %v8135
    %8562 = vmatmul.f32.gmra.mxu0 %v8544
    %v8563 = vpop.f32.mrf.mxu0
    %v8564 = vadd.f32 0.0, %v8563
    %8565 = vdwg.mxu0
    %v8567 = vsel %vm1343, %v8492, 0
    %8569 = vmatpush.msra.mxu0 0.0
    %8570 = vmatpush.msra.mxu0 0.0
    %8571 = vmatpush.msra.mxu0 0.0
    %8572 = vmatpush.msra.mxu0 0.0
    %8573 = vmatpush.msra.mxu0 0.0
    %8574 = vmatpush.msra.mxu0 0.0
    %8575 = vmatpush.msra.mxu0 0.0
    %8576 = vmatpush.msra.mxu0 0.0
    %8577 = vmatpush.msra.mxu0 0.0
    %8578 = vmatpush.msra.mxu0 0.0
    %8579 = vmatpush.msra.mxu0 0.0
    %8580 = vmatpush.msra.mxu0 0.0
    %8581 = vmatpush.msra.mxu0 0.0
    %8582 = vmatpush.msra.mxu0 0.0
    %8583 = vmatpush.msra.mxu0 0.0
    %8584 = vmatpush.msra.mxu0 %v8137
    %8585 = vmatmul.f32.gmra.mxu0 %v8567
    %v8586 = vpop.f32.mrf.mxu0
    %v8587 = vadd.f32 0.0, %v8586
    %8588 = vdwg.mxu0
    %v8590 = vsel %vm1343, %v8493, 0
    %8592 = vmatpush.msra.mxu0 0.0
    %8593 = vmatpush.msra.mxu0 0.0
    %8594 = vmatpush.msra.mxu0 0.0
    %8595 = vmatpush.msra.mxu0 0.0
    %8596 = vmatpush.msra.mxu0 0.0
    %8597 = vmatpush.msra.mxu0 0.0
    %8598 = vmatpush.msra.mxu0 0.0
    %8599 = vmatpush.msra.mxu0 0.0
    %8600 = vmatpush.msra.mxu0 0.0
    %8601 = vmatpush.msra.mxu0 0.0
    %8602 = vmatpush.msra.mxu0 0.0
    %8603 = vmatpush.msra.mxu0 0.0
    %8604 = vmatpush.msra.mxu0 0.0
    %8605 = vmatpush.msra.mxu0 0.0
    %8606 = vmatpush.msra.mxu0 0.0
    %8607 = vmatpush.msra.mxu0 %v8185
    %8608 = vmatmul.f32.gmra.mxu0 %v8590
    %v8609 = vpop.f32.mrf.mxu0
    %v8610 = vadd.f32 0.0, %v8609
    %8611 = vdwg.mxu0
    %v8613 = vsel %vm1343, %v8494, 0
    %8615 = vmatpush.msra.mxu0 0.0
    %8616 = vmatpush.msra.mxu0 0.0
    %8617 = vmatpush.msra.mxu0 0.0
    %8618 = vmatpush.msra.mxu0 0.0
    %8619 = vmatpush.msra.mxu0 0.0
    %8620 = vmatpush.msra.mxu0 0.0
    %8621 = vmatpush.msra.mxu0 0.0
    %8622 = vmatpush.msra.mxu0 0.0
    %8623 = vmatpush.msra.mxu0 0.0
    %8624 = vmatpush.msra.mxu0 0.0
    %8625 = vmatpush.msra.mxu0 0.0
    %8626 = vmatpush.msra.mxu0 0.0
    %8627 = vmatpush.msra.mxu0 0.0
    %8628 = vmatpush.msra.mxu0 0.0
    %8629 = vmatpush.msra.mxu0 0.0
    %8630 = vmatpush.msra.mxu0 %v8187
    %8631 = vmatmul.f32.gmra.mxu0 %v8613
    %v8632 = vpop.f32.mrf.mxu0
    %v8633 = vadd.f32 0.0, %v8632
    %8634 = vdwg.mxu0
    %v8636 = vsel %vm1343, %v8495, 0
    %8638 = vmatpush.msra.mxu0 0.0
    %8639 = vmatpush.msra.mxu0 0.0
    %8640 = vmatpush.msra.mxu0 0.0
    %8641 = vmatpush.msra.mxu0 0.0
    %8642 = vmatpush.msra.mxu0 0.0
    %8643 = vmatpush.msra.mxu0 0.0
    %8644 = vmatpush.msra.mxu0 0.0
    %8645 = vmatpush.msra.mxu0 0.0
    %8646 = vmatpush.msra.mxu0 0.0
    %8647 = vmatpush.msra.mxu0 0.0
    %8648 = vmatpush.msra.mxu0 0.0
    %8649 = vmatpush.msra.mxu0 0.0
    %8650 = vmatpush.msra.mxu0 0.0
    %8651 = vmatpush.msra.mxu0 0.0
    %8652 = vmatpush.msra.mxu0 0.0
    %8653 = vmatpush.msra.mxu0 %v8189
    %8654 = vmatmul.f32.gmra.mxu0 %v8636
    %v8655 = vpop.f32.mrf.mxu0
    %v8656 = vadd.f32 0.0, %v8655
    %8657 = vdwg.mxu0
    %v8659 = vsel %vm1343, %v8496, 0
    %8661 = vmatpush.msra.mxu0 0.0
    %8662 = vmatpush.msra.mxu0 0.0
    %8663 = vmatpush.msra.mxu0 0.0
    %8664 = vmatpush.msra.mxu0 0.0
    %8665 = vmatpush.msra.mxu0 0.0
    %8666 = vmatpush.msra.mxu0 0.0
    %8667 = vmatpush.msra.mxu0 0.0
    %8668 = vmatpush.msra.mxu0 0.0
    %8669 = vmatpush.msra.mxu0 0.0
    %8670 = vmatpush.msra.mxu0 0.0
    %8671 = vmatpush.msra.mxu0 0.0
    %8672 = vmatpush.msra.mxu0 0.0
    %8673 = vmatpush.msra.mxu0 0.0
    %8674 = vmatpush.msra.mxu0 0.0
    %8675 = vmatpush.msra.mxu0 0.0
    %8676 = vmatpush.msra.mxu0 %v8191
    %8677 = vmatmul.f32.gmra.mxu0 %v8659
    %v8678 = vpop.f32.mrf.mxu0
    %v8679 = vadd.f32 0.0, %v8678
    %8680 = vdwg.mxu0
    %v8681 = vrot.slane %v8564, 4
    %v8682 = vsel %vm635, %v8681, %v8518
    %v8684 = vunpack.c.l.s4 1983009808
    %v8685 = vunpack.c.0.s8 %v8684
    %v8686 = vperm.slane %v8682, %v8685
    %v8687 = vrot.slane %v8587, 4
    %v8688 = vsel %vm635, %v8687, %v8541
    %v8690 = vunpack.c.l.s4 1983009808
    %v8691 = vunpack.c.0.s8 %v8690
    %v8692 = vperm.slane %v8688, %v8691
    %v8693 = vrot.slane %v8692, 4
    %v8694 = vsel %vm635, %v8693, %v8686
    %v8695 = vrot.slane %v8656, 4
    %v8696 = vsel %vm635, %v8695, %v8610
    %v8698 = vunpack.c.l.s4 1983009808
    %v8699 = vunpack.c.0.s8 %v8698
    %v8700 = vperm.slane %v8696, %v8699
    %v8701 = vrot.slane %v8679, 4
    %v8702 = vsel %vm635, %v8701, %v8633
    %v8704 = vunpack.c.l.s4 1983009808
    %v8705 = vunpack.c.0.s8 %v8704
    %v8706 = vperm.slane %v8702, %v8705
    %v8707 = vrot.slane %v8706, 4
    %v8708 = vsel %vm635, %v8707, %v8700
    %v8710 = vunpack.c.l.s4 1934713408
    %v8711 = vunpack.c.0.s8 %v8710
    %v8712 = vperm.slane %v8694, %v8711
    %v8714 = vunpack.c.l.s4 1983009808
    %v8715 = vunpack.c.0.s8 %v8714
    %v8716 = vperm.slane %v8712, %v8715
    %v8718 = vunpack.c.l.s4 1934713408
    %v8719 = vunpack.c.0.s8 %v8718
    %v8720 = vperm.slane %v8708, %v8719
    %v8722 = vunpack.c.l.s4 1983009808
    %v8723 = vunpack.c.0.s8 %v8722
    %v8724 = vperm.slane %v8720, %v8723
    %v8725 = vrot.slane %v8724, 4
    %v8726 = vsel %vm635, %v8725, %v8716
    %v8727 = vrot.slane %v8716, 4
    %v8728 = vsel %vm635, %v8724, %v8727
    %v8730 = vunpack.c.l.s4 1934713408
    %v8731 = vunpack.c.0.s8 %v8730
    %v8732 = vperm.slane %v8726, %v8731
    %v8734 = vunpack.c.l.s4 1934713408
    %v8735 = vunpack.c.0.s8 %v8734
    %v8736 = vperm.slane %v8728, %v8735
    %v8737 = vrot.slane %v8732, 4
    %v8738 = vsel %vm635, 0.0, %v8737
    %v8739 = vrot.slane %v8736, 4
    %v8740 = vsel %vm635, 0.0, %v8739
    %8742 = vrot.lane.b32.xlu0 %v8738, 8
    %v8743 = vpop.permute.xlu0 %8742
    %8746 = vrot.lane.b32.xlu0 %v8736, 16
    %v8747 = vpop.permute.xlu0 %8746
    %8750 = vrot.lane.b32.xlu0 %v8740, 24
    %v8751 = vpop.permute.xlu0 %8750
    %v8753 = vsel %vm1343, %v8732, %v8743
    %v8754 = vsel %vm2078, %v8753, %v8747
    %v8755 = vsel %vm2081, %v8754, %v8751
    %v8757 = vperm.slane %v7641, 0
    %v8760 = vsel %vm579, %v8755, 0
    %8762 = vmatpush.msra.mxu0 0.0
    %8763 = vmatpush.msra.mxu0 0.0
    %8764 = vmatpush.msra.mxu0 0.0
    %8765 = vmatpush.msra.mxu0 0.0
    %8766 = vmatpush.msra.mxu0 0.0
    %8767 = vmatpush.msra.mxu0 0.0
    %8768 = vmatpush.msra.mxu0 0.0
    %8769 = vmatpush.msra.mxu0 0.0
    %8770 = vmatpush.msra.mxu0 0.0
    %8771 = vmatpush.msra.mxu0 0.0
    %8772 = vmatpush.msra.mxu0 0.0
    %8773 = vmatpush.msra.mxu0 0.0
    %8774 = vmatpush.msra.mxu0 %v7640
    %8775 = vmatpush.msra.mxu0 %v7639
    %8776 = vmatpush.msra.mxu0 %v7638
    %8777 = vmatpush.msra.mxu0 %v7637
    %8778 = vmatmul.f32.gmra.mxu0 %v8760
    %v8779 = vpop.f32.mrf.mxu0
    %v8780 = vadd.f32 %v8757, %v8779
    %8781 = vdwg.mxu0
    %v8782 = vld [vmem:[%s51] sm:$0xff]
    %v8783 = vld [vmem:[%s51 + $0x8] sm:$0xff]
    %v8784 = vld [vmem:[%s51 + $0x10] sm:$0xff]
    %v8785 = vld [vmem:[%s51 + $0x18] sm:$0xff]
    %v8786 = vld [vmem:[#allocation31] sm:$0x1]
    %v8788 = vperm.slane %v8786, 0
    %v8791 = vsel %vm579, %v8780, 0
    %8793 = vmatpush.msra.mxu0 0.0
    %8794 = vmatpush.msra.mxu0 0.0
    %8795 = vmatpush.msra.mxu0 0.0
    %8796 = vmatpush.msra.mxu0 0.0
    %8797 = vmatpush.msra.mxu0 0.0
    %8798 = vmatpush.msra.mxu0 0.0
    %8799 = vmatpush.msra.mxu0 0.0
    %8800 = vmatpush.msra.mxu0 0.0
    %8801 = vmatpush.msra.mxu0 0.0
    %8802 = vmatpush.msra.mxu0 0.0
    %8803 = vmatpush.msra.mxu0 0.0
    %8804 = vmatpush.msra.mxu0 0.0
    %8805 = vmatpush.msra.mxu0 %v8785
    %8806 = vmatpush.msra.mxu0 %v8784
    %8807 = vmatpush.msra.mxu0 %v8783
    %8808 = vmatpush.msra.mxu0 %v8782
    %8809 = vmatmul.f32.gmra.mxu0 %v8791
    %v8810 = vpop.f32.mrf.mxu0
    %v8811 = vadd.f32 %v8788, %v8810
    %8812 = vdwg.mxu0
    %vm8813 = vcmp.gt.f32.partialorder %v8811, 0.0
    %v8814 = vmin.f32 %v8811, 0.0
    %v8815 = vmul.f32 %v8814, 1.442695
    %v8816 = vpow.pop %v8815
    %v8817 = vsub.f32 %v8816, 1.0
    %v8818 = vsel %vm8813, %v8811, %v8817
    %v8819 = vld [vmem:[#allocation32] sm:$0xff]
    %v8820 = vld [vmem:[#allocation32 + $0x8] sm:$0xff]
    %v8821 = vld [vmem:[#allocation32 + $0x10] sm:$0xff]
    %v8822 = vld [vmem:[#allocation32 + $0x18] sm:$0xff]
    %v8823 = vld [vmem:[#allocation34] sm:$0x1]
    %v8825 = vperm.slane %v8823, 0
    %v8828 = vsel %vm579, %v8818, 0
    %8830 = vmatpush.msra.mxu0 0.0
    %8831 = vmatpush.msra.mxu0 0.0
    %8832 = vmatpush.msra.mxu0 0.0
    %8833 = vmatpush.msra.mxu0 0.0
    %8834 = vmatpush.msra.mxu0 0.0
    %8835 = vmatpush.msra.mxu0 0.0
    %8836 = vmatpush.msra.mxu0 0.0
    %8837 = vmatpush.msra.mxu0 0.0
    %8838 = vmatpush.msra.mxu0 0.0
    %8839 = vmatpush.msra.mxu0 0.0
    %8840 = vmatpush.msra.mxu0 0.0
    %8841 = vmatpush.msra.mxu0 0.0
    %8842 = vmatpush.msra.mxu0 %v8822
    %8843 = vmatpush.msra.mxu0 %v8821
    %8844 = vmatpush.msra.mxu0 %v8820
    %8845 = vmatpush.msra.mxu0 %v8819
    %8846 = vmatmul.f32.gmra.mxu0 %v8828
    %v8847 = vpop.f32.mrf.mxu0
    %v8848 = vadd.f32 %v8825, %v8847
    %8849 = vdwg.mxu0
    %v8850 = vld [vmem:[#allocation35] sm:$0xff]
    %v8851 = vld [vmem:[#allocation35 + $0x8] sm:$0xff]
    %v8852 = vld [vmem:[#allocation35 + $0x10] sm:$0xff]
    %v8853 = vld [vmem:[#allocation35 + $0x18] sm:$0xff]
    %v8854 = vld [vmem:[%s61] sm:$0x1]
    %v8856 = vperm.slane %v8854, 0
    %8858 = vmatpush.msra.mxu0 0.0
    %8859 = vmatpush.msra.mxu0 0.0
    %8860 = vmatpush.msra.mxu0 0.0
    %8861 = vmatpush.msra.mxu0 0.0
    %8862 = vmatpush.msra.mxu0 0.0
    %8863 = vmatpush.msra.mxu0 0.0
    %8864 = vmatpush.msra.mxu0 0.0
    %8865 = vmatpush.msra.mxu0 0.0
    %8866 = vmatpush.msra.mxu0 0.0
    %8867 = vmatpush.msra.mxu0 0.0
    %8868 = vmatpush.msra.mxu0 0.0
    %8869 = vmatpush.msra.mxu0 0.0
    %8870 = vmatpush.msra.mxu0 %v8853
    %8871 = vmatpush.msra.mxu0 %v8852
    %8872 = vmatpush.msra.mxu0 %v8851
    %8873 = vmatpush.msra.mxu0 %v8850
    %8874 = vmatmul.f32.gmra.mxu0 %v8791
    %v8875 = vpop.f32.mrf.mxu0
    %v8876 = vadd.f32 %v8856, %v8875
    %8877 = vdwg.mxu0
    %v8878 = vsub.f32 0.0, %v8876
    %v8879 = vmul.f32 %v8878, 1.442695
    %v8880 = vpow.pop %v8879
    %v8881 = vadd.f32 %v8880, 1.0
    %v8882 = vrcp.pop %v8881
    %v8883 = vmul.f32 %v8882, %v8848
    %v8884 = vsub.f32 1.0, %v8882
    %v8886 = vmul.f32 %v8884, %v7577
    %v8887 = vadd.f32 %v8883, %v8886
    %v8888 = vld [vmem:[%s63] sm:$0x1]
    %v8889 = vld [vmem:[%s65] sm:$0x1]
    %vm8890 = vcmask 254976
    %v8891 = vsel %vm8890, %v8887, 0.0
    %8892 = vadd.xlane.f32.xlu0 %v8891
    %v8893 = vpop.xlane.xlu0 %8892
    %v8894 = vmul.f32 %v8893, %v2132
    %v8895 = vsub.f32 %v8887, %v8894
    %v8896 = vmul.f32 %v8895, %v8895
    %v8897 = vsel %vm8890, %v8896, 0.0
    %8898 = vadd.xlane.f32.xlu0 %v8897
    %v8899 = vpop.xlane.xlu0 %8898
    %v8900 = vmul.f32 %v8899, %v2132
    %v8901 = vadd.f32 %v8900, 1e-05
    %v8902 = vrsqrt.pop %v8901
    %v8903 = vmul.f32 %v8902, %v8901
    %v8904 = vmul.f32 %v8903, %v8902
    %v8905 = vmul.f32 0.5, %v8904
    %v8906 = vsub.f32 1.5, %v8905
    %v8907 = vmul.f32 %v8902, %v8906
    %vm8908 = vweird.f32 %v8901
    %vm8909 = vweird.f32 %v8902
    %vm8910 = vmor %vm8908, %vm8909
    %v8911 = vsel %vm8910, %v8902, %v8907
    %v8912 = vmul.f32 %v8895, %v8911
    %v8914 = vperm.slane %v8888, 0
    %v8916 = vmul.f32 %v8912, %v8914
    %v8918 = vperm.slane %v8889, 0
    %v8920 = vadd.f32 %v8916, %v8918
    %v8921 = vld [vmem:[#allocation37] sm:$0xff]
    %v8922 = vld [vmem:[#allocation37 + $0x8] sm:$0xff]
    %v8923 = vld [vmem:[#allocation37 + $0x10] sm:$0xff]
    %v8924 = vld [vmem:[#allocation37 + $0x18] sm:$0xff]
    %v8925 = vld [vmem:[%s69] sm:$0x1]
    %v8927 = vperm.slane %v8925, 0
    %v8930 = vsel %vm579, %v8920, 0
    %8932 = vmatpush.msra.mxu0 0.0
    %8933 = vmatpush.msra.mxu0 0.0
    %8934 = vmatpush.msra.mxu0 0.0
    %8935 = vmatpush.msra.mxu0 0.0
    %8936 = vmatpush.msra.mxu0 0.0
    %8937 = vmatpush.msra.mxu0 0.0
    %8938 = vmatpush.msra.mxu0 0.0
    %8939 = vmatpush.msra.mxu0 0.0
    %8940 = vmatpush.msra.mxu0 0.0
    %8941 = vmatpush.msra.mxu0 0.0
    %8942 = vmatpush.msra.mxu0 0.0
    %8943 = vmatpush.msra.mxu0 0.0
    %8944 = vmatpush.msra.mxu0 %v8924
    %8945 = vmatpush.msra.mxu0 %v8923
    %8946 = vmatpush.msra.mxu0 %v8922
    %8947 = vmatpush.msra.mxu0 %v8921
    %8948 = vmatmul.f32.gmra.mxu0 %v8930
    %v8949 = vpop.f32.mrf.mxu0
    %v8950 = vadd.f32 %v8927, %v8949
    %8951 = vdwg.mxu0
    %8952 = vst [vmem:[#allocation38] sm:$0x3] %v8950
    // Predicated region
    $region234: #{tpu_custom_call.1} parent=1 // pred_check
      _
    $region235: #{tpu_custom_call.1} parent=1 // pred_check_branch
      %8954 = sbr.rel (0) target = $region237
    $region236: #{tpu_custom_call.1} parent=1 // pred_region
      %8956 = vsyncadd [#allocation4], 0
      %s8958 = sshll.u32 [#allocation38], 4
      %s8959 = int_to_ptr.vmem [resolvable:$true] %s8958
      %s8960 = sshll.u32 %s71, 4
      %s8961 = int_to_ptr.hbm [resolvable:$true] %s8960
      %8963 = dma.vmem_to_hbm [thread:$0]  %s8959, 32, %s8961, [#allocation4]
    $region237: #{tpu_custom_call.1} parent=1 // pred_fallthru
      _
    // Predicated region
    $region238: #{tpu_custom_call.1} parent=1 // pred_check
      _
    $region239: #{tpu_custom_call.1} parent=1 // pred_check_branch
      %8965 = sbr.rel (0) target = $region241
    $region240: #{tpu_custom_call.1} parent=1 // pred_region
      %8967 = dma.done [#allocation4], 32
    $region241: #{tpu_custom_call.1} parent=1 // pred_fallthru
      _
    %8968 = vsyncpa [#allocation3], 1
    %8969 = vsyncpa [#allocation6], 1
    %8970 = vsyncpa [#allocation9], 1
    %8971 = vsyncpa [#allocation12], 1
    %8972 = vsyncpa [#allocation15], 1
    %8973 = vsyncpa [#allocation18], 1
    %8974 = vsyncpa [#allocation21], 1
    %8975 = vsyncpa [#allocation24], 1
    %8976 = vsyncpa [#allocation27], 1
    %8977 = vsyncpa [#allocation30], 1
    %8978 = vsyncpa [#allocation33], 1
    %8979 = vsyncpa [#allocation36], 1
    %8980 = vsyncpa [#allocation4], 1

</llo_original>
